<compile_context>
chip_gen: v5e
topology: v5e:2x2
jax: 0.10.0
libtpu: 0.0.40
codegen_flags: <defaults>
</compile_context>

<pallas_src>
import functools

import jax
import jax.numpy as jnp
from jax.experimental import pallas as pl
from jax.experimental.pallas import tpu as pltpu


# --------------------------------------------------------------------- fused GEMM+BN+ReLU

def _gemm_bn_relu_kernel(x_ref, w_ref, g_ref, be_ref, y_ref,
                         mu_ref, s2_ref, m2_ref,
                         *, n_sub, n_tiles, tm, te, m_tot, inv_m):
    """Per grid step: Y[rows] = X_tile @ W[sub] (bf16 in, f32 MXU acc), stored bf16 into
    the resident Y block; per-channel batch stats are accumulated incrementally while the
    GEMM result is still in vregs.  Last (sequential) step: finalize mean/var, then one
    normalize+ReLU sweep over the resident Y."""
    s = pl.program_id(0)
    i = pl.program_id(1)
    step = s * n_tiles + i
    n_steps = n_sub * n_tiles

    @pl.when(step == 0)
    def _():
        mu_ref[...] = jnp.zeros_like(mu_ref)
        s2_ref[...] = jnp.zeros_like(s2_ref)
        m2_ref[...] = jnp.zeros_like(m2_ref)

    # GEMM.  No bias: it is mathematically cancelled by the BN mean subtraction.
    y = jnp.dot(x_ref[...], w_ref[0], preferred_element_type=jnp.float32)   # (tm, cpad) f32
    row = pl.multiple_of(step * tm, tm)
    y_ref[pl.ds(row, tm), :] = y.astype(y_ref.dtype)

    # Incremental per-channel stats (equal-sized tiles -> pooled mean / M2 combine).
    mu_t = jnp.sum(y, axis=0, keepdims=True) * (1.0 / tm)                   # tile mean
    d = y - mu_t
    mu_ref[...] += mu_t                                                     # sum of tile means
    s2_ref[...] += mu_t * mu_t                                              # sum of tile means^2
    m2_ref[...] += jnp.sum(d * d, axis=0, keepdims=True)                    # within-tile M2

    # Epilogue on the last sequential grid step.
    @pl.when(step == n_steps - 1)
    def _():
        mean = mu_ref[...] * (1.0 / n_steps)
        between = jnp.maximum(s2_ref[...] * (1.0 / n_steps) - mean * mean, 0.0)
        var = m2_ref[...] * inv_m + between                                 # biased variance
        scale = g_ref[...] * jax.lax.rsqrt(var + 1e-5)
        shift = be_ref[...] - mean * scale

        n_chunks = m_tot // te

        @pl.loop(0, n_chunks, unroll=(n_chunks <= 8))
        def _(c):
            r = pl.multiple_of(c * te, te)
            v = y_ref[pl.ds(r, te), :].astype(jnp.float32) * scale + shift
            y_ref[pl.ds(r, te), :] = jnp.maximum(v, 0.0).astype(y_ref.dtype)


def _pick_tile(m, cap):
    t = min(m, cap)
    while m % t:
        t //= 2
    assert t >= 16 and m % t == 0, (m, cap)    # bf16 rows pack 16 per sublane tile
    return t


def fused_bn_relu_gemm(x_mat, w_sub, gamma, beta):
    """x_mat: (n_sub*m_s, K); w_sub: (n_sub, K, cout).
    Returns ReLU(BatchNorm(X @ W[sub])) as (n_sub*m_s, cpad) bf16 (padded lanes are 0)."""
    m_tot, k = x_mat.shape
    n_sub, _, cout = w_sub.shape
    m_s = m_tot // n_sub
    cpad = max(128, ((cout + 127) // 128) * 128)           # lane-dense stores

    tm = _pick_tile(m_s, 512)                              # GEMM row tile
    n_tiles = m_s // tm
    te = _pick_tile(m_tot, 512)                            # epilogue apply-chunk rows

    x_bf = x_mat.astype(jnp.bfloat16)
    w_bf = jnp.pad(w_sub, ((0, 0), (0, 0), (0, cpad - cout))).astype(jnp.bfloat16)
    g_p = jnp.pad(gamma.astype(jnp.float32).reshape(1, cout), ((0, 0), (0, cpad - cout)))
    be_p = jnp.pad(beta.astype(jnp.float32).reshape(1, cout), ((0, 0), (0, cpad - cout)))

    kern = functools.partial(
        _gemm_bn_relu_kernel, n_sub=n_sub, n_tiles=n_tiles, tm=tm, te=te,
        m_tot=m_tot, inv_m=1.0 / m_tot)

    # VMEM budget: resident bf16 Y + double-buffered X/W tiles + small params/stats.
    y_bytes = m_tot * cpad * 2
    est = y_bytes + 2 * (tm * k * 2) + 2 * (k * cpad * 2) + 10 * cpad * 4
    # TODO(synk): streaming (non-resident-Y) fallback for batches that overflow v7x's 64 MiB VMEM.
    assert y_bytes <= 40 * (1 << 20), "resident-Y fused BN path exceeds the v7x VMEM budget"
    vmem_limit = min(64 << 20, max(16 << 20, 2 * est))

    flops = 2 * m_tot * k * cpad + 8 * m_tot * cpad
    bytes_accessed = m_tot * k * 2 + n_sub * k * cpad * 2 + y_bytes + 2 * cpad * 4

    y = pl.pallas_call(
        kern,
        out_shape=jax.ShapeDtypeStruct((m_tot, cpad), jnp.bfloat16),
        grid_spec=pltpu.PrefetchScalarGridSpec(
            num_scalar_prefetch=0,
            grid=(n_sub, n_tiles),
            in_specs=[
                pl.BlockSpec((tm, k), lambda s, i: (s * n_tiles + i, 0)),
                pl.BlockSpec((1, k, cpad), lambda s, i: (s, 0, 0)),
                pl.BlockSpec((1, cpad), lambda s, i: (0, 0)),
                pl.BlockSpec((1, cpad), lambda s, i: (0, 0)),
            ],
            out_specs=pl.BlockSpec((m_tot, cpad), lambda s, i: (0, 0)),   # resident Y
            scratch_shapes=[
                pltpu.VMEM((1, cpad), jnp.float32),    # sum of tile means
                pltpu.VMEM((1, cpad), jnp.float32),    # sum of tile means^2
                pltpu.VMEM((1, cpad), jnp.float32),    # sum of within-tile M2
            ],
        ),
        compiler_params=pltpu.CompilerParams(
            # MUST stay sequential: the resident-Y + last-step BN epilogue relies on it.
            dimension_semantics=("arbitrary", "arbitrary"),
            vmem_limit_bytes=vmem_limit),
        cost_estimate=pl.CostEstimate(flops=flops, transcendentals=cpad,
                                      bytes_accessed=bytes_accessed),
    )(x_bf, w_bf, g_p, be_p)
    return y


# --------------------------------------------------------------------- lane-dense tanh layer

def _final_tanh_kernel(w_ref, b_ref, x_ref, o_ref):
    """Cout=1 last layer: per parity s, (1,K) @ (K, M_tile) on the MXU so the output
    *pixels* map to lanes; tanh and stores touch only real data (no 1->128 lane pad)."""
    bias = b_ref[0, 0]
    rows = [jnp.dot(w_ref[s], x_ref[s], preferred_element_type=jnp.float32)
            for s in range(4)]                                    # 4 x (1, tmL)
    y = jnp.concatenate(rows, axis=0) + bias                      # (4, tmL)
    o_ref[...] = jnp.tanh(y).astype(o_ref.dtype)


_TAPS = ((3, 1), (2, 0))    # kernel taps (di=0, di=1) for output parity a=0 / a=1


def _deconv_stride2_tanh_c1(x, w, b):
    """ConvTranspose2d(Cin -> 1, k=4, s=2, p=1) + Tanh (no BN), transposed-GEMM form."""
    n, h, wd, cin = x.shape
    assert w.shape[1] == 1
    m = n * h * wd
    k = 4 * cin
    xp = jnp.pad(x, ((0, 0), (1, 1), (1, 1), (0, 0)))

    x_subs, w_subs = [], []
    for a in range(2):
        for bb in range(2):
            p = jnp.stack(
                [xp[:, a + di:a + di + h, bb + dj:bb + dj + wd, :]
                 for di in range(2) for dj in range(2)], axis=3)          # (N, H, W, 4, Cin)
            x_subs.append(p.reshape(m, k).T)                              # (K, M)
            w_subs.append(jnp.stack(
                [w[:, 0, _TAPS[a][di], _TAPS[bb][dj]]
                 for di in range(2) for dj in range(2)], axis=0).reshape(k))
    x_t = jnp.stack(x_subs, axis=0).astype(jnp.bfloat16)                  # (4, K, M)
    w_t = jnp.stack(w_subs, axis=0).reshape(4, 1, k).astype(jnp.bfloat16)  # (4, 1, K)
    b_s = b.astype(jnp.float32).reshape(1, 1)

    assert m % 128 == 0, "output-pixel count must be lane aligned"
    tmL = _pick_tile(m, 2048)
    assert tmL % 128 == 0

    y = pl.pallas_call(
        _final_tanh_kernel,
        out_shape=jax.ShapeDtypeStruct((4, m), jnp.bfloat16),
        grid=(m // tmL,),
        in_specs=[
            pl.BlockSpec((4, 1, k), lambda j: (0, 0, 0)),
            pl.BlockSpec(memory_space=pltpu.MemorySpace.SMEM),            # bias scalar
            pl.BlockSpec((4, k, tmL), lambda j: (0, 0, j)),
        ],
        out_specs=pl.BlockSpec((4, tmL), lambda j: (0, j)),
        compiler_params=pltpu.CompilerParams(dimension_semantics=("parallel",)),
        cost_estimate=pl.CostEstimate(flops=2 * 4 * k * m, transcendentals=4 * m,
                                      bytes_accessed=4 * k * m * 2 + 4 * m * 2 + 4 * k * 2),
    )(w_t, b_s, x_t)

    # un-interleave parities: row a*2+b, column (n, mh, ml) -> (n, 2*mh+a, 2*ml+b)
    y = y.reshape(2, 2, n, h, wd)
    y = jnp.transpose(y, (2, 3, 0, 4, 1)).reshape(n, 2 * h, 2 * wd, 1)
    return y


# --------------------------------------------------------------------- layer wrappers

def _deconv_stride1_bn_relu(x, w, gamma, beta, *, pad):
    """ConvTranspose2d(stride=1), PyTorch weight layout (Cin, Cout, k, k) + BN + ReLU."""
    n, h, wd, cin = x.shape
    cout, k = w.shape[1], w.shape[2]
    pp = k - 1 - pad
    xp = jnp.pad(x, ((0, 0), (pp, pp), (pp, pp), (0, 0)))
    oh = h - 1 - 2 * pad + k
    ow = wd - 1 - 2 * pad + k
    patches = jnp.stack(
        [xp[:, kh:kh + oh, kw:kw + ow, :] for kh in range(k) for kw in range(k)], axis=3)
    x_mat = patches.reshape(n * oh * ow, k * k * cin)
    # transposed conv (stride 1) == conv over the padded input with a flipped kernel
    w_mat = jnp.transpose(w[:, :, ::-1, ::-1], (2, 3, 0, 1)).reshape(1, k * k * cin, cout)
    y = fused_bn_relu_gemm(x_mat, w_mat, gamma, beta)[:, :cout]
    return y.reshape(n, oh, ow, cout)


def _deconv_stride2_bn_relu(x, w, gamma, beta):
    """ConvTranspose2d(k=4, s=2, p=1) + BN + ReLU via sub-pixel decomposition: per output
    parity (a, b), a 2x2 conv of the 1-padded input — no zero-dilation, 4x fewer MACs."""
    n, h, wd, cin = x.shape
    cout = w.shape[1]
    xp = jnp.pad(x, ((0, 0), (1, 1), (1, 1), (0, 0)))

    subs = []
    for a in range(2):
        for bb in range(2):
            p = jnp.stack(
                [xp[:, a + di:a + di + h, bb + dj:bb + dj + wd, :]
                 for di in range(2) for dj in range(2)], axis=3)          # (N, H, W, 4, Cin)
            subs.append(p.reshape(n * h * wd, 4 * cin))
    x_mat = jnp.concatenate(subs, axis=0)                                  # (4*N*H*W, 4*Cin)

    w_sub = jnp.stack(
        [jnp.stack([w[:, :, _TAPS[a][di], _TAPS[bb][dj]]
                    for di in range(2) for dj in range(2)], axis=0)        # (4, Cin, Cout)
         for a in range(2) for bb in range(2)], axis=0)                    # (4, 4, Cin, Cout)
    w_sub = w_sub.reshape(4, 4 * cin, cout)

    # TODO(synk): merge the 4 parity GEMMs into a single 9*Cin-wide (pixel-shuffle) GEMM for
    # the Cin<=64 layers (~1.78x fewer MXU ops, lane-dense 4*Cout output).
    y = fused_bn_relu_gemm(x_mat, w_sub, gamma, beta)[:, :cout]

    y = y.reshape(2, 2, n, h, wd, cout)
    y = jnp.transpose(y, (2, 3, 0, 4, 1, 5)).reshape(n, 2 * h, 2 * wd, cout)
    return y


def generator_forward(z_nchw, params):
    """z: (N, z_dim, 1, 1) NCHW -> (N, 1, 64, 64) NCHW, matching the PyTorch Generator
    forward (training-mode BatchNorm with batch statistics)."""
    x = jnp.transpose(z_nchw, (0, 2, 3, 1))   # NCHW -> NHWC
    (w1, _b1, g1, be1), (w2, _b2, g2, be2), (w3, _b3, g3, be3), (w4, _b4, g4, be4), (w5, b5) = params
    # Conv biases of the BN layers are mathematically cancelled by the BN mean subtraction.
    x = _deconv_stride1_bn_relu(x, w1, g1, be1, pad=0)            # 1  -> 4
    x = _deconv_stride2_bn_relu(x, w2, g2, be2)                   # 4  -> 8
    x = _deconv_stride2_bn_relu(x, w3, g3, be3)                   # 8  -> 16
    x = _deconv_stride2_bn_relu(x, w4, g4, be4)                   # 16 -> 32
    x = _deconv_stride2_tanh_c1(x, w5, b5)                        # 32 -> 64
    return jnp.transpose(x, (0, 3, 1, 2)).astype(jnp.float32)     # NHWC -> NCHW


# --------------------------------------------------------------------- init / main

def init_params(key, z_dim, image_size):
    chans = [z_dim, image_size * 8, image_size * 4, image_size * 2, image_size, 1]
    params = []
    for li in range(5):
        key, kw, kb = jax.random.split(key, 3)
        cin, cout = chans[li], chans[li + 1]
        w = 0.02 * jax.random.normal(kw, (cin, cout, 4, 4), jnp.float32)  # PyTorch layout
        b = 0.01 * jax.random.normal(kb, (cout,), jnp.float32)
        if li < 4:
            gamma = jnp.ones((cout,), jnp.float32)   # BatchNorm2d default init
            beta = jnp.zeros((cout,), jnp.float32)
            params.append((w, b, gamma, beta))
        else:
            params.append((w, b))
    return tuple(params)


if __name__ == "__main__":
    batch, z_dim, image_size = 2, 8, 16   # small shapes; spatial path is 1->4->8->16->32->64
    key = jax.random.PRNGKey(0)
    key, kz = jax.random.split(key)
    z = jax.random.normal(kz, (batch, z_dim, 1, 1), jnp.float32)

    params = init_params(key, z_dim, image_size)

    fwd = jax.jit(generator_forward)
    out = fwd(z, params)
    jax.block_until_ready(out)

    assert out.shape == (batch, 1, 64, 64), out.shape
    assert bool(jnp.all(jnp.isfinite(out)))
    print("KERNEL_OK")
</pallas_src>

<mosaic_0001>
module attributes {stable_mosaic.version = 11 : i64} {
  func.func @_gemm_bn_relu_kernel(%arg0: i32, %arg1: i32, %arg2: memref<32x128xbf16, #tpu.memory_space<vmem>>, %arg3: memref<1x128x128xbf16, #tpu.memory_space<vmem>>, %arg4: memref<1x128xf32, #tpu.memory_space<vmem>>, %arg5: memref<1x128xf32, #tpu.memory_space<vmem>>, %arg6: memref<32x128xbf16, #tpu.memory_space<vmem>>, %arg7: memref<1x128xf32, #tpu.memory_space<vmem>>, %arg8: memref<1x128xf32, #tpu.memory_space<vmem>>, %arg9: memref<1x128xf32, #tpu.memory_space<vmem>>) attributes {dimension_semantics = [#tpu.dimension_semantics<arbitrary>, #tpu.dimension_semantics<arbitrary>], iteration_bounds = array<i64: 1, 1>, scalar_prefetch = 0 : i64, scratch_operands = 3 : i64, tpu.core_type = #tpu.core_type<tc>, window_params = [{transform_indices = @transform_0, window_bounds = array<i64: 32, 128>}, {transform_indices = @transform_1, window_bounds = array<i64: 1, 128, 128>}, {pipeline_mode = #tpu.pipeline_mode<synchronous>, transform_indices = @transform_2, window_bounds = array<i64: 1, 128>}, {pipeline_mode = #tpu.pipeline_mode<synchronous>, transform_indices = @transform_3, window_bounds = array<i64: 1, 128>}, {pipeline_mode = #tpu.pipeline_mode<synchronous>, transform_indices = @transform_4, window_bounds = array<i64: 32, 128>}]} {
    %c1_i32 = arith.constant 1 : i32
    %0 = arith.muli %arg0, %c1_i32 : i32
    %1 = arith.addi %0, %arg1 : i32
    %c0_i32 = arith.constant 0 : i32
    %2 = arith.cmpi eq, %1, %c0_i32 : i32
    %3 = arith.extui %2 : i1 to i32
    %c0_i32_0 = arith.constant 0 : i32
    %4 = arith.cmpi ne, %3, %c0_i32_0 : i32
    scf.if %4 {
      %cst_23 = arith.constant 0.000000e+00 : f32
      %36 = vector.broadcast %cst_23 : f32 to vector<1x128xf32>
      %c0_24 = arith.constant 0 : index
      %c0_25 = arith.constant 0 : index
      %37 = vector.load %arg7[%c0_24, %c0_25] : memref<1x128xf32, #tpu.memory_space<vmem>>, vector<1x128xf32>
      tpu.vector_store %arg7[%c0_24, %c0_25], %36 {strides = array<i32>} : memref<1x128xf32, #tpu.memory_space<vmem>>, vector<1x128xf32>,
      %cst_26 = arith.constant 0.000000e+00 : f32
      %38 = vector.broadcast %cst_26 : f32 to vector<1x128xf32>
      %c0_27 = arith.constant 0 : index
      %c0_28 = arith.constant 0 : index
      %39 = vector.load %arg8[%c0_27, %c0_28] : memref<1x128xf32, #tpu.memory_space<vmem>>, vector<1x128xf32>
      tpu.vector_store %arg8[%c0_27, %c0_28], %38 {strides = array<i32>} : memref<1x128xf32, #tpu.memory_space<vmem>>, vector<1x128xf32>,
      %cst_29 = arith.constant 0.000000e+00 : f32
      %40 = vector.broadcast %cst_29 : f32 to vector<1x128xf32>
      %c0_30 = arith.constant 0 : index
      %c0_31 = arith.constant 0 : index
      %41 = vector.load %arg9[%c0_30, %c0_31] : memref<1x128xf32, #tpu.memory_space<vmem>>, vector<1x128xf32>
      tpu.vector_store %arg9[%c0_30, %c0_31], %40 {strides = array<i32>} : memref<1x128xf32, #tpu.memory_space<vmem>>, vector<1x128xf32>,
    } else {
    }
    %c0 = arith.constant 0 : index
    %c0_1 = arith.constant 0 : index
    %5 = vector.load %arg2[%c0, %c0_1] : memref<32x128xbf16, #tpu.memory_space<vmem>>, vector<32x128xbf16>
    %c0_2 = arith.constant 0 : index
    %c0_3 = arith.constant 0 : index
    %c0_4 = arith.constant 0 : index
    %6 = vector.load %arg3[%c0_2, %c0_3, %c0_4] : memref<1x128x128xbf16, #tpu.memory_space<vmem>>, vector<1x128x128xbf16>
    %7 = vector.shape_cast %6 : vector<1x128x128xbf16> to vector<128x128xbf16>
    %cst = arith.constant dense<0.000000e+00> : vector<32x128xf32>
    %8 = tpu.matmul %5, %7, %cst {dimension_numbers = #tpu.dot_dimension_numbers<[1], [0], [0], [1], [0, 0, 1, 1], [], []>} : vector<32x128xbf16>, vector<128x128xbf16>, vector<32x128xf32> -> vector<32x128xf32>
    %c32_i32 = arith.constant 32 : i32
    %9 = arith.muli %1, %c32_i32 : i32
    %10 = tpu.assume_multiple %9, 32 : i32
    %11 = arith.truncf %8 : vector<32x128xf32> to vector<32x128xbf16>
    %12 = arith.index_cast %10 : i32 to index
    %c0_5 = arith.constant 0 : index
    %13 = vector.load %arg6[%12, %c0_5] : memref<32x128xbf16, #tpu.memory_space<vmem>>, vector<32x128xbf16>
    tpu.vector_store %arg6[%12, %c0_5], %11 {strides = array<i32>} : memref<32x128xbf16, #tpu.memory_space<vmem>>, vector<32x128xbf16>,
    %cst_6 = arith.constant dense<0.000000e+00> : vector<128xf32>
    %14 = vector.multi_reduction <add>, %8, %cst_6 [0] : vector<32x128xf32> to vector<128xf32>
    %15 = vector.shape_cast %14 : vector<128xf32> to vector<1x128xf32>
    %cst_7 = arith.constant 3.125000e-02 : f32
    %16 = vector.broadcast %cst_7 : f32 to vector<1x128xf32>
    %17 = arith.mulf %15, %16 : vector<1x128xf32>
    %18 = vector.broadcast %17 : vector<1x128xf32> to vector<32x128xf32>
    %19 = arith.subf %8, %18 : vector<32x128xf32>
    %c0_8 = arith.constant 0 : index
    %c0_9 = arith.constant 0 : index
    %20 = vector.load %arg7[%c0_8, %c0_9] : memref<1x128xf32, #tpu.memory_space<vmem>>, vector<1x128xf32>
    %21 = arith.addf %20, %17 : vector<1x128xf32>
    %c0_10 = arith.constant 0 : index
    %c0_11 = arith.constant 0 : index
    %22 = vector.load %arg7[%c0_10, %c0_11] : memref<1x128xf32, #tpu.memory_space<vmem>>, vector<1x128xf32>
    tpu.vector_store %arg7[%c0_10, %c0_11], %21 {strides = array<i32>} : memref<1x128xf32, #tpu.memory_space<vmem>>, vector<1x128xf32>,
    %c0_12 = arith.constant 0 : index
    %c0_13 = arith.constant 0 : index
    %23 = vector.load %arg8[%c0_12, %c0_13] : memref<1x128xf32, #tpu.memory_space<vmem>>, vector<1x128xf32>
    %24 = arith.mulf %17, %17 : vector<1x128xf32>
    %25 = arith.addf %23, %24 : vector<1x128xf32>
    %c0_14 = arith.constant 0 : index
    %c0_15 = arith.constant 0 : index
    %26 = vector.load %arg8[%c0_14, %c0_15] : memref<1x128xf32, #tpu.memory_space<vmem>>, vector<1x128xf32>
    tpu.vector_store %arg8[%c0_14, %c0_15], %25 {strides = array<i32>} : memref<1x128xf32, #tpu.memory_space<vmem>>, vector<1x128xf32>,
    %c0_16 = arith.constant 0 : index
    %c0_17 = arith.constant 0 : index
    %27 = vector.load %arg9[%c0_16, %c0_17] : memref<1x128xf32, #tpu.memory_space<vmem>>, vector<1x128xf32>
    %28 = arith.mulf %19, %19 : vector<32x128xf32>
    %cst_18 = arith.constant dense<0.000000e+00> : vector<128xf32>
    %29 = vector.multi_reduction <add>, %28, %cst_18 [0] : vector<32x128xf32> to vector<128xf32>
    %30 = vector.shape_cast %29 : vector<128xf32> to vector<1x128xf32>
    %31 = arith.addf %27, %30 : vector<1x128xf32>
    %c0_19 = arith.constant 0 : index
    %c0_20 = arith.constant 0 : index
    %32 = vector.load %arg9[%c0_19, %c0_20] : memref<1x128xf32, #tpu.memory_space<vmem>>, vector<1x128xf32>
    tpu.vector_store %arg9[%c0_19, %c0_20], %31 {strides = array<i32>} : memref<1x128xf32, #tpu.memory_space<vmem>>, vector<1x128xf32>,
    %c0_i32_21 = arith.constant 0 : i32
    %33 = arith.cmpi eq, %1, %c0_i32_21 : i32
    %34 = arith.extui %33 : i1 to i32
    %c0_i32_22 = arith.constant 0 : i32
    %35 = arith.cmpi ne, %34, %c0_i32_22 : i32
    scf.if %35 {
      %c0_23 = arith.constant 0 : index
      %c0_24 = arith.constant 0 : index
      %36 = vector.load %arg7[%c0_23, %c0_24] : memref<1x128xf32, #tpu.memory_space<vmem>>, vector<1x128xf32>
      %cst_25 = arith.constant 1.000000e+00 : f32
      %37 = vector.broadcast %cst_25 : f32 to vector<1x128xf32>
      %38 = arith.mulf %36, %37 : vector<1x128xf32>
      %c0_26 = arith.constant 0 : index
      %c0_27 = arith.constant 0 : index
      %39 = vector.load %arg8[%c0_26, %c0_27] : memref<1x128xf32, #tpu.memory_space<vmem>>, vector<1x128xf32>
      %cst_28 = arith.constant 1.000000e+00 : f32
      %40 = vector.broadcast %cst_28 : f32 to vector<1x128xf32>
      %41 = arith.mulf %39, %40 : vector<1x128xf32>
      %42 = arith.mulf %38, %38 : vector<1x128xf32>
      %43 = arith.subf %41, %42 : vector<1x128xf32>
      %cst_29 = arith.constant 0.000000e+00 : f32
      %44 = vector.broadcast %cst_29 : f32 to vector<1x128xf32>
      %45 = arith.maximumf %43, %44 : vector<1x128xf32>
      %c0_30 = arith.constant 0 : index
      %c0_31 = arith.constant 0 : index
      %46 = vector.load %arg9[%c0_30, %c0_31] : memref<1x128xf32, #tpu.memory_space<vmem>>, vector<1x128xf32>
      %cst_32 = arith.constant 3.125000e-02 : f32
      %47 = vector.broadcast %cst_32 : f32 to vector<1x128xf32>
      %48 = arith.mulf %46, %47 : vector<1x128xf32>
      %49 = arith.addf %48, %45 : vector<1x128xf32>
      %c0_33 = arith.constant 0 : index
      %c0_34 = arith.constant 0 : index
      %50 = vector.load %arg4[%c0_33, %c0_34] : memref<1x128xf32, #tpu.memory_space<vmem>>, vector<1x128xf32>
      %cst_35 = arith.constant 9.99999974E-6 : f32
      %51 = vector.broadcast %cst_35 : f32 to vector<1x128xf32>
      %52 = arith.addf %49, %51 : vector<1x128xf32>
      %53 = math.rsqrt %52 : vector<1x128xf32>
      %54 = arith.mulf %50, %53 : vector<1x128xf32>
      %c0_36 = arith.constant 0 : index
      %c0_37 = arith.constant 0 : index
      %55 = vector.load %arg5[%c0_36, %c0_37] : memref<1x128xf32, #tpu.memory_space<vmem>>, vector<1x128xf32>
      %56 = arith.mulf %38, %54 : vector<1x128xf32>
      %57 = arith.subf %55, %56 : vector<1x128xf32>
      %c0_i32_38 = arith.constant 0 : i32
      %c1_i32_39 = arith.constant 1 : i32
      %58 = arith.muli %c0_i32_38, %c1_i32_39 : i32
      %c0_i32_40 = arith.constant 0 : i32
      %59 = arith.addi %c0_i32_40, %58 : i32
      %c32_i32_41 = arith.constant 32 : i32
      %60 = arith.muli %59, %c32_i32_41 : i32
      %61 = tpu.assume_multiple %60, 32 : i32
      %62 = arith.index_cast %61 : i32 to index
      %c0_42 = arith.constant 0 : index
      %63 = vector.load %arg6[%62, %c0_42] : memref<32x128xbf16, #tpu.memory_space<vmem>>, vector<32x128xbf16>
      %64 = arith.extf %63 : vector<32x128xbf16> to vector<32x128xf32>
      %65 = vector.broadcast %54 : vector<1x128xf32> to vector<32x128xf32>
      %66 = arith.mulf %64, %65 : vector<32x128xf32>
      %67 = vector.broadcast %57 : vector<1x128xf32> to vector<32x128xf32>
      %68 = arith.addf %66, %67 : vector<32x128xf32>
      %cst_43 = arith.constant 0.000000e+00 : f32
      %69 = vector.broadcast %cst_43 : f32 to vector<32x128xf32>
      %70 = arith.maximumf %68, %69 : vector<32x128xf32>
      %71 = arith.truncf %70 : vector<32x128xf32> to vector<32x128xbf16>
      %72 = arith.index_cast %61 : i32 to index
      %c0_44 = arith.constant 0 : index
      %73 = vector.load %arg6[%72, %c0_44] : memref<32x128xbf16, #tpu.memory_space<vmem>>, vector<32x128xbf16>
      tpu.vector_store %arg6[%72, %c0_44], %71 {strides = array<i32>} : memref<32x128xbf16, #tpu.memory_space<vmem>>, vector<32x128xbf16>,
      %c1_i32_45 = arith.constant 1 : i32
    } else {
    }
    return
  }
  func.func @transform_0(%arg0: i32, %arg1: i32) -> (i32, i32) {
    %c1_i32 = arith.constant 1 : i32
    %0 = arith.muli %arg0, %c1_i32 : i32
    %1 = arith.addi %0, %arg1 : i32
    %c0_i32 = arith.constant 0 : i32
    %c0_i32_0 = arith.constant 0 : i32
    return %1, %c0_i32 : i32, i32
  }
  func.func @transform_1(%arg0: i32, %arg1: i32) -> (i32, i32, i32) {
    %c0_i32 = arith.constant 0 : i32
    %c0_i32_0 = arith.constant 0 : i32
    %c0_i32_1 = arith.constant 0 : i32
    return %arg0, %c0_i32, %c0_i32_0 : i32, i32, i32
  }
  func.func @transform_2(%arg0: i32, %arg1: i32) -> (i32, i32) {
    %c0_i32 = arith.constant 0 : i32
    %c0_i32_0 = arith.constant 0 : i32
    %c0_i32_1 = arith.constant 0 : i32
    return %c0_i32, %c0_i32_0 : i32, i32
  }
  func.func @transform_3(%arg0: i32, %arg1: i32) -> (i32, i32) {
    %c0_i32 = arith.constant 0 : i32
    %c0_i32_0 = arith.constant 0 : i32
    %c0_i32_1 = arith.constant 0 : i32
    return %c0_i32, %c0_i32_0 : i32, i32
  }
  func.func @transform_4(%arg0: i32, %arg1: i32) -> (i32, i32) {
    %c0_i32 = arith.constant 0 : i32
    %c0_i32_0 = arith.constant 0 : i32
    %c0_i32_1 = arith.constant 0 : i32
    return %c0_i32, %c0_i32_0 : i32, i32
  }
}

module attributes {stable_mosaic.version = 11 : i64} {
  func.func @_gemm_bn_relu_kernel(%arg0: i32, %arg1: i32, %arg2: memref<32x512xbf16, #tpu.memory_space<vmem>>, %arg3: memref<1x512x128xbf16, #tpu.memory_space<vmem>>, %arg4: memref<1x128xf32, #tpu.memory_space<vmem>>, %arg5: memref<1x128xf32, #tpu.memory_space<vmem>>, %arg6: memref<128x128xbf16, #tpu.memory_space<vmem>>, %arg7: memref<1x128xf32, #tpu.memory_space<vmem>>, %arg8: memref<1x128xf32, #tpu.memory_space<vmem>>, %arg9: memref<1x128xf32, #tpu.memory_space<vmem>>) attributes {dimension_semantics = [#tpu.dimension_semantics<arbitrary>, #tpu.dimension_semantics<arbitrary>], iteration_bounds = array<i64: 4, 1>, scalar_prefetch = 0 : i64, scratch_operands = 3 : i64, tpu.core_type = #tpu.core_type<tc>, window_params = [{transform_indices = @transform_0, window_bounds = array<i64: 32, 512>}, {transform_indices = @transform_1, window_bounds = array<i64: 1, 512, 128>}, {pipeline_mode = #tpu.pipeline_mode<synchronous>, transform_indices = @transform_2, window_bounds = array<i64: 1, 128>}, {pipeline_mode = #tpu.pipeline_mode<synchronous>, transform_indices = @transform_3, window_bounds = array<i64: 1, 128>}, {pipeline_mode = #tpu.pipeline_mode<synchronous>, transform_indices = @transform_4, window_bounds = array<i64: 128, 128>}]} {
    %c1_i32 = arith.constant 1 : i32
    %0 = arith.muli %arg0, %c1_i32 : i32
    %1 = arith.addi %0, %arg1 : i32
    %c0_i32 = arith.constant 0 : i32
    %2 = arith.cmpi eq, %1, %c0_i32 : i32
    %3 = arith.extui %2 : i1 to i32
    %c0_i32_0 = arith.constant 0 : i32
    %4 = arith.cmpi ne, %3, %c0_i32_0 : i32
    scf.if %4 {
      %cst_22 = arith.constant 0.000000e+00 : f32
      %36 = vector.broadcast %cst_22 : f32 to vector<1x128xf32>
      %c0_23 = arith.constant 0 : index
      %c0_24 = arith.constant 0 : index
      %37 = vector.load %arg7[%c0_23, %c0_24] : memref<1x128xf32, #tpu.memory_space<vmem>>, vector<1x128xf32>
      tpu.vector_store %arg7[%c0_23, %c0_24], %36 {strides = array<i32>} : memref<1x128xf32, #tpu.memory_space<vmem>>, vector<1x128xf32>,
      %cst_25 = arith.constant 0.000000e+00 : f32
      %38 = vector.broadcast %cst_25 : f32 to vector<1x128xf32>
      %c0_26 = arith.constant 0 : index
      %c0_27 = arith.constant 0 : index
      %39 = vector.load %arg8[%c0_26, %c0_27] : memref<1x128xf32, #tpu.memory_space<vmem>>, vector<1x128xf32>
      tpu.vector_store %arg8[%c0_26, %c0_27], %38 {strides = array<i32>} : memref<1x128xf32, #tpu.memory_space<vmem>>, vector<1x128xf32>,
      %cst_28 = arith.constant 0.000000e+00 : f32
      %40 = vector.broadcast %cst_28 : f32 to vector<1x128xf32>
      %c0_29 = arith.constant 0 : index
      %c0_30 = arith.constant 0 : index
      %41 = vector.load %arg9[%c0_29, %c0_30] : memref<1x128xf32, #tpu.memory_space<vmem>>, vector<1x128xf32>
      tpu.vector_store %arg9[%c0_29, %c0_30], %40 {strides = array<i32>} : memref<1x128xf32, #tpu.memory_space<vmem>>, vector<1x128xf32>,
    } else {
    }
    %c0 = arith.constant 0 : index
    %c0_1 = arith.constant 0 : index
    %5 = vector.load %arg2[%c0, %c0_1] : memref<32x512xbf16, #tpu.memory_space<vmem>>, vector<32x512xbf16>
    %c0_2 = arith.constant 0 : index
    %c0_3 = arith.constant 0 : index
    %c0_4 = arith.constant 0 : index
    %6 = vector.load %arg3[%c0_2, %c0_3, %c0_4] : memref<1x512x128xbf16, #tpu.memory_space<vmem>>, vector<1x512x128xbf16>
    %7 = vector.shape_cast %6 : vector<1x512x128xbf16> to vector<512x128xbf16>
    %cst = arith.constant dense<0.000000e+00> : vector<32x128xf32>
    %8 = tpu.matmul %5, %7, %cst {dimension_numbers = #tpu.dot_dimension_numbers<[1], [0], [0], [1], [0, 0, 1, 1], [], []>} : vector<32x512xbf16>, vector<512x128xbf16>, vector<32x128xf32> -> vector<32x128xf32>
    %c32_i32 = arith.constant 32 : i32
    %9 = arith.muli %1, %c32_i32 : i32
    %10 = tpu.assume_multiple %9, 32 : i32
    %11 = arith.truncf %8 : vector<32x128xf32> to vector<32x128xbf16>
    %12 = arith.index_cast %10 : i32 to index
    %c0_5 = arith.constant 0 : index
    %13 = vector.load %arg6[%12, %c0_5] : memref<128x128xbf16, #tpu.memory_space<vmem>>, vector<32x128xbf16>
    tpu.vector_store %arg6[%12, %c0_5], %11 {strides = array<i32>} : memref<128x128xbf16, #tpu.memory_space<vmem>>, vector<32x128xbf16>,
    %cst_6 = arith.constant dense<0.000000e+00> : vector<128xf32>
    %14 = vector.multi_reduction <add>, %8, %cst_6 [0] : vector<32x128xf32> to vector<128xf32>
    %15 = vector.shape_cast %14 : vector<128xf32> to vector<1x128xf32>
    %cst_7 = arith.constant 3.125000e-02 : f32
    %16 = vector.broadcast %cst_7 : f32 to vector<1x128xf32>
    %17 = arith.mulf %15, %16 : vector<1x128xf32>
    %18 = vector.broadcast %17 : vector<1x128xf32> to vector<32x128xf32>
    %19 = arith.subf %8, %18 : vector<32x128xf32>
    %c0_8 = arith.constant 0 : index
    %c0_9 = arith.constant 0 : index
    %20 = vector.load %arg7[%c0_8, %c0_9] : memref<1x128xf32, #tpu.memory_space<vmem>>, vector<1x128xf32>
    %21 = arith.addf %20, %17 : vector<1x128xf32>
    %c0_10 = arith.constant 0 : index
    %c0_11 = arith.constant 0 : index
    %22 = vector.load %arg7[%c0_10, %c0_11] : memref<1x128xf32, #tpu.memory_space<vmem>>, vector<1x128xf32>
    tpu.vector_store %arg7[%c0_10, %c0_11], %21 {strides = array<i32>} : memref<1x128xf32, #tpu.memory_space<vmem>>, vector<1x128xf32>,
    %c0_12 = arith.constant 0 : index
    %c0_13 = arith.constant 0 : index
    %23 = vector.load %arg8[%c0_12, %c0_13] : memref<1x128xf32, #tpu.memory_space<vmem>>, vector<1x128xf32>
    %24 = arith.mulf %17, %17 : vector<1x128xf32>
    %25 = arith.addf %23, %24 : vector<1x128xf32>
    %c0_14 = arith.constant 0 : index
    %c0_15 = arith.constant 0 : index
    %26 = vector.load %arg8[%c0_14, %c0_15] : memref<1x128xf32, #tpu.memory_space<vmem>>, vector<1x128xf32>
    tpu.vector_store %arg8[%c0_14, %c0_15], %25 {strides = array<i32>} : memref<1x128xf32, #tpu.memory_space<vmem>>, vector<1x128xf32>,
    %c0_16 = arith.constant 0 : index
    %c0_17 = arith.constant 0 : index
    %27 = vector.load %arg9[%c0_16, %c0_17] : memref<1x128xf32, #tpu.memory_space<vmem>>, vector<1x128xf32>
    %28 = arith.mulf %19, %19 : vector<32x128xf32>
    %cst_18 = arith.constant dense<0.000000e+00> : vector<128xf32>
    %29 = vector.multi_reduction <add>, %28, %cst_18 [0] : vector<32x128xf32> to vector<128xf32>
    %30 = vector.shape_cast %29 : vector<128xf32> to vector<1x128xf32>
    %31 = arith.addf %27, %30 : vector<1x128xf32>
    %c0_19 = arith.constant 0 : index
    %c0_20 = arith.constant 0 : index
    %32 = vector.load %arg9[%c0_19, %c0_20] : memref<1x128xf32, #tpu.memory_space<vmem>>, vector<1x128xf32>
    tpu.vector_store %arg9[%c0_19, %c0_20], %31 {strides = array<i32>} : memref<1x128xf32, #tpu.memory_space<vmem>>, vector<1x128xf32>,
    %c3_i32 = arith.constant 3 : i32
    %33 = arith.cmpi eq, %1, %c3_i32 : i32
    %34 = arith.extui %33 : i1 to i32
    %c0_i32_21 = arith.constant 0 : i32
    %35 = arith.cmpi ne, %34, %c0_i32_21 : i32
    scf.if %35 {
      %c0_22 = arith.constant 0 : index
      %c0_23 = arith.constant 0 : index
      %36 = vector.load %arg7[%c0_22, %c0_23] : memref<1x128xf32, #tpu.memory_space<vmem>>, vector<1x128xf32>
      %cst_24 = arith.constant 2.500000e-01 : f32
      %37 = vector.broadcast %cst_24 : f32 to vector<1x128xf32>
      %38 = arith.mulf %36, %37 : vector<1x128xf32>
      %c0_25 = arith.constant 0 : index
      %c0_26 = arith.constant 0 : index
      %39 = vector.load %arg8[%c0_25, %c0_26] : memref<1x128xf32, #tpu.memory_space<vmem>>, vector<1x128xf32>
      %cst_27 = arith.constant 2.500000e-01 : f32
      %40 = vector.broadcast %cst_27 : f32 to vector<1x128xf32>
      %41 = arith.mulf %39, %40 : vector<1x128xf32>
      %42 = arith.mulf %38, %38 : vector<1x128xf32>
      %43 = arith.subf %41, %42 : vector<1x128xf32>
      %cst_28 = arith.constant 0.000000e+00 : f32
      %44 = vector.broadcast %cst_28 : f32 to vector<1x128xf32>
      %45 = arith.maximumf %43, %44 : vector<1x128xf32>
      %c0_29 = arith.constant 0 : index
      %c0_30 = arith.constant 0 : index
      %46 = vector.load %arg9[%c0_29, %c0_30] : memref<1x128xf32, #tpu.memory_space<vmem>>, vector<1x128xf32>
      %cst_31 = arith.constant 7.812500e-03 : f32
      %47 = vector.broadcast %cst_31 : f32 to vector<1x128xf32>
      %48 = arith.mulf %46, %47 : vector<1x128xf32>
      %49 = arith.addf %48, %45 : vector<1x128xf32>
      %c0_32 = arith.constant 0 : index
      %c0_33 = arith.constant 0 : index
      %50 = vector.load %arg4[%c0_32, %c0_33] : memref<1x128xf32, #tpu.memory_space<vmem>>, vector<1x128xf32>
      %cst_34 = arith.constant 9.99999974E-6 : f32
      %51 = vector.broadcast %cst_34 : f32 to vector<1x128xf32>
      %52 = arith.addf %49, %51 : vector<1x128xf32>
      %53 = math.rsqrt %52 : vector<1x128xf32>
      %54 = arith.mulf %50, %53 : vector<1x128xf32>
      %c0_35 = arith.constant 0 : index
      %c0_36 = arith.constant 0 : index
      %55 = vector.load %arg5[%c0_35, %c0_36] : memref<1x128xf32, #tpu.memory_space<vmem>>, vector<1x128xf32>
      %56 = arith.mulf %38, %54 : vector<1x128xf32>
      %57 = arith.subf %55, %56 : vector<1x128xf32>
      %c0_i32_37 = arith.constant 0 : i32
      %c1_i32_38 = arith.constant 1 : i32
      %58 = arith.muli %c0_i32_37, %c1_i32_38 : i32
      %c0_i32_39 = arith.constant 0 : i32
      %59 = arith.addi %c0_i32_39, %58 : i32
      %c128_i32 = arith.constant 128 : i32
      %60 = arith.muli %59, %c128_i32 : i32
      %61 = tpu.assume_multiple %60, 128 : i32
      %62 = arith.index_cast %61 : i32 to index
      %c0_40 = arith.constant 0 : index
      %63 = vector.load %arg6[%62, %c0_40] : memref<128x128xbf16, #tpu.memory_space<vmem>>, vector<128x128xbf16>
      %64 = arith.extf %63 : vector<128x128xbf16> to vector<128x128xf32>
      %65 = vector.broadcast %54 : vector<1x128xf32> to vector<128x128xf32>
      %66 = arith.mulf %64, %65 : vector<128x128xf32>
      %67 = vector.broadcast %57 : vector<1x128xf32> to vector<128x128xf32>
      %68 = arith.addf %66, %67 : vector<128x128xf32>
      %cst_41 = arith.constant 0.000000e+00 : f32
      %69 = vector.broadcast %cst_41 : f32 to vector<128x128xf32>
      %70 = arith.maximumf %68, %69 : vector<128x128xf32>
      %71 = arith.truncf %70 : vector<128x128xf32> to vector<128x128xbf16>
      %72 = arith.index_cast %61 : i32 to index
      %c0_42 = arith.constant 0 : index
      %73 = vector.load %arg6[%72, %c0_42] : memref<128x128xbf16, #tpu.memory_space<vmem>>, vector<128x128xbf16>
      tpu.vector_store %arg6[%72, %c0_42], %71 {strides = array<i32>} : memref<128x128xbf16, #tpu.memory_space<vmem>>, vector<128x128xbf16>,
      %c1_i32_43 = arith.constant 1 : i32
    } else {
    }
    return
  }
  func.func @transform_0(%arg0: i32, %arg1: i32) -> (i32, i32) {
    %c1_i32 = arith.constant 1 : i32
    %0 = arith.muli %arg0, %c1_i32 : i32
    %1 = arith.addi %0, %arg1 : i32
    %c0_i32 = arith.constant 0 : i32
    %c0_i32_0 = arith.constant 0 : i32
    return %1, %c0_i32 : i32, i32
  }
  func.func @transform_1(%arg0: i32, %arg1: i32) -> (i32, i32, i32) {
    %c0_i32 = arith.constant 0 : i32
    %c0_i32_0 = arith.constant 0 : i32
    %c0_i32_1 = arith.constant 0 : i32
    return %arg0, %c0_i32, %c0_i32_0 : i32, i32, i32
  }
  func.func @transform_2(%arg0: i32, %arg1: i32) -> (i32, i32) {
    %c0_i32 = arith.constant 0 : i32
    %c0_i32_0 = arith.constant 0 : i32
    %c0_i32_1 = arith.constant 0 : i32
    return %c0_i32, %c0_i32_0 : i32, i32
  }
  func.func @transform_3(%arg0: i32, %arg1: i32) -> (i32, i32) {
    %c0_i32 = arith.constant 0 : i32
    %c0_i32_0 = arith.constant 0 : i32
    %c0_i32_1 = arith.constant 0 : i32
    return %c0_i32, %c0_i32_0 : i32, i32
  }
  func.func @transform_4(%arg0: i32, %arg1: i32) -> (i32, i32) {
    %c0_i32 = arith.constant 0 : i32
    %c0_i32_0 = arith.constant 0 : i32
    %c0_i32_1 = arith.constant 0 : i32
    return %c0_i32, %c0_i32_0 : i32, i32
  }
}

module attributes {stable_mosaic.version = 11 : i64} {
  func.func @_gemm_bn_relu_kernel(%arg0: i32, %arg1: i32, %arg2: memref<128x256xbf16, #tpu.memory_space<vmem>>, %arg3: memref<1x256x128xbf16, #tpu.memory_space<vmem>>, %arg4: memref<1x128xf32, #tpu.memory_space<vmem>>, %arg5: memref<1x128xf32, #tpu.memory_space<vmem>>, %arg6: memref<512x128xbf16, #tpu.memory_space<vmem>>, %arg7: memref<1x128xf32, #tpu.memory_space<vmem>>, %arg8: memref<1x128xf32, #tpu.memory_space<vmem>>, %arg9: memref<1x128xf32, #tpu.memory_space<vmem>>) attributes {dimension_semantics = [#tpu.dimension_semantics<arbitrary>, #tpu.dimension_semantics<arbitrary>], iteration_bounds = array<i64: 4, 1>, scalar_prefetch = 0 : i64, scratch_operands = 3 : i64, tpu.core_type = #tpu.core_type<tc>, window_params = [{transform_indices = @transform_0, window_bounds = array<i64: 128, 256>}, {transform_indices = @transform_1, window_bounds = array<i64: 1, 256, 128>}, {pipeline_mode = #tpu.pipeline_mode<synchronous>, transform_indices = @transform_2, window_bounds = array<i64: 1, 128>}, {pipeline_mode = #tpu.pipeline_mode<synchronous>, transform_indices = @transform_3, window_bounds = array<i64: 1, 128>}, {pipeline_mode = #tpu.pipeline_mode<synchronous>, transform_indices = @transform_4, window_bounds = array<i64: 512, 128>}]} {
    %c1_i32 = arith.constant 1 : i32
    %0 = arith.muli %arg0, %c1_i32 : i32
    %1 = arith.addi %0, %arg1 : i32
    %c0_i32 = arith.constant 0 : i32
    %2 = arith.cmpi eq, %1, %c0_i32 : i32
    %3 = arith.extui %2 : i1 to i32
    %c0_i32_0 = arith.constant 0 : i32
    %4 = arith.cmpi ne, %3, %c0_i32_0 : i32
    scf.if %4 {
      %cst_22 = arith.constant 0.000000e+00 : f32
      %36 = vector.broadcast %cst_22 : f32 to vector<1x128xf32>
      %c0_23 = arith.constant 0 : index
      %c0_24 = arith.constant 0 : index
      %37 = vector.load %arg7[%c0_23, %c0_24] : memref<1x128xf32, #tpu.memory_space<vmem>>, vector<1x128xf32>
      tpu.vector_store %arg7[%c0_23, %c0_24], %36 {strides = array<i32>} : memref<1x128xf32, #tpu.memory_space<vmem>>, vector<1x128xf32>,
      %cst_25 = arith.constant 0.000000e+00 : f32
      %38 = vector.broadcast %cst_25 : f32 to vector<1x128xf32>
      %c0_26 = arith.constant 0 : index
      %c0_27 = arith.constant 0 : index
      %39 = vector.load %arg8[%c0_26, %c0_27] : memref<1x128xf32, #tpu.memory_space<vmem>>, vector<1x128xf32>
      tpu.vector_store %arg8[%c0_26, %c0_27], %38 {strides = array<i32>} : memref<1x128xf32, #tpu.memory_space<vmem>>, vector<1x128xf32>,
      %cst_28 = arith.constant 0.000000e+00 : f32
      %40 = vector.broadcast %cst_28 : f32 to vector<1x128xf32>
      %c0_29 = arith.constant 0 : index
      %c0_30 = arith.constant 0 : index
      %41 = vector.load %arg9[%c0_29, %c0_30] : memref<1x128xf32, #tpu.memory_space<vmem>>, vector<1x128xf32>
      tpu.vector_store %arg9[%c0_29, %c0_30], %40 {strides = array<i32>} : memref<1x128xf32, #tpu.memory_space<vmem>>, vector<1x128xf32>,
    } else {
    }
    %c0 = arith.constant 0 : index
    %c0_1 = arith.constant 0 : index
    %5 = vector.load %arg2[%c0, %c0_1] : memref<128x256xbf16, #tpu.memory_space<vmem>>, vector<128x256xbf16>
    %c0_2 = arith.constant 0 : index
    %c0_3 = arith.constant 0 : index
    %c0_4 = arith.constant 0 : index
    %6 = vector.load %arg3[%c0_2, %c0_3, %c0_4] : memref<1x256x128xbf16, #tpu.memory_space<vmem>>, vector<1x256x128xbf16>
    %7 = vector.shape_cast %6 : vector<1x256x128xbf16> to vector<256x128xbf16>
    %cst = arith.constant dense<0.000000e+00> : vector<128x128xf32>
    %8 = tpu.matmul %5, %7, %cst {dimension_numbers = #tpu.dot_dimension_numbers<[1], [0], [0], [1], [0, 0, 1, 1], [], []>} : vector<128x256xbf16>, vector<256x128xbf16>, vector<128x128xf32> -> vector<128x128xf32>
    %c128_i32 = arith.constant 128 : i32
    %9 = arith.muli %1, %c128_i32 : i32
    %10 = tpu.assume_multiple %9, 128 : i32
    %11 = arith.truncf %8 : vector<128x128xf32> to vector<128x128xbf16>
    %12 = arith.index_cast %10 : i32 to index
    %c0_5 = arith.constant 0 : index
    %13 = vector.load %arg6[%12, %c0_5] : memref<512x128xbf16, #tpu.memory_space<vmem>>, vector<128x128xbf16>
    tpu.vector_store %arg6[%12, %c0_5], %11 {strides = array<i32>} : memref<512x128xbf16, #tpu.memory_space<vmem>>, vector<128x128xbf16>,
    %cst_6 = arith.constant dense<0.000000e+00> : vector<128xf32>
    %14 = vector.multi_reduction <add>, %8, %cst_6 [0] : vector<128x128xf32> to vector<128xf32>
    %15 = vector.shape_cast %14 : vector<128xf32> to vector<1x128xf32>
    %cst_7 = arith.constant 7.812500e-03 : f32
    %16 = vector.broadcast %cst_7 : f32 to vector<1x128xf32>
    %17 = arith.mulf %15, %16 : vector<1x128xf32>
    %18 = vector.broadcast %17 : vector<1x128xf32> to vector<128x128xf32>
    %19 = arith.subf %8, %18 : vector<128x128xf32>
    %c0_8 = arith.constant 0 : index
    %c0_9 = arith.constant 0 : index
    %20 = vector.load %arg7[%c0_8, %c0_9] : memref<1x128xf32, #tpu.memory_space<vmem>>, vector<1x128xf32>
    %21 = arith.addf %20, %17 : vector<1x128xf32>
    %c0_10 = arith.constant 0 : index
    %c0_11 = arith.constant 0 : index
    %22 = vector.load %arg7[%c0_10, %c0_11] : memref<1x128xf32, #tpu.memory_space<vmem>>, vector<1x128xf32>
    tpu.vector_store %arg7[%c0_10, %c0_11], %21 {strides = array<i32>} : memref<1x128xf32, #tpu.memory_space<vmem>>, vector<1x128xf32>,
    %c0_12 = arith.constant 0 : index
    %c0_13 = arith.constant 0 : index
    %23 = vector.load %arg8[%c0_12, %c0_13] : memref<1x128xf32, #tpu.memory_space<vmem>>, vector<1x128xf32>
    %24 = arith.mulf %17, %17 : vector<1x128xf32>
    %25 = arith.addf %23, %24 : vector<1x128xf32>
    %c0_14 = arith.constant 0 : index
    %c0_15 = arith.constant 0 : index
    %26 = vector.load %arg8[%c0_14, %c0_15] : memref<1x128xf32, #tpu.memory_space<vmem>>, vector<1x128xf32>
    tpu.vector_store %arg8[%c0_14, %c0_15], %25 {strides = array<i32>} : memref<1x128xf32, #tpu.memory_space<vmem>>, vector<1x128xf32>,
    %c0_16 = arith.constant 0 : index
    %c0_17 = arith.constant 0 : index
    %27 = vector.load %arg9[%c0_16, %c0_17] : memref<1x128xf32, #tpu.memory_space<vmem>>, vector<1x128xf32>
    %28 = arith.mulf %19, %19 : vector<128x128xf32>
    %cst_18 = arith.constant dense<0.000000e+00> : vector<128xf32>
    %29 = vector.multi_reduction <add>, %28, %cst_18 [0] : vector<128x128xf32> to vector<128xf32>
    %30 = vector.shape_cast %29 : vector<128xf32> to vector<1x128xf32>
    %31 = arith.addf %27, %30 : vector<1x128xf32>
    %c0_19 = arith.constant 0 : index
    %c0_20 = arith.constant 0 : index
    %32 = vector.load %arg9[%c0_19, %c0_20] : memref<1x128xf32, #tpu.memory_space<vmem>>, vector<1x128xf32>
    tpu.vector_store %arg9[%c0_19, %c0_20], %31 {strides = array<i32>} : memref<1x128xf32, #tpu.memory_space<vmem>>, vector<1x128xf32>,
    %c3_i32 = arith.constant 3 : i32
    %33 = arith.cmpi eq, %1, %c3_i32 : i32
    %34 = arith.extui %33 : i1 to i32
    %c0_i32_21 = arith.constant 0 : i32
    %35 = arith.cmpi ne, %34, %c0_i32_21 : i32
    scf.if %35 {
      %c0_22 = arith.constant 0 : index
      %c0_23 = arith.constant 0 : index
      %36 = vector.load %arg7[%c0_22, %c0_23] : memref<1x128xf32, #tpu.memory_space<vmem>>, vector<1x128xf32>
      %cst_24 = arith.constant 2.500000e-01 : f32
      %37 = vector.broadcast %cst_24 : f32 to vector<1x128xf32>
      %38 = arith.mulf %36, %37 : vector<1x128xf32>
      %c0_25 = arith.constant 0 : index
      %c0_26 = arith.constant 0 : index
      %39 = vector.load %arg8[%c0_25, %c0_26] : memref<1x128xf32, #tpu.memory_space<vmem>>, vector<1x128xf32>
      %cst_27 = arith.constant 2.500000e-01 : f32
      %40 = vector.broadcast %cst_27 : f32 to vector<1x128xf32>
      %41 = arith.mulf %39, %40 : vector<1x128xf32>
      %42 = arith.mulf %38, %38 : vector<1x128xf32>
      %43 = arith.subf %41, %42 : vector<1x128xf32>
      %cst_28 = arith.constant 0.000000e+00 : f32
      %44 = vector.broadcast %cst_28 : f32 to vector<1x128xf32>
      %45 = arith.maximumf %43, %44 : vector<1x128xf32>
      %c0_29 = arith.constant 0 : index
      %c0_30 = arith.constant 0 : index
      %46 = vector.load %arg9[%c0_29, %c0_30] : memref<1x128xf32, #tpu.memory_space<vmem>>, vector<1x128xf32>
      %cst_31 = arith.constant 0.001953125 : f32
      %47 = vector.broadcast %cst_31 : f32 to vector<1x128xf32>
      %48 = arith.mulf %46, %47 : vector<1x128xf32>
      %49 = arith.addf %48, %45 : vector<1x128xf32>
      %c0_32 = arith.constant 0 : index
      %c0_33 = arith.constant 0 : index
      %50 = vector.load %arg4[%c0_32, %c0_33] : memref<1x128xf32, #tpu.memory_space<vmem>>, vector<1x128xf32>
      %cst_34 = arith.constant 9.99999974E-6 : f32
      %51 = vector.broadcast %cst_34 : f32 to vector<1x128xf32>
      %52 = arith.addf %49, %51 : vector<1x128xf32>
      %53 = math.rsqrt %52 : vector<1x128xf32>
      %54 = arith.mulf %50, %53 : vector<1x128xf32>
      %c0_35 = arith.constant 0 : index
      %c0_36 = arith.constant 0 : index
      %55 = vector.load %arg5[%c0_35, %c0_36] : memref<1x128xf32, #tpu.memory_space<vmem>>, vector<1x128xf32>
      %56 = arith.mulf %38, %54 : vector<1x128xf32>
      %57 = arith.subf %55, %56 : vector<1x128xf32>
      %c0_i32_37 = arith.constant 0 : i32
      %c1_i32_38 = arith.constant 1 : i32
      %58 = arith.muli %c0_i32_37, %c1_i32_38 : i32
      %c0_i32_39 = arith.constant 0 : i32
      %59 = arith.addi %c0_i32_39, %58 : i32
      %c512_i32 = arith.constant 512 : i32
      %60 = arith.muli %59, %c512_i32 : i32
      %61 = tpu.assume_multiple %60, 512 : i32
      %62 = arith.index_cast %61 : i32 to index
      %c0_40 = arith.constant 0 : index
      %63 = vector.load %arg6[%62, %c0_40] : memref<512x128xbf16, #tpu.memory_space<vmem>>, vector<512x128xbf16>
      %64 = arith.extf %63 : vector<512x128xbf16> to vector<512x128xf32>
      %65 = vector.broadcast %54 : vector<1x128xf32> to vector<512x128xf32>
      %66 = arith.mulf %64, %65 : vector<512x128xf32>
      %67 = vector.broadcast %57 : vector<1x128xf32> to vector<512x128xf32>
      %68 = arith.addf %66, %67 : vector<512x128xf32>
      %cst_41 = arith.constant 0.000000e+00 : f32
      %69 = vector.broadcast %cst_41 : f32 to vector<512x128xf32>
      %70 = arith.maximumf %68, %69 : vector<512x128xf32>
      %71 = arith.truncf %70 : vector<512x128xf32> to vector<512x128xbf16>
      %72 = arith.index_cast %61 : i32 to index
      %c0_42 = arith.constant 0 : index
      %73 = vector.load %arg6[%72, %c0_42] : memref<512x128xbf16, #tpu.memory_space<vmem>>, vector<512x128xbf16>
      tpu.vector_store %arg6[%72, %c0_42], %71 {strides = array<i32>} : memref<512x128xbf16, #tpu.memory_space<vmem>>, vector<512x128xbf16>,
      %c1_i32_43 = arith.constant 1 : i32
    } else {
    }
    return
  }
  func.func @transform_0(%arg0: i32, %arg1: i32) -> (i32, i32) {
    %c1_i32 = arith.constant 1 : i32
    %0 = arith.muli %arg0, %c1_i32 : i32
    %1 = arith.addi %0, %arg1 : i32
    %c0_i32 = arith.constant 0 : i32
    %c0_i32_0 = arith.constant 0 : i32
    return %1, %c0_i32 : i32, i32
  }
  func.func @transform_1(%arg0: i32, %arg1: i32) -> (i32, i32, i32) {
    %c0_i32 = arith.constant 0 : i32
    %c0_i32_0 = arith.constant 0 : i32
    %c0_i32_1 = arith.constant 0 : i32
    return %arg0, %c0_i32, %c0_i32_0 : i32, i32, i32
  }
  func.func @transform_2(%arg0: i32, %arg1: i32) -> (i32, i32) {
    %c0_i32 = arith.constant 0 : i32
    %c0_i32_0 = arith.constant 0 : i32
    %c0_i32_1 = arith.constant 0 : i32
    return %c0_i32, %c0_i32_0 : i32, i32
  }
  func.func @transform_3(%arg0: i32, %arg1: i32) -> (i32, i32) {
    %c0_i32 = arith.constant 0 : i32
    %c0_i32_0 = arith.constant 0 : i32
    %c0_i32_1 = arith.constant 0 : i32
    return %c0_i32, %c0_i32_0 : i32, i32
  }
  func.func @transform_4(%arg0: i32, %arg1: i32) -> (i32, i32) {
    %c0_i32 = arith.constant 0 : i32
    %c0_i32_0 = arith.constant 0 : i32
    %c0_i32_1 = arith.constant 0 : i32
    return %c0_i32, %c0_i32_0 : i32, i32
  }
}

module attributes {stable_mosaic.version = 11 : i64} {
  func.func @_gemm_bn_relu_kernel(%arg0: i32, %arg1: i32, %arg2: memref<512x128xbf16, #tpu.memory_space<vmem>>, %arg3: memref<1x128x128xbf16, #tpu.memory_space<vmem>>, %arg4: memref<1x128xf32, #tpu.memory_space<vmem>>, %arg5: memref<1x128xf32, #tpu.memory_space<vmem>>, %arg6: memref<2048x128xbf16, #tpu.memory_space<vmem>>, %arg7: memref<1x128xf32, #tpu.memory_space<vmem>>, %arg8: memref<1x128xf32, #tpu.memory_space<vmem>>, %arg9: memref<1x128xf32, #tpu.memory_space<vmem>>) attributes {dimension_semantics = [#tpu.dimension_semantics<arbitrary>, #tpu.dimension_semantics<arbitrary>], iteration_bounds = array<i64: 4, 1>, scalar_prefetch = 0 : i64, scratch_operands = 3 : i64, tpu.core_type = #tpu.core_type<tc>, window_params = [{transform_indices = @transform_0, window_bounds = array<i64: 512, 128>}, {transform_indices = @transform_1, window_bounds = array<i64: 1, 128, 128>}, {pipeline_mode = #tpu.pipeline_mode<synchronous>, transform_indices = @transform_2, window_bounds = array<i64: 1, 128>}, {pipeline_mode = #tpu.pipeline_mode<synchronous>, transform_indices = @transform_3, window_bounds = array<i64: 1, 128>}, {pipeline_mode = #tpu.pipeline_mode<synchronous>, transform_indices = @transform_4, window_bounds = array<i64: 2048, 128>}]} {
    %c1_i32 = arith.constant 1 : i32
    %0 = arith.muli %arg0, %c1_i32 : i32
    %1 = arith.addi %0, %arg1 : i32
    %c0_i32 = arith.constant 0 : i32
    %2 = arith.cmpi eq, %1, %c0_i32 : i32
    %3 = arith.extui %2 : i1 to i32
    %c0_i32_0 = arith.constant 0 : i32
    %4 = arith.cmpi ne, %3, %c0_i32_0 : i32
    scf.if %4 {
      %cst_22 = arith.constant 0.000000e+00 : f32
      %36 = vector.broadcast %cst_22 : f32 to vector<1x128xf32>
      %c0_23 = arith.constant 0 : index
      %c0_24 = arith.constant 0 : index
      %37 = vector.load %arg7[%c0_23, %c0_24] : memref<1x128xf32, #tpu.memory_space<vmem>>, vector<1x128xf32>
      tpu.vector_store %arg7[%c0_23, %c0_24], %36 {strides = array<i32>} : memref<1x128xf32, #tpu.memory_space<vmem>>, vector<1x128xf32>,
      %cst_25 = arith.constant 0.000000e+00 : f32
      %38 = vector.broadcast %cst_25 : f32 to vector<1x128xf32>
      %c0_26 = arith.constant 0 : index
      %c0_27 = arith.constant 0 : index
      %39 = vector.load %arg8[%c0_26, %c0_27] : memref<1x128xf32, #tpu.memory_space<vmem>>, vector<1x128xf32>
      tpu.vector_store %arg8[%c0_26, %c0_27], %38 {strides = array<i32>} : memref<1x128xf32, #tpu.memory_space<vmem>>, vector<1x128xf32>,
      %cst_28 = arith.constant 0.000000e+00 : f32
      %40 = vector.broadcast %cst_28 : f32 to vector<1x128xf32>
      %c0_29 = arith.constant 0 : index
      %c0_30 = arith.constant 0 : index
      %41 = vector.load %arg9[%c0_29, %c0_30] : memref<1x128xf32, #tpu.memory_space<vmem>>, vector<1x128xf32>
      tpu.vector_store %arg9[%c0_29, %c0_30], %40 {strides = array<i32>} : memref<1x128xf32, #tpu.memory_space<vmem>>, vector<1x128xf32>,
    } else {
    }
    %c0 = arith.constant 0 : index
    %c0_1 = arith.constant 0 : index
    %5 = vector.load %arg2[%c0, %c0_1] : memref<512x128xbf16, #tpu.memory_space<vmem>>, vector<512x128xbf16>
    %c0_2 = arith.constant 0 : index
    %c0_3 = arith.constant 0 : index
    %c0_4 = arith.constant 0 : index
    %6 = vector.load %arg3[%c0_2, %c0_3, %c0_4] : memref<1x128x128xbf16, #tpu.memory_space<vmem>>, vector<1x128x128xbf16>
    %7 = vector.shape_cast %6 : vector<1x128x128xbf16> to vector<128x128xbf16>
    %cst = arith.constant dense<0.000000e+00> : vector<512x128xf32>
    %8 = tpu.matmul %5, %7, %cst {dimension_numbers = #tpu.dot_dimension_numbers<[1], [0], [0], [1], [0, 0, 1, 1], [], []>} : vector<512x128xbf16>, vector<128x128xbf16>, vector<512x128xf32> -> vector<512x128xf32>
    %c512_i32 = arith.constant 512 : i32
    %9 = arith.muli %1, %c512_i32 : i32
    %10 = tpu.assume_multiple %9, 512 : i32
    %11 = arith.truncf %8 : vector<512x128xf32> to vector<512x128xbf16>
    %12 = arith.index_cast %10 : i32 to index
    %c0_5 = arith.constant 0 : index
    %13 = vector.load %arg6[%12, %c0_5] : memref<2048x128xbf16, #tpu.memory_space<vmem>>, vector<512x128xbf16>
    tpu.vector_store %arg6[%12, %c0_5], %11 {strides = array<i32>} : memref<2048x128xbf16, #tpu.memory_space<vmem>>, vector<512x128xbf16>,
    %cst_6 = arith.constant dense<0.000000e+00> : vector<128xf32>
    %14 = vector.multi_reduction <add>, %8, %cst_6 [0] : vector<512x128xf32> to vector<128xf32>
    %15 = vector.shape_cast %14 : vector<128xf32> to vector<1x128xf32>
    %cst_7 = arith.constant 0.001953125 : f32
    %16 = vector.broadcast %cst_7 : f32 to vector<1x128xf32>
    %17 = arith.mulf %15, %16 : vector<1x128xf32>
    %18 = vector.broadcast %17 : vector<1x128xf32> to vector<512x128xf32>
    %19 = arith.subf %8, %18 : vector<512x128xf32>
    %c0_8 = arith.constant 0 : index
    %c0_9 = arith.constant 0 : index
    %20 = vector.load %arg7[%c0_8, %c0_9] : memref<1x128xf32, #tpu.memory_space<vmem>>, vector<1x128xf32>
    %21 = arith.addf %20, %17 : vector<1x128xf32>
    %c0_10 = arith.constant 0 : index
    %c0_11 = arith.constant 0 : index
    %22 = vector.load %arg7[%c0_10, %c0_11] : memref<1x128xf32, #tpu.memory_space<vmem>>, vector<1x128xf32>
    tpu.vector_store %arg7[%c0_10, %c0_11], %21 {strides = array<i32>} : memref<1x128xf32, #tpu.memory_space<vmem>>, vector<1x128xf32>,
    %c0_12 = arith.constant 0 : index
    %c0_13 = arith.constant 0 : index
    %23 = vector.load %arg8[%c0_12, %c0_13] : memref<1x128xf32, #tpu.memory_space<vmem>>, vector<1x128xf32>
    %24 = arith.mulf %17, %17 : vector<1x128xf32>
    %25 = arith.addf %23, %24 : vector<1x128xf32>
    %c0_14 = arith.constant 0 : index
    %c0_15 = arith.constant 0 : index
    %26 = vector.load %arg8[%c0_14, %c0_15] : memref<1x128xf32, #tpu.memory_space<vmem>>, vector<1x128xf32>
    tpu.vector_store %arg8[%c0_14, %c0_15], %25 {strides = array<i32>} : memref<1x128xf32, #tpu.memory_space<vmem>>, vector<1x128xf32>,
    %c0_16 = arith.constant 0 : index
    %c0_17 = arith.constant 0 : index
    %27 = vector.load %arg9[%c0_16, %c0_17] : memref<1x128xf32, #tpu.memory_space<vmem>>, vector<1x128xf32>
    %28 = arith.mulf %19, %19 : vector<512x128xf32>
    %cst_18 = arith.constant dense<0.000000e+00> : vector<128xf32>
    %29 = vector.multi_reduction <add>, %28, %cst_18 [0] : vector<512x128xf32> to vector<128xf32>
    %30 = vector.shape_cast %29 : vector<128xf32> to vector<1x128xf32>
    %31 = arith.addf %27, %30 : vector<1x128xf32>
    %c0_19 = arith.constant 0 : index
    %c0_20 = arith.constant 0 : index
    %32 = vector.load %arg9[%c0_19, %c0_20] : memref<1x128xf32, #tpu.memory_space<vmem>>, vector<1x128xf32>
    tpu.vector_store %arg9[%c0_19, %c0_20], %31 {strides = array<i32>} : memref<1x128xf32, #tpu.memory_space<vmem>>, vector<1x128xf32>,
    %c3_i32 = arith.constant 3 : i32
    %33 = arith.cmpi eq, %1, %c3_i32 : i32
    %34 = arith.extui %33 : i1 to i32
    %c0_i32_21 = arith.constant 0 : i32
    %35 = arith.cmpi ne, %34, %c0_i32_21 : i32
    scf.if %35 {
      %c0_22 = arith.constant 0 : index
      %c0_23 = arith.constant 0 : index
      %36 = vector.load %arg7[%c0_22, %c0_23] : memref<1x128xf32, #tpu.memory_space<vmem>>, vector<1x128xf32>
      %cst_24 = arith.constant 2.500000e-01 : f32
      %37 = vector.broadcast %cst_24 : f32 to vector<1x128xf32>
      %38 = arith.mulf %36, %37 : vector<1x128xf32>
      %c0_25 = arith.constant 0 : index
      %c0_26 = arith.constant 0 : index
      %39 = vector.load %arg8[%c0_25, %c0_26] : memref<1x128xf32, #tpu.memory_space<vmem>>, vector<1x128xf32>
      %cst_27 = arith.constant 2.500000e-01 : f32
      %40 = vector.broadcast %cst_27 : f32 to vector<1x128xf32>
      %41 = arith.mulf %39, %40 : vector<1x128xf32>
      %42 = arith.mulf %38, %38 : vector<1x128xf32>
      %43 = arith.subf %41, %42 : vector<1x128xf32>
      %cst_28 = arith.constant 0.000000e+00 : f32
      %44 = vector.broadcast %cst_28 : f32 to vector<1x128xf32>
      %45 = arith.maximumf %43, %44 : vector<1x128xf32>
      %c0_29 = arith.constant 0 : index
      %c0_30 = arith.constant 0 : index
      %46 = vector.load %arg9[%c0_29, %c0_30] : memref<1x128xf32, #tpu.memory_space<vmem>>, vector<1x128xf32>
      %cst_31 = arith.constant 4.8828125E-4 : f32
      %47 = vector.broadcast %cst_31 : f32 to vector<1x128xf32>
      %48 = arith.mulf %46, %47 : vector<1x128xf32>
      %49 = arith.addf %48, %45 : vector<1x128xf32>
      %c0_32 = arith.constant 0 : index
      %c0_33 = arith.constant 0 : index
      %50 = vector.load %arg4[%c0_32, %c0_33] : memref<1x128xf32, #tpu.memory_space<vmem>>, vector<1x128xf32>
      %cst_34 = arith.constant 9.99999974E-6 : f32
      %51 = vector.broadcast %cst_34 : f32 to vector<1x128xf32>
      %52 = arith.addf %49, %51 : vector<1x128xf32>
      %53 = math.rsqrt %52 : vector<1x128xf32>
      %54 = arith.mulf %50, %53 : vector<1x128xf32>
      %c0_35 = arith.constant 0 : index
      %c0_36 = arith.constant 0 : index
      %55 = vector.load %arg5[%c0_35, %c0_36] : memref<1x128xf32, #tpu.memory_space<vmem>>, vector<1x128xf32>
      %56 = arith.mulf %38, %54 : vector<1x128xf32>
      %57 = arith.subf %55, %56 : vector<1x128xf32>
      %c0_i32_37 = arith.constant 0 : i32
      %c1_i32_38 = arith.constant 1 : i32
      %58 = arith.muli %c0_i32_37, %c1_i32_38 : i32
      %c0_i32_39 = arith.constant 0 : i32
      %59 = arith.addi %c0_i32_39, %58 : i32
      %c512_i32_40 = arith.constant 512 : i32
      %60 = arith.muli %59, %c512_i32_40 : i32
      %61 = tpu.assume_multiple %60, 512 : i32
      %62 = arith.index_cast %61 : i32 to index
      %c0_41 = arith.constant 0 : index
      %63 = vector.load %arg6[%62, %c0_41] : memref<2048x128xbf16, #tpu.memory_space<vmem>>, vector<512x128xbf16>
      %64 = arith.extf %63 : vector<512x128xbf16> to vector<512x128xf32>
      %65 = vector.broadcast %54 : vector<1x128xf32> to vector<512x128xf32>
      %66 = arith.mulf %64, %65 : vector<512x128xf32>
      %67 = vector.broadcast %57 : vector<1x128xf32> to vector<512x128xf32>
      %68 = arith.addf %66, %67 : vector<512x128xf32>
      %cst_42 = arith.constant 0.000000e+00 : f32
      %69 = vector.broadcast %cst_42 : f32 to vector<512x128xf32>
      %70 = arith.maximumf %68, %69 : vector<512x128xf32>
      %71 = arith.truncf %70 : vector<512x128xf32> to vector<512x128xbf16>
      %72 = arith.index_cast %61 : i32 to index
      %c0_43 = arith.constant 0 : index
      %73 = vector.load %arg6[%72, %c0_43] : memref<2048x128xbf16, #tpu.memory_space<vmem>>, vector<512x128xbf16>
      tpu.vector_store %arg6[%72, %c0_43], %71 {strides = array<i32>} : memref<2048x128xbf16, #tpu.memory_space<vmem>>, vector<512x128xbf16>,
      %c1_i32_44 = arith.constant 1 : i32
      %c1_i32_45 = arith.constant 1 : i32
      %74 = arith.muli %c1_i32_44, %c1_i32_45 : i32
      %c0_i32_46 = arith.constant 0 : i32
      %75 = arith.addi %c0_i32_46, %74 : i32
      %c512_i32_47 = arith.constant 512 : i32
      %76 = arith.muli %75, %c512_i32_47 : i32
      %77 = tpu.assume_multiple %76, 512 : i32
      %78 = arith.index_cast %77 : i32 to index
      %c0_48 = arith.constant 0 : index
      %79 = vector.load %arg6[%78, %c0_48] : memref<2048x128xbf16, #tpu.memory_space<vmem>>, vector<512x128xbf16>
      %80 = arith.extf %79 : vector<512x128xbf16> to vector<512x128xf32>
      %81 = vector.broadcast %54 : vector<1x128xf32> to vector<512x128xf32>
      %82 = arith.mulf %80, %81 : vector<512x128xf32>
      %83 = vector.broadcast %57 : vector<1x128xf32> to vector<512x128xf32>
      %84 = arith.addf %82, %83 : vector<512x128xf32>
      %cst_49 = arith.constant 0.000000e+00 : f32
      %85 = vector.broadcast %cst_49 : f32 to vector<512x128xf32>
      %86 = arith.maximumf %84, %85 : vector<512x128xf32>
      %87 = arith.truncf %86 : vector<512x128xf32> to vector<512x128xbf16>
      %88 = arith.index_cast %77 : i32 to index
      %c0_50 = arith.constant 0 : index
      %89 = vector.load %arg6[%88, %c0_50] : memref<2048x128xbf16, #tpu.memory_space<vmem>>, vector<512x128xbf16>
      tpu.vector_store %arg6[%88, %c0_50], %87 {strides = array<i32>} : memref<2048x128xbf16, #tpu.memory_space<vmem>>, vector<512x128xbf16>,
      %c2_i32 = arith.constant 2 : i32
      %c1_i32_51 = arith.constant 1 : i32
      %90 = arith.muli %c2_i32, %c1_i32_51 : i32
      %c0_i32_52 = arith.constant 0 : i32
      %91 = arith.addi %c0_i32_52, %90 : i32
      %c512_i32_53 = arith.constant 512 : i32
      %92 = arith.muli %91, %c512_i32_53 : i32
      %93 = tpu.assume_multiple %92, 512 : i32
      %94 = arith.index_cast %93 : i32 to index
      %c0_54 = arith.constant 0 : index
      %95 = vector.load %arg6[%94, %c0_54] : memref<2048x128xbf16, #tpu.memory_space<vmem>>, vector<512x128xbf16>
      %96 = arith.extf %95 : vector<512x128xbf16> to vector<512x128xf32>
      %97 = vector.broadcast %54 : vector<1x128xf32> to vector<512x128xf32>
      %98 = arith.mulf %96, %97 : vector<512x128xf32>
      %99 = vector.broadcast %57 : vector<1x128xf32> to vector<512x128xf32>
      %100 = arith.addf %98, %99 : vector<512x128xf32>
      %cst_55 = arith.constant 0.000000e+00 : f32
      %101 = vector.broadcast %cst_55 : f32 to vector<512x128xf32>
      %102 = arith.maximumf %100, %101 : vector<512x128xf32>
      %103 = arith.truncf %102 : vector<512x128xf32> to vector<512x128xbf16>
      %104 = arith.index_cast %93 : i32 to index
      %c0_56 = arith.constant 0 : index
      %105 = vector.load %arg6[%104, %c0_56] : memref<2048x128xbf16, #tpu.memory_space<vmem>>, vector<512x128xbf16>
      tpu.vector_store %arg6[%104, %c0_56], %103 {strides = array<i32>} : memref<2048x128xbf16, #tpu.memory_space<vmem>>, vector<512x128xbf16>,
      %c3_i32_57 = arith.constant 3 : i32
      %c1_i32_58 = arith.constant 1 : i32
      %106 = arith.muli %c3_i32_57, %c1_i32_58 : i32
      %c0_i32_59 = arith.constant 0 : i32
      %107 = arith.addi %c0_i32_59, %106 : i32
      %c512_i32_60 = arith.constant 512 : i32
      %108 = arith.muli %107, %c512_i32_60 : i32
      %109 = tpu.assume_multiple %108, 512 : i32
      %110 = arith.index_cast %109 : i32 to index
      %c0_61 = arith.constant 0 : index
      %111 = vector.load %arg6[%110, %c0_61] : memref<2048x128xbf16, #tpu.memory_space<vmem>>, vector<512x128xbf16>
      %112 = arith.extf %111 : vector<512x128xbf16> to vector<512x128xf32>
      %113 = vector.broadcast %54 : vector<1x128xf32> to vector<512x128xf32>
      %114 = arith.mulf %112, %113 : vector<512x128xf32>
      %115 = vector.broadcast %57 : vector<1x128xf32> to vector<512x128xf32>
      %116 = arith.addf %114, %115 : vector<512x128xf32>
      %cst_62 = arith.constant 0.000000e+00 : f32
      %117 = vector.broadcast %cst_62 : f32 to vector<512x128xf32>
      %118 = arith.maximumf %116, %117 : vector<512x128xf32>
      %119 = arith.truncf %118 : vector<512x128xf32> to vector<512x128xbf16>
      %120 = arith.index_cast %109 : i32 to index
      %c0_63 = arith.constant 0 : index
      %121 = vector.load %arg6[%120, %c0_63] : memref<2048x128xbf16, #tpu.memory_space<vmem>>, vector<512x128xbf16>
      tpu.vector_store %arg6[%120, %c0_63], %119 {strides = array<i32>} : memref<2048x128xbf16, #tpu.memory_space<vmem>>, vector<512x128xbf16>,
      %c4_i32 = arith.constant 4 : i32
    } else {
    }
    return
  }
  func.func @transform_0(%arg0: i32, %arg1: i32) -> (i32, i32) {
    %c1_i32 = arith.constant 1 : i32
    %0 = arith.muli %arg0, %c1_i32 : i32
    %1 = arith.addi %0, %arg1 : i32
    %c0_i32 = arith.constant 0 : i32
    %c0_i32_0 = arith.constant 0 : i32
    return %1, %c0_i32 : i32, i32
  }
  func.func @transform_1(%arg0: i32, %arg1: i32) -> (i32, i32, i32) {
    %c0_i32 = arith.constant 0 : i32
    %c0_i32_0 = arith.constant 0 : i32
    %c0_i32_1 = arith.constant 0 : i32
    return %arg0, %c0_i32, %c0_i32_0 : i32, i32, i32
  }
  func.func @transform_2(%arg0: i32, %arg1: i32) -> (i32, i32) {
    %c0_i32 = arith.constant 0 : i32
    %c0_i32_0 = arith.constant 0 : i32
    %c0_i32_1 = arith.constant 0 : i32
    return %c0_i32, %c0_i32_0 : i32, i32
  }
  func.func @transform_3(%arg0: i32, %arg1: i32) -> (i32, i32) {
    %c0_i32 = arith.constant 0 : i32
    %c0_i32_0 = arith.constant 0 : i32
    %c0_i32_1 = arith.constant 0 : i32
    return %c0_i32, %c0_i32_0 : i32, i32
  }
  func.func @transform_4(%arg0: i32, %arg1: i32) -> (i32, i32) {
    %c0_i32 = arith.constant 0 : i32
    %c0_i32_0 = arith.constant 0 : i32
    %c0_i32_1 = arith.constant 0 : i32
    return %c0_i32, %c0_i32_0 : i32, i32
  }
}

module attributes {stable_mosaic.version = 11 : i64} {
  func.func @_final_tanh_kernel(%arg0: i32, %arg1: memref<4x1x64xbf16, #tpu.memory_space<vmem>>, %arg2: memref<1x1xf32, #tpu.memory_space<smem>>, %arg3: memref<4x64x2048xbf16, #tpu.memory_space<vmem>>, %arg4: memref<4x2048xbf16, #tpu.memory_space<vmem>>) attributes {dimension_semantics = [#tpu.dimension_semantics<parallel>], iteration_bounds = array<i64: 1>, scalar_prefetch = 0 : i64, scratch_operands = 0 : i64, tpu.core_type = #tpu.core_type<tc>, window_params = [{pipeline_mode = #tpu.pipeline_mode<synchronous>, transform_indices = @transform_0, window_bounds = array<i64: 4, 1, 64>}, {transform_indices = @transform_1, window_bounds = array<i64: 1, 1>}, {transform_indices = @transform_2, window_bounds = array<i64: 4, 64, 2048>}, {transform_indices = @transform_3, window_bounds = array<i64: 4, 2048>}]} {
    %c0 = arith.constant 0 : index
    %c0_0 = arith.constant 0 : index
    %0 = memref.load %arg2[%c0, %c0_0] : memref<1x1xf32, #tpu.memory_space<smem>>
    %c0_1 = arith.constant 0 : index
    %c0_2 = arith.constant 0 : index
    %c0_3 = arith.constant 0 : index
    %1 = vector.load %arg1[%c0_1, %c0_2, %c0_3] : memref<4x1x64xbf16, #tpu.memory_space<vmem>>, vector<1x1x64xbf16>
    %2 = vector.shape_cast %1 : vector<1x1x64xbf16> to vector<1x64xbf16>
    %c0_4 = arith.constant 0 : index
    %c0_5 = arith.constant 0 : index
    %c0_6 = arith.constant 0 : index
    %3 = vector.load %arg3[%c0_4, %c0_5, %c0_6] : memref<4x64x2048xbf16, #tpu.memory_space<vmem>>, vector<1x64x2048xbf16>
    %4 = vector.shape_cast %3 : vector<1x64x2048xbf16> to vector<64x2048xbf16>
    %cst = arith.constant dense<0.000000e+00> : vector<1x2048xf32>
    %5 = tpu.matmul %2, %4, %cst {dimension_numbers = #tpu.dot_dimension_numbers<[1], [0], [0], [1], [0, 0, 1, 1], [], []>} : vector<1x64xbf16>, vector<64x2048xbf16>, vector<1x2048xf32> -> vector<1x2048xf32>
    %c1 = arith.constant 1 : index
    %c0_7 = arith.constant 0 : index
    %c0_8 = arith.constant 0 : index
    %6 = vector.load %arg1[%c1, %c0_7, %c0_8] : memref<4x1x64xbf16, #tpu.memory_space<vmem>>, vector<1x1x64xbf16>
    %7 = vector.shape_cast %6 : vector<1x1x64xbf16> to vector<1x64xbf16>
    %c1_9 = arith.constant 1 : index
    %c0_10 = arith.constant 0 : index
    %c0_11 = arith.constant 0 : index
    %8 = vector.load %arg3[%c1_9, %c0_10, %c0_11] : memref<4x64x2048xbf16, #tpu.memory_space<vmem>>, vector<1x64x2048xbf16>
    %9 = vector.shape_cast %8 : vector<1x64x2048xbf16> to vector<64x2048xbf16>
    %cst_12 = arith.constant dense<0.000000e+00> : vector<1x2048xf32>
    %10 = tpu.matmul %7, %9, %cst_12 {dimension_numbers = #tpu.dot_dimension_numbers<[1], [0], [0], [1], [0, 0, 1, 1], [], []>} : vector<1x64xbf16>, vector<64x2048xbf16>, vector<1x2048xf32> -> vector<1x2048xf32>
    %c2 = arith.constant 2 : index
    %c0_13 = arith.constant 0 : index
    %c0_14 = arith.constant 0 : index
    %11 = vector.load %arg1[%c2, %c0_13, %c0_14] : memref<4x1x64xbf16, #tpu.memory_space<vmem>>, vector<1x1x64xbf16>
    %12 = vector.shape_cast %11 : vector<1x1x64xbf16> to vector<1x64xbf16>
    %c2_15 = arith.constant 2 : index
    %c0_16 = arith.constant 0 : index
    %c0_17 = arith.constant 0 : index
    %13 = vector.load %arg3[%c2_15, %c0_16, %c0_17] : memref<4x64x2048xbf16, #tpu.memory_space<vmem>>, vector<1x64x2048xbf16>
    %14 = vector.shape_cast %13 : vector<1x64x2048xbf16> to vector<64x2048xbf16>
    %cst_18 = arith.constant dense<0.000000e+00> : vector<1x2048xf32>
    %15 = tpu.matmul %12, %14, %cst_18 {dimension_numbers = #tpu.dot_dimension_numbers<[1], [0], [0], [1], [0, 0, 1, 1], [], []>} : vector<1x64xbf16>, vector<64x2048xbf16>, vector<1x2048xf32> -> vector<1x2048xf32>
    %c3 = arith.constant 3 : index
    %c0_19 = arith.constant 0 : index
    %c0_20 = arith.constant 0 : index
    %16 = vector.load %arg1[%c3, %c0_19, %c0_20] : memref<4x1x64xbf16, #tpu.memory_space<vmem>>, vector<1x1x64xbf16>
    %17 = vector.shape_cast %16 : vector<1x1x64xbf16> to vector<1x64xbf16>
    %c3_21 = arith.constant 3 : index
    %c0_22 = arith.constant 0 : index
    %c0_23 = arith.constant 0 : index
    %18 = vector.load %arg3[%c3_21, %c0_22, %c0_23] : memref<4x64x2048xbf16, #tpu.memory_space<vmem>>, vector<1x64x2048xbf16>
    %19 = vector.shape_cast %18 : vector<1x64x2048xbf16> to vector<64x2048xbf16>
    %cst_24 = arith.constant dense<0.000000e+00> : vector<1x2048xf32>
    %20 = tpu.matmul %17, %19, %cst_24 {dimension_numbers = #tpu.dot_dimension_numbers<[1], [0], [0], [1], [0, 0, 1, 1], [], []>} : vector<1x64xbf16>, vector<64x2048xbf16>, vector<1x2048xf32> -> vector<1x2048xf32>
    %21 = tpu.concatenate %5, %10, %15, %20 in 0 : vector<1x2048xf32>, vector<1x2048xf32>, vector<1x2048xf32>, vector<1x2048xf32> -> vector<4x2048xf32>
    %22 = vector.broadcast %0 : f32 to vector<4x2048xf32>
    %23 = arith.addf %21, %22 : vector<4x2048xf32>
    %24 = math.tanh %23 : vector<4x2048xf32>
    %25 = arith.truncf %24 : vector<4x2048xf32> to vector<4x2048xbf16>
    %c0_25 = arith.constant 0 : index
    %c0_26 = arith.constant 0 : index
    %26 = vector.load %arg4[%c0_25, %c0_26] : memref<4x2048xbf16, #tpu.memory_space<vmem>>, vector<4x2048xbf16>
    tpu.vector_store %arg4[%c0_25, %c0_26], %25 {strides = array<i32>} : memref<4x2048xbf16, #tpu.memory_space<vmem>>, vector<4x2048xbf16>,
    return
  }
  func.func @transform_0(%arg0: i32) -> (i32, i32, i32) {
    %c0_i32 = arith.constant 0 : i32
    %c0_i32_0 = arith.constant 0 : i32
    %c0_i32_1 = arith.constant 0 : i32
    %c0_i32_2 = arith.constant 0 : i32
    return %c0_i32, %c0_i32_0, %c0_i32_1 : i32, i32, i32
  }
  func.func @transform_1(%arg0: i32) -> (i32, i32) {
    %c0_i32 = arith.constant 0 : i32
    %c0_i32_0 = arith.constant 0 : i32
    %c0_i32_1 = arith.constant 0 : i32
    return %c0_i32, %c0_i32_0 : i32, i32
  }
  func.func @transform_2(%arg0: i32) -> (i32, i32, i32) {
    %c0_i32 = arith.constant 0 : i32
    %c0_i32_0 = arith.constant 0 : i32
    %c0_i32_1 = arith.constant 0 : i32
    return %c0_i32, %c0_i32_0, %arg0 : i32, i32, i32
  }
  func.func @transform_3(%arg0: i32) -> (i32, i32) {
    %c0_i32 = arith.constant 0 : i32
    %c0_i32_0 = arith.constant 0 : i32
    return %c0_i32, %arg0 : i32, i32
  }
}

</mosaic_0001>

<llo_original>
// kernel: generator_forward.5
$region0: #{generator_forward.5}
  #allocation0 [shape = 'u32[]', space=smem, size = 0x4, offset = 0x4, fixed_abs, tag = 'smem constant byte address 0x4 - core index']
  #allocation1 [shape = 'u32[72,128]{1,0:T(1,128)}', space=vmem, size = 0x9000, scoped, tag = 'internal scratch']
  #allocation2 [shape = 'f32[1,128]{1,0:T(1,128)}', space=vmem, size = 0x200, scoped, tag = 'scratch operand']
  #allocation3 [shape = 'f32[1,128]{1,0:T(1,128)}', space=vmem, size = 0x200, scoped, tag = 'scratch operand']
  #allocation4 [shape = 'f32[1,128]{1,0:T(1,128)}', space=vmem, size = 0x200, scoped, tag = 'scratch operand']
  %s0 = inlined_call_operand.vmem [shape: bf16[32,128], index: 0, kind: input, shape index: {}]
  %s1 = inlined_call_operand.vmem [shape: bf16[1,128,128], index: 1, kind: input, shape index: {}]
  %s2 = inlined_call_operand.hbm [shape: f32[1,128], index: 2, kind: input, shape index: {}]
  %s3 = inlined_call_operand.hbm [shape: f32[1,128], index: 3, kind: input, shape index: {}]
  %s4 = inlined_call_operand.vmem [shape: bf16[32,128], index: 4, kind: output, shape index: {}]
  %s5 = sld [smem:[#allocation0]]
  $region42: #{generator_forward.5} parent=0
    _
  %s7 = ssub.s32 1, %s5
  %s8 = scalar_select 0, %s7, %s5
  $region1: #{generator_forward.5} parent=0
    #allocation5 [shape = 'u8[512]{0}', space=vmem, size = 0x400, scoped, tag = 'input window, operand 2, single buffered']
    #allocation6 [shape = 's32[1]{0}', space=sflag, size = 0x4, scoped, tag = 'scoped memory for generator_forward.5']
    #allocation7 [shape = 'u8[512]{0}', space=vmem, size = 0x400, scoped, tag = 'input window, operand 3, single buffered']
    #allocation8 [shape = 's32[1]{0}', space=sflag, size = 0x4, scoped, tag = 'scoped memory for generator_forward.5']
    %9 = vsyncpa [#allocation6], 0
    %10 = vsyncpa [#allocation8], 0
    // Predicated region
    $region2: #{generator_forward.5} parent=1 // pred_check
      _
    $region3: #{generator_forward.5} parent=1 // pred_check_branch
      %12 = sbr.rel (0) target = $region5
    $region4: #{generator_forward.5} parent=1 // pred_region
      %s13 = sadd.s32 0, 0
      %s14 = smul.u32 4, %s13
      %p15 = scmp.lt.s32.totalorder %s14, 3
      %s16 = scalar_select %p15, %s14, 3
      %s17 = smul.addr %s16, 4
      %s18 = scalar_lea.vmem %s0, %s17
      %s19 = sadd.s32 0, 0
      %s20 = smul.u32 4, %s19
    $region5: #{generator_forward.5} parent=1 // pred_fallthru
      _
    // Predicated region
    $region6: #{generator_forward.5} parent=1 // pred_check
      _
    $region7: #{generator_forward.5} parent=1 // pred_check_branch
      %22 = sbr.rel (0) target = $region9
    $region8: #{generator_forward.5} parent=1 // pred_region
      _
    $region9: #{generator_forward.5} parent=1 // pred_fallthru
      _
    // Predicated region
    $region10: #{generator_forward.5} parent=1 // pred_check
      _
    $region11: #{generator_forward.5} parent=1 // pred_check_branch
      %24 = sbr.rel (0) target = $region13
    $region12: #{generator_forward.5} parent=1 // pred_region
      %26 = vsyncadd [#allocation6], 0
      %s28 = sshll.u32 %s2, 4
      %s29 = int_to_ptr.hbm [resolvable:$true] %s28
      %s30 = sshll.u32 [#allocation5], 4
      %s31 = int_to_ptr.vmem [resolvable:$true] %s30
      %33 = dma.hbm_to_vmem [thread:$0]  %s29, 16, %s31, [#allocation6]
    $region13: #{generator_forward.5} parent=1 // pred_fallthru
      _
    // Predicated region
    $region14: #{generator_forward.5} parent=1 // pred_check
      _
    $region15: #{generator_forward.5} parent=1 // pred_check_branch
      %35 = sbr.rel (0) target = $region17
    $region16: #{generator_forward.5} parent=1 // pred_region
      %37 = vsyncadd [#allocation8], 0
      %s39 = sshll.u32 %s3, 4
      %s40 = int_to_ptr.hbm [resolvable:$true] %s39
      %s41 = sshll.u32 [#allocation7], 4
      %s42 = int_to_ptr.vmem [resolvable:$true] %s41
      %44 = dma.hbm_to_vmem [thread:$0]  %s40, 16, %s42, [#allocation8]
    $region17: #{generator_forward.5} parent=1 // pred_fallthru
      _
    // Predicated region
    $region18: #{generator_forward.5} parent=1 // pred_check
      _
    $region19: #{generator_forward.5} parent=1 // pred_check_branch
      %46 = sbr.rel (0) target = $region21
    $region20: #{generator_forward.5} parent=1 // pred_region
      %48 = dma.done [#allocation6], 16
    $region21: #{generator_forward.5} parent=1 // pred_fallthru
      _
    // Predicated region
    $region22: #{generator_forward.5} parent=1 // pred_check
      _
    $region23: #{generator_forward.5} parent=1 // pred_check_branch
      %50 = sbr.rel (0) target = $region25
    $region24: #{generator_forward.5} parent=1 // pred_region
      %52 = dma.done [#allocation8], 16
    $region25: #{generator_forward.5} parent=1 // pred_fallthru
      _
    %s53 = sadd.s32 0, 0
    %s54 = smul.u32 4, %s53
    %p55 = scmp.lt.s32.totalorder %s54, 3
    %s56 = scalar_select %p55, %s54, 3
    %s57 = smul.addr %s56, 4
    %s58 = scalar_lea.vmem %s0, %s57
    %s59 = sadd.s32 0, 0
    %s60 = smul.u32 4, %s59
    %p61 = scmp.lt.s32.totalorder %s60, 3
    %s62 = scalar_select %p61, %s60, 3
    %s63 = smul.addr %s62, 4
    %s64 = scalar_lea.vmem %s0, %s63
    %s65 = sadd.s32 0, 0
    %s66 = smul.u32 4, %s65
    %s67 = sadd.s32 0, 0
    %p68 = scmp.eq.s32.totalorder %s67, 0
    // Predicated region
    $region26: #{generator_forward.5} parent=1 // pred_check
      %p69 = pneg %p68
    $region27: #{generator_forward.5} parent=1 // pred_check_branch
      %71 = sbr.rel (%p69) target = $region29
    $region28: #{generator_forward.5} parent=1 // pred_region
      %72 = vst [vmem:[#allocation2] sm:$0x1] 0.0
      %73 = vst [vmem:[#allocation3] sm:$0x1] 0.0
      %74 = vst [vmem:[#allocation4] sm:$0x1] 0.0
    $region29: #{generator_forward.5} parent=1 // pred_fallthru
      _
    %v75 = vld [vmem:[%s64] sm:$0xf]
    %v76 = vld [vmem:[%s64 + $0x4] sm:$0xf]
    %v77 = vld [vmem:[%s64 + $0x8] sm:$0xf]
    %v78 = vld [vmem:[%s64 + $0xc] sm:$0xf]
    %v79 = vld [vmem:[%s1] sm:$0xf]
    %v80 = vld [vmem:[%s1 + $0x4] sm:$0xf]
    %v81 = vld [vmem:[%s1 + $0x8] sm:$0xf]
    %v82 = vld [vmem:[%s1 + $0xc] sm:$0xf]
    %v83 = vld [vmem:[%s1 + $0x10] sm:$0xf]
    %v84 = vld [vmem:[%s1 + $0x14] sm:$0xf]
    %v85 = vld [vmem:[%s1 + $0x18] sm:$0xf]
    %v86 = vld [vmem:[%s1 + $0x1c] sm:$0xf]
    %v87 = vld [vmem:[%s1 + $0x20] sm:$0xf]
    %v88 = vld [vmem:[%s1 + $0x24] sm:$0xf]
    %v89 = vld [vmem:[%s1 + $0x28] sm:$0xf]
    %v90 = vld [vmem:[%s1 + $0x2c] sm:$0xf]
    %v91 = vld [vmem:[%s1 + $0x30] sm:$0xf]
    %v92 = vld [vmem:[%s1 + $0x34] sm:$0xf]
    %v93 = vld [vmem:[%s1 + $0x38] sm:$0xf]
    %v94 = vld [vmem:[%s1 + $0x3c] sm:$0xf]
    %v99 = vunpack.c.l.b16 %v75
    %v100 = vunpack.c.l.b16 %v76
    %v101 = vunpack.c.l.b16 %v77
    %v102 = vunpack.c.l.b16 %v78
    %v103 = vpack.c.b16 %v100, %v99
    %v104 = vpack.c.b16 %v102, %v101
    %v123 = vunpack.c.l.b16 %v79
    %v124 = vunpack.c.l.b16 %v80
    %v125 = vunpack.c.l.b16 %v81
    %v126 = vunpack.c.l.b16 %v82
    %v127 = vunpack.c.l.b16 %v83
    %v128 = vunpack.c.l.b16 %v84
    %v129 = vunpack.c.l.b16 %v85
    %v130 = vunpack.c.l.b16 %v86
    %v131 = vunpack.c.l.b16 %v87
    %v132 = vunpack.c.l.b16 %v88
    %v133 = vunpack.c.l.b16 %v89
    %v134 = vunpack.c.l.b16 %v90
    %v135 = vunpack.c.l.b16 %v91
    %v136 = vunpack.c.l.b16 %v92
    %v137 = vunpack.c.l.b16 %v93
    %v138 = vunpack.c.l.b16 %v94
    %v139 = vpack.c.b16 %v124, %v123
    %v140 = vpack.c.b16 %v126, %v125
    %v141 = vpack.c.b16 %v128, %v127
    %v142 = vpack.c.b16 %v130, %v129
    %v143 = vpack.c.b16 %v132, %v131
    %v144 = vpack.c.b16 %v134, %v133
    %v145 = vpack.c.b16 %v136, %v135
    %v146 = vpack.c.b16 %v138, %v137
    %155 = vmatpush.bf16.msra.mxu0 %v146
    %156 = vmatpush.bf16.msra.mxu0 %v145
    %157 = vmatpush.bf16.msra.mxu0 %v144
    %158 = vmatpush.bf16.msra.mxu0 %v143
    %159 = vmatpush.bf16.msra.mxu0 %v142
    %160 = vmatpush.bf16.msra.mxu0 %v141
    %161 = vmatpush.bf16.msra.mxu0 %v140
    %162 = vmatpush.bf16.msra.mxu0 %v139
    %163 = vmatmul.bf16.gmra.mxu0 %v103
    %v164 = vpop.f32.mrf.mxu0
    %v165 = vadd.f32 0.0, %v164
    %v166 = vpop.f32.mrf.mxu0
    %v167 = vadd.f32 0.0, %v166
    %168 = vmatmul.bf16.gmra.mxu0 %v104
    %v169 = vpop.f32.mrf.mxu0
    %v170 = vadd.f32 0.0, %v169
    %v171 = vpop.f32.mrf.mxu0
    %v172 = vadd.f32 0.0, %v171
    %173 = vdwg.mxu0
    %s174 = smul.u32 %s67, 32
    %v175 = vpack.c.bf16 %v165, %v165
    %v176 = vpack.c.bf16 %v167, %v167
    %v177 = vpack.c.bf16 %v170, %v170
    %v178 = vpack.c.bf16 %v172, %v172
    %s179 = sshra.s32 %s174, 3
    %s180 = sand.u32 %s174, 7
    %s181 = smul.addr %s179, 4
    %s182 = scalar_lea.vmem %s4, %s181
    %183 = vst [vmem:[%s182] sm:$0xf] %v175
    %184 = vst [vmem:[%s182 + $0x4] sm:$0xf] %v176
    %185 = vst [vmem:[%s182 + $0x8] sm:$0xf] %v177
    %186 = vst [vmem:[%s182 + $0xc] sm:$0xf] %v178
    %v187 = vadd.f32 %v165, %v167
    %v188 = vadd.f32 %v187, %v170
    %v189 = vadd.f32 %v188, %v172
    %v190 = vrot.slane %v189, 4
    %v191 = vadd.f32 %v189, %v190
    %v192 = vrot.slane %v191, 2
    %v193 = vadd.f32 %v191, %v192
    %v194 = vrot.slane %v193, 1
    %v195 = vadd.f32 %v193, %v194
    %v196 = vmul.f32 %v195, 0.03125
    %v197 = vsub.f32 %v165, %v196
    %v198 = vsub.f32 %v167, %v196
    %v199 = vsub.f32 %v170, %v196
    %v200 = vsub.f32 %v172, %v196
    %v201 = vld [vmem:[#allocation2] sm:$0x1]
    %v202 = vadd.f32 %v201, %v196
    %203 = vst [vmem:[#allocation2] sm:$0x1] %v202
    %v204 = vld [vmem:[#allocation3] sm:$0x1]
    %v205 = vmul.f32 %v196, %v196
    %v206 = vadd.f32 %v204, %v205
    %207 = vst [vmem:[#allocation3] sm:$0x1] %v206
    %v208 = vld [vmem:[#allocation4] sm:$0x1]
    %v209 = vmul.f32 %v197, %v197
    %v210 = vmul.f32 %v198, %v198
    %v211 = vmul.f32 %v199, %v199
    %v212 = vmul.f32 %v200, %v200
    %v213 = vadd.f32 %v209, %v210
    %v214 = vadd.f32 %v213, %v211
    %v215 = vadd.f32 %v214, %v212
    %v216 = vrot.slane %v215, 4
    %v217 = vadd.f32 %v215, %v216
    %v218 = vrot.slane %v217, 2
    %v219 = vadd.f32 %v217, %v218
    %v220 = vrot.slane %v219, 1
    %v221 = vadd.f32 %v219, %v220
    %v222 = vadd.f32 %v208, %v221
    %223 = vst [vmem:[#allocation4] sm:$0x1] %v222
    // Predicated region
    $region30: #{generator_forward.5} parent=1 // pred_check
      %p224 = pneg %p68
    $region31: #{generator_forward.5} parent=1 // pred_check_branch
      %226 = sbr.rel (%p224) target = $region33
    $region32: #{generator_forward.5} parent=1 // pred_region
      %v227 = vld [vmem:[#allocation2] sm:$0x1]
      %v228 = vld [vmem:[#allocation3] sm:$0x1]
      %v229 = vmul.f32 %v227, %v227
      %v230 = vsub.f32 %v228, %v229
      %v231 = vmax.f32 %v230, 0.0
      %v232 = vld [vmem:[#allocation4] sm:$0x1]
      %v233 = vmul.f32 %v232, 0.03125
      %v234 = vadd.f32 %v233, %v231
      %v235 = vld [vmem:[#allocation5] sm:$0x1]
      %v236 = vadd.f32 %v234, 1e-05
      %v237 = vrsqrt.pop %v236
      %v238 = vmul.f32 %v237, %v236
      %v239 = vmul.f32 %v238, %v237
      %v240 = vmul.f32 0.5, %v239
      %v241 = vsub.f32 1.5, %v240
      %v242 = vmul.f32 %v237, %v241
      %vm243 = vweird.f32 %v236
      %vm244 = vweird.f32 %v237
      %vm245 = vmor %vm243, %vm244
      %v246 = vsel %vm245, %v237, %v242
      %v247 = vmul.f32 %v235, %v246
      %v248 = vld [vmem:[#allocation7] sm:$0x1]
      %v249 = vmul.f32 %v227, %v247
      %v250 = vsub.f32 %v248, %v249
      %v251 = vld [vmem:[%s4] sm:$0xf]
      %v252 = vld [vmem:[%s4 + $0x4] sm:$0xf]
      %v253 = vld [vmem:[%s4 + $0x8] sm:$0xf]
      %v254 = vld [vmem:[%s4 + $0xc] sm:$0xf]
      %v255 = vunpack.c.l.bf16 %v251
      %v256 = vunpack.c.l.bf16 %v252
      %v257 = vunpack.c.l.bf16 %v253
      %v258 = vunpack.c.l.bf16 %v254
      %v260 = vperm.slane %v247, 0
      %v262 = vmul.f32 %v255, %v260
      %v263 = vmul.f32 %v256, %v260
      %v264 = vmul.f32 %v257, %v260
      %v265 = vmul.f32 %v258, %v260
      %v267 = vperm.slane %v250, 0
      %v269 = vadd.f32 %v262, %v267
      %v270 = vadd.f32 %v263, %v267
      %v271 = vadd.f32 %v264, %v267
      %v272 = vadd.f32 %v265, %v267
      %v273 = vmax.f32 %v269, 0.0
      %v274 = vmax.f32 %v270, 0.0
      %v275 = vmax.f32 %v271, 0.0
      %v276 = vmax.f32 %v272, 0.0
      %v277 = vpack.c.bf16 %v273, %v273
      %v278 = vpack.c.bf16 %v274, %v274
      %v279 = vpack.c.bf16 %v275, %v275
      %v280 = vpack.c.bf16 %v276, %v276
      %281 = vst [vmem:[%s4] sm:$0xf] %v277
      %282 = vst [vmem:[%s4 + $0x4] sm:$0xf] %v278
      %283 = vst [vmem:[%s4 + $0x8] sm:$0xf] %v279
      %284 = vst [vmem:[%s4 + $0xc] sm:$0xf] %v280
    $region33: #{generator_forward.5} parent=1 // pred_fallthru
      _
    // Predicated region
    $region34: #{generator_forward.5} parent=1 // pred_check
      _
    $region35: #{generator_forward.5} parent=1 // pred_check_branch
      %286 = sbr.rel (0) target = $region37
    $region36: #{generator_forward.5} parent=1 // pred_region
      _
    $region37: #{generator_forward.5} parent=1 // pred_fallthru
      _
    // Predicated region
    $region38: #{generator_forward.5} parent=1 // pred_check
      _
    $region39: #{generator_forward.5} parent=1 // pred_check_branch
      %288 = sbr.rel (0) target = $region41
    $region40: #{generator_forward.5} parent=1 // pred_region
      _
    $region41: #{generator_forward.5} parent=1 // pred_fallthru
      _
    %289 = vsyncpa [#allocation6], 1
    %290 = vsyncpa [#allocation8], 1

// kernel: generator_forward.6
$region0: #{generator_forward.6}
  #allocation0 [shape = 'u32[]', space=smem, size = 0x4, offset = 0x4, fixed_abs, tag = 'smem constant byte address 0x4 - core index']
  #allocation1 [shape = 'u32[72,128]{1,0:T(1,128)}', space=vmem, size = 0x9000, scoped, tag = 'internal scratch']
  #allocation2 [shape = 'f32[1,128]{1,0:T(1,128)}', space=vmem, size = 0x200, scoped, tag = 'scratch operand']
  #allocation3 [shape = 'f32[1,128]{1,0:T(1,128)}', space=vmem, size = 0x200, scoped, tag = 'scratch operand']
  #allocation4 [shape = 'f32[1,128]{1,0:T(1,128)}', space=vmem, size = 0x200, scoped, tag = 'scratch operand']
  %s0 = inlined_call_operand.vmem [shape: bf16[128,512], index: 0, kind: input, shape index: {}]
  %s1 = inlined_call_operand.vmem [shape: bf16[4,512,128], index: 1, kind: input, shape index: {}]
  %s2 = inlined_call_operand.vmem [shape: f32[1,128], index: 2, kind: input, shape index: {}]
  %s3 = inlined_call_operand.vmem [shape: f32[1,128], index: 3, kind: input, shape index: {}]
  %s4 = inlined_call_operand.vmem [shape: bf16[128,128], index: 4, kind: output, shape index: {}]
  %s5 = sld [smem:[#allocation0]]
  $region57: #{generator_forward.6} parent=0
    _
  %s7 = ssub.s32 1, %s5
  %s8 = scalar_select 0, %s7, %s5
  loop: start=0, step=1, limit=6
  $region2: #{generator_forward.6} parent=0 // loop_pre_header
    _
  $region3: #{generator_forward.6} parent=0 // loop_header
    %s10 = sphi 0, %s14
    %p11 = scmp.ge.s32.totalorder %s10, 6
    %s17 = sphi 0, %s29
    %s18 = sphi 0, %s25
    %s19 = sphi 0, %s17
    %s20 = sphi 0, %s18
    %s21 = sphi 0, %s19
    %s22 = sphi 0, %s20
    %s34 = sphi 0, %s36
    %s37 = sphi 0, %s34
    %s38 = sphi 0, %s37
    %s54 = sphi 0, %s38
    %s60 = sphi 0, %s62
    %s63 = sphi 0, %s60
    %s64 = sphi 0, %s63
    %s80 = sphi 0, %s64
    %s84 = sphi 0, %s84
    %s86 = sphi 0, %s84
    %s87 = sphi 0, %s86
    %s101 = sphi 0, %s87
    %s105 = sphi 0, %s105
    %s107 = sphi 0, %s105
    %s108 = sphi 0, %s107
    %s122 = sphi 0, %s108
    %s126 = sphi 0, %s126
    %s128 = sphi 0, %s126
    %s129 = sphi 0, %s128
    %s143 = sphi 0, %s129
  $region4: #{generator_forward.6} parent=0 // loop_header_branch
    %13 = sbr.rel (%p11) target = $region8
  $region5: #{generator_forward.6} parent=0 // loop_body
    %s15 = ssub.s32 %s10, 1
    %s16 = ssub.s32 %s10, 2
    %s23 = sadd.s32 1, %s18
    %p24 = scmp.ge.s32.totalorder %s23, 1
    %s25 = scalar_select %p24, 0, %s23
    %s26 = sadd.s32 1, %s17
    %s27 = scalar_select %p24, %s26, %s17
    %p28 = scmp.ge.s32.totalorder %s27, 4
    %s29 = scalar_select %p28, 0, %s27
    %s30 = sadd.s32 %s17, %s18
    %s31 = sadd.s32 %s29, %s25
    %s32 = ssub.s32 %s30, %s31
    %p33 = scmp.eq.s32.totalorder %s32, 0
    %s35 = sadd.s32 %s34, 1
    %s36 = scalar_select %p33, %s34, %s35
    %p39 = pneg %p33
    %p40 = scmp.eq.s32.totalorder %s10, 3
    %p41 = por %p39, %p40
    %p42 = scmp.ne.s32.totalorder %s34, %s37
    %p43 = scmp.eq.s32.totalorder %s10, 0
    %p44 = por %p42, %p43
    %p45 = scmp.ne.s32.totalorder %s34, %s37
    %p46 = scmp.eq.s32.totalorder %s15, 3
    %p47 = por %p45, %p46
    %p48 = scmp.ne.s32.totalorder %s37, %s38
    %p49 = scmp.eq.s32.totalorder %s15, 0
    %p50 = por %p48, %p49
    %p51 = scmp.ne.s32.totalorder %s37, %s38
    %p52 = scmp.eq.s32.totalorder %s16, 3
    %p53 = por %p51, %p52
    %p55 = scmp.ne.s32.totalorder %s38, %s54
    %p56 = scmp.eq.s32.totalorder %s16, 0
    %p57 = por %p55, %p56
    %s58 = ssub.s32 %s17, %s29
    %p59 = scmp.eq.s32.totalorder %s58, 0
    %s61 = sadd.s32 %s60, 1
    %s62 = scalar_select %p59, %s60, %s61
    %p65 = pneg %p59
    %p66 = scmp.eq.s32.totalorder %s10, 3
    %p67 = por %p65, %p66
    %p68 = scmp.ne.s32.totalorder %s60, %s63
    %p69 = scmp.eq.s32.totalorder %s10, 0
    %p70 = por %p68, %p69
    %p71 = scmp.ne.s32.totalorder %s60, %s63
    %p72 = scmp.eq.s32.totalorder %s15, 3
    %p73 = por %p71, %p72
    %p74 = scmp.ne.s32.totalorder %s63, %s64
    %p75 = scmp.eq.s32.totalorder %s15, 0
    %p76 = por %p74, %p75
    %p77 = scmp.ne.s32.totalorder %s63, %s64
    %p78 = scmp.eq.s32.totalorder %s16, 3
    %p79 = por %p77, %p78
    %p81 = scmp.ne.s32.totalorder %s64, %s80
    %p82 = scmp.eq.s32.totalorder %s16, 0
    %p83 = por %p81, %p82
    %s85 = sadd.s32 %s84, 1
    %p88 = scmp.eq.s32.totalorder %s10, 3
    %p89 = scmp.ne.s32.totalorder %s84, %s86
    %p90 = scmp.eq.s32.totalorder %s10, 0
    %p91 = por %p89, %p90
    %p92 = scmp.ne.s32.totalorder %s84, %s86
    %p93 = scmp.eq.s32.totalorder %s15, 3
    %p94 = por %p92, %p93
    %p95 = scmp.ne.s32.totalorder %s86, %s87
    %p96 = scmp.eq.s32.totalorder %s15, 0
    %p97 = por %p95, %p96
    %p98 = scmp.ne.s32.totalorder %s86, %s87
    %p99 = scmp.eq.s32.totalorder %s16, 3
    %p100 = por %p98, %p99
    %p102 = scmp.ne.s32.totalorder %s87, %s101
    %p103 = scmp.eq.s32.totalorder %s16, 0
    %p104 = por %p102, %p103
    %s106 = sadd.s32 %s105, 1
    %p109 = scmp.eq.s32.totalorder %s10, 3
    %p110 = scmp.ne.s32.totalorder %s105, %s107
    %p111 = scmp.eq.s32.totalorder %s10, 0
    %p112 = por %p110, %p111
    %p113 = scmp.ne.s32.totalorder %s105, %s107
    %p114 = scmp.eq.s32.totalorder %s15, 3
    %p115 = por %p113, %p114
    %p116 = scmp.ne.s32.totalorder %s107, %s108
    %p117 = scmp.eq.s32.totalorder %s15, 0
    %p118 = por %p116, %p117
    %p119 = scmp.ne.s32.totalorder %s107, %s108
    %p120 = scmp.eq.s32.totalorder %s16, 3
    %p121 = por %p119, %p120
    %p123 = scmp.ne.s32.totalorder %s108, %s122
    %p124 = scmp.eq.s32.totalorder %s16, 0
    %p125 = por %p123, %p124
    %s127 = sadd.s32 %s126, 1
    %p130 = scmp.eq.s32.totalorder %s10, 3
    %p131 = scmp.ne.s32.totalorder %s126, %s128
    %p132 = scmp.eq.s32.totalorder %s10, 0
    %p133 = por %p131, %p132
    %p134 = scmp.ne.s32.totalorder %s126, %s128
    %p135 = scmp.eq.s32.totalorder %s15, 3
    %p136 = por %p134, %p135
    %p137 = scmp.ne.s32.totalorder %s128, %s129
    %p138 = scmp.eq.s32.totalorder %s15, 0
    %p139 = por %p137, %p138
    %p140 = scmp.ne.s32.totalorder %s128, %s129
    %p141 = scmp.eq.s32.totalorder %s16, 3
    %p142 = por %p140, %p141
    %p144 = scmp.ne.s32.totalorder %s129, %s143
    %p145 = scmp.eq.s32.totalorder %s16, 0
    %p146 = por %p144, %p145
    %p147 = scmp.le.s32.totalorder 1, %s10
    %p148 = scmp.lt.s32.totalorder %s10, 5
    %p149 = pnand %p147, %p148
    %p150 = pneg %p149
    // Predicated region
    $region9: #{generator_forward.6} parent=5 // pred_check
      _
    $region10: #{generator_forward.6} parent=5 // pred_check_branch
      %152 = sbr.rel (%p149) target = $region12
    $region11: #{generator_forward.6} parent=5 // pred_region
      %s153 = ssub.s32 %s10, 1
      // Predicated region
      $region13: #{generator_forward.6} parent=11 // pred_check
        %p154 = pneg %p97
      $region14: #{generator_forward.6} parent=11 // pred_check_branch
        %156 = sbr.rel (%p154) target = $region16
      $region15: #{generator_forward.6} parent=11 // pred_region
        _
      $region16: #{generator_forward.6} parent=11 // pred_fallthru
        _
      // Predicated region
      $region17: #{generator_forward.6} parent=11 // pred_check
        %p157 = pneg %p118
      $region18: #{generator_forward.6} parent=11 // pred_check_branch
        %159 = sbr.rel (%p157) target = $region20
      $region19: #{generator_forward.6} parent=11 // pred_region
        _
      $region20: #{generator_forward.6} parent=11 // pred_fallthru
        _
    $region12: #{generator_forward.6} parent=5 // pred_fallthru
      _
    %p160 = scmp.lt.s32.totalorder %s10, 4
    // Predicated region
    $region21: #{generator_forward.6} parent=5 // pred_check
      %p161 = pneg %p160
    $region22: #{generator_forward.6} parent=5 // pred_check_branch
      %163 = sbr.rel (%p161) target = $region24
    $region23: #{generator_forward.6} parent=5 // pred_region
      // Predicated region
      $region25: #{generator_forward.6} parent=23 // pred_check
        %p164 = pneg %p44
      $region26: #{generator_forward.6} parent=23 // pred_check_branch
        %166 = sbr.rel (%p164) target = $region28
      $region27: #{generator_forward.6} parent=23 // pred_region
        %s167 = sadd.s32 %s17, %s18
        %s168 = smul.u32 4, %s167
        %p169 = scmp.lt.s32.totalorder %s168, 15
        %s170 = scalar_select %p169, %s168, 15
        %s171 = smul.addr %s170, 4
        %s172 = smul.addr %s171, 4
        %s173 = scalar_lea.vmem %s0, %s172
        %s174 = sadd.s32 %s17, %s18
        %s175 = smul.u32 4, %s174
      $region28: #{generator_forward.6} parent=23 // pred_fallthru
        _
      // Predicated region
      $region29: #{generator_forward.6} parent=23 // pred_check
        %p176 = pneg %p70
      $region30: #{generator_forward.6} parent=23 // pred_check_branch
        %178 = sbr.rel (%p176) target = $region32
      $region31: #{generator_forward.6} parent=23 // pred_region
        %p179 = scmp.lt.s32.totalorder %s17, 3
        %s180 = scalar_select %p179, %s17, 3
        %s181 = smul.addr %s180, 64
        %s182 = smul.addr %s181, 4
        %s183 = scalar_lea.vmem %s1, %s182
      $region32: #{generator_forward.6} parent=23 // pred_fallthru
        _
    $region24: #{generator_forward.6} parent=5 // pred_fallthru
      _
    %p184 = scmp.le.s32.totalorder 1, %s10
    %p185 = scmp.lt.s32.totalorder %s10, 5
    %p186 = pnand %p184, %p185
    %p187 = pneg %p186
    // Predicated region
    $region33: #{generator_forward.6} parent=5 // pred_check
      _
    $region34: #{generator_forward.6} parent=5 // pred_check_branch
      %189 = sbr.rel (%p186) target = $region36
    $region35: #{generator_forward.6} parent=5 // pred_region
      %s190 = ssub.s32 %s10, 1
      %s191 = sadd.s32 %s19, %s20
      %s192 = smul.u32 4, %s191
      %p193 = scmp.lt.s32.totalorder %s192, 15
      %s194 = scalar_select %p193, %s192, 15
      %s195 = smul.addr %s194, 4
      %s196 = smul.addr %s195, 4
      %s197 = scalar_lea.vmem %s0, %s196
      %p198 = pneg %p50
      %p199 = pneg %p47
      %p200 = scmp.lt.s32.totalorder %s19, 3
      %s201 = scalar_select %p200, %s19, 3
      %s202 = smul.addr %s201, 64
      %s203 = smul.addr %s202, 4
      %s204 = scalar_lea.vmem %s1, %s203
      %p205 = pneg %p76
      %p206 = pneg %p73
      %p207 = pneg %p97
      %p208 = pneg %p94
      %p209 = pneg %p118
      %p210 = pneg %p115
      %p211 = pneg %p139
      %p212 = pneg %p136
      %s213 = sadd.s32 %s19, %s20
      %s214 = smul.u32 4, %s213
      %p215 = scmp.lt.s32.totalorder %s214, 15
      %s216 = scalar_select %p215, %s214, 15
      %s217 = smul.addr %s216, 4
      %s218 = smul.addr %s217, 4
      %s219 = scalar_lea.vmem %s0, %s218
      %s220 = sadd.s32 %s19, %s20
      %s221 = smul.u32 4, %s220
      %p222 = scmp.lt.s32.totalorder %s19, 3
      %s223 = scalar_select %p222, %s19, 3
      %s224 = smul.addr %s223, 64
      %s225 = smul.addr %s224, 4
      %s226 = scalar_lea.vmem %s1, %s225
      %s227 = sadd.s32 %s19, %s20
      %p228 = scmp.eq.s32.totalorder %s227, 0
      // Predicated region
      $region37: #{generator_forward.6} parent=35 // pred_check
        %p229 = pneg %p228
      $region38: #{generator_forward.6} parent=35 // pred_check_branch
        %231 = sbr.rel (%p229) target = $region40
      $region39: #{generator_forward.6} parent=35 // pred_region
        %232 = vst [vmem:[#allocation2] sm:$0x1] 0.0
        %233 = vst [vmem:[#allocation3] sm:$0x1] 0.0
        %234 = vst [vmem:[#allocation4] sm:$0x1] 0.0
      $region40: #{generator_forward.6} parent=35 // pred_fallthru
        _
      %v235 = vld [vmem:[%s219] sm:$0xff]
      %v236 = vld [vmem:[%s219 + $0x8] sm:$0xff]
      %v237 = vld [vmem:[%s219 + $0x10] sm:$0xff]
      %v238 = vld [vmem:[%s219 + $0x18] sm:$0xff]
      %v239 = vld [vmem:[%s219 + $0x20] sm:$0xff]
      %v240 = vld [vmem:[%s219 + $0x28] sm:$0xff]
      %v241 = vld [vmem:[%s219 + $0x30] sm:$0xff]
      %v242 = vld [vmem:[%s219 + $0x38] sm:$0xff]
      %v243 = vld [vmem:[%s226] sm:$0xf]
      %v244 = vld [vmem:[%s226 + $0x4] sm:$0xf]
      %v245 = vld [vmem:[%s226 + $0x8] sm:$0xf]
      %v246 = vld [vmem:[%s226 + $0xc] sm:$0xf]
      %v247 = vld [vmem:[%s226 + $0x10] sm:$0xf]
      %v248 = vld [vmem:[%s226 + $0x14] sm:$0xf]
      %v249 = vld [vmem:[%s226 + $0x18] sm:$0xf]
      %v250 = vld [vmem:[%s226 + $0x1c] sm:$0xf]
      %v251 = vld [vmem:[%s226 + $0x20] sm:$0xf]
      %v252 = vld [vmem:[%s226 + $0x24] sm:$0xf]
      %v253 = vld [vmem:[%s226 + $0x28] sm:$0xf]
      %v254 = vld [vmem:[%s226 + $0x2c] sm:$0xf]
      %v255 = vld [vmem:[%s226 + $0x30] sm:$0xf]
      %v256 = vld [vmem:[%s226 + $0x34] sm:$0xf]
      %v257 = vld [vmem:[%s226 + $0x38] sm:$0xf]
      %v258 = vld [vmem:[%s226 + $0x3c] sm:$0xf]
      %v259 = vld [vmem:[%s226 + $0x40] sm:$0xf]
      %v260 = vld [vmem:[%s226 + $0x44] sm:$0xf]
      %v261 = vld [vmem:[%s226 + $0x48] sm:$0xf]
      %v262 = vld [vmem:[%s226 + $0x4c] sm:$0xf]
      %v263 = vld [vmem:[%s226 + $0x50] sm:$0xf]
      %v264 = vld [vmem:[%s226 + $0x54] sm:$0xf]
      %v265 = vld [vmem:[%s226 + $0x58] sm:$0xf]
      %v266 = vld [vmem:[%s226 + $0x5c] sm:$0xf]
      %v267 = vld [vmem:[%s226 + $0x60] sm:$0xf]
      %v268 = vld [vmem:[%s226 + $0x64] sm:$0xf]
      %v269 = vld [vmem:[%s226 + $0x68] sm:$0xf]
      %v270 = vld [vmem:[%s226 + $0x6c] sm:$0xf]
      %v271 = vld [vmem:[%s226 + $0x70] sm:$0xf]
      %v272 = vld [vmem:[%s226 + $0x74] sm:$0xf]
      %v273 = vld [vmem:[%s226 + $0x78] sm:$0xf]
      %v274 = vld [vmem:[%s226 + $0x7c] sm:$0xf]
      %v275 = vld [vmem:[%s226 + $0x80] sm:$0xf]
      %v276 = vld [vmem:[%s226 + $0x84] sm:$0xf]
      %v277 = vld [vmem:[%s226 + $0x88] sm:$0xf]
      %v278 = vld [vmem:[%s226 + $0x8c] sm:$0xf]
      %v279 = vld [vmem:[%s226 + $0x90] sm:$0xf]
      %v280 = vld [vmem:[%s226 + $0x94] sm:$0xf]
      %v281 = vld [vmem:[%s226 + $0x98] sm:$0xf]
      %v282 = vld [vmem:[%s226 + $0x9c] sm:$0xf]
      %v283 = vld [vmem:[%s226 + $0xa0] sm:$0xf]
      %v284 = vld [vmem:[%s226 + $0xa4] sm:$0xf]
      %v285 = vld [vmem:[%s226 + $0xa8] sm:$0xf]
      %v286 = vld [vmem:[%s226 + $0xac] sm:$0xf]
      %v287 = vld [vmem:[%s226 + $0xb0] sm:$0xf]
      %v288 = vld [vmem:[%s226 + $0xb4] sm:$0xf]
      %v289 = vld [vmem:[%s226 + $0xb8] sm:$0xf]
      %v290 = vld [vmem:[%s226 + $0xbc] sm:$0xf]
      %v291 = vld [vmem:[%s226 + $0xc0] sm:$0xf]
      %v292 = vld [vmem:[%s226 + $0xc4] sm:$0xf]
      %v293 = vld [vmem:[%s226 + $0xc8] sm:$0xf]
      %v294 = vld [vmem:[%s226 + $0xcc] sm:$0xf]
      %v295 = vld [vmem:[%s226 + $0xd0] sm:$0xf]
      %v296 = vld [vmem:[%s226 + $0xd4] sm:$0xf]
      %v297 = vld [vmem:[%s226 + $0xd8] sm:$0xf]
      %v298 = vld [vmem:[%s226 + $0xdc] sm:$0xf]
      %v299 = vld [vmem:[%s226 + $0xe0] sm:$0xf]
      %v300 = vld [vmem:[%s226 + $0xe4] sm:$0xf]
      %v301 = vld [vmem:[%s226 + $0xe8] sm:$0xf]
      %v302 = vld [vmem:[%s226 + $0xec] sm:$0xf]
      %v303 = vld [vmem:[%s226 + $0xf0] sm:$0xf]
      %v304 = vld [vmem:[%s226 + $0xf4] sm:$0xf]
      %v305 = vld [vmem:[%s226 + $0xf8] sm:$0xf]
      %v306 = vld [vmem:[%s226 + $0xfc] sm:$0xf]
      %v315 = vunpack.c.l.b16 %v235
      %v316 = vunpack.c.h.b16 %v235
      %v317 = vunpack.c.l.b16 %v236
      %v318 = vunpack.c.h.b16 %v236
      %v319 = vunpack.c.l.b16 %v237
      %v320 = vunpack.c.h.b16 %v237
      %v321 = vunpack.c.l.b16 %v238
      %v322 = vunpack.c.h.b16 %v238
      %v323 = vunpack.c.l.b16 %v239
      %v324 = vunpack.c.h.b16 %v239
      %v325 = vunpack.c.l.b16 %v240
      %v326 = vunpack.c.h.b16 %v240
      %v327 = vunpack.c.l.b16 %v241
      %v328 = vunpack.c.h.b16 %v241
      %v329 = vunpack.c.l.b16 %v242
      %v330 = vunpack.c.h.b16 %v242
      %v331 = vpack.c.b16 %v319, %v315
      %v332 = vpack.c.b16 %v320, %v316
      %v333 = vpack.c.b16 %v321, %v317
      %v334 = vpack.c.b16 %v322, %v318
      %v335 = vpack.c.b16 %v327, %v323
      %v336 = vpack.c.b16 %v328, %v324
      %v337 = vpack.c.b16 %v329, %v325
      %v338 = vpack.c.b16 %v330, %v326
      %v411 = vunpack.c.l.b16 %v243
      %v412 = vunpack.c.l.b16 %v244
      %v413 = vunpack.c.l.b16 %v245
      %v414 = vunpack.c.l.b16 %v246
      %v415 = vunpack.c.l.b16 %v247
      %v416 = vunpack.c.l.b16 %v248
      %v417 = vunpack.c.l.b16 %v249
      %v418 = vunpack.c.l.b16 %v250
      %v419 = vunpack.c.l.b16 %v251
      %v420 = vunpack.c.l.b16 %v252
      %v421 = vunpack.c.l.b16 %v253
      %v422 = vunpack.c.l.b16 %v254
      %v423 = vunpack.c.l.b16 %v255
      %v424 = vunpack.c.l.b16 %v256
      %v425 = vunpack.c.l.b16 %v257
      %v426 = vunpack.c.l.b16 %v258
      %v427 = vunpack.c.l.b16 %v259
      %v428 = vunpack.c.l.b16 %v260
      %v429 = vunpack.c.l.b16 %v261
      %v430 = vunpack.c.l.b16 %v262
      %v431 = vunpack.c.l.b16 %v263
      %v432 = vunpack.c.l.b16 %v264
      %v433 = vunpack.c.l.b16 %v265
      %v434 = vunpack.c.l.b16 %v266
      %v435 = vunpack.c.l.b16 %v267
      %v436 = vunpack.c.l.b16 %v268
      %v437 = vunpack.c.l.b16 %v269
      %v438 = vunpack.c.l.b16 %v270
      %v439 = vunpack.c.l.b16 %v271
      %v440 = vunpack.c.l.b16 %v272
      %v441 = vunpack.c.l.b16 %v273
      %v442 = vunpack.c.l.b16 %v274
      %v443 = vunpack.c.l.b16 %v275
      %v444 = vunpack.c.l.b16 %v276
      %v445 = vunpack.c.l.b16 %v277
      %v446 = vunpack.c.l.b16 %v278
      %v447 = vunpack.c.l.b16 %v279
      %v448 = vunpack.c.l.b16 %v280
      %v449 = vunpack.c.l.b16 %v281
      %v450 = vunpack.c.l.b16 %v282
      %v451 = vunpack.c.l.b16 %v283
      %v452 = vunpack.c.l.b16 %v284
      %v453 = vunpack.c.l.b16 %v285
      %v454 = vunpack.c.l.b16 %v286
      %v455 = vunpack.c.l.b16 %v287
      %v456 = vunpack.c.l.b16 %v288
      %v457 = vunpack.c.l.b16 %v289
      %v458 = vunpack.c.l.b16 %v290
      %v459 = vunpack.c.l.b16 %v291
      %v460 = vunpack.c.l.b16 %v292
      %v461 = vunpack.c.l.b16 %v293
      %v462 = vunpack.c.l.b16 %v294
      %v463 = vunpack.c.l.b16 %v295
      %v464 = vunpack.c.l.b16 %v296
      %v465 = vunpack.c.l.b16 %v297
      %v466 = vunpack.c.l.b16 %v298
      %v467 = vunpack.c.l.b16 %v299
      %v468 = vunpack.c.l.b16 %v300
      %v469 = vunpack.c.l.b16 %v301
      %v470 = vunpack.c.l.b16 %v302
      %v471 = vunpack.c.l.b16 %v303
      %v472 = vunpack.c.l.b16 %v304
      %v473 = vunpack.c.l.b16 %v305
      %v474 = vunpack.c.l.b16 %v306
      %v475 = vpack.c.b16 %v412, %v411
      %v476 = vpack.c.b16 %v414, %v413
      %v477 = vpack.c.b16 %v416, %v415
      %v478 = vpack.c.b16 %v418, %v417
      %v479 = vpack.c.b16 %v420, %v419
      %v480 = vpack.c.b16 %v422, %v421
      %v481 = vpack.c.b16 %v424, %v423
      %v482 = vpack.c.b16 %v426, %v425
      %v483 = vpack.c.b16 %v428, %v427
      %v484 = vpack.c.b16 %v430, %v429
      %v485 = vpack.c.b16 %v432, %v431
      %v486 = vpack.c.b16 %v434, %v433
      %v487 = vpack.c.b16 %v436, %v435
      %v488 = vpack.c.b16 %v438, %v437
      %v489 = vpack.c.b16 %v440, %v439
      %v490 = vpack.c.b16 %v442, %v441
      %v491 = vpack.c.b16 %v444, %v443
      %v492 = vpack.c.b16 %v446, %v445
      %v493 = vpack.c.b16 %v448, %v447
      %v494 = vpack.c.b16 %v450, %v449
      %v495 = vpack.c.b16 %v452, %v451
      %v496 = vpack.c.b16 %v454, %v453
      %v497 = vpack.c.b16 %v456, %v455
      %v498 = vpack.c.b16 %v458, %v457
      %v499 = vpack.c.b16 %v460, %v459
      %v500 = vpack.c.b16 %v462, %v461
      %v501 = vpack.c.b16 %v464, %v463
      %v502 = vpack.c.b16 %v466, %v465
      %v503 = vpack.c.b16 %v468, %v467
      %v504 = vpack.c.b16 %v470, %v469
      %v505 = vpack.c.b16 %v472, %v471
      %v506 = vpack.c.b16 %v474, %v473
      %539 = vmatpush.bf16.msra.mxu0 %v482
      %540 = vmatpush.bf16.msra.mxu0 %v481
      %541 = vmatpush.bf16.msra.mxu0 %v480
      %542 = vmatpush.bf16.msra.mxu0 %v479
      %543 = vmatpush.bf16.msra.mxu0 %v478
      %544 = vmatpush.bf16.msra.mxu0 %v477
      %545 = vmatpush.bf16.msra.mxu0 %v476
      %546 = vmatpush.bf16.msra.mxu0 %v475
      %547 = vmatmul.bf16.gmra.mxu0 %v331
      %v548 = vpop.f32.mrf.mxu0
      %v549 = vadd.f32 0.0, %v548
      %v550 = vpop.f32.mrf.mxu0
      %v551 = vadd.f32 0.0, %v550
      %552 = vmatmul.bf16.gmra.mxu0 %v335
      %v553 = vpop.f32.mrf.mxu0
      %v554 = vadd.f32 0.0, %v553
      %v555 = vpop.f32.mrf.mxu0
      %v556 = vadd.f32 0.0, %v555
      %557 = vdwg.mxu0
      %558 = vmatpush.bf16.msra.mxu0 %v490
      %559 = vmatpush.bf16.msra.mxu0 %v489
      %560 = vmatpush.bf16.msra.mxu0 %v488
      %561 = vmatpush.bf16.msra.mxu0 %v487
      %562 = vmatpush.bf16.msra.mxu0 %v486
      %563 = vmatpush.bf16.msra.mxu0 %v485
      %564 = vmatpush.bf16.msra.mxu0 %v484
      %565 = vmatpush.bf16.msra.mxu0 %v483
      %566 = vmatmul.bf16.gmra.mxu0 %v332
      %v567 = vpop.f32.mrf.mxu0
      %v568 = vadd.f32 %v549, %v567
      %v569 = vpop.f32.mrf.mxu0
      %v570 = vadd.f32 %v551, %v569
      %571 = vmatmul.bf16.gmra.mxu0 %v336
      %v572 = vpop.f32.mrf.mxu0
      %v573 = vadd.f32 %v554, %v572
      %v574 = vpop.f32.mrf.mxu0
      %v575 = vadd.f32 %v556, %v574
      %576 = vdwg.mxu0
      %577 = vmatpush.bf16.msra.mxu0 %v498
      %578 = vmatpush.bf16.msra.mxu0 %v497
      %579 = vmatpush.bf16.msra.mxu0 %v496
      %580 = vmatpush.bf16.msra.mxu0 %v495
      %581 = vmatpush.bf16.msra.mxu0 %v494
      %582 = vmatpush.bf16.msra.mxu0 %v493
      %583 = vmatpush.bf16.msra.mxu0 %v492
      %584 = vmatpush.bf16.msra.mxu0 %v491
      %585 = vmatmul.bf16.gmra.mxu0 %v333
      %v586 = vpop.f32.mrf.mxu0
      %v587 = vadd.f32 %v568, %v586
      %v588 = vpop.f32.mrf.mxu0
      %v589 = vadd.f32 %v570, %v588
      %590 = vmatmul.bf16.gmra.mxu0 %v337
      %v591 = vpop.f32.mrf.mxu0
      %v592 = vadd.f32 %v573, %v591
      %v593 = vpop.f32.mrf.mxu0
      %v594 = vadd.f32 %v575, %v593
      %595 = vdwg.mxu0
      %596 = vmatpush.bf16.msra.mxu0 %v506
      %597 = vmatpush.bf16.msra.mxu0 %v505
      %598 = vmatpush.bf16.msra.mxu0 %v504
      %599 = vmatpush.bf16.msra.mxu0 %v503
      %600 = vmatpush.bf16.msra.mxu0 %v502
      %601 = vmatpush.bf16.msra.mxu0 %v501
      %602 = vmatpush.bf16.msra.mxu0 %v500
      %603 = vmatpush.bf16.msra.mxu0 %v499
      %604 = vmatmul.bf16.gmra.mxu0 %v334
      %v605 = vpop.f32.mrf.mxu0
      %v606 = vadd.f32 %v587, %v605
      %v607 = vpop.f32.mrf.mxu0
      %v608 = vadd.f32 %v589, %v607
      %609 = vmatmul.bf16.gmra.mxu0 %v338
      %v610 = vpop.f32.mrf.mxu0
      %v611 = vadd.f32 %v592, %v610
      %v612 = vpop.f32.mrf.mxu0
      %v613 = vadd.f32 %v594, %v612
      %614 = vdwg.mxu0
      %s615 = smul.u32 %s227, 32
      %v616 = vpack.c.bf16 %v606, %v606
      %v617 = vpack.c.bf16 %v608, %v608
      %v618 = vpack.c.bf16 %v611, %v611
      %v619 = vpack.c.bf16 %v613, %v613
      %s620 = sshra.s32 %s615, 3
      %s621 = sand.u32 %s615, 7
      %s622 = smul.addr %s620, 4
      %s623 = scalar_lea.vmem %s4, %s622
      %624 = vst [vmem:[%s623] sm:$0xf] %v616
      %625 = vst [vmem:[%s623 + $0x4] sm:$0xf] %v617
      %626 = vst [vmem:[%s623 + $0x8] sm:$0xf] %v618
      %627 = vst [vmem:[%s623 + $0xc] sm:$0xf] %v619
      %v628 = vadd.f32 %v606, %v608
      %v629 = vadd.f32 %v628, %v611
      %v630 = vadd.f32 %v629, %v613
      %v631 = vrot.slane %v630, 4
      %v632 = vadd.f32 %v630, %v631
      %v633 = vrot.slane %v632, 2
      %v634 = vadd.f32 %v632, %v633
      %v635 = vrot.slane %v634, 1
      %v636 = vadd.f32 %v634, %v635
      %v637 = vmul.f32 %v636, 0.03125
      %v638 = vsub.f32 %v606, %v637
      %v639 = vsub.f32 %v608, %v637
      %v640 = vsub.f32 %v611, %v637
      %v641 = vsub.f32 %v613, %v637
      %v642 = vld [vmem:[#allocation2] sm:$0x1]
      %v643 = vadd.f32 %v642, %v637
      %644 = vst [vmem:[#allocation2] sm:$0x1] %v643
      %v645 = vld [vmem:[#allocation3] sm:$0x1]
      %v646 = vmul.f32 %v637, %v637
      %v647 = vadd.f32 %v645, %v646
      %648 = vst [vmem:[#allocation3] sm:$0x1] %v647
      %v649 = vld [vmem:[#allocation4] sm:$0x1]
      %v650 = vmul.f32 %v638, %v638
      %v651 = vmul.f32 %v639, %v639
      %v652 = vmul.f32 %v640, %v640
      %v653 = vmul.f32 %v641, %v641
      %v654 = vadd.f32 %v650, %v651
      %v655 = vadd.f32 %v654, %v652
      %v656 = vadd.f32 %v655, %v653
      %v657 = vrot.slane %v656, 4
      %v658 = vadd.f32 %v656, %v657
      %v659 = vrot.slane %v658, 2
      %v660 = vadd.f32 %v658, %v659
      %v661 = vrot.slane %v660, 1
      %v662 = vadd.f32 %v660, %v661
      %v663 = vadd.f32 %v649, %v662
      %664 = vst [vmem:[#allocation4] sm:$0x1] %v663
      %p665 = scmp.eq.s32.totalorder %s227, 3
      // Predicated region
      $region41: #{generator_forward.6} parent=35 // pred_check
        %p666 = pneg %p665
      $region42: #{generator_forward.6} parent=35 // pred_check_branch
        %668 = sbr.rel (%p666) target = $region44
      $region43: #{generator_forward.6} parent=35 // pred_region
        %v669 = vld [vmem:[#allocation2] sm:$0x1]
        %v670 = vmul.f32 %v669, 0.25
        %v671 = vld [vmem:[#allocation3] sm:$0x1]
        %v672 = vmul.f32 %v671, 0.25
        %v673 = vmul.f32 %v670, %v670
        %v674 = vsub.f32 %v672, %v673
        %v675 = vmax.f32 %v674, 0.0
        %v676 = vld [vmem:[#allocation4] sm:$0x1]
        %v677 = vmul.f32 %v676, 0.0078125
        %v678 = vadd.f32 %v677, %v675
        %v679 = vld [vmem:[%s2] sm:$0x1]
        %v680 = vadd.f32 %v678, 1e-05
        %v681 = vrsqrt.pop %v680
        %v682 = vmul.f32 %v681, %v680
        %v683 = vmul.f32 %v682, %v681
        %v684 = vmul.f32 0.5, %v683
        %v685 = vsub.f32 1.5, %v684
        %v686 = vmul.f32 %v681, %v685
        %vm687 = vweird.f32 %v680
        %vm688 = vweird.f32 %v681
        %vm689 = vmor %vm687, %vm688
        %v690 = vsel %vm689, %v681, %v686
        %v691 = vmul.f32 %v679, %v690
        %v692 = vld [vmem:[%s3] sm:$0x1]
        %v693 = vmul.f32 %v670, %v691
        %v694 = vsub.f32 %v692, %v693
        %v695 = vld [vmem:[%s4] sm:$0xf]
        %v696 = vld [vmem:[%s4 + $0x4] sm:$0xf]
        %v697 = vld [vmem:[%s4 + $0x8] sm:$0xf]
        %v698 = vld [vmem:[%s4 + $0xc] sm:$0xf]
        %v699 = vld [vmem:[%s4 + $0x10] sm:$0xf]
        %v700 = vld [vmem:[%s4 + $0x14] sm:$0xf]
        %v701 = vld [vmem:[%s4 + $0x18] sm:$0xf]
        %v702 = vld [vmem:[%s4 + $0x1c] sm:$0xf]
        %v703 = vld [vmem:[%s4 + $0x20] sm:$0xf]
        %v704 = vld [vmem:[%s4 + $0x24] sm:$0xf]
        %v705 = vld [vmem:[%s4 + $0x28] sm:$0xf]
        %v706 = vld [vmem:[%s4 + $0x2c] sm:$0xf]
        %v707 = vld [vmem:[%s4 + $0x30] sm:$0xf]
        %v708 = vld [vmem:[%s4 + $0x34] sm:$0xf]
        %v709 = vld [vmem:[%s4 + $0x38] sm:$0xf]
        %v710 = vld [vmem:[%s4 + $0x3c] sm:$0xf]
        %v711 = vunpack.c.l.bf16 %v695
        %v712 = vunpack.c.l.bf16 %v696
        %v713 = vunpack.c.l.bf16 %v697
        %v714 = vunpack.c.l.bf16 %v698
        %v715 = vunpack.c.l.bf16 %v699
        %v716 = vunpack.c.l.bf16 %v700
        %v717 = vunpack.c.l.bf16 %v701
        %v718 = vunpack.c.l.bf16 %v702
        %v719 = vunpack.c.l.bf16 %v703
        %v720 = vunpack.c.l.bf16 %v704
        %v721 = vunpack.c.l.bf16 %v705
        %v722 = vunpack.c.l.bf16 %v706
        %v723 = vunpack.c.l.bf16 %v707
        %v724 = vunpack.c.l.bf16 %v708
        %v725 = vunpack.c.l.bf16 %v709
        %v726 = vunpack.c.l.bf16 %v710
        %v728 = vperm.slane %v691, 0
        %v730 = vmul.f32 %v711, %v728
        %v731 = vmul.f32 %v712, %v728
        %v732 = vmul.f32 %v713, %v728
        %v733 = vmul.f32 %v714, %v728
        %v734 = vmul.f32 %v715, %v728
        %v735 = vmul.f32 %v716, %v728
        %v736 = vmul.f32 %v717, %v728
        %v737 = vmul.f32 %v718, %v728
        %v738 = vmul.f32 %v719, %v728
        %v739 = vmul.f32 %v720, %v728
        %v740 = vmul.f32 %v721, %v728
        %v741 = vmul.f32 %v722, %v728
        %v742 = vmul.f32 %v723, %v728
        %v743 = vmul.f32 %v724, %v728
        %v744 = vmul.f32 %v725, %v728
        %v745 = vmul.f32 %v726, %v728
        %v747 = vperm.slane %v694, 0
        %v749 = vadd.f32 %v730, %v747
        %v750 = vadd.f32 %v731, %v747
        %v751 = vadd.f32 %v732, %v747
        %v752 = vadd.f32 %v733, %v747
        %v753 = vadd.f32 %v734, %v747
        %v754 = vadd.f32 %v735, %v747
        %v755 = vadd.f32 %v736, %v747
        %v756 = vadd.f32 %v737, %v747
        %v757 = vadd.f32 %v738, %v747
        %v758 = vadd.f32 %v739, %v747
        %v759 = vadd.f32 %v740, %v747
        %v760 = vadd.f32 %v741, %v747
        %v761 = vadd.f32 %v742, %v747
        %v762 = vadd.f32 %v743, %v747
        %v763 = vadd.f32 %v744, %v747
        %v764 = vadd.f32 %v745, %v747
        %v765 = vmax.f32 %v749, 0.0
        %v766 = vmax.f32 %v750, 0.0
        %v767 = vmax.f32 %v751, 0.0
        %v768 = vmax.f32 %v752, 0.0
        %v769 = vmax.f32 %v753, 0.0
        %v770 = vmax.f32 %v754, 0.0
        %v771 = vmax.f32 %v755, 0.0
        %v772 = vmax.f32 %v756, 0.0
        %v773 = vmax.f32 %v757, 0.0
        %v774 = vmax.f32 %v758, 0.0
        %v775 = vmax.f32 %v759, 0.0
        %v776 = vmax.f32 %v760, 0.0
        %v777 = vmax.f32 %v761, 0.0
        %v778 = vmax.f32 %v762, 0.0
        %v779 = vmax.f32 %v763, 0.0
        %v780 = vmax.f32 %v764, 0.0
        %v781 = vpack.c.bf16 %v765, %v765
        %v782 = vpack.c.bf16 %v766, %v766
        %v783 = vpack.c.bf16 %v767, %v767
        %v784 = vpack.c.bf16 %v768, %v768
        %v785 = vpack.c.bf16 %v769, %v769
        %v786 = vpack.c.bf16 %v770, %v770
        %v787 = vpack.c.bf16 %v771, %v771
        %v788 = vpack.c.bf16 %v772, %v772
        %v789 = vpack.c.bf16 %v773, %v773
        %v790 = vpack.c.bf16 %v774, %v774
        %v791 = vpack.c.bf16 %v775, %v775
        %v792 = vpack.c.bf16 %v776, %v776
        %v793 = vpack.c.bf16 %v777, %v777
        %v794 = vpack.c.bf16 %v778, %v778
        %v795 = vpack.c.bf16 %v779, %v779
        %v796 = vpack.c.bf16 %v780, %v780
        %797 = vst [vmem:[%s4] sm:$0xf] %v781
        %798 = vst [vmem:[%s4 + $0x4] sm:$0xf] %v782
        %799 = vst [vmem:[%s4 + $0x8] sm:$0xf] %v783
        %800 = vst [vmem:[%s4 + $0xc] sm:$0xf] %v784
        %801 = vst [vmem:[%s4 + $0x10] sm:$0xf] %v785
        %802 = vst [vmem:[%s4 + $0x14] sm:$0xf] %v786
        %803 = vst [vmem:[%s4 + $0x18] sm:$0xf] %v787
        %804 = vst [vmem:[%s4 + $0x1c] sm:$0xf] %v788
        %805 = vst [vmem:[%s4 + $0x20] sm:$0xf] %v789
        %806 = vst [vmem:[%s4 + $0x24] sm:$0xf] %v790
        %807 = vst [vmem:[%s4 + $0x28] sm:$0xf] %v791
        %808 = vst [vmem:[%s4 + $0x2c] sm:$0xf] %v792
        %809 = vst [vmem:[%s4 + $0x30] sm:$0xf] %v793
        %810 = vst [vmem:[%s4 + $0x34] sm:$0xf] %v794
        %811 = vst [vmem:[%s4 + $0x38] sm:$0xf] %v795
        %812 = vst [vmem:[%s4 + $0x3c] sm:$0xf] %v796
      $region44: #{generator_forward.6} parent=35 // pred_fallthru
        _
      // Predicated region
      $region45: #{generator_forward.6} parent=35 // pred_check
        %p813 = pneg %p136
      $region46: #{generator_forward.6} parent=35 // pred_check_branch
        %815 = sbr.rel (%p813) target = $region48
      $region47: #{generator_forward.6} parent=35 // pred_region
        _
      $region48: #{generator_forward.6} parent=35 // pred_fallthru
        _
      // Predicated region
      $region49: #{generator_forward.6} parent=35 // pred_check
        %p816 = pneg %p136
      $region50: #{generator_forward.6} parent=35 // pred_check_branch
        %818 = sbr.rel (%p816) target = $region52
      $region51: #{generator_forward.6} parent=35 // pred_region
        _
      $region52: #{generator_forward.6} parent=35 // pred_fallthru
        _
    $region36: #{generator_forward.6} parent=5 // pred_fallthru
      _
    %p819 = scmp.le.s32.totalorder 2, %s10
    // Predicated region
    $region53: #{generator_forward.6} parent=5 // pred_check
      %p820 = pneg %p819
    $region54: #{generator_forward.6} parent=5 // pred_check_branch
      %822 = sbr.rel (%p820) target = $region56
    $region55: #{generator_forward.6} parent=5 // pred_region
      %s823 = ssub.s32 %s10, 2
    $region56: #{generator_forward.6} parent=5 // pred_fallthru
      _
  $region6: #{generator_forward.6} parent=0 // loop_footer
    %s14 = sadd.s32 1, %s10
  $region7: #{generator_forward.6} parent=0 // loop_footer_branch
    %9 = sbr.rel target = $region3
  $region8: #{generator_forward.6} parent=0 // loop_exit
    _

// kernel: generator_forward.7
$region0: #{generator_forward.7}
  #allocation0 [shape = 'u32[]', space=smem, size = 0x4, offset = 0x4, fixed_abs, tag = 'smem constant byte address 0x4 - core index']
  #allocation1 [shape = 'u32[72,128]{1,0:T(1,128)}', space=vmem, size = 0x9000, scoped, tag = 'internal scratch']
  #allocation2 [shape = 'f32[1,128]{1,0:T(1,128)}', space=vmem, size = 0x200, scoped, tag = 'scratch operand']
  #allocation3 [shape = 'f32[1,128]{1,0:T(1,128)}', space=vmem, size = 0x200, scoped, tag = 'scratch operand']
  #allocation4 [shape = 'f32[1,128]{1,0:T(1,128)}', space=vmem, size = 0x200, scoped, tag = 'scratch operand']
  %s0 = inlined_call_operand.vmem [shape: bf16[512,256], index: 0, kind: input, shape index: {}]
  %s1 = inlined_call_operand.vmem [shape: bf16[4,256,128], index: 1, kind: input, shape index: {}]
  %s2 = inlined_call_operand.vmem [shape: f32[1,128], index: 2, kind: input, shape index: {}]
  %s3 = inlined_call_operand.vmem [shape: f32[1,128], index: 3, kind: input, shape index: {}]
  %s4 = inlined_call_operand.vmem [shape: bf16[512,128], index: 4, kind: output, shape index: {}]
  %s5 = sld [smem:[#allocation0]]
  $region57: #{generator_forward.7} parent=0
    _
  %s7 = ssub.s32 1, %s5
  %s8 = scalar_select 0, %s7, %s5
  loop: start=0, step=1, limit=6
  $region2: #{generator_forward.7} parent=0 // loop_pre_header
    _
  $region3: #{generator_forward.7} parent=0 // loop_header
    %s10 = sphi 0, %s14
    %p11 = scmp.ge.s32.totalorder %s10, 6
    %s17 = sphi 0, %s29
    %s18 = sphi 0, %s25
    %s19 = sphi 0, %s17
    %s20 = sphi 0, %s18
    %s21 = sphi 0, %s19
    %s22 = sphi 0, %s20
    %s34 = sphi 0, %s36
    %s37 = sphi 0, %s34
    %s38 = sphi 0, %s37
    %s54 = sphi 0, %s38
    %s60 = sphi 0, %s62
    %s63 = sphi 0, %s60
    %s64 = sphi 0, %s63
    %s80 = sphi 0, %s64
    %s84 = sphi 0, %s84
    %s86 = sphi 0, %s84
    %s87 = sphi 0, %s86
    %s101 = sphi 0, %s87
    %s105 = sphi 0, %s105
    %s107 = sphi 0, %s105
    %s108 = sphi 0, %s107
    %s122 = sphi 0, %s108
    %s126 = sphi 0, %s126
    %s128 = sphi 0, %s126
    %s129 = sphi 0, %s128
    %s143 = sphi 0, %s129
  $region4: #{generator_forward.7} parent=0 // loop_header_branch
    %13 = sbr.rel (%p11) target = $region8
  $region5: #{generator_forward.7} parent=0 // loop_body
    %s15 = ssub.s32 %s10, 1
    %s16 = ssub.s32 %s10, 2
    %s23 = sadd.s32 1, %s18
    %p24 = scmp.ge.s32.totalorder %s23, 1
    %s25 = scalar_select %p24, 0, %s23
    %s26 = sadd.s32 1, %s17
    %s27 = scalar_select %p24, %s26, %s17
    %p28 = scmp.ge.s32.totalorder %s27, 4
    %s29 = scalar_select %p28, 0, %s27
    %s30 = sadd.s32 %s17, %s18
    %s31 = sadd.s32 %s29, %s25
    %s32 = ssub.s32 %s30, %s31
    %p33 = scmp.eq.s32.totalorder %s32, 0
    %s35 = sadd.s32 %s34, 1
    %s36 = scalar_select %p33, %s34, %s35
    %p39 = pneg %p33
    %p40 = scmp.eq.s32.totalorder %s10, 3
    %p41 = por %p39, %p40
    %p42 = scmp.ne.s32.totalorder %s34, %s37
    %p43 = scmp.eq.s32.totalorder %s10, 0
    %p44 = por %p42, %p43
    %p45 = scmp.ne.s32.totalorder %s34, %s37
    %p46 = scmp.eq.s32.totalorder %s15, 3
    %p47 = por %p45, %p46
    %p48 = scmp.ne.s32.totalorder %s37, %s38
    %p49 = scmp.eq.s32.totalorder %s15, 0
    %p50 = por %p48, %p49
    %p51 = scmp.ne.s32.totalorder %s37, %s38
    %p52 = scmp.eq.s32.totalorder %s16, 3
    %p53 = por %p51, %p52
    %p55 = scmp.ne.s32.totalorder %s38, %s54
    %p56 = scmp.eq.s32.totalorder %s16, 0
    %p57 = por %p55, %p56
    %s58 = ssub.s32 %s17, %s29
    %p59 = scmp.eq.s32.totalorder %s58, 0
    %s61 = sadd.s32 %s60, 1
    %s62 = scalar_select %p59, %s60, %s61
    %p65 = pneg %p59
    %p66 = scmp.eq.s32.totalorder %s10, 3
    %p67 = por %p65, %p66
    %p68 = scmp.ne.s32.totalorder %s60, %s63
    %p69 = scmp.eq.s32.totalorder %s10, 0
    %p70 = por %p68, %p69
    %p71 = scmp.ne.s32.totalorder %s60, %s63
    %p72 = scmp.eq.s32.totalorder %s15, 3
    %p73 = por %p71, %p72
    %p74 = scmp.ne.s32.totalorder %s63, %s64
    %p75 = scmp.eq.s32.totalorder %s15, 0
    %p76 = por %p74, %p75
    %p77 = scmp.ne.s32.totalorder %s63, %s64
    %p78 = scmp.eq.s32.totalorder %s16, 3
    %p79 = por %p77, %p78
    %p81 = scmp.ne.s32.totalorder %s64, %s80
    %p82 = scmp.eq.s32.totalorder %s16, 0
    %p83 = por %p81, %p82
    %s85 = sadd.s32 %s84, 1
    %p88 = scmp.eq.s32.totalorder %s10, 3
    %p89 = scmp.ne.s32.totalorder %s84, %s86
    %p90 = scmp.eq.s32.totalorder %s10, 0
    %p91 = por %p89, %p90
    %p92 = scmp.ne.s32.totalorder %s84, %s86
    %p93 = scmp.eq.s32.totalorder %s15, 3
    %p94 = por %p92, %p93
    %p95 = scmp.ne.s32.totalorder %s86, %s87
    %p96 = scmp.eq.s32.totalorder %s15, 0
    %p97 = por %p95, %p96
    %p98 = scmp.ne.s32.totalorder %s86, %s87
    %p99 = scmp.eq.s32.totalorder %s16, 3
    %p100 = por %p98, %p99
    %p102 = scmp.ne.s32.totalorder %s87, %s101
    %p103 = scmp.eq.s32.totalorder %s16, 0
    %p104 = por %p102, %p103
    %s106 = sadd.s32 %s105, 1
    %p109 = scmp.eq.s32.totalorder %s10, 3
    %p110 = scmp.ne.s32.totalorder %s105, %s107
    %p111 = scmp.eq.s32.totalorder %s10, 0
    %p112 = por %p110, %p111
    %p113 = scmp.ne.s32.totalorder %s105, %s107
    %p114 = scmp.eq.s32.totalorder %s15, 3
    %p115 = por %p113, %p114
    %p116 = scmp.ne.s32.totalorder %s107, %s108
    %p117 = scmp.eq.s32.totalorder %s15, 0
    %p118 = por %p116, %p117
    %p119 = scmp.ne.s32.totalorder %s107, %s108
    %p120 = scmp.eq.s32.totalorder %s16, 3
    %p121 = por %p119, %p120
    %p123 = scmp.ne.s32.totalorder %s108, %s122
    %p124 = scmp.eq.s32.totalorder %s16, 0
    %p125 = por %p123, %p124
    %s127 = sadd.s32 %s126, 1
    %p130 = scmp.eq.s32.totalorder %s10, 3
    %p131 = scmp.ne.s32.totalorder %s126, %s128
    %p132 = scmp.eq.s32.totalorder %s10, 0
    %p133 = por %p131, %p132
    %p134 = scmp.ne.s32.totalorder %s126, %s128
    %p135 = scmp.eq.s32.totalorder %s15, 3
    %p136 = por %p134, %p135
    %p137 = scmp.ne.s32.totalorder %s128, %s129
    %p138 = scmp.eq.s32.totalorder %s15, 0
    %p139 = por %p137, %p138
    %p140 = scmp.ne.s32.totalorder %s128, %s129
    %p141 = scmp.eq.s32.totalorder %s16, 3
    %p142 = por %p140, %p141
    %p144 = scmp.ne.s32.totalorder %s129, %s143
    %p145 = scmp.eq.s32.totalorder %s16, 0
    %p146 = por %p144, %p145
    %p147 = scmp.le.s32.totalorder 1, %s10
    %p148 = scmp.lt.s32.totalorder %s10, 5
    %p149 = pnand %p147, %p148
    %p150 = pneg %p149
    // Predicated region
    $region9: #{generator_forward.7} parent=5 // pred_check
      _
    $region10: #{generator_forward.7} parent=5 // pred_check_branch
      %152 = sbr.rel (%p149) target = $region12
    $region11: #{generator_forward.7} parent=5 // pred_region
      %s153 = ssub.s32 %s10, 1
      // Predicated region
      $region13: #{generator_forward.7} parent=11 // pred_check
        %p154 = pneg %p97
      $region14: #{generator_forward.7} parent=11 // pred_check_branch
        %156 = sbr.rel (%p154) target = $region16
      $region15: #{generator_forward.7} parent=11 // pred_region
        _
      $region16: #{generator_forward.7} parent=11 // pred_fallthru
        _
      // Predicated region
      $region17: #{generator_forward.7} parent=11 // pred_check
        %p157 = pneg %p118
      $region18: #{generator_forward.7} parent=11 // pred_check_branch
        %159 = sbr.rel (%p157) target = $region20
      $region19: #{generator_forward.7} parent=11 // pred_region
        _
      $region20: #{generator_forward.7} parent=11 // pred_fallthru
        _
    $region12: #{generator_forward.7} parent=5 // pred_fallthru
      _
    %p160 = scmp.lt.s32.totalorder %s10, 4
    // Predicated region
    $region21: #{generator_forward.7} parent=5 // pred_check
      %p161 = pneg %p160
    $region22: #{generator_forward.7} parent=5 // pred_check_branch
      %163 = sbr.rel (%p161) target = $region24
    $region23: #{generator_forward.7} parent=5 // pred_region
      // Predicated region
      $region25: #{generator_forward.7} parent=23 // pred_check
        %p164 = pneg %p44
      $region26: #{generator_forward.7} parent=23 // pred_check_branch
        %166 = sbr.rel (%p164) target = $region28
      $region27: #{generator_forward.7} parent=23 // pred_region
        %s167 = sadd.s32 %s17, %s18
        %s168 = smul.u32 16, %s167
        %p169 = scmp.lt.s32.totalorder %s168, 63
        %s170 = scalar_select %p169, %s168, 63
        %s171 = smul.addr %s170, 2
        %s172 = smul.addr %s171, 4
        %s173 = scalar_lea.vmem %s0, %s172
        %s174 = sadd.s32 %s17, %s18
        %s175 = smul.u32 16, %s174
      $region28: #{generator_forward.7} parent=23 // pred_fallthru
        _
      // Predicated region
      $region29: #{generator_forward.7} parent=23 // pred_check
        %p176 = pneg %p70
      $region30: #{generator_forward.7} parent=23 // pred_check_branch
        %178 = sbr.rel (%p176) target = $region32
      $region31: #{generator_forward.7} parent=23 // pred_region
        %p179 = scmp.lt.s32.totalorder %s17, 3
        %s180 = scalar_select %p179, %s17, 3
        %s181 = smul.addr %s180, 32
        %s182 = smul.addr %s181, 4
        %s183 = scalar_lea.vmem %s1, %s182
      $region32: #{generator_forward.7} parent=23 // pred_fallthru
        _
    $region24: #{generator_forward.7} parent=5 // pred_fallthru
      _
    %p184 = scmp.le.s32.totalorder 1, %s10
    %p185 = scmp.lt.s32.totalorder %s10, 5
    %p186 = pnand %p184, %p185
    %p187 = pneg %p186
    // Predicated region
    $region33: #{generator_forward.7} parent=5 // pred_check
      _
    $region34: #{generator_forward.7} parent=5 // pred_check_branch
      %189 = sbr.rel (%p186) target = $region36
    $region35: #{generator_forward.7} parent=5 // pred_region
      %s190 = ssub.s32 %s10, 1
      %s191 = sadd.s32 %s19, %s20
      %s192 = smul.u32 16, %s191
      %p193 = scmp.lt.s32.totalorder %s192, 63
      %s194 = scalar_select %p193, %s192, 63
      %s195 = smul.addr %s194, 2
      %s196 = smul.addr %s195, 4
      %s197 = scalar_lea.vmem %s0, %s196
      %p198 = pneg %p50
      %p199 = pneg %p47
      %p200 = scmp.lt.s32.totalorder %s19, 3
      %s201 = scalar_select %p200, %s19, 3
      %s202 = smul.addr %s201, 32
      %s203 = smul.addr %s202, 4
      %s204 = scalar_lea.vmem %s1, %s203
      %p205 = pneg %p76
      %p206 = pneg %p73
      %p207 = pneg %p97
      %p208 = pneg %p94
      %p209 = pneg %p118
      %p210 = pneg %p115
      %p211 = pneg %p139
      %p212 = pneg %p136
      %s213 = sadd.s32 %s19, %s20
      %s214 = smul.u32 16, %s213
      %p215 = scmp.lt.s32.totalorder %s214, 63
      %s216 = scalar_select %p215, %s214, 63
      %s217 = smul.addr %s216, 2
      %s218 = smul.addr %s217, 4
      %s219 = scalar_lea.vmem %s0, %s218
      %s220 = sadd.s32 %s19, %s20
      %s221 = smul.u32 16, %s220
      %p222 = scmp.lt.s32.totalorder %s19, 3
      %s223 = scalar_select %p222, %s19, 3
      %s224 = smul.addr %s223, 32
      %s225 = smul.addr %s224, 4
      %s226 = scalar_lea.vmem %s1, %s225
      %s227 = sadd.s32 %s19, %s20
      %p228 = scmp.eq.s32.totalorder %s227, 0
      // Predicated region
      $region37: #{generator_forward.7} parent=35 // pred_check
        %p229 = pneg %p228
      $region38: #{generator_forward.7} parent=35 // pred_check_branch
        %231 = sbr.rel (%p229) target = $region40
      $region39: #{generator_forward.7} parent=35 // pred_region
        %232 = vst [vmem:[#allocation2] sm:$0x1] 0.0
        %233 = vst [vmem:[#allocation3] sm:$0x1] 0.0
        %234 = vst [vmem:[#allocation4] sm:$0x1] 0.0
      $region40: #{generator_forward.7} parent=35 // pred_fallthru
        _
      %v235 = vld [vmem:[%s219] sm:$0xff]
      %v236 = vld [vmem:[%s219 + $0x8] sm:$0xff]
      %v237 = vld [vmem:[%s219 + $0x10] sm:$0xff]
      %v238 = vld [vmem:[%s219 + $0x18] sm:$0xff]
      %v239 = vld [vmem:[%s219 + $0x20] sm:$0xff]
      %v240 = vld [vmem:[%s219 + $0x28] sm:$0xff]
      %v241 = vld [vmem:[%s219 + $0x30] sm:$0xff]
      %v242 = vld [vmem:[%s219 + $0x38] sm:$0xff]
      %v243 = vld [vmem:[%s219 + $0x40] sm:$0xff]
      %v244 = vld [vmem:[%s219 + $0x48] sm:$0xff]
      %v245 = vld [vmem:[%s219 + $0x50] sm:$0xff]
      %v246 = vld [vmem:[%s219 + $0x58] sm:$0xff]
      %v247 = vld [vmem:[%s219 + $0x60] sm:$0xff]
      %v248 = vld [vmem:[%s219 + $0x68] sm:$0xff]
      %v249 = vld [vmem:[%s219 + $0x70] sm:$0xff]
      %v250 = vld [vmem:[%s219 + $0x78] sm:$0xff]
      %v251 = vld [vmem:[%s226] sm:$0xf]
      %v252 = vld [vmem:[%s226 + $0x4] sm:$0xf]
      %v253 = vld [vmem:[%s226 + $0x8] sm:$0xf]
      %v254 = vld [vmem:[%s226 + $0xc] sm:$0xf]
      %v255 = vld [vmem:[%s226 + $0x10] sm:$0xf]
      %v256 = vld [vmem:[%s226 + $0x14] sm:$0xf]
      %v257 = vld [vmem:[%s226 + $0x18] sm:$0xf]
      %v258 = vld [vmem:[%s226 + $0x1c] sm:$0xf]
      %v259 = vld [vmem:[%s226 + $0x20] sm:$0xf]
      %v260 = vld [vmem:[%s226 + $0x24] sm:$0xf]
      %v261 = vld [vmem:[%s226 + $0x28] sm:$0xf]
      %v262 = vld [vmem:[%s226 + $0x2c] sm:$0xf]
      %v263 = vld [vmem:[%s226 + $0x30] sm:$0xf]
      %v264 = vld [vmem:[%s226 + $0x34] sm:$0xf]
      %v265 = vld [vmem:[%s226 + $0x38] sm:$0xf]
      %v266 = vld [vmem:[%s226 + $0x3c] sm:$0xf]
      %v267 = vld [vmem:[%s226 + $0x40] sm:$0xf]
      %v268 = vld [vmem:[%s226 + $0x44] sm:$0xf]
      %v269 = vld [vmem:[%s226 + $0x48] sm:$0xf]
      %v270 = vld [vmem:[%s226 + $0x4c] sm:$0xf]
      %v271 = vld [vmem:[%s226 + $0x50] sm:$0xf]
      %v272 = vld [vmem:[%s226 + $0x54] sm:$0xf]
      %v273 = vld [vmem:[%s226 + $0x58] sm:$0xf]
      %v274 = vld [vmem:[%s226 + $0x5c] sm:$0xf]
      %v275 = vld [vmem:[%s226 + $0x60] sm:$0xf]
      %v276 = vld [vmem:[%s226 + $0x64] sm:$0xf]
      %v277 = vld [vmem:[%s226 + $0x68] sm:$0xf]
      %v278 = vld [vmem:[%s226 + $0x6c] sm:$0xf]
      %v279 = vld [vmem:[%s226 + $0x70] sm:$0xf]
      %v280 = vld [vmem:[%s226 + $0x74] sm:$0xf]
      %v281 = vld [vmem:[%s226 + $0x78] sm:$0xf]
      %v282 = vld [vmem:[%s226 + $0x7c] sm:$0xf]
      %v299 = vunpack.c.l.b16 %v235
      %v300 = vunpack.c.h.b16 %v235
      %v301 = vunpack.c.l.b16 %v236
      %v302 = vunpack.c.h.b16 %v236
      %v303 = vunpack.c.l.b16 %v237
      %v304 = vunpack.c.h.b16 %v237
      %v305 = vunpack.c.l.b16 %v238
      %v306 = vunpack.c.h.b16 %v238
      %v307 = vunpack.c.l.b16 %v239
      %v308 = vunpack.c.h.b16 %v239
      %v309 = vunpack.c.l.b16 %v240
      %v310 = vunpack.c.h.b16 %v240
      %v311 = vunpack.c.l.b16 %v241
      %v312 = vunpack.c.h.b16 %v241
      %v313 = vunpack.c.l.b16 %v242
      %v314 = vunpack.c.h.b16 %v242
      %v315 = vunpack.c.l.b16 %v243
      %v316 = vunpack.c.h.b16 %v243
      %v317 = vunpack.c.l.b16 %v244
      %v318 = vunpack.c.h.b16 %v244
      %v319 = vunpack.c.l.b16 %v245
      %v320 = vunpack.c.h.b16 %v245
      %v321 = vunpack.c.l.b16 %v246
      %v322 = vunpack.c.h.b16 %v246
      %v323 = vunpack.c.l.b16 %v247
      %v324 = vunpack.c.h.b16 %v247
      %v325 = vunpack.c.l.b16 %v248
      %v326 = vunpack.c.h.b16 %v248
      %v327 = vunpack.c.l.b16 %v249
      %v328 = vunpack.c.h.b16 %v249
      %v329 = vunpack.c.l.b16 %v250
      %v330 = vunpack.c.h.b16 %v250
      %v331 = vpack.c.b16 %v301, %v299
      %v332 = vpack.c.b16 %v302, %v300
      %v333 = vpack.c.b16 %v305, %v303
      %v334 = vpack.c.b16 %v306, %v304
      %v335 = vpack.c.b16 %v309, %v307
      %v336 = vpack.c.b16 %v310, %v308
      %v337 = vpack.c.b16 %v313, %v311
      %v338 = vpack.c.b16 %v314, %v312
      %v339 = vpack.c.b16 %v317, %v315
      %v340 = vpack.c.b16 %v318, %v316
      %v341 = vpack.c.b16 %v321, %v319
      %v342 = vpack.c.b16 %v322, %v320
      %v343 = vpack.c.b16 %v325, %v323
      %v344 = vpack.c.b16 %v326, %v324
      %v345 = vpack.c.b16 %v329, %v327
      %v346 = vpack.c.b16 %v330, %v328
      %v395 = vunpack.c.l.b16 %v251
      %v396 = vunpack.c.l.b16 %v252
      %v397 = vunpack.c.l.b16 %v253
      %v398 = vunpack.c.l.b16 %v254
      %v399 = vunpack.c.l.b16 %v255
      %v400 = vunpack.c.l.b16 %v256
      %v401 = vunpack.c.l.b16 %v257
      %v402 = vunpack.c.l.b16 %v258
      %v403 = vunpack.c.l.b16 %v259
      %v404 = vunpack.c.l.b16 %v260
      %v405 = vunpack.c.l.b16 %v261
      %v406 = vunpack.c.l.b16 %v262
      %v407 = vunpack.c.l.b16 %v263
      %v408 = vunpack.c.l.b16 %v264
      %v409 = vunpack.c.l.b16 %v265
      %v410 = vunpack.c.l.b16 %v266
      %v411 = vunpack.c.l.b16 %v267
      %v412 = vunpack.c.l.b16 %v268
      %v413 = vunpack.c.l.b16 %v269
      %v414 = vunpack.c.l.b16 %v270
      %v415 = vunpack.c.l.b16 %v271
      %v416 = vunpack.c.l.b16 %v272
      %v417 = vunpack.c.l.b16 %v273
      %v418 = vunpack.c.l.b16 %v274
      %v419 = vunpack.c.l.b16 %v275
      %v420 = vunpack.c.l.b16 %v276
      %v421 = vunpack.c.l.b16 %v277
      %v422 = vunpack.c.l.b16 %v278
      %v423 = vunpack.c.l.b16 %v279
      %v424 = vunpack.c.l.b16 %v280
      %v425 = vunpack.c.l.b16 %v281
      %v426 = vunpack.c.l.b16 %v282
      %v427 = vpack.c.b16 %v396, %v395
      %v428 = vpack.c.b16 %v398, %v397
      %v429 = vpack.c.b16 %v400, %v399
      %v430 = vpack.c.b16 %v402, %v401
      %v431 = vpack.c.b16 %v404, %v403
      %v432 = vpack.c.b16 %v406, %v405
      %v433 = vpack.c.b16 %v408, %v407
      %v434 = vpack.c.b16 %v410, %v409
      %v435 = vpack.c.b16 %v412, %v411
      %v436 = vpack.c.b16 %v414, %v413
      %v437 = vpack.c.b16 %v416, %v415
      %v438 = vpack.c.b16 %v418, %v417
      %v439 = vpack.c.b16 %v420, %v419
      %v440 = vpack.c.b16 %v422, %v421
      %v441 = vpack.c.b16 %v424, %v423
      %v442 = vpack.c.b16 %v426, %v425
      %459 = vmatpush.bf16.msra.mxu0 %v434
      %460 = vmatpush.bf16.msra.mxu0 %v433
      %461 = vmatpush.bf16.msra.mxu0 %v432
      %462 = vmatpush.bf16.msra.mxu0 %v431
      %463 = vmatpush.bf16.msra.mxu0 %v430
      %464 = vmatpush.bf16.msra.mxu0 %v429
      %465 = vmatpush.bf16.msra.mxu0 %v428
      %466 = vmatpush.bf16.msra.mxu0 %v427
      %467 = vmatmul.bf16.gmra.mxu0 %v331
      %v468 = vpop.f32.mrf.mxu0
      %v469 = vadd.f32 0.0, %v468
      %v470 = vpop.f32.mrf.mxu0
      %v471 = vadd.f32 0.0, %v470
      %472 = vmatmul.bf16.gmra.mxu0 %v333
      %v473 = vpop.f32.mrf.mxu0
      %v474 = vadd.f32 0.0, %v473
      %v475 = vpop.f32.mrf.mxu0
      %v476 = vadd.f32 0.0, %v475
      %477 = vmatmul.bf16.gmra.mxu0 %v335
      %v478 = vpop.f32.mrf.mxu0
      %v479 = vadd.f32 0.0, %v478
      %v480 = vpop.f32.mrf.mxu0
      %v481 = vadd.f32 0.0, %v480
      %482 = vmatmul.bf16.gmra.mxu0 %v337
      %v483 = vpop.f32.mrf.mxu0
      %v484 = vadd.f32 0.0, %v483
      %v485 = vpop.f32.mrf.mxu0
      %v486 = vadd.f32 0.0, %v485
      %487 = vmatmul.bf16.gmra.mxu0 %v339
      %v488 = vpop.f32.mrf.mxu0
      %v489 = vadd.f32 0.0, %v488
      %v490 = vpop.f32.mrf.mxu0
      %v491 = vadd.f32 0.0, %v490
      %492 = vmatmul.bf16.gmra.mxu0 %v341
      %v493 = vpop.f32.mrf.mxu0
      %v494 = vadd.f32 0.0, %v493
      %v495 = vpop.f32.mrf.mxu0
      %v496 = vadd.f32 0.0, %v495
      %497 = vmatmul.bf16.gmra.mxu0 %v343
      %v498 = vpop.f32.mrf.mxu0
      %v499 = vadd.f32 0.0, %v498
      %v500 = vpop.f32.mrf.mxu0
      %v501 = vadd.f32 0.0, %v500
      %502 = vmatmul.bf16.gmra.mxu0 %v345
      %v503 = vpop.f32.mrf.mxu0
      %v504 = vadd.f32 0.0, %v503
      %v505 = vpop.f32.mrf.mxu0
      %v506 = vadd.f32 0.0, %v505
      %507 = vdwg.mxu0
      %508 = vmatpush.bf16.msra.mxu0 %v442
      %509 = vmatpush.bf16.msra.mxu0 %v441
      %510 = vmatpush.bf16.msra.mxu0 %v440
      %511 = vmatpush.bf16.msra.mxu0 %v439
      %512 = vmatpush.bf16.msra.mxu0 %v438
      %513 = vmatpush.bf16.msra.mxu0 %v437
      %514 = vmatpush.bf16.msra.mxu0 %v436
      %515 = vmatpush.bf16.msra.mxu0 %v435
      %516 = vmatmul.bf16.gmra.mxu0 %v332
      %v517 = vpop.f32.mrf.mxu0
      %v518 = vadd.f32 %v469, %v517
      %v519 = vpop.f32.mrf.mxu0
      %v520 = vadd.f32 %v471, %v519
      %521 = vmatmul.bf16.gmra.mxu0 %v334
      %v522 = vpop.f32.mrf.mxu0
      %v523 = vadd.f32 %v474, %v522
      %v524 = vpop.f32.mrf.mxu0
      %v525 = vadd.f32 %v476, %v524
      %526 = vmatmul.bf16.gmra.mxu0 %v336
      %v527 = vpop.f32.mrf.mxu0
      %v528 = vadd.f32 %v479, %v527
      %v529 = vpop.f32.mrf.mxu0
      %v530 = vadd.f32 %v481, %v529
      %531 = vmatmul.bf16.gmra.mxu0 %v338
      %v532 = vpop.f32.mrf.mxu0
      %v533 = vadd.f32 %v484, %v532
      %v534 = vpop.f32.mrf.mxu0
      %v535 = vadd.f32 %v486, %v534
      %536 = vmatmul.bf16.gmra.mxu0 %v340
      %v537 = vpop.f32.mrf.mxu0
      %v538 = vadd.f32 %v489, %v537
      %v539 = vpop.f32.mrf.mxu0
      %v540 = vadd.f32 %v491, %v539
      %541 = vmatmul.bf16.gmra.mxu0 %v342
      %v542 = vpop.f32.mrf.mxu0
      %v543 = vadd.f32 %v494, %v542
      %v544 = vpop.f32.mrf.mxu0
      %v545 = vadd.f32 %v496, %v544
      %546 = vmatmul.bf16.gmra.mxu0 %v344
      %v547 = vpop.f32.mrf.mxu0
      %v548 = vadd.f32 %v499, %v547
      %v549 = vpop.f32.mrf.mxu0
      %v550 = vadd.f32 %v501, %v549
      %551 = vmatmul.bf16.gmra.mxu0 %v346
      %v552 = vpop.f32.mrf.mxu0
      %v553 = vadd.f32 %v504, %v552
      %v554 = vpop.f32.mrf.mxu0
      %v555 = vadd.f32 %v506, %v554
      %556 = vdwg.mxu0
      %s557 = smul.u32 %s227, 128
      %v558 = vpack.c.bf16 %v518, %v518
      %v559 = vpack.c.bf16 %v520, %v520
      %v560 = vpack.c.bf16 %v523, %v523
      %v561 = vpack.c.bf16 %v525, %v525
      %v562 = vpack.c.bf16 %v528, %v528
      %v563 = vpack.c.bf16 %v530, %v530
      %v564 = vpack.c.bf16 %v533, %v533
      %v565 = vpack.c.bf16 %v535, %v535
      %v566 = vpack.c.bf16 %v538, %v538
      %v567 = vpack.c.bf16 %v540, %v540
      %v568 = vpack.c.bf16 %v543, %v543
      %v569 = vpack.c.bf16 %v545, %v545
      %v570 = vpack.c.bf16 %v548, %v548
      %v571 = vpack.c.bf16 %v550, %v550
      %v572 = vpack.c.bf16 %v553, %v553
      %v573 = vpack.c.bf16 %v555, %v555
      %s574 = sshra.s32 %s557, 3
      %s575 = sand.u32 %s557, 7
      %s576 = smul.addr %s574, 4
      %s577 = scalar_lea.vmem %s4, %s576
      %578 = vst [vmem:[%s577] sm:$0xf] %v558
      %579 = vst [vmem:[%s577 + $0x4] sm:$0xf] %v559
      %580 = vst [vmem:[%s577 + $0x8] sm:$0xf] %v560
      %581 = vst [vmem:[%s577 + $0xc] sm:$0xf] %v561
      %582 = vst [vmem:[%s577 + $0x10] sm:$0xf] %v562
      %583 = vst [vmem:[%s577 + $0x14] sm:$0xf] %v563
      %584 = vst [vmem:[%s577 + $0x18] sm:$0xf] %v564
      %585 = vst [vmem:[%s577 + $0x1c] sm:$0xf] %v565
      %586 = vst [vmem:[%s577 + $0x20] sm:$0xf] %v566
      %587 = vst [vmem:[%s577 + $0x24] sm:$0xf] %v567
      %588 = vst [vmem:[%s577 + $0x28] sm:$0xf] %v568
      %589 = vst [vmem:[%s577 + $0x2c] sm:$0xf] %v569
      %590 = vst [vmem:[%s577 + $0x30] sm:$0xf] %v570
      %591 = vst [vmem:[%s577 + $0x34] sm:$0xf] %v571
      %592 = vst [vmem:[%s577 + $0x38] sm:$0xf] %v572
      %593 = vst [vmem:[%s577 + $0x3c] sm:$0xf] %v573
      %v594 = vadd.f32 %v518, %v520
      %v595 = vadd.f32 %v594, %v523
      %v596 = vadd.f32 %v595, %v525
      %v597 = vadd.f32 %v596, %v528
      %v598 = vadd.f32 %v597, %v530
      %v599 = vadd.f32 %v598, %v533
      %v600 = vadd.f32 %v599, %v535
      %v601 = vadd.f32 %v600, %v538
      %v602 = vadd.f32 %v601, %v540
      %v603 = vadd.f32 %v602, %v543
      %v604 = vadd.f32 %v603, %v545
      %v605 = vadd.f32 %v604, %v548
      %v606 = vadd.f32 %v605, %v550
      %v607 = vadd.f32 %v606, %v553
      %v608 = vadd.f32 %v607, %v555
      %v609 = vrot.slane %v608, 4
      %v610 = vadd.f32 %v608, %v609
      %v611 = vrot.slane %v610, 2
      %v612 = vadd.f32 %v610, %v611
      %v613 = vrot.slane %v612, 1
      %v614 = vadd.f32 %v612, %v613
      %v615 = vmul.f32 %v614, 0.0078125
      %v616 = vsub.f32 %v518, %v615
      %v617 = vsub.f32 %v520, %v615
      %v618 = vsub.f32 %v523, %v615
      %v619 = vsub.f32 %v525, %v615
      %v620 = vsub.f32 %v528, %v615
      %v621 = vsub.f32 %v530, %v615
      %v622 = vsub.f32 %v533, %v615
      %v623 = vsub.f32 %v535, %v615
      %v624 = vsub.f32 %v538, %v615
      %v625 = vsub.f32 %v540, %v615
      %v626 = vsub.f32 %v543, %v615
      %v627 = vsub.f32 %v545, %v615
      %v628 = vsub.f32 %v548, %v615
      %v629 = vsub.f32 %v550, %v615
      %v630 = vsub.f32 %v553, %v615
      %v631 = vsub.f32 %v555, %v615
      %v632 = vld [vmem:[#allocation2] sm:$0x1]
      %v633 = vadd.f32 %v632, %v615
      %634 = vst [vmem:[#allocation2] sm:$0x1] %v633
      %v635 = vld [vmem:[#allocation3] sm:$0x1]
      %v636 = vmul.f32 %v615, %v615
      %v637 = vadd.f32 %v635, %v636
      %638 = vst [vmem:[#allocation3] sm:$0x1] %v637
      %v639 = vld [vmem:[#allocation4] sm:$0x1]
      %v640 = vmul.f32 %v616, %v616
      %v641 = vmul.f32 %v617, %v617
      %v642 = vmul.f32 %v618, %v618
      %v643 = vmul.f32 %v619, %v619
      %v644 = vmul.f32 %v620, %v620
      %v645 = vmul.f32 %v621, %v621
      %v646 = vmul.f32 %v622, %v622
      %v647 = vmul.f32 %v623, %v623
      %v648 = vmul.f32 %v624, %v624
      %v649 = vmul.f32 %v625, %v625
      %v650 = vmul.f32 %v626, %v626
      %v651 = vmul.f32 %v627, %v627
      %v652 = vmul.f32 %v628, %v628
      %v653 = vmul.f32 %v629, %v629
      %v654 = vmul.f32 %v630, %v630
      %v655 = vmul.f32 %v631, %v631
      %v656 = vadd.f32 %v640, %v641
      %v657 = vadd.f32 %v656, %v642
      %v658 = vadd.f32 %v657, %v643
      %v659 = vadd.f32 %v658, %v644
      %v660 = vadd.f32 %v659, %v645
      %v661 = vadd.f32 %v660, %v646
      %v662 = vadd.f32 %v661, %v647
      %v663 = vadd.f32 %v662, %v648
      %v664 = vadd.f32 %v663, %v649
      %v665 = vadd.f32 %v664, %v650
      %v666 = vadd.f32 %v665, %v651
      %v667 = vadd.f32 %v666, %v652
      %v668 = vadd.f32 %v667, %v653
      %v669 = vadd.f32 %v668, %v654
      %v670 = vadd.f32 %v669, %v655
      %v671 = vrot.slane %v670, 4
      %v672 = vadd.f32 %v670, %v671
      %v673 = vrot.slane %v672, 2
      %v674 = vadd.f32 %v672, %v673
      %v675 = vrot.slane %v674, 1
      %v676 = vadd.f32 %v674, %v675
      %v677 = vadd.f32 %v639, %v676
      %678 = vst [vmem:[#allocation4] sm:$0x1] %v677
      %p679 = scmp.eq.s32.totalorder %s227, 3
      // Predicated region
      $region41: #{generator_forward.7} parent=35 // pred_check
        %p680 = pneg %p679
      $region42: #{generator_forward.7} parent=35 // pred_check_branch
        %682 = sbr.rel (%p680) target = $region44
      $region43: #{generator_forward.7} parent=35 // pred_region
        %v683 = vld [vmem:[#allocation2] sm:$0x1]
        %v684 = vmul.f32 %v683, 0.25
        %v685 = vld [vmem:[#allocation3] sm:$0x1]
        %v686 = vmul.f32 %v685, 0.25
        %v687 = vmul.f32 %v684, %v684
        %v688 = vsub.f32 %v686, %v687
        %v689 = vmax.f32 %v688, 0.0
        %v690 = vld [vmem:[#allocation4] sm:$0x1]
        %v691 = vmul.f32 %v690, 0.001953125
        %v692 = vadd.f32 %v691, %v689
        %v693 = vld [vmem:[%s2] sm:$0x1]
        %v694 = vadd.f32 %v692, 1e-05
        %v695 = vrsqrt.pop %v694
        %v696 = vmul.f32 %v695, %v694
        %v697 = vmul.f32 %v696, %v695
        %v698 = vmul.f32 0.5, %v697
        %v699 = vsub.f32 1.5, %v698
        %v700 = vmul.f32 %v695, %v699
        %vm701 = vweird.f32 %v694
        %vm702 = vweird.f32 %v695
        %vm703 = vmor %vm701, %vm702
        %v704 = vsel %vm703, %v695, %v700
        %v705 = vmul.f32 %v693, %v704
        %v706 = vld [vmem:[%s3] sm:$0x1]
        %v707 = vmul.f32 %v684, %v705
        %v708 = vsub.f32 %v706, %v707
        %v709 = vld [vmem:[%s4] sm:$0xf]
        %v710 = vld [vmem:[%s4 + $0x4] sm:$0xf]
        %v711 = vld [vmem:[%s4 + $0x8] sm:$0xf]
        %v712 = vld [vmem:[%s4 + $0xc] sm:$0xf]
        %v713 = vld [vmem:[%s4 + $0x10] sm:$0xf]
        %v714 = vld [vmem:[%s4 + $0x14] sm:$0xf]
        %v715 = vld [vmem:[%s4 + $0x18] sm:$0xf]
        %v716 = vld [vmem:[%s4 + $0x1c] sm:$0xf]
        %v717 = vld [vmem:[%s4 + $0x20] sm:$0xf]
        %v718 = vld [vmem:[%s4 + $0x24] sm:$0xf]
        %v719 = vld [vmem:[%s4 + $0x28] sm:$0xf]
        %v720 = vld [vmem:[%s4 + $0x2c] sm:$0xf]
        %v721 = vld [vmem:[%s4 + $0x30] sm:$0xf]
        %v722 = vld [vmem:[%s4 + $0x34] sm:$0xf]
        %v723 = vld [vmem:[%s4 + $0x38] sm:$0xf]
        %v724 = vld [vmem:[%s4 + $0x3c] sm:$0xf]
        %v725 = vld [vmem:[%s4 + $0x40] sm:$0xf]
        %v726 = vld [vmem:[%s4 + $0x44] sm:$0xf]
        %v727 = vld [vmem:[%s4 + $0x48] sm:$0xf]
        %v728 = vld [vmem:[%s4 + $0x4c] sm:$0xf]
        %v729 = vld [vmem:[%s4 + $0x50] sm:$0xf]
        %v730 = vld [vmem:[%s4 + $0x54] sm:$0xf]
        %v731 = vld [vmem:[%s4 + $0x58] sm:$0xf]
        %v732 = vld [vmem:[%s4 + $0x5c] sm:$0xf]
        %v733 = vld [vmem:[%s4 + $0x60] sm:$0xf]
        %v734 = vld [vmem:[%s4 + $0x64] sm:$0xf]
        %v735 = vld [vmem:[%s4 + $0x68] sm:$0xf]
        %v736 = vld [vmem:[%s4 + $0x6c] sm:$0xf]
        %v737 = vld [vmem:[%s4 + $0x70] sm:$0xf]
        %v738 = vld [vmem:[%s4 + $0x74] sm:$0xf]
        %v739 = vld [vmem:[%s4 + $0x78] sm:$0xf]
        %v740 = vld [vmem:[%s4 + $0x7c] sm:$0xf]
        %v741 = vld [vmem:[%s4 + $0x80] sm:$0xf]
        %v742 = vld [vmem:[%s4 + $0x84] sm:$0xf]
        %v743 = vld [vmem:[%s4 + $0x88] sm:$0xf]
        %v744 = vld [vmem:[%s4 + $0x8c] sm:$0xf]
        %v745 = vld [vmem:[%s4 + $0x90] sm:$0xf]
        %v746 = vld [vmem:[%s4 + $0x94] sm:$0xf]
        %v747 = vld [vmem:[%s4 + $0x98] sm:$0xf]
        %v748 = vld [vmem:[%s4 + $0x9c] sm:$0xf]
        %v749 = vld [vmem:[%s4 + $0xa0] sm:$0xf]
        %v750 = vld [vmem:[%s4 + $0xa4] sm:$0xf]
        %v751 = vld [vmem:[%s4 + $0xa8] sm:$0xf]
        %v752 = vld [vmem:[%s4 + $0xac] sm:$0xf]
        %v753 = vld [vmem:[%s4 + $0xb0] sm:$0xf]
        %v754 = vld [vmem:[%s4 + $0xb4] sm:$0xf]
        %v755 = vld [vmem:[%s4 + $0xb8] sm:$0xf]
        %v756 = vld [vmem:[%s4 + $0xbc] sm:$0xf]
        %v757 = vld [vmem:[%s4 + $0xc0] sm:$0xf]
        %v758 = vld [vmem:[%s4 + $0xc4] sm:$0xf]
        %v759 = vld [vmem:[%s4 + $0xc8] sm:$0xf]
        %v760 = vld [vmem:[%s4 + $0xcc] sm:$0xf]
        %v761 = vld [vmem:[%s4 + $0xd0] sm:$0xf]
        %v762 = vld [vmem:[%s4 + $0xd4] sm:$0xf]
        %v763 = vld [vmem:[%s4 + $0xd8] sm:$0xf]
        %v764 = vld [vmem:[%s4 + $0xdc] sm:$0xf]
        %v765 = vld [vmem:[%s4 + $0xe0] sm:$0xf]
        %v766 = vld [vmem:[%s4 + $0xe4] sm:$0xf]
        %v767 = vld [vmem:[%s4 + $0xe8] sm:$0xf]
        %v768 = vld [vmem:[%s4 + $0xec] sm:$0xf]
        %v769 = vld [vmem:[%s4 + $0xf0] sm:$0xf]
        %v770 = vld [vmem:[%s4 + $0xf4] sm:$0xf]
        %v771 = vld [vmem:[%s4 + $0xf8] sm:$0xf]
        %v772 = vld [vmem:[%s4 + $0xfc] sm:$0xf]
        %v773 = vunpack.c.l.bf16 %v709
        %v774 = vunpack.c.l.bf16 %v710
        %v775 = vunpack.c.l.bf16 %v711
        %v776 = vunpack.c.l.bf16 %v712
        %v777 = vunpack.c.l.bf16 %v713
        %v778 = vunpack.c.l.bf16 %v714
        %v779 = vunpack.c.l.bf16 %v715
        %v780 = vunpack.c.l.bf16 %v716
        %v781 = vunpack.c.l.bf16 %v717
        %v782 = vunpack.c.l.bf16 %v718
        %v783 = vunpack.c.l.bf16 %v719
        %v784 = vunpack.c.l.bf16 %v720
        %v785 = vunpack.c.l.bf16 %v721
        %v786 = vunpack.c.l.bf16 %v722
        %v787 = vunpack.c.l.bf16 %v723
        %v788 = vunpack.c.l.bf16 %v724
        %v789 = vunpack.c.l.bf16 %v725
        %v790 = vunpack.c.l.bf16 %v726
        %v791 = vunpack.c.l.bf16 %v727
        %v792 = vunpack.c.l.bf16 %v728
        %v793 = vunpack.c.l.bf16 %v729
        %v794 = vunpack.c.l.bf16 %v730
        %v795 = vunpack.c.l.bf16 %v731
        %v796 = vunpack.c.l.bf16 %v732
        %v797 = vunpack.c.l.bf16 %v733
        %v798 = vunpack.c.l.bf16 %v734
        %v799 = vunpack.c.l.bf16 %v735
        %v800 = vunpack.c.l.bf16 %v736
        %v801 = vunpack.c.l.bf16 %v737
        %v802 = vunpack.c.l.bf16 %v738
        %v803 = vunpack.c.l.bf16 %v739
        %v804 = vunpack.c.l.bf16 %v740
        %v805 = vunpack.c.l.bf16 %v741
        %v806 = vunpack.c.l.bf16 %v742
        %v807 = vunpack.c.l.bf16 %v743
        %v808 = vunpack.c.l.bf16 %v744
        %v809 = vunpack.c.l.bf16 %v745
        %v810 = vunpack.c.l.bf16 %v746
        %v811 = vunpack.c.l.bf16 %v747
        %v812 = vunpack.c.l.bf16 %v748
        %v813 = vunpack.c.l.bf16 %v749
        %v814 = vunpack.c.l.bf16 %v750
        %v815 = vunpack.c.l.bf16 %v751
        %v816 = vunpack.c.l.bf16 %v752
        %v817 = vunpack.c.l.bf16 %v753
        %v818 = vunpack.c.l.bf16 %v754
        %v819 = vunpack.c.l.bf16 %v755
        %v820 = vunpack.c.l.bf16 %v756
        %v821 = vunpack.c.l.bf16 %v757
        %v822 = vunpack.c.l.bf16 %v758
        %v823 = vunpack.c.l.bf16 %v759
        %v824 = vunpack.c.l.bf16 %v760
        %v825 = vunpack.c.l.bf16 %v761
        %v826 = vunpack.c.l.bf16 %v762
        %v827 = vunpack.c.l.bf16 %v763
        %v828 = vunpack.c.l.bf16 %v764
        %v829 = vunpack.c.l.bf16 %v765
        %v830 = vunpack.c.l.bf16 %v766
        %v831 = vunpack.c.l.bf16 %v767
        %v832 = vunpack.c.l.bf16 %v768
        %v833 = vunpack.c.l.bf16 %v769
        %v834 = vunpack.c.l.bf16 %v770
        %v835 = vunpack.c.l.bf16 %v771
        %v836 = vunpack.c.l.bf16 %v772
        %v838 = vperm.slane %v705, 0
        %v840 = vmul.f32 %v773, %v838
        %v841 = vmul.f32 %v774, %v838
        %v842 = vmul.f32 %v775, %v838
        %v843 = vmul.f32 %v776, %v838
        %v844 = vmul.f32 %v777, %v838
        %v845 = vmul.f32 %v778, %v838
        %v846 = vmul.f32 %v779, %v838
        %v847 = vmul.f32 %v780, %v838
        %v848 = vmul.f32 %v781, %v838
        %v849 = vmul.f32 %v782, %v838
        %v850 = vmul.f32 %v783, %v838
        %v851 = vmul.f32 %v784, %v838
        %v852 = vmul.f32 %v785, %v838
        %v853 = vmul.f32 %v786, %v838
        %v854 = vmul.f32 %v787, %v838
        %v855 = vmul.f32 %v788, %v838
        %v856 = vmul.f32 %v789, %v838
        %v857 = vmul.f32 %v790, %v838
        %v858 = vmul.f32 %v791, %v838
        %v859 = vmul.f32 %v792, %v838
        %v860 = vmul.f32 %v793, %v838
        %v861 = vmul.f32 %v794, %v838
        %v862 = vmul.f32 %v795, %v838
        %v863 = vmul.f32 %v796, %v838
        %v864 = vmul.f32 %v797, %v838
        %v865 = vmul.f32 %v798, %v838
        %v866 = vmul.f32 %v799, %v838
        %v867 = vmul.f32 %v800, %v838
        %v868 = vmul.f32 %v801, %v838
        %v869 = vmul.f32 %v802, %v838
        %v870 = vmul.f32 %v803, %v838
        %v871 = vmul.f32 %v804, %v838
        %v872 = vmul.f32 %v805, %v838
        %v873 = vmul.f32 %v806, %v838
        %v874 = vmul.f32 %v807, %v838
        %v875 = vmul.f32 %v808, %v838
        %v876 = vmul.f32 %v809, %v838
        %v877 = vmul.f32 %v810, %v838
        %v878 = vmul.f32 %v811, %v838
        %v879 = vmul.f32 %v812, %v838
        %v880 = vmul.f32 %v813, %v838
        %v881 = vmul.f32 %v814, %v838
        %v882 = vmul.f32 %v815, %v838
        %v883 = vmul.f32 %v816, %v838
        %v884 = vmul.f32 %v817, %v838
        %v885 = vmul.f32 %v818, %v838
        %v886 = vmul.f32 %v819, %v838
        %v887 = vmul.f32 %v820, %v838
        %v888 = vmul.f32 %v821, %v838
        %v889 = vmul.f32 %v822, %v838
        %v890 = vmul.f32 %v823, %v838
        %v891 = vmul.f32 %v824, %v838
        %v892 = vmul.f32 %v825, %v838
        %v893 = vmul.f32 %v826, %v838
        %v894 = vmul.f32 %v827, %v838
        %v895 = vmul.f32 %v828, %v838
        %v896 = vmul.f32 %v829, %v838
        %v897 = vmul.f32 %v830, %v838
        %v898 = vmul.f32 %v831, %v838
        %v899 = vmul.f32 %v832, %v838
        %v900 = vmul.f32 %v833, %v838
        %v901 = vmul.f32 %v834, %v838
        %v902 = vmul.f32 %v835, %v838
        %v903 = vmul.f32 %v836, %v838
        %v905 = vperm.slane %v708, 0
        %v907 = vadd.f32 %v840, %v905
        %v908 = vadd.f32 %v841, %v905
        %v909 = vadd.f32 %v842, %v905
        %v910 = vadd.f32 %v843, %v905
        %v911 = vadd.f32 %v844, %v905
        %v912 = vadd.f32 %v845, %v905
        %v913 = vadd.f32 %v846, %v905
        %v914 = vadd.f32 %v847, %v905
        %v915 = vadd.f32 %v848, %v905
        %v916 = vadd.f32 %v849, %v905
        %v917 = vadd.f32 %v850, %v905
        %v918 = vadd.f32 %v851, %v905
        %v919 = vadd.f32 %v852, %v905
        %v920 = vadd.f32 %v853, %v905
        %v921 = vadd.f32 %v854, %v905
        %v922 = vadd.f32 %v855, %v905
        %v923 = vadd.f32 %v856, %v905
        %v924 = vadd.f32 %v857, %v905
        %v925 = vadd.f32 %v858, %v905
        %v926 = vadd.f32 %v859, %v905
        %v927 = vadd.f32 %v860, %v905
        %v928 = vadd.f32 %v861, %v905
        %v929 = vadd.f32 %v862, %v905
        %v930 = vadd.f32 %v863, %v905
        %v931 = vadd.f32 %v864, %v905
        %v932 = vadd.f32 %v865, %v905
        %v933 = vadd.f32 %v866, %v905
        %v934 = vadd.f32 %v867, %v905
        %v935 = vadd.f32 %v868, %v905
        %v936 = vadd.f32 %v869, %v905
        %v937 = vadd.f32 %v870, %v905
        %v938 = vadd.f32 %v871, %v905
        %v939 = vadd.f32 %v872, %v905
        %v940 = vadd.f32 %v873, %v905
        %v941 = vadd.f32 %v874, %v905
        %v942 = vadd.f32 %v875, %v905
        %v943 = vadd.f32 %v876, %v905
        %v944 = vadd.f32 %v877, %v905
        %v945 = vadd.f32 %v878, %v905
        %v946 = vadd.f32 %v879, %v905
        %v947 = vadd.f32 %v880, %v905
        %v948 = vadd.f32 %v881, %v905
        %v949 = vadd.f32 %v882, %v905
        %v950 = vadd.f32 %v883, %v905
        %v951 = vadd.f32 %v884, %v905
        %v952 = vadd.f32 %v885, %v905
        %v953 = vadd.f32 %v886, %v905
        %v954 = vadd.f32 %v887, %v905
        %v955 = vadd.f32 %v888, %v905
        %v956 = vadd.f32 %v889, %v905
        %v957 = vadd.f32 %v890, %v905
        %v958 = vadd.f32 %v891, %v905
        %v959 = vadd.f32 %v892, %v905
        %v960 = vadd.f32 %v893, %v905
        %v961 = vadd.f32 %v894, %v905
        %v962 = vadd.f32 %v895, %v905
        %v963 = vadd.f32 %v896, %v905
        %v964 = vadd.f32 %v897, %v905
        %v965 = vadd.f32 %v898, %v905
        %v966 = vadd.f32 %v899, %v905
        %v967 = vadd.f32 %v900, %v905
        %v968 = vadd.f32 %v901, %v905
        %v969 = vadd.f32 %v902, %v905
        %v970 = vadd.f32 %v903, %v905
        %v971 = vmax.f32 %v907, 0.0
        %v972 = vmax.f32 %v908, 0.0
        %v973 = vmax.f32 %v909, 0.0
        %v974 = vmax.f32 %v910, 0.0
        %v975 = vmax.f32 %v911, 0.0
        %v976 = vmax.f32 %v912, 0.0
        %v977 = vmax.f32 %v913, 0.0
        %v978 = vmax.f32 %v914, 0.0
        %v979 = vmax.f32 %v915, 0.0
        %v980 = vmax.f32 %v916, 0.0
        %v981 = vmax.f32 %v917, 0.0
        %v982 = vmax.f32 %v918, 0.0
        %v983 = vmax.f32 %v919, 0.0
        %v984 = vmax.f32 %v920, 0.0
        %v985 = vmax.f32 %v921, 0.0
        %v986 = vmax.f32 %v922, 0.0
        %v987 = vmax.f32 %v923, 0.0
        %v988 = vmax.f32 %v924, 0.0
        %v989 = vmax.f32 %v925, 0.0
        %v990 = vmax.f32 %v926, 0.0
        %v991 = vmax.f32 %v927, 0.0
        %v992 = vmax.f32 %v928, 0.0
        %v993 = vmax.f32 %v929, 0.0
        %v994 = vmax.f32 %v930, 0.0
        %v995 = vmax.f32 %v931, 0.0
        %v996 = vmax.f32 %v932, 0.0
        %v997 = vmax.f32 %v933, 0.0
        %v998 = vmax.f32 %v934, 0.0
        %v999 = vmax.f32 %v935, 0.0
        %v1000 = vmax.f32 %v936, 0.0
        %v1001 = vmax.f32 %v937, 0.0
        %v1002 = vmax.f32 %v938, 0.0
        %v1003 = vmax.f32 %v939, 0.0
        %v1004 = vmax.f32 %v940, 0.0
        %v1005 = vmax.f32 %v941, 0.0
        %v1006 = vmax.f32 %v942, 0.0
        %v1007 = vmax.f32 %v943, 0.0
        %v1008 = vmax.f32 %v944, 0.0
        %v1009 = vmax.f32 %v945, 0.0
        %v1010 = vmax.f32 %v946, 0.0
        %v1011 = vmax.f32 %v947, 0.0
        %v1012 = vmax.f32 %v948, 0.0
        %v1013 = vmax.f32 %v949, 0.0
        %v1014 = vmax.f32 %v950, 0.0
        %v1015 = vmax.f32 %v951, 0.0
        %v1016 = vmax.f32 %v952, 0.0
        %v1017 = vmax.f32 %v953, 0.0
        %v1018 = vmax.f32 %v954, 0.0
        %v1019 = vmax.f32 %v955, 0.0
        %v1020 = vmax.f32 %v956, 0.0
        %v1021 = vmax.f32 %v957, 0.0
        %v1022 = vmax.f32 %v958, 0.0
        %v1023 = vmax.f32 %v959, 0.0
        %v1024 = vmax.f32 %v960, 0.0
        %v1025 = vmax.f32 %v961, 0.0
        %v1026 = vmax.f32 %v962, 0.0
        %v1027 = vmax.f32 %v963, 0.0
        %v1028 = vmax.f32 %v964, 0.0
        %v1029 = vmax.f32 %v965, 0.0
        %v1030 = vmax.f32 %v966, 0.0
        %v1031 = vmax.f32 %v967, 0.0
        %v1032 = vmax.f32 %v968, 0.0
        %v1033 = vmax.f32 %v969, 0.0
        %v1034 = vmax.f32 %v970, 0.0
        %v1035 = vpack.c.bf16 %v971, %v971
        %v1036 = vpack.c.bf16 %v972, %v972
        %v1037 = vpack.c.bf16 %v973, %v973
        %v1038 = vpack.c.bf16 %v974, %v974
        %v1039 = vpack.c.bf16 %v975, %v975
        %v1040 = vpack.c.bf16 %v976, %v976
        %v1041 = vpack.c.bf16 %v977, %v977
        %v1042 = vpack.c.bf16 %v978, %v978
        %v1043 = vpack.c.bf16 %v979, %v979
        %v1044 = vpack.c.bf16 %v980, %v980
        %v1045 = vpack.c.bf16 %v981, %v981
        %v1046 = vpack.c.bf16 %v982, %v982
        %v1047 = vpack.c.bf16 %v983, %v983
        %v1048 = vpack.c.bf16 %v984, %v984
        %v1049 = vpack.c.bf16 %v985, %v985
        %v1050 = vpack.c.bf16 %v986, %v986
        %v1051 = vpack.c.bf16 %v987, %v987
        %v1052 = vpack.c.bf16 %v988, %v988
        %v1053 = vpack.c.bf16 %v989, %v989
        %v1054 = vpack.c.bf16 %v990, %v990
        %v1055 = vpack.c.bf16 %v991, %v991
        %v1056 = vpack.c.bf16 %v992, %v992
        %v1057 = vpack.c.bf16 %v993, %v993
        %v1058 = vpack.c.bf16 %v994, %v994
        %v1059 = vpack.c.bf16 %v995, %v995
        %v1060 = vpack.c.bf16 %v996, %v996
        %v1061 = vpack.c.bf16 %v997, %v997
        %v1062 = vpack.c.bf16 %v998, %v998
        %v1063 = vpack.c.bf16 %v999, %v999
        %v1064 = vpack.c.bf16 %v1000, %v1000
        %v1065 = vpack.c.bf16 %v1001, %v1001
        %v1066 = vpack.c.bf16 %v1002, %v1002
        %v1067 = vpack.c.bf16 %v1003, %v1003
        %v1068 = vpack.c.bf16 %v1004, %v1004
        %v1069 = vpack.c.bf16 %v1005, %v1005
        %v1070 = vpack.c.bf16 %v1006, %v1006
        %v1071 = vpack.c.bf16 %v1007, %v1007
        %v1072 = vpack.c.bf16 %v1008, %v1008
        %v1073 = vpack.c.bf16 %v1009, %v1009
        %v1074 = vpack.c.bf16 %v1010, %v1010
        %v1075 = vpack.c.bf16 %v1011, %v1011
        %v1076 = vpack.c.bf16 %v1012, %v1012
        %v1077 = vpack.c.bf16 %v1013, %v1013
        %v1078 = vpack.c.bf16 %v1014, %v1014
        %v1079 = vpack.c.bf16 %v1015, %v1015
        %v1080 = vpack.c.bf16 %v1016, %v1016
        %v1081 = vpack.c.bf16 %v1017, %v1017
        %v1082 = vpack.c.bf16 %v1018, %v1018
        %v1083 = vpack.c.bf16 %v1019, %v1019
        %v1084 = vpack.c.bf16 %v1020, %v1020
        %v1085 = vpack.c.bf16 %v1021, %v1021
        %v1086 = vpack.c.bf16 %v1022, %v1022
        %v1087 = vpack.c.bf16 %v1023, %v1023
        %v1088 = vpack.c.bf16 %v1024, %v1024
        %v1089 = vpack.c.bf16 %v1025, %v1025
        %v1090 = vpack.c.bf16 %v1026, %v1026
        %v1091 = vpack.c.bf16 %v1027, %v1027
        %v1092 = vpack.c.bf16 %v1028, %v1028
        %v1093 = vpack.c.bf16 %v1029, %v1029
        %v1094 = vpack.c.bf16 %v1030, %v1030
        %v1095 = vpack.c.bf16 %v1031, %v1031
        %v1096 = vpack.c.bf16 %v1032, %v1032
        %v1097 = vpack.c.bf16 %v1033, %v1033
        %v1098 = vpack.c.bf16 %v1034, %v1034
        %1099 = vst [vmem:[%s4] sm:$0xf] %v1035
        %1100 = vst [vmem:[%s4 + $0x4] sm:$0xf] %v1036
        %1101 = vst [vmem:[%s4 + $0x8] sm:$0xf] %v1037
        %1102 = vst [vmem:[%s4 + $0xc] sm:$0xf] %v1038
        %1103 = vst [vmem:[%s4 + $0x10] sm:$0xf] %v1039
        %1104 = vst [vmem:[%s4 + $0x14] sm:$0xf] %v1040
        %1105 = vst [vmem:[%s4 + $0x18] sm:$0xf] %v1041
        %1106 = vst [vmem:[%s4 + $0x1c] sm:$0xf] %v1042
        %1107 = vst [vmem:[%s4 + $0x20] sm:$0xf] %v1043
        %1108 = vst [vmem:[%s4 + $0x24] sm:$0xf] %v1044
        %1109 = vst [vmem:[%s4 + $0x28] sm:$0xf] %v1045
        %1110 = vst [vmem:[%s4 + $0x2c] sm:$0xf] %v1046
        %1111 = vst [vmem:[%s4 + $0x30] sm:$0xf] %v1047
        %1112 = vst [vmem:[%s4 + $0x34] sm:$0xf] %v1048
        %1113 = vst [vmem:[%s4 + $0x38] sm:$0xf] %v1049
        %1114 = vst [vmem:[%s4 + $0x3c] sm:$0xf] %v1050
        %1115 = vst [vmem:[%s4 + $0x40] sm:$0xf] %v1051
        %1116 = vst [vmem:[%s4 + $0x44] sm:$0xf] %v1052
        %1117 = vst [vmem:[%s4 + $0x48] sm:$0xf] %v1053
        %1118 = vst [vmem:[%s4 + $0x4c] sm:$0xf] %v1054
        %1119 = vst [vmem:[%s4 + $0x50] sm:$0xf] %v1055
        %1120 = vst [vmem:[%s4 + $0x54] sm:$0xf] %v1056
        %1121 = vst [vmem:[%s4 + $0x58] sm:$0xf] %v1057
        %1122 = vst [vmem:[%s4 + $0x5c] sm:$0xf] %v1058
        %1123 = vst [vmem:[%s4 + $0x60] sm:$0xf] %v1059
        %1124 = vst [vmem:[%s4 + $0x64] sm:$0xf] %v1060
        %1125 = vst [vmem:[%s4 + $0x68] sm:$0xf] %v1061
        %1126 = vst [vmem:[%s4 + $0x6c] sm:$0xf] %v1062
        %1127 = vst [vmem:[%s4 + $0x70] sm:$0xf] %v1063
        %1128 = vst [vmem:[%s4 + $0x74] sm:$0xf] %v1064
        %1129 = vst [vmem:[%s4 + $0x78] sm:$0xf] %v1065
        %1130 = vst [vmem:[%s4 + $0x7c] sm:$0xf] %v1066
        %1131 = vst [vmem:[%s4 + $0x80] sm:$0xf] %v1067
        %1132 = vst [vmem:[%s4 + $0x84] sm:$0xf] %v1068
        %1133 = vst [vmem:[%s4 + $0x88] sm:$0xf] %v1069
        %1134 = vst [vmem:[%s4 + $0x8c] sm:$0xf] %v1070
        %1135 = vst [vmem:[%s4 + $0x90] sm:$0xf] %v1071
        %1136 = vst [vmem:[%s4 + $0x94] sm:$0xf] %v1072
        %1137 = vst [vmem:[%s4 + $0x98] sm:$0xf] %v1073
        %1138 = vst [vmem:[%s4 + $0x9c] sm:$0xf] %v1074
        %1139 = vst [vmem:[%s4 + $0xa0] sm:$0xf] %v1075
        %1140 = vst [vmem:[%s4 + $0xa4] sm:$0xf] %v1076
        %1141 = vst [vmem:[%s4 + $0xa8] sm:$0xf] %v1077
        %1142 = vst [vmem:[%s4 + $0xac] sm:$0xf] %v1078
        %1143 = vst [vmem:[%s4 + $0xb0] sm:$0xf] %v1079
        %1144 = vst [vmem:[%s4 + $0xb4] sm:$0xf] %v1080
        %1145 = vst [vmem:[%s4 + $0xb8] sm:$0xf] %v1081
        %1146 = vst [vmem:[%s4 + $0xbc] sm:$0xf] %v1082
        %1147 = vst [vmem:[%s4 + $0xc0] sm:$0xf] %v1083
        %1148 = vst [vmem:[%s4 + $0xc4] sm:$0xf] %v1084
        %1149 = vst [vmem:[%s4 + $0xc8] sm:$0xf] %v1085
        %1150 = vst [vmem:[%s4 + $0xcc] sm:$0xf] %v1086
        %1151 = vst [vmem:[%s4 + $0xd0] sm:$0xf] %v1087
        %1152 = vst [vmem:[%s4 + $0xd4] sm:$0xf] %v1088
        %1153 = vst [vmem:[%s4 + $0xd8] sm:$0xf] %v1089
        %1154 = vst [vmem:[%s4 + $0xdc] sm:$0xf] %v1090
        %1155 = vst [vmem:[%s4 + $0xe0] sm:$0xf] %v1091
        %1156 = vst [vmem:[%s4 + $0xe4] sm:$0xf] %v1092
        %1157 = vst [vmem:[%s4 + $0xe8] sm:$0xf] %v1093
        %1158 = vst [vmem:[%s4 + $0xec] sm:$0xf] %v1094
        %1159 = vst [vmem:[%s4 + $0xf0] sm:$0xf] %v1095
        %1160 = vst [vmem:[%s4 + $0xf4] sm:$0xf] %v1096
        %1161 = vst [vmem:[%s4 + $0xf8] sm:$0xf] %v1097
        %1162 = vst [vmem:[%s4 + $0xfc] sm:$0xf] %v1098
      $region44: #{generator_forward.7} parent=35 // pred_fallthru
        _
      // Predicated region
      $region45: #{generator_forward.7} parent=35 // pred_check
        %p1163 = pneg %p136
      $region46: #{generator_forward.7} parent=35 // pred_check_branch
        %1165 = sbr.rel (%p1163) target = $region48
      $region47: #{generator_forward.7} parent=35 // pred_region
        _
      $region48: #{generator_forward.7} parent=35 // pred_fallthru
        _
      // Predicated region
      $region49: #{generator_forward.7} parent=35 // pred_check
        %p1166 = pneg %p136
      $region50: #{generator_forward.7} parent=35 // pred_check_branch
        %1168 = sbr.rel (%p1166) target = $region52
      $region51: #{generator_forward.7} parent=35 // pred_region
        _
      $region52: #{generator_forward.7} parent=35 // pred_fallthru
        _
    $region36: #{generator_forward.7} parent=5 // pred_fallthru
      _
    %p1169 = scmp.le.s32.totalorder 2, %s10
    // Predicated region
    $region53: #{generator_forward.7} parent=5 // pred_check
      %p1170 = pneg %p1169
    $region54: #{generator_forward.7} parent=5 // pred_check_branch
      %1172 = sbr.rel (%p1170) target = $region56
    $region55: #{generator_forward.7} parent=5 // pred_region
      %s1173 = ssub.s32 %s10, 2
    $region56: #{generator_forward.7} parent=5 // pred_fallthru
      _
  $region6: #{generator_forward.7} parent=0 // loop_footer
    %s14 = sadd.s32 1, %s10
  $region7: #{generator_forward.7} parent=0 // loop_footer_branch
    %9 = sbr.rel target = $region3
  $region8: #{generator_forward.7} parent=0 // loop_exit
    _

// kernel: generator_forward.8
$region0: #{generator_forward.8}
  #allocation0 [shape = 'u32[]', space=smem, size = 0x4, offset = 0x4, fixed_abs, tag = 'smem constant byte address 0x4 - core index']
  #allocation1 [shape = 'u32[72,128]{1,0:T(1,128)}', space=vmem, size = 0x9000, scoped, tag = 'internal scratch']
  #allocation2 [shape = 'f32[1,128]{1,0:T(1,128)}', space=vmem, size = 0x200, scoped, tag = 'scratch operand']
  #allocation3 [shape = 'f32[1,128]{1,0:T(1,128)}', space=vmem, size = 0x200, scoped, tag = 'scratch operand']
  #allocation4 [shape = 'f32[1,128]{1,0:T(1,128)}', space=vmem, size = 0x200, scoped, tag = 'scratch operand']
  %s0 = inlined_call_operand.vmem [shape: bf16[2048,128], index: 0, kind: input, shape index: {}]
  %s1 = inlined_call_operand.vmem [shape: bf16[4,128,128], index: 1, kind: input, shape index: {}]
  %s2 = inlined_call_operand.vmem [shape: f32[1,128], index: 2, kind: input, shape index: {}]
  %s3 = inlined_call_operand.vmem [shape: f32[1,128], index: 3, kind: input, shape index: {}]
  %s4 = inlined_call_operand.vmem [shape: bf16[2048,128], index: 4, kind: output, shape index: {}]
  %s5 = sld [smem:[#allocation0]]
  $region57: #{generator_forward.8} parent=0
    _
  %s7 = ssub.s32 1, %s5
  %s8 = scalar_select 0, %s7, %s5
  loop: start=0, step=1, limit=6
  $region2: #{generator_forward.8} parent=0 // loop_pre_header
    _
  $region3: #{generator_forward.8} parent=0 // loop_header
    %s10 = sphi 0, %s14
    %p11 = scmp.ge.s32.totalorder %s10, 6
    %s17 = sphi 0, %s29
    %s18 = sphi 0, %s25
    %s19 = sphi 0, %s17
    %s20 = sphi 0, %s18
    %s21 = sphi 0, %s19
    %s22 = sphi 0, %s20
    %s34 = sphi 0, %s36
    %s37 = sphi 0, %s34
    %s38 = sphi 0, %s37
    %s54 = sphi 0, %s38
    %s60 = sphi 0, %s62
    %s63 = sphi 0, %s60
    %s64 = sphi 0, %s63
    %s80 = sphi 0, %s64
    %s84 = sphi 0, %s84
    %s86 = sphi 0, %s84
    %s87 = sphi 0, %s86
    %s101 = sphi 0, %s87
    %s105 = sphi 0, %s105
    %s107 = sphi 0, %s105
    %s108 = sphi 0, %s107
    %s122 = sphi 0, %s108
    %s126 = sphi 0, %s126
    %s128 = sphi 0, %s126
    %s129 = sphi 0, %s128
    %s143 = sphi 0, %s129
  $region4: #{generator_forward.8} parent=0 // loop_header_branch
    %13 = sbr.rel (%p11) target = $region8
  $region5: #{generator_forward.8} parent=0 // loop_body
    %s15 = ssub.s32 %s10, 1
    %s16 = ssub.s32 %s10, 2
    %s23 = sadd.s32 1, %s18
    %p24 = scmp.ge.s32.totalorder %s23, 1
    %s25 = scalar_select %p24, 0, %s23
    %s26 = sadd.s32 1, %s17
    %s27 = scalar_select %p24, %s26, %s17
    %p28 = scmp.ge.s32.totalorder %s27, 4
    %s29 = scalar_select %p28, 0, %s27
    %s30 = sadd.s32 %s17, %s18
    %s31 = sadd.s32 %s29, %s25
    %s32 = ssub.s32 %s30, %s31
    %p33 = scmp.eq.s32.totalorder %s32, 0
    %s35 = sadd.s32 %s34, 1
    %s36 = scalar_select %p33, %s34, %s35
    %p39 = pneg %p33
    %p40 = scmp.eq.s32.totalorder %s10, 3
    %p41 = por %p39, %p40
    %p42 = scmp.ne.s32.totalorder %s34, %s37
    %p43 = scmp.eq.s32.totalorder %s10, 0
    %p44 = por %p42, %p43
    %p45 = scmp.ne.s32.totalorder %s34, %s37
    %p46 = scmp.eq.s32.totalorder %s15, 3
    %p47 = por %p45, %p46
    %p48 = scmp.ne.s32.totalorder %s37, %s38
    %p49 = scmp.eq.s32.totalorder %s15, 0
    %p50 = por %p48, %p49
    %p51 = scmp.ne.s32.totalorder %s37, %s38
    %p52 = scmp.eq.s32.totalorder %s16, 3
    %p53 = por %p51, %p52
    %p55 = scmp.ne.s32.totalorder %s38, %s54
    %p56 = scmp.eq.s32.totalorder %s16, 0
    %p57 = por %p55, %p56
    %s58 = ssub.s32 %s17, %s29
    %p59 = scmp.eq.s32.totalorder %s58, 0
    %s61 = sadd.s32 %s60, 1
    %s62 = scalar_select %p59, %s60, %s61
    %p65 = pneg %p59
    %p66 = scmp.eq.s32.totalorder %s10, 3
    %p67 = por %p65, %p66
    %p68 = scmp.ne.s32.totalorder %s60, %s63
    %p69 = scmp.eq.s32.totalorder %s10, 0
    %p70 = por %p68, %p69
    %p71 = scmp.ne.s32.totalorder %s60, %s63
    %p72 = scmp.eq.s32.totalorder %s15, 3
    %p73 = por %p71, %p72
    %p74 = scmp.ne.s32.totalorder %s63, %s64
    %p75 = scmp.eq.s32.totalorder %s15, 0
    %p76 = por %p74, %p75
    %p77 = scmp.ne.s32.totalorder %s63, %s64
    %p78 = scmp.eq.s32.totalorder %s16, 3
    %p79 = por %p77, %p78
    %p81 = scmp.ne.s32.totalorder %s64, %s80
    %p82 = scmp.eq.s32.totalorder %s16, 0
    %p83 = por %p81, %p82
    %s85 = sadd.s32 %s84, 1
    %p88 = scmp.eq.s32.totalorder %s10, 3
    %p89 = scmp.ne.s32.totalorder %s84, %s86
    %p90 = scmp.eq.s32.totalorder %s10, 0
    %p91 = por %p89, %p90
    %p92 = scmp.ne.s32.totalorder %s84, %s86
    %p93 = scmp.eq.s32.totalorder %s15, 3
    %p94 = por %p92, %p93
    %p95 = scmp.ne.s32.totalorder %s86, %s87
    %p96 = scmp.eq.s32.totalorder %s15, 0
    %p97 = por %p95, %p96
    %p98 = scmp.ne.s32.totalorder %s86, %s87
    %p99 = scmp.eq.s32.totalorder %s16, 3
    %p100 = por %p98, %p99
    %p102 = scmp.ne.s32.totalorder %s87, %s101
    %p103 = scmp.eq.s32.totalorder %s16, 0
    %p104 = por %p102, %p103
    %s106 = sadd.s32 %s105, 1
    %p109 = scmp.eq.s32.totalorder %s10, 3
    %p110 = scmp.ne.s32.totalorder %s105, %s107
    %p111 = scmp.eq.s32.totalorder %s10, 0
    %p112 = por %p110, %p111
    %p113 = scmp.ne.s32.totalorder %s105, %s107
    %p114 = scmp.eq.s32.totalorder %s15, 3
    %p115 = por %p113, %p114
    %p116 = scmp.ne.s32.totalorder %s107, %s108
    %p117 = scmp.eq.s32.totalorder %s15, 0
    %p118 = por %p116, %p117
    %p119 = scmp.ne.s32.totalorder %s107, %s108
    %p120 = scmp.eq.s32.totalorder %s16, 3
    %p121 = por %p119, %p120
    %p123 = scmp.ne.s32.totalorder %s108, %s122
    %p124 = scmp.eq.s32.totalorder %s16, 0
    %p125 = por %p123, %p124
    %s127 = sadd.s32 %s126, 1
    %p130 = scmp.eq.s32.totalorder %s10, 3
    %p131 = scmp.ne.s32.totalorder %s126, %s128
    %p132 = scmp.eq.s32.totalorder %s10, 0
    %p133 = por %p131, %p132
    %p134 = scmp.ne.s32.totalorder %s126, %s128
    %p135 = scmp.eq.s32.totalorder %s15, 3
    %p136 = por %p134, %p135
    %p137 = scmp.ne.s32.totalorder %s128, %s129
    %p138 = scmp.eq.s32.totalorder %s15, 0
    %p139 = por %p137, %p138
    %p140 = scmp.ne.s32.totalorder %s128, %s129
    %p141 = scmp.eq.s32.totalorder %s16, 3
    %p142 = por %p140, %p141
    %p144 = scmp.ne.s32.totalorder %s129, %s143
    %p145 = scmp.eq.s32.totalorder %s16, 0
    %p146 = por %p144, %p145
    %p147 = scmp.le.s32.totalorder 1, %s10
    %p148 = scmp.lt.s32.totalorder %s10, 5
    %p149 = pnand %p147, %p148
    %p150 = pneg %p149
    // Predicated region
    $region9: #{generator_forward.8} parent=5 // pred_check
      _
    $region10: #{generator_forward.8} parent=5 // pred_check_branch
      %152 = sbr.rel (%p149) target = $region12
    $region11: #{generator_forward.8} parent=5 // pred_region
      %s153 = ssub.s32 %s10, 1
      // Predicated region
      $region13: #{generator_forward.8} parent=11 // pred_check
        %p154 = pneg %p97
      $region14: #{generator_forward.8} parent=11 // pred_check_branch
        %156 = sbr.rel (%p154) target = $region16
      $region15: #{generator_forward.8} parent=11 // pred_region
        _
      $region16: #{generator_forward.8} parent=11 // pred_fallthru
        _
      // Predicated region
      $region17: #{generator_forward.8} parent=11 // pred_check
        %p157 = pneg %p118
      $region18: #{generator_forward.8} parent=11 // pred_check_branch
        %159 = sbr.rel (%p157) target = $region20
      $region19: #{generator_forward.8} parent=11 // pred_region
        _
      $region20: #{generator_forward.8} parent=11 // pred_fallthru
        _
    $region12: #{generator_forward.8} parent=5 // pred_fallthru
      _
    %p160 = scmp.lt.s32.totalorder %s10, 4
    // Predicated region
    $region21: #{generator_forward.8} parent=5 // pred_check
      %p161 = pneg %p160
    $region22: #{generator_forward.8} parent=5 // pred_check_branch
      %163 = sbr.rel (%p161) target = $region24
    $region23: #{generator_forward.8} parent=5 // pred_region
      // Predicated region
      $region25: #{generator_forward.8} parent=23 // pred_check
        %p164 = pneg %p44
      $region26: #{generator_forward.8} parent=23 // pred_check_branch
        %166 = sbr.rel (%p164) target = $region28
      $region27: #{generator_forward.8} parent=23 // pred_region
        %s167 = sadd.s32 %s17, %s18
        %s168 = smul.u32 64, %s167
        %p169 = scmp.lt.s32.totalorder %s168, 255
        %s170 = scalar_select %p169, %s168, 255
        %s171 = smul.addr %s170, 4
        %s172 = scalar_lea.vmem %s0, %s171
        %s173 = sadd.s32 %s17, %s18
        %s174 = smul.u32 64, %s173
      $region28: #{generator_forward.8} parent=23 // pred_fallthru
        _
      // Predicated region
      $region29: #{generator_forward.8} parent=23 // pred_check
        %p175 = pneg %p70
      $region30: #{generator_forward.8} parent=23 // pred_check_branch
        %177 = sbr.rel (%p175) target = $region32
      $region31: #{generator_forward.8} parent=23 // pred_region
        %p178 = scmp.lt.s32.totalorder %s17, 3
        %s179 = scalar_select %p178, %s17, 3
        %s180 = smul.addr %s179, 16
        %s181 = smul.addr %s180, 4
        %s182 = scalar_lea.vmem %s1, %s181
      $region32: #{generator_forward.8} parent=23 // pred_fallthru
        _
    $region24: #{generator_forward.8} parent=5 // pred_fallthru
      _
    %p183 = scmp.le.s32.totalorder 1, %s10
    %p184 = scmp.lt.s32.totalorder %s10, 5
    %p185 = pnand %p183, %p184
    %p186 = pneg %p185
    // Predicated region
    $region33: #{generator_forward.8} parent=5 // pred_check
      _
    $region34: #{generator_forward.8} parent=5 // pred_check_branch
      %188 = sbr.rel (%p185) target = $region36
    $region35: #{generator_forward.8} parent=5 // pred_region
      %s189 = ssub.s32 %s10, 1
      %s190 = sadd.s32 %s19, %s20
      %s191 = smul.u32 64, %s190
      %p192 = scmp.lt.s32.totalorder %s191, 255
      %s193 = scalar_select %p192, %s191, 255
      %s194 = smul.addr %s193, 4
      %s195 = scalar_lea.vmem %s0, %s194
      %p196 = pneg %p50
      %p197 = pneg %p47
      %p198 = scmp.lt.s32.totalorder %s19, 3
      %s199 = scalar_select %p198, %s19, 3
      %s200 = smul.addr %s199, 16
      %s201 = smul.addr %s200, 4
      %s202 = scalar_lea.vmem %s1, %s201
      %p203 = pneg %p76
      %p204 = pneg %p73
      %p205 = pneg %p97
      %p206 = pneg %p94
      %p207 = pneg %p118
      %p208 = pneg %p115
      %p209 = pneg %p139
      %p210 = pneg %p136
      %s211 = sadd.s32 %s19, %s20
      %s212 = smul.u32 64, %s211
      %p213 = scmp.lt.s32.totalorder %s212, 255
      %s214 = scalar_select %p213, %s212, 255
      %s215 = smul.addr %s214, 4
      %s216 = scalar_lea.vmem %s0, %s215
      %s217 = sadd.s32 %s19, %s20
      %s218 = smul.u32 64, %s217
      %p219 = scmp.lt.s32.totalorder %s19, 3
      %s220 = scalar_select %p219, %s19, 3
      %s221 = smul.addr %s220, 16
      %s222 = smul.addr %s221, 4
      %s223 = scalar_lea.vmem %s1, %s222
      %s224 = sadd.s32 %s19, %s20
      %p225 = scmp.eq.s32.totalorder %s224, 0
      // Predicated region
      $region37: #{generator_forward.8} parent=35 // pred_check
        %p226 = pneg %p225
      $region38: #{generator_forward.8} parent=35 // pred_check_branch
        %228 = sbr.rel (%p226) target = $region40
      $region39: #{generator_forward.8} parent=35 // pred_region
        %229 = vst [vmem:[#allocation2] sm:$0x1] 0.0
        %230 = vst [vmem:[#allocation3] sm:$0x1] 0.0
        %231 = vst [vmem:[#allocation4] sm:$0x1] 0.0
      $region40: #{generator_forward.8} parent=35 // pred_fallthru
        _
      %v232 = vld [vmem:[%s216] sm:$0xf]
      %v233 = vld [vmem:[%s216 + $0x4] sm:$0xf]
      %v234 = vld [vmem:[%s216 + $0x8] sm:$0xf]
      %v235 = vld [vmem:[%s216 + $0xc] sm:$0xf]
      %v236 = vld [vmem:[%s216 + $0x10] sm:$0xf]
      %v237 = vld [vmem:[%s216 + $0x14] sm:$0xf]
      %v238 = vld [vmem:[%s216 + $0x18] sm:$0xf]
      %v239 = vld [vmem:[%s216 + $0x1c] sm:$0xf]
      %v240 = vld [vmem:[%s216 + $0x20] sm:$0xf]
      %v241 = vld [vmem:[%s216 + $0x24] sm:$0xf]
      %v242 = vld [vmem:[%s216 + $0x28] sm:$0xf]
      %v243 = vld [vmem:[%s216 + $0x2c] sm:$0xf]
      %v244 = vld [vmem:[%s216 + $0x30] sm:$0xf]
      %v245 = vld [vmem:[%s216 + $0x34] sm:$0xf]
      %v246 = vld [vmem:[%s216 + $0x38] sm:$0xf]
      %v247 = vld [vmem:[%s216 + $0x3c] sm:$0xf]
      %v248 = vld [vmem:[%s216 + $0x40] sm:$0xf]
      %v249 = vld [vmem:[%s216 + $0x44] sm:$0xf]
      %v250 = vld [vmem:[%s216 + $0x48] sm:$0xf]
      %v251 = vld [vmem:[%s216 + $0x4c] sm:$0xf]
      %v252 = vld [vmem:[%s216 + $0x50] sm:$0xf]
      %v253 = vld [vmem:[%s216 + $0x54] sm:$0xf]
      %v254 = vld [vmem:[%s216 + $0x58] sm:$0xf]
      %v255 = vld [vmem:[%s216 + $0x5c] sm:$0xf]
      %v256 = vld [vmem:[%s216 + $0x60] sm:$0xf]
      %v257 = vld [vmem:[%s216 + $0x64] sm:$0xf]
      %v258 = vld [vmem:[%s216 + $0x68] sm:$0xf]
      %v259 = vld [vmem:[%s216 + $0x6c] sm:$0xf]
      %v260 = vld [vmem:[%s216 + $0x70] sm:$0xf]
      %v261 = vld [vmem:[%s216 + $0x74] sm:$0xf]
      %v262 = vld [vmem:[%s216 + $0x78] sm:$0xf]
      %v263 = vld [vmem:[%s216 + $0x7c] sm:$0xf]
      %v264 = vld [vmem:[%s216 + $0x80] sm:$0xf]
      %v265 = vld [vmem:[%s216 + $0x84] sm:$0xf]
      %v266 = vld [vmem:[%s216 + $0x88] sm:$0xf]
      %v267 = vld [vmem:[%s216 + $0x8c] sm:$0xf]
      %v268 = vld [vmem:[%s216 + $0x90] sm:$0xf]
      %v269 = vld [vmem:[%s216 + $0x94] sm:$0xf]
      %v270 = vld [vmem:[%s216 + $0x98] sm:$0xf]
      %v271 = vld [vmem:[%s216 + $0x9c] sm:$0xf]
      %v272 = vld [vmem:[%s216 + $0xa0] sm:$0xf]
      %v273 = vld [vmem:[%s216 + $0xa4] sm:$0xf]
      %v274 = vld [vmem:[%s216 + $0xa8] sm:$0xf]
      %v275 = vld [vmem:[%s216 + $0xac] sm:$0xf]
      %v276 = vld [vmem:[%s216 + $0xb0] sm:$0xf]
      %v277 = vld [vmem:[%s216 + $0xb4] sm:$0xf]
      %v278 = vld [vmem:[%s216 + $0xb8] sm:$0xf]
      %v279 = vld [vmem:[%s216 + $0xbc] sm:$0xf]
      %v280 = vld [vmem:[%s216 + $0xc0] sm:$0xf]
      %v281 = vld [vmem:[%s216 + $0xc4] sm:$0xf]
      %v282 = vld [vmem:[%s216 + $0xc8] sm:$0xf]
      %v283 = vld [vmem:[%s216 + $0xcc] sm:$0xf]
      %v284 = vld [vmem:[%s216 + $0xd0] sm:$0xf]
      %v285 = vld [vmem:[%s216 + $0xd4] sm:$0xf]
      %v286 = vld [vmem:[%s216 + $0xd8] sm:$0xf]
      %v287 = vld [vmem:[%s216 + $0xdc] sm:$0xf]
      %v288 = vld [vmem:[%s216 + $0xe0] sm:$0xf]
      %v289 = vld [vmem:[%s216 + $0xe4] sm:$0xf]
      %v290 = vld [vmem:[%s216 + $0xe8] sm:$0xf]
      %v291 = vld [vmem:[%s216 + $0xec] sm:$0xf]
      %v292 = vld [vmem:[%s216 + $0xf0] sm:$0xf]
      %v293 = vld [vmem:[%s216 + $0xf4] sm:$0xf]
      %v294 = vld [vmem:[%s216 + $0xf8] sm:$0xf]
      %v295 = vld [vmem:[%s216 + $0xfc] sm:$0xf]
      %v296 = vld [vmem:[%s223] sm:$0xf]
      %v297 = vld [vmem:[%s223 + $0x4] sm:$0xf]
      %v298 = vld [vmem:[%s223 + $0x8] sm:$0xf]
      %v299 = vld [vmem:[%s223 + $0xc] sm:$0xf]
      %v300 = vld [vmem:[%s223 + $0x10] sm:$0xf]
      %v301 = vld [vmem:[%s223 + $0x14] sm:$0xf]
      %v302 = vld [vmem:[%s223 + $0x18] sm:$0xf]
      %v303 = vld [vmem:[%s223 + $0x1c] sm:$0xf]
      %v304 = vld [vmem:[%s223 + $0x20] sm:$0xf]
      %v305 = vld [vmem:[%s223 + $0x24] sm:$0xf]
      %v306 = vld [vmem:[%s223 + $0x28] sm:$0xf]
      %v307 = vld [vmem:[%s223 + $0x2c] sm:$0xf]
      %v308 = vld [vmem:[%s223 + $0x30] sm:$0xf]
      %v309 = vld [vmem:[%s223 + $0x34] sm:$0xf]
      %v310 = vld [vmem:[%s223 + $0x38] sm:$0xf]
      %v311 = vld [vmem:[%s223 + $0x3c] sm:$0xf]
      %v376 = vunpack.c.l.b16 %v232
      %v377 = vunpack.c.l.b16 %v233
      %v378 = vunpack.c.l.b16 %v234
      %v379 = vunpack.c.l.b16 %v235
      %v380 = vunpack.c.l.b16 %v236
      %v381 = vunpack.c.l.b16 %v237
      %v382 = vunpack.c.l.b16 %v238
      %v383 = vunpack.c.l.b16 %v239
      %v384 = vunpack.c.l.b16 %v240
      %v385 = vunpack.c.l.b16 %v241
      %v386 = vunpack.c.l.b16 %v242
      %v387 = vunpack.c.l.b16 %v243
      %v388 = vunpack.c.l.b16 %v244
      %v389 = vunpack.c.l.b16 %v245
      %v390 = vunpack.c.l.b16 %v246
      %v391 = vunpack.c.l.b16 %v247
      %v392 = vunpack.c.l.b16 %v248
      %v393 = vunpack.c.l.b16 %v249
      %v394 = vunpack.c.l.b16 %v250
      %v395 = vunpack.c.l.b16 %v251
      %v396 = vunpack.c.l.b16 %v252
      %v397 = vunpack.c.l.b16 %v253
      %v398 = vunpack.c.l.b16 %v254
      %v399 = vunpack.c.l.b16 %v255
      %v400 = vunpack.c.l.b16 %v256
      %v401 = vunpack.c.l.b16 %v257
      %v402 = vunpack.c.l.b16 %v258
      %v403 = vunpack.c.l.b16 %v259
      %v404 = vunpack.c.l.b16 %v260
      %v405 = vunpack.c.l.b16 %v261
      %v406 = vunpack.c.l.b16 %v262
      %v407 = vunpack.c.l.b16 %v263
      %v408 = vunpack.c.l.b16 %v264
      %v409 = vunpack.c.l.b16 %v265
      %v410 = vunpack.c.l.b16 %v266
      %v411 = vunpack.c.l.b16 %v267
      %v412 = vunpack.c.l.b16 %v268
      %v413 = vunpack.c.l.b16 %v269
      %v414 = vunpack.c.l.b16 %v270
      %v415 = vunpack.c.l.b16 %v271
      %v416 = vunpack.c.l.b16 %v272
      %v417 = vunpack.c.l.b16 %v273
      %v418 = vunpack.c.l.b16 %v274
      %v419 = vunpack.c.l.b16 %v275
      %v420 = vunpack.c.l.b16 %v276
      %v421 = vunpack.c.l.b16 %v277
      %v422 = vunpack.c.l.b16 %v278
      %v423 = vunpack.c.l.b16 %v279
      %v424 = vunpack.c.l.b16 %v280
      %v425 = vunpack.c.l.b16 %v281
      %v426 = vunpack.c.l.b16 %v282
      %v427 = vunpack.c.l.b16 %v283
      %v428 = vunpack.c.l.b16 %v284
      %v429 = vunpack.c.l.b16 %v285
      %v430 = vunpack.c.l.b16 %v286
      %v431 = vunpack.c.l.b16 %v287
      %v432 = vunpack.c.l.b16 %v288
      %v433 = vunpack.c.l.b16 %v289
      %v434 = vunpack.c.l.b16 %v290
      %v435 = vunpack.c.l.b16 %v291
      %v436 = vunpack.c.l.b16 %v292
      %v437 = vunpack.c.l.b16 %v293
      %v438 = vunpack.c.l.b16 %v294
      %v439 = vunpack.c.l.b16 %v295
      %v440 = vpack.c.b16 %v377, %v376
      %v441 = vpack.c.b16 %v379, %v378
      %v442 = vpack.c.b16 %v381, %v380
      %v443 = vpack.c.b16 %v383, %v382
      %v444 = vpack.c.b16 %v385, %v384
      %v445 = vpack.c.b16 %v387, %v386
      %v446 = vpack.c.b16 %v389, %v388
      %v447 = vpack.c.b16 %v391, %v390
      %v448 = vpack.c.b16 %v393, %v392
      %v449 = vpack.c.b16 %v395, %v394
      %v450 = vpack.c.b16 %v397, %v396
      %v451 = vpack.c.b16 %v399, %v398
      %v452 = vpack.c.b16 %v401, %v400
      %v453 = vpack.c.b16 %v403, %v402
      %v454 = vpack.c.b16 %v405, %v404
      %v455 = vpack.c.b16 %v407, %v406
      %v456 = vpack.c.b16 %v409, %v408
      %v457 = vpack.c.b16 %v411, %v410
      %v458 = vpack.c.b16 %v413, %v412
      %v459 = vpack.c.b16 %v415, %v414
      %v460 = vpack.c.b16 %v417, %v416
      %v461 = vpack.c.b16 %v419, %v418
      %v462 = vpack.c.b16 %v421, %v420
      %v463 = vpack.c.b16 %v423, %v422
      %v464 = vpack.c.b16 %v425, %v424
      %v465 = vpack.c.b16 %v427, %v426
      %v466 = vpack.c.b16 %v429, %v428
      %v467 = vpack.c.b16 %v431, %v430
      %v468 = vpack.c.b16 %v433, %v432
      %v469 = vpack.c.b16 %v435, %v434
      %v470 = vpack.c.b16 %v437, %v436
      %v471 = vpack.c.b16 %v439, %v438
      %v520 = vunpack.c.l.b16 %v296
      %v521 = vunpack.c.l.b16 %v297
      %v522 = vunpack.c.l.b16 %v298
      %v523 = vunpack.c.l.b16 %v299
      %v524 = vunpack.c.l.b16 %v300
      %v525 = vunpack.c.l.b16 %v301
      %v526 = vunpack.c.l.b16 %v302
      %v527 = vunpack.c.l.b16 %v303
      %v528 = vunpack.c.l.b16 %v304
      %v529 = vunpack.c.l.b16 %v305
      %v530 = vunpack.c.l.b16 %v306
      %v531 = vunpack.c.l.b16 %v307
      %v532 = vunpack.c.l.b16 %v308
      %v533 = vunpack.c.l.b16 %v309
      %v534 = vunpack.c.l.b16 %v310
      %v535 = vunpack.c.l.b16 %v311
      %v536 = vpack.c.b16 %v521, %v520
      %v537 = vpack.c.b16 %v523, %v522
      %v538 = vpack.c.b16 %v525, %v524
      %v539 = vpack.c.b16 %v527, %v526
      %v540 = vpack.c.b16 %v529, %v528
      %v541 = vpack.c.b16 %v531, %v530
      %v542 = vpack.c.b16 %v533, %v532
      %v543 = vpack.c.b16 %v535, %v534
      %552 = vmatpush.bf16.msra.mxu0 %v543
      %553 = vmatpush.bf16.msra.mxu0 %v542
      %554 = vmatpush.bf16.msra.mxu0 %v541
      %555 = vmatpush.bf16.msra.mxu0 %v540
      %556 = vmatpush.bf16.msra.mxu0 %v539
      %557 = vmatpush.bf16.msra.mxu0 %v538
      %558 = vmatpush.bf16.msra.mxu0 %v537
      %559 = vmatpush.bf16.msra.mxu0 %v536
      %560 = vmatmul.bf16.gmra.mxu0 %v440
      %v561 = vpop.f32.mrf.mxu0
      %v562 = vadd.f32 0.0, %v561
      %v563 = vpop.f32.mrf.mxu0
      %v564 = vadd.f32 0.0, %v563
      %565 = vmatmul.bf16.gmra.mxu0 %v441
      %v566 = vpop.f32.mrf.mxu0
      %v567 = vadd.f32 0.0, %v566
      %v568 = vpop.f32.mrf.mxu0
      %v569 = vadd.f32 0.0, %v568
      %570 = vmatmul.bf16.gmra.mxu0 %v442
      %v571 = vpop.f32.mrf.mxu0
      %v572 = vadd.f32 0.0, %v571
      %v573 = vpop.f32.mrf.mxu0
      %v574 = vadd.f32 0.0, %v573
      %575 = vmatmul.bf16.gmra.mxu0 %v443
      %v576 = vpop.f32.mrf.mxu0
      %v577 = vadd.f32 0.0, %v576
      %v578 = vpop.f32.mrf.mxu0
      %v579 = vadd.f32 0.0, %v578
      %580 = vmatmul.bf16.gmra.mxu0 %v444
      %v581 = vpop.f32.mrf.mxu0
      %v582 = vadd.f32 0.0, %v581
      %v583 = vpop.f32.mrf.mxu0
      %v584 = vadd.f32 0.0, %v583
      %585 = vmatmul.bf16.gmra.mxu0 %v445
      %v586 = vpop.f32.mrf.mxu0
      %v587 = vadd.f32 0.0, %v586
      %v588 = vpop.f32.mrf.mxu0
      %v589 = vadd.f32 0.0, %v588
      %590 = vmatmul.bf16.gmra.mxu0 %v446
      %v591 = vpop.f32.mrf.mxu0
      %v592 = vadd.f32 0.0, %v591
      %v593 = vpop.f32.mrf.mxu0
      %v594 = vadd.f32 0.0, %v593
      %595 = vmatmul.bf16.gmra.mxu0 %v447
      %v596 = vpop.f32.mrf.mxu0
      %v597 = vadd.f32 0.0, %v596
      %v598 = vpop.f32.mrf.mxu0
      %v599 = vadd.f32 0.0, %v598
      %600 = vmatmul.bf16.gmra.mxu0 %v448
      %v601 = vpop.f32.mrf.mxu0
      %v602 = vadd.f32 0.0, %v601
      %v603 = vpop.f32.mrf.mxu0
      %v604 = vadd.f32 0.0, %v603
      %605 = vmatmul.bf16.gmra.mxu0 %v449
      %v606 = vpop.f32.mrf.mxu0
      %v607 = vadd.f32 0.0, %v606
      %v608 = vpop.f32.mrf.mxu0
      %v609 = vadd.f32 0.0, %v608
      %610 = vmatmul.bf16.gmra.mxu0 %v450
      %v611 = vpop.f32.mrf.mxu0
      %v612 = vadd.f32 0.0, %v611
      %v613 = vpop.f32.mrf.mxu0
      %v614 = vadd.f32 0.0, %v613
      %615 = vmatmul.bf16.gmra.mxu0 %v451
      %v616 = vpop.f32.mrf.mxu0
      %v617 = vadd.f32 0.0, %v616
      %v618 = vpop.f32.mrf.mxu0
      %v619 = vadd.f32 0.0, %v618
      %620 = vmatmul.bf16.gmra.mxu0 %v452
      %v621 = vpop.f32.mrf.mxu0
      %v622 = vadd.f32 0.0, %v621
      %v623 = vpop.f32.mrf.mxu0
      %v624 = vadd.f32 0.0, %v623
      %625 = vmatmul.bf16.gmra.mxu0 %v453
      %v626 = vpop.f32.mrf.mxu0
      %v627 = vadd.f32 0.0, %v626
      %v628 = vpop.f32.mrf.mxu0
      %v629 = vadd.f32 0.0, %v628
      %630 = vmatmul.bf16.gmra.mxu0 %v454
      %v631 = vpop.f32.mrf.mxu0
      %v632 = vadd.f32 0.0, %v631
      %v633 = vpop.f32.mrf.mxu0
      %v634 = vadd.f32 0.0, %v633
      %635 = vmatmul.bf16.gmra.mxu0 %v455
      %v636 = vpop.f32.mrf.mxu0
      %v637 = vadd.f32 0.0, %v636
      %v638 = vpop.f32.mrf.mxu0
      %v639 = vadd.f32 0.0, %v638
      %640 = vmatmul.bf16.gmra.mxu0 %v456
      %v641 = vpop.f32.mrf.mxu0
      %v642 = vadd.f32 0.0, %v641
      %v643 = vpop.f32.mrf.mxu0
      %v644 = vadd.f32 0.0, %v643
      %645 = vmatmul.bf16.gmra.mxu0 %v457
      %v646 = vpop.f32.mrf.mxu0
      %v647 = vadd.f32 0.0, %v646
      %v648 = vpop.f32.mrf.mxu0
      %v649 = vadd.f32 0.0, %v648
      %650 = vmatmul.bf16.gmra.mxu0 %v458
      %v651 = vpop.f32.mrf.mxu0
      %v652 = vadd.f32 0.0, %v651
      %v653 = vpop.f32.mrf.mxu0
      %v654 = vadd.f32 0.0, %v653
      %655 = vmatmul.bf16.gmra.mxu0 %v459
      %v656 = vpop.f32.mrf.mxu0
      %v657 = vadd.f32 0.0, %v656
      %v658 = vpop.f32.mrf.mxu0
      %v659 = vadd.f32 0.0, %v658
      %660 = vmatmul.bf16.gmra.mxu0 %v460
      %v661 = vpop.f32.mrf.mxu0
      %v662 = vadd.f32 0.0, %v661
      %v663 = vpop.f32.mrf.mxu0
      %v664 = vadd.f32 0.0, %v663
      %665 = vmatmul.bf16.gmra.mxu0 %v461
      %v666 = vpop.f32.mrf.mxu0
      %v667 = vadd.f32 0.0, %v666
      %v668 = vpop.f32.mrf.mxu0
      %v669 = vadd.f32 0.0, %v668
      %670 = vmatmul.bf16.gmra.mxu0 %v462
      %v671 = vpop.f32.mrf.mxu0
      %v672 = vadd.f32 0.0, %v671
      %v673 = vpop.f32.mrf.mxu0
      %v674 = vadd.f32 0.0, %v673
      %675 = vmatmul.bf16.gmra.mxu0 %v463
      %v676 = vpop.f32.mrf.mxu0
      %v677 = vadd.f32 0.0, %v676
      %v678 = vpop.f32.mrf.mxu0
      %v679 = vadd.f32 0.0, %v678
      %680 = vmatmul.bf16.gmra.mxu0 %v464
      %v681 = vpop.f32.mrf.mxu0
      %v682 = vadd.f32 0.0, %v681
      %v683 = vpop.f32.mrf.mxu0
      %v684 = vadd.f32 0.0, %v683
      %685 = vmatmul.bf16.gmra.mxu0 %v465
      %v686 = vpop.f32.mrf.mxu0
      %v687 = vadd.f32 0.0, %v686
      %v688 = vpop.f32.mrf.mxu0
      %v689 = vadd.f32 0.0, %v688
      %690 = vmatmul.bf16.gmra.mxu0 %v466
      %v691 = vpop.f32.mrf.mxu0
      %v692 = vadd.f32 0.0, %v691
      %v693 = vpop.f32.mrf.mxu0
      %v694 = vadd.f32 0.0, %v693
      %695 = vmatmul.bf16.gmra.mxu0 %v467
      %v696 = vpop.f32.mrf.mxu0
      %v697 = vadd.f32 0.0, %v696
      %v698 = vpop.f32.mrf.mxu0
      %v699 = vadd.f32 0.0, %v698
      %700 = vmatmul.bf16.gmra.mxu0 %v468
      %v701 = vpop.f32.mrf.mxu0
      %v702 = vadd.f32 0.0, %v701
      %v703 = vpop.f32.mrf.mxu0
      %v704 = vadd.f32 0.0, %v703
      %705 = vmatmul.bf16.gmra.mxu0 %v469
      %v706 = vpop.f32.mrf.mxu0
      %v707 = vadd.f32 0.0, %v706
      %v708 = vpop.f32.mrf.mxu0
      %v709 = vadd.f32 0.0, %v708
      %710 = vmatmul.bf16.gmra.mxu0 %v470
      %v711 = vpop.f32.mrf.mxu0
      %v712 = vadd.f32 0.0, %v711
      %v713 = vpop.f32.mrf.mxu0
      %v714 = vadd.f32 0.0, %v713
      %715 = vmatmul.bf16.gmra.mxu0 %v471
      %v716 = vpop.f32.mrf.mxu0
      %v717 = vadd.f32 0.0, %v716
      %v718 = vpop.f32.mrf.mxu0
      %v719 = vadd.f32 0.0, %v718
      %720 = vdwg.mxu0
      %s721 = smul.u32 %s224, 512
      %v722 = vpack.c.bf16 %v562, %v562
      %v723 = vpack.c.bf16 %v564, %v564
      %v724 = vpack.c.bf16 %v567, %v567
      %v725 = vpack.c.bf16 %v569, %v569
      %v726 = vpack.c.bf16 %v572, %v572
      %v727 = vpack.c.bf16 %v574, %v574
      %v728 = vpack.c.bf16 %v577, %v577
      %v729 = vpack.c.bf16 %v579, %v579
      %v730 = vpack.c.bf16 %v582, %v582
      %v731 = vpack.c.bf16 %v584, %v584
      %v732 = vpack.c.bf16 %v587, %v587
      %v733 = vpack.c.bf16 %v589, %v589
      %v734 = vpack.c.bf16 %v592, %v592
      %v735 = vpack.c.bf16 %v594, %v594
      %v736 = vpack.c.bf16 %v597, %v597
      %v737 = vpack.c.bf16 %v599, %v599
      %v738 = vpack.c.bf16 %v602, %v602
      %v739 = vpack.c.bf16 %v604, %v604
      %v740 = vpack.c.bf16 %v607, %v607
      %v741 = vpack.c.bf16 %v609, %v609
      %v742 = vpack.c.bf16 %v612, %v612
      %v743 = vpack.c.bf16 %v614, %v614
      %v744 = vpack.c.bf16 %v617, %v617
      %v745 = vpack.c.bf16 %v619, %v619
      %v746 = vpack.c.bf16 %v622, %v622
      %v747 = vpack.c.bf16 %v624, %v624
      %v748 = vpack.c.bf16 %v627, %v627
      %v749 = vpack.c.bf16 %v629, %v629
      %v750 = vpack.c.bf16 %v632, %v632
      %v751 = vpack.c.bf16 %v634, %v634
      %v752 = vpack.c.bf16 %v637, %v637
      %v753 = vpack.c.bf16 %v639, %v639
      %v754 = vpack.c.bf16 %v642, %v642
      %v755 = vpack.c.bf16 %v644, %v644
      %v756 = vpack.c.bf16 %v647, %v647
      %v757 = vpack.c.bf16 %v649, %v649
      %v758 = vpack.c.bf16 %v652, %v652
      %v759 = vpack.c.bf16 %v654, %v654
      %v760 = vpack.c.bf16 %v657, %v657
      %v761 = vpack.c.bf16 %v659, %v659
      %v762 = vpack.c.bf16 %v662, %v662
      %v763 = vpack.c.bf16 %v664, %v664
      %v764 = vpack.c.bf16 %v667, %v667
      %v765 = vpack.c.bf16 %v669, %v669
      %v766 = vpack.c.bf16 %v672, %v672
      %v767 = vpack.c.bf16 %v674, %v674
      %v768 = vpack.c.bf16 %v677, %v677
      %v769 = vpack.c.bf16 %v679, %v679
      %v770 = vpack.c.bf16 %v682, %v682
      %v771 = vpack.c.bf16 %v684, %v684
      %v772 = vpack.c.bf16 %v687, %v687
      %v773 = vpack.c.bf16 %v689, %v689
      %v774 = vpack.c.bf16 %v692, %v692
      %v775 = vpack.c.bf16 %v694, %v694
      %v776 = vpack.c.bf16 %v697, %v697
      %v777 = vpack.c.bf16 %v699, %v699
      %v778 = vpack.c.bf16 %v702, %v702
      %v779 = vpack.c.bf16 %v704, %v704
      %v780 = vpack.c.bf16 %v707, %v707
      %v781 = vpack.c.bf16 %v709, %v709
      %v782 = vpack.c.bf16 %v712, %v712
      %v783 = vpack.c.bf16 %v714, %v714
      %v784 = vpack.c.bf16 %v717, %v717
      %v785 = vpack.c.bf16 %v719, %v719
      %s786 = sshra.s32 %s721, 3
      %s787 = sand.u32 %s721, 7
      %s788 = smul.addr %s786, 4
      %s789 = scalar_lea.vmem %s4, %s788
      %790 = vst [vmem:[%s789] sm:$0xf] %v722
      %791 = vst [vmem:[%s789 + $0x4] sm:$0xf] %v723
      %792 = vst [vmem:[%s789 + $0x8] sm:$0xf] %v724
      %793 = vst [vmem:[%s789 + $0xc] sm:$0xf] %v725
      %794 = vst [vmem:[%s789 + $0x10] sm:$0xf] %v726
      %795 = vst [vmem:[%s789 + $0x14] sm:$0xf] %v727
      %796 = vst [vmem:[%s789 + $0x18] sm:$0xf] %v728
      %797 = vst [vmem:[%s789 + $0x1c] sm:$0xf] %v729
      %798 = vst [vmem:[%s789 + $0x20] sm:$0xf] %v730
      %799 = vst [vmem:[%s789 + $0x24] sm:$0xf] %v731
      %800 = vst [vmem:[%s789 + $0x28] sm:$0xf] %v732
      %801 = vst [vmem:[%s789 + $0x2c] sm:$0xf] %v733
      %802 = vst [vmem:[%s789 + $0x30] sm:$0xf] %v734
      %803 = vst [vmem:[%s789 + $0x34] sm:$0xf] %v735
      %804 = vst [vmem:[%s789 + $0x38] sm:$0xf] %v736
      %805 = vst [vmem:[%s789 + $0x3c] sm:$0xf] %v737
      %806 = vst [vmem:[%s789 + $0x40] sm:$0xf] %v738
      %807 = vst [vmem:[%s789 + $0x44] sm:$0xf] %v739
      %808 = vst [vmem:[%s789 + $0x48] sm:$0xf] %v740
      %809 = vst [vmem:[%s789 + $0x4c] sm:$0xf] %v741
      %810 = vst [vmem:[%s789 + $0x50] sm:$0xf] %v742
      %811 = vst [vmem:[%s789 + $0x54] sm:$0xf] %v743
      %812 = vst [vmem:[%s789 + $0x58] sm:$0xf] %v744
      %813 = vst [vmem:[%s789 + $0x5c] sm:$0xf] %v745
      %814 = vst [vmem:[%s789 + $0x60] sm:$0xf] %v746
      %815 = vst [vmem:[%s789 + $0x64] sm:$0xf] %v747
      %816 = vst [vmem:[%s789 + $0x68] sm:$0xf] %v748
      %817 = vst [vmem:[%s789 + $0x6c] sm:$0xf] %v749
      %818 = vst [vmem:[%s789 + $0x70] sm:$0xf] %v750
      %819 = vst [vmem:[%s789 + $0x74] sm:$0xf] %v751
      %820 = vst [vmem:[%s789 + $0x78] sm:$0xf] %v752
      %821 = vst [vmem:[%s789 + $0x7c] sm:$0xf] %v753
      %822 = vst [vmem:[%s789 + $0x80] sm:$0xf] %v754
      %823 = vst [vmem:[%s789 + $0x84] sm:$0xf] %v755
      %824 = vst [vmem:[%s789 + $0x88] sm:$0xf] %v756
      %825 = vst [vmem:[%s789 + $0x8c] sm:$0xf] %v757
      %826 = vst [vmem:[%s789 + $0x90] sm:$0xf] %v758
      %827 = vst [vmem:[%s789 + $0x94] sm:$0xf] %v759
      %828 = vst [vmem:[%s789 + $0x98] sm:$0xf] %v760
      %829 = vst [vmem:[%s789 + $0x9c] sm:$0xf] %v761
      %830 = vst [vmem:[%s789 + $0xa0] sm:$0xf] %v762
      %831 = vst [vmem:[%s789 + $0xa4] sm:$0xf] %v763
      %832 = vst [vmem:[%s789 + $0xa8] sm:$0xf] %v764
      %833 = vst [vmem:[%s789 + $0xac] sm:$0xf] %v765
      %834 = vst [vmem:[%s789 + $0xb0] sm:$0xf] %v766
      %835 = vst [vmem:[%s789 + $0xb4] sm:$0xf] %v767
      %836 = vst [vmem:[%s789 + $0xb8] sm:$0xf] %v768
      %837 = vst [vmem:[%s789 + $0xbc] sm:$0xf] %v769
      %838 = vst [vmem:[%s789 + $0xc0] sm:$0xf] %v770
      %839 = vst [vmem:[%s789 + $0xc4] sm:$0xf] %v771
      %840 = vst [vmem:[%s789 + $0xc8] sm:$0xf] %v772
      %841 = vst [vmem:[%s789 + $0xcc] sm:$0xf] %v773
      %842 = vst [vmem:[%s789 + $0xd0] sm:$0xf] %v774
      %843 = vst [vmem:[%s789 + $0xd4] sm:$0xf] %v775
      %844 = vst [vmem:[%s789 + $0xd8] sm:$0xf] %v776
      %845 = vst [vmem:[%s789 + $0xdc] sm:$0xf] %v777
      %846 = vst [vmem:[%s789 + $0xe0] sm:$0xf] %v778
      %847 = vst [vmem:[%s789 + $0xe4] sm:$0xf] %v779
      %848 = vst [vmem:[%s789 + $0xe8] sm:$0xf] %v780
      %849 = vst [vmem:[%s789 + $0xec] sm:$0xf] %v781
      %850 = vst [vmem:[%s789 + $0xf0] sm:$0xf] %v782
      %851 = vst [vmem:[%s789 + $0xf4] sm:$0xf] %v783
      %852 = vst [vmem:[%s789 + $0xf8] sm:$0xf] %v784
      %853 = vst [vmem:[%s789 + $0xfc] sm:$0xf] %v785
      %v854 = vadd.f32 %v562, %v564
      %v855 = vadd.f32 %v854, %v567
      %v856 = vadd.f32 %v855, %v569
      %v857 = vadd.f32 %v856, %v572
      %v858 = vadd.f32 %v857, %v574
      %v859 = vadd.f32 %v858, %v577
      %v860 = vadd.f32 %v859, %v579
      %v861 = vadd.f32 %v860, %v582
      %v862 = vadd.f32 %v861, %v584
      %v863 = vadd.f32 %v862, %v587
      %v864 = vadd.f32 %v863, %v589
      %v865 = vadd.f32 %v864, %v592
      %v866 = vadd.f32 %v865, %v594
      %v867 = vadd.f32 %v866, %v597
      %v868 = vadd.f32 %v867, %v599
      %v869 = vadd.f32 %v868, %v602
      %v870 = vadd.f32 %v869, %v604
      %v871 = vadd.f32 %v870, %v607
      %v872 = vadd.f32 %v871, %v609
      %v873 = vadd.f32 %v872, %v612
      %v874 = vadd.f32 %v873, %v614
      %v875 = vadd.f32 %v874, %v617
      %v876 = vadd.f32 %v875, %v619
      %v877 = vadd.f32 %v876, %v622
      %v878 = vadd.f32 %v877, %v624
      %v879 = vadd.f32 %v878, %v627
      %v880 = vadd.f32 %v879, %v629
      %v881 = vadd.f32 %v880, %v632
      %v882 = vadd.f32 %v881, %v634
      %v883 = vadd.f32 %v882, %v637
      %v884 = vadd.f32 %v883, %v639
      %v885 = vadd.f32 %v884, %v642
      %v886 = vadd.f32 %v885, %v644
      %v887 = vadd.f32 %v886, %v647
      %v888 = vadd.f32 %v887, %v649
      %v889 = vadd.f32 %v888, %v652
      %v890 = vadd.f32 %v889, %v654
      %v891 = vadd.f32 %v890, %v657
      %v892 = vadd.f32 %v891, %v659
      %v893 = vadd.f32 %v892, %v662
      %v894 = vadd.f32 %v893, %v664
      %v895 = vadd.f32 %v894, %v667
      %v896 = vadd.f32 %v895, %v669
      %v897 = vadd.f32 %v896, %v672
      %v898 = vadd.f32 %v897, %v674
      %v899 = vadd.f32 %v898, %v677
      %v900 = vadd.f32 %v899, %v679
      %v901 = vadd.f32 %v900, %v682
      %v902 = vadd.f32 %v901, %v684
      %v903 = vadd.f32 %v902, %v687
      %v904 = vadd.f32 %v903, %v689
      %v905 = vadd.f32 %v904, %v692
      %v906 = vadd.f32 %v905, %v694
      %v907 = vadd.f32 %v906, %v697
      %v908 = vadd.f32 %v907, %v699
      %v909 = vadd.f32 %v908, %v702
      %v910 = vadd.f32 %v909, %v704
      %v911 = vadd.f32 %v910, %v707
      %v912 = vadd.f32 %v911, %v709
      %v913 = vadd.f32 %v912, %v712
      %v914 = vadd.f32 %v913, %v714
      %v915 = vadd.f32 %v914, %v717
      %v916 = vadd.f32 %v915, %v719
      %v917 = vrot.slane %v916, 4
      %v918 = vadd.f32 %v916, %v917
      %v919 = vrot.slane %v918, 2
      %v920 = vadd.f32 %v918, %v919
      %v921 = vrot.slane %v920, 1
      %v922 = vadd.f32 %v920, %v921
      %v923 = vmul.f32 %v922, 0.001953125
      %v924 = vsub.f32 %v562, %v923
      %v925 = vsub.f32 %v564, %v923
      %v926 = vsub.f32 %v567, %v923
      %v927 = vsub.f32 %v569, %v923
      %v928 = vsub.f32 %v572, %v923
      %v929 = vsub.f32 %v574, %v923
      %v930 = vsub.f32 %v577, %v923
      %v931 = vsub.f32 %v579, %v923
      %v932 = vsub.f32 %v582, %v923
      %v933 = vsub.f32 %v584, %v923
      %v934 = vsub.f32 %v587, %v923
      %v935 = vsub.f32 %v589, %v923
      %v936 = vsub.f32 %v592, %v923
      %v937 = vsub.f32 %v594, %v923
      %v938 = vsub.f32 %v597, %v923
      %v939 = vsub.f32 %v599, %v923
      %v940 = vsub.f32 %v602, %v923
      %v941 = vsub.f32 %v604, %v923
      %v942 = vsub.f32 %v607, %v923
      %v943 = vsub.f32 %v609, %v923
      %v944 = vsub.f32 %v612, %v923
      %v945 = vsub.f32 %v614, %v923
      %v946 = vsub.f32 %v617, %v923
      %v947 = vsub.f32 %v619, %v923
      %v948 = vsub.f32 %v622, %v923
      %v949 = vsub.f32 %v624, %v923
      %v950 = vsub.f32 %v627, %v923
      %v951 = vsub.f32 %v629, %v923
      %v952 = vsub.f32 %v632, %v923
      %v953 = vsub.f32 %v634, %v923
      %v954 = vsub.f32 %v637, %v923
      %v955 = vsub.f32 %v639, %v923
      %v956 = vsub.f32 %v642, %v923
      %v957 = vsub.f32 %v644, %v923
      %v958 = vsub.f32 %v647, %v923
      %v959 = vsub.f32 %v649, %v923
      %v960 = vsub.f32 %v652, %v923
      %v961 = vsub.f32 %v654, %v923
      %v962 = vsub.f32 %v657, %v923
      %v963 = vsub.f32 %v659, %v923
      %v964 = vsub.f32 %v662, %v923
      %v965 = vsub.f32 %v664, %v923
      %v966 = vsub.f32 %v667, %v923
      %v967 = vsub.f32 %v669, %v923
      %v968 = vsub.f32 %v672, %v923
      %v969 = vsub.f32 %v674, %v923
      %v970 = vsub.f32 %v677, %v923
      %v971 = vsub.f32 %v679, %v923
      %v972 = vsub.f32 %v682, %v923
      %v973 = vsub.f32 %v684, %v923
      %v974 = vsub.f32 %v687, %v923
      %v975 = vsub.f32 %v689, %v923
      %v976 = vsub.f32 %v692, %v923
      %v977 = vsub.f32 %v694, %v923
      %v978 = vsub.f32 %v697, %v923
      %v979 = vsub.f32 %v699, %v923
      %v980 = vsub.f32 %v702, %v923
      %v981 = vsub.f32 %v704, %v923
      %v982 = vsub.f32 %v707, %v923
      %v983 = vsub.f32 %v709, %v923
      %v984 = vsub.f32 %v712, %v923
      %v985 = vsub.f32 %v714, %v923
      %v986 = vsub.f32 %v717, %v923
      %v987 = vsub.f32 %v719, %v923
      %v988 = vld [vmem:[#allocation2] sm:$0x1]
      %v989 = vadd.f32 %v988, %v923
      %990 = vst [vmem:[#allocation2] sm:$0x1] %v989
      %v991 = vld [vmem:[#allocation3] sm:$0x1]
      %v992 = vmul.f32 %v923, %v923
      %v993 = vadd.f32 %v991, %v992
      %994 = vst [vmem:[#allocation3] sm:$0x1] %v993
      %v995 = vld [vmem:[#allocation4] sm:$0x1]
      %v996 = vmul.f32 %v924, %v924
      %v997 = vmul.f32 %v925, %v925
      %v998 = vmul.f32 %v926, %v926
      %v999 = vmul.f32 %v927, %v927
      %v1000 = vmul.f32 %v928, %v928
      %v1001 = vmul.f32 %v929, %v929
      %v1002 = vmul.f32 %v930, %v930
      %v1003 = vmul.f32 %v931, %v931
      %v1004 = vmul.f32 %v932, %v932
      %v1005 = vmul.f32 %v933, %v933
      %v1006 = vmul.f32 %v934, %v934
      %v1007 = vmul.f32 %v935, %v935
      %v1008 = vmul.f32 %v936, %v936
      %v1009 = vmul.f32 %v937, %v937
      %v1010 = vmul.f32 %v938, %v938
      %v1011 = vmul.f32 %v939, %v939
      %v1012 = vmul.f32 %v940, %v940
      %v1013 = vmul.f32 %v941, %v941
      %v1014 = vmul.f32 %v942, %v942
      %v1015 = vmul.f32 %v943, %v943
      %v1016 = vmul.f32 %v944, %v944
      %v1017 = vmul.f32 %v945, %v945
      %v1018 = vmul.f32 %v946, %v946
      %v1019 = vmul.f32 %v947, %v947
      %v1020 = vmul.f32 %v948, %v948
      %v1021 = vmul.f32 %v949, %v949
      %v1022 = vmul.f32 %v950, %v950
      %v1023 = vmul.f32 %v951, %v951
      %v1024 = vmul.f32 %v952, %v952
      %v1025 = vmul.f32 %v953, %v953
      %v1026 = vmul.f32 %v954, %v954
      %v1027 = vmul.f32 %v955, %v955
      %v1028 = vmul.f32 %v956, %v956
      %v1029 = vmul.f32 %v957, %v957
      %v1030 = vmul.f32 %v958, %v958
      %v1031 = vmul.f32 %v959, %v959
      %v1032 = vmul.f32 %v960, %v960
      %v1033 = vmul.f32 %v961, %v961
      %v1034 = vmul.f32 %v962, %v962
      %v1035 = vmul.f32 %v963, %v963
      %v1036 = vmul.f32 %v964, %v964
      %v1037 = vmul.f32 %v965, %v965
      %v1038 = vmul.f32 %v966, %v966
      %v1039 = vmul.f32 %v967, %v967
      %v1040 = vmul.f32 %v968, %v968
      %v1041 = vmul.f32 %v969, %v969
      %v1042 = vmul.f32 %v970, %v970
      %v1043 = vmul.f32 %v971, %v971
      %v1044 = vmul.f32 %v972, %v972
      %v1045 = vmul.f32 %v973, %v973
      %v1046 = vmul.f32 %v974, %v974
      %v1047 = vmul.f32 %v975, %v975
      %v1048 = vmul.f32 %v976, %v976
      %v1049 = vmul.f32 %v977, %v977
      %v1050 = vmul.f32 %v978, %v978
      %v1051 = vmul.f32 %v979, %v979
      %v1052 = vmul.f32 %v980, %v980
      %v1053 = vmul.f32 %v981, %v981
      %v1054 = vmul.f32 %v982, %v982
      %v1055 = vmul.f32 %v983, %v983
      %v1056 = vmul.f32 %v984, %v984
      %v1057 = vmul.f32 %v985, %v985
      %v1058 = vmul.f32 %v986, %v986
      %v1059 = vmul.f32 %v987, %v987
      %v1060 = vadd.f32 %v996, %v997
      %v1061 = vadd.f32 %v1060, %v998
      %v1062 = vadd.f32 %v1061, %v999
      %v1063 = vadd.f32 %v1062, %v1000
      %v1064 = vadd.f32 %v1063, %v1001
      %v1065 = vadd.f32 %v1064, %v1002
      %v1066 = vadd.f32 %v1065, %v1003
      %v1067 = vadd.f32 %v1066, %v1004
      %v1068 = vadd.f32 %v1067, %v1005
      %v1069 = vadd.f32 %v1068, %v1006
      %v1070 = vadd.f32 %v1069, %v1007
      %v1071 = vadd.f32 %v1070, %v1008
      %v1072 = vadd.f32 %v1071, %v1009
      %v1073 = vadd.f32 %v1072, %v1010
      %v1074 = vadd.f32 %v1073, %v1011
      %v1075 = vadd.f32 %v1074, %v1012
      %v1076 = vadd.f32 %v1075, %v1013
      %v1077 = vadd.f32 %v1076, %v1014
      %v1078 = vadd.f32 %v1077, %v1015
      %v1079 = vadd.f32 %v1078, %v1016
      %v1080 = vadd.f32 %v1079, %v1017
      %v1081 = vadd.f32 %v1080, %v1018
      %v1082 = vadd.f32 %v1081, %v1019
      %v1083 = vadd.f32 %v1082, %v1020
      %v1084 = vadd.f32 %v1083, %v1021
      %v1085 = vadd.f32 %v1084, %v1022
      %v1086 = vadd.f32 %v1085, %v1023
      %v1087 = vadd.f32 %v1086, %v1024
      %v1088 = vadd.f32 %v1087, %v1025
      %v1089 = vadd.f32 %v1088, %v1026
      %v1090 = vadd.f32 %v1089, %v1027
      %v1091 = vadd.f32 %v1090, %v1028
      %v1092 = vadd.f32 %v1091, %v1029
      %v1093 = vadd.f32 %v1092, %v1030
      %v1094 = vadd.f32 %v1093, %v1031
      %v1095 = vadd.f32 %v1094, %v1032
      %v1096 = vadd.f32 %v1095, %v1033
      %v1097 = vadd.f32 %v1096, %v1034
      %v1098 = vadd.f32 %v1097, %v1035
      %v1099 = vadd.f32 %v1098, %v1036
      %v1100 = vadd.f32 %v1099, %v1037
      %v1101 = vadd.f32 %v1100, %v1038
      %v1102 = vadd.f32 %v1101, %v1039
      %v1103 = vadd.f32 %v1102, %v1040
      %v1104 = vadd.f32 %v1103, %v1041
      %v1105 = vadd.f32 %v1104, %v1042
      %v1106 = vadd.f32 %v1105, %v1043
      %v1107 = vadd.f32 %v1106, %v1044
      %v1108 = vadd.f32 %v1107, %v1045
      %v1109 = vadd.f32 %v1108, %v1046
      %v1110 = vadd.f32 %v1109, %v1047
      %v1111 = vadd.f32 %v1110, %v1048
      %v1112 = vadd.f32 %v1111, %v1049
      %v1113 = vadd.f32 %v1112, %v1050
      %v1114 = vadd.f32 %v1113, %v1051
      %v1115 = vadd.f32 %v1114, %v1052
      %v1116 = vadd.f32 %v1115, %v1053
      %v1117 = vadd.f32 %v1116, %v1054
      %v1118 = vadd.f32 %v1117, %v1055
      %v1119 = vadd.f32 %v1118, %v1056
      %v1120 = vadd.f32 %v1119, %v1057
      %v1121 = vadd.f32 %v1120, %v1058
      %v1122 = vadd.f32 %v1121, %v1059
      %v1123 = vrot.slane %v1122, 4
      %v1124 = vadd.f32 %v1122, %v1123
      %v1125 = vrot.slane %v1124, 2
      %v1126 = vadd.f32 %v1124, %v1125
      %v1127 = vrot.slane %v1126, 1
      %v1128 = vadd.f32 %v1126, %v1127
      %v1129 = vadd.f32 %v995, %v1128
      %1130 = vst [vmem:[#allocation4] sm:$0x1] %v1129
      %p1131 = scmp.eq.s32.totalorder %s224, 3
      // Predicated region
      $region41: #{generator_forward.8} parent=35 // pred_check
        %p1132 = pneg %p1131
      $region42: #{generator_forward.8} parent=35 // pred_check_branch
        %1134 = sbr.rel (%p1132) target = $region44
      $region43: #{generator_forward.8} parent=35 // pred_region
        %v1135 = vld [vmem:[#allocation2] sm:$0x1]
        %v1136 = vmul.f32 %v1135, 0.25
        %v1137 = vld [vmem:[#allocation3] sm:$0x1]
        %v1138 = vmul.f32 %v1137, 0.25
        %v1139 = vmul.f32 %v1136, %v1136
        %v1140 = vsub.f32 %v1138, %v1139
        %v1141 = vmax.f32 %v1140, 0.0
        %v1142 = vld [vmem:[#allocation4] sm:$0x1]
        %v1143 = vmul.f32 %v1142, 0.00048828125
        %v1144 = vadd.f32 %v1143, %v1141
        %v1145 = vld [vmem:[%s2] sm:$0x1]
        %v1146 = vadd.f32 %v1144, 1e-05
        %v1147 = vrsqrt.pop %v1146
        %v1148 = vmul.f32 %v1147, %v1146
        %v1149 = vmul.f32 %v1148, %v1147
        %v1150 = vmul.f32 0.5, %v1149
        %v1151 = vsub.f32 1.5, %v1150
        %v1152 = vmul.f32 %v1147, %v1151
        %vm1153 = vweird.f32 %v1146
        %vm1154 = vweird.f32 %v1147
        %vm1155 = vmor %vm1153, %vm1154
        %v1156 = vsel %vm1155, %v1147, %v1152
        %v1157 = vmul.f32 %v1145, %v1156
        %v1158 = vld [vmem:[%s3] sm:$0x1]
        %v1159 = vmul.f32 %v1136, %v1157
        %v1160 = vsub.f32 %v1158, %v1159
        %v1161 = vld [vmem:[%s4] sm:$0xf]
        %v1162 = vld [vmem:[%s4 + $0x4] sm:$0xf]
        %v1163 = vld [vmem:[%s4 + $0x8] sm:$0xf]
        %v1164 = vld [vmem:[%s4 + $0xc] sm:$0xf]
        %v1165 = vld [vmem:[%s4 + $0x10] sm:$0xf]
        %v1166 = vld [vmem:[%s4 + $0x14] sm:$0xf]
        %v1167 = vld [vmem:[%s4 + $0x18] sm:$0xf]
        %v1168 = vld [vmem:[%s4 + $0x1c] sm:$0xf]
        %v1169 = vld [vmem:[%s4 + $0x20] sm:$0xf]
        %v1170 = vld [vmem:[%s4 + $0x24] sm:$0xf]
        %v1171 = vld [vmem:[%s4 + $0x28] sm:$0xf]
        %v1172 = vld [vmem:[%s4 + $0x2c] sm:$0xf]
        %v1173 = vld [vmem:[%s4 + $0x30] sm:$0xf]
        %v1174 = vld [vmem:[%s4 + $0x34] sm:$0xf]
        %v1175 = vld [vmem:[%s4 + $0x38] sm:$0xf]
        %v1176 = vld [vmem:[%s4 + $0x3c] sm:$0xf]
        %v1177 = vld [vmem:[%s4 + $0x40] sm:$0xf]
        %v1178 = vld [vmem:[%s4 + $0x44] sm:$0xf]
        %v1179 = vld [vmem:[%s4 + $0x48] sm:$0xf]
        %v1180 = vld [vmem:[%s4 + $0x4c] sm:$0xf]
        %v1181 = vld [vmem:[%s4 + $0x50] sm:$0xf]
        %v1182 = vld [vmem:[%s4 + $0x54] sm:$0xf]
        %v1183 = vld [vmem:[%s4 + $0x58] sm:$0xf]
        %v1184 = vld [vmem:[%s4 + $0x5c] sm:$0xf]
        %v1185 = vld [vmem:[%s4 + $0x60] sm:$0xf]
        %v1186 = vld [vmem:[%s4 + $0x64] sm:$0xf]
        %v1187 = vld [vmem:[%s4 + $0x68] sm:$0xf]
        %v1188 = vld [vmem:[%s4 + $0x6c] sm:$0xf]
        %v1189 = vld [vmem:[%s4 + $0x70] sm:$0xf]
        %v1190 = vld [vmem:[%s4 + $0x74] sm:$0xf]
        %v1191 = vld [vmem:[%s4 + $0x78] sm:$0xf]
        %v1192 = vld [vmem:[%s4 + $0x7c] sm:$0xf]
        %v1193 = vld [vmem:[%s4 + $0x80] sm:$0xf]
        %v1194 = vld [vmem:[%s4 + $0x84] sm:$0xf]
        %v1195 = vld [vmem:[%s4 + $0x88] sm:$0xf]
        %v1196 = vld [vmem:[%s4 + $0x8c] sm:$0xf]
        %v1197 = vld [vmem:[%s4 + $0x90] sm:$0xf]
        %v1198 = vld [vmem:[%s4 + $0x94] sm:$0xf]
        %v1199 = vld [vmem:[%s4 + $0x98] sm:$0xf]
        %v1200 = vld [vmem:[%s4 + $0x9c] sm:$0xf]
        %v1201 = vld [vmem:[%s4 + $0xa0] sm:$0xf]
        %v1202 = vld [vmem:[%s4 + $0xa4] sm:$0xf]
        %v1203 = vld [vmem:[%s4 + $0xa8] sm:$0xf]
        %v1204 = vld [vmem:[%s4 + $0xac] sm:$0xf]
        %v1205 = vld [vmem:[%s4 + $0xb0] sm:$0xf]
        %v1206 = vld [vmem:[%s4 + $0xb4] sm:$0xf]
        %v1207 = vld [vmem:[%s4 + $0xb8] sm:$0xf]
        %v1208 = vld [vmem:[%s4 + $0xbc] sm:$0xf]
        %v1209 = vld [vmem:[%s4 + $0xc0] sm:$0xf]
        %v1210 = vld [vmem:[%s4 + $0xc4] sm:$0xf]
        %v1211 = vld [vmem:[%s4 + $0xc8] sm:$0xf]
        %v1212 = vld [vmem:[%s4 + $0xcc] sm:$0xf]
        %v1213 = vld [vmem:[%s4 + $0xd0] sm:$0xf]
        %v1214 = vld [vmem:[%s4 + $0xd4] sm:$0xf]
        %v1215 = vld [vmem:[%s4 + $0xd8] sm:$0xf]
        %v1216 = vld [vmem:[%s4 + $0xdc] sm:$0xf]
        %v1217 = vld [vmem:[%s4 + $0xe0] sm:$0xf]
        %v1218 = vld [vmem:[%s4 + $0xe4] sm:$0xf]
        %v1219 = vld [vmem:[%s4 + $0xe8] sm:$0xf]
        %v1220 = vld [vmem:[%s4 + $0xec] sm:$0xf]
        %v1221 = vld [vmem:[%s4 + $0xf0] sm:$0xf]
        %v1222 = vld [vmem:[%s4 + $0xf4] sm:$0xf]
        %v1223 = vld [vmem:[%s4 + $0xf8] sm:$0xf]
        %v1224 = vld [vmem:[%s4 + $0xfc] sm:$0xf]
        %v1225 = vunpack.c.l.bf16 %v1161
        %v1226 = vunpack.c.l.bf16 %v1162
        %v1227 = vunpack.c.l.bf16 %v1163
        %v1228 = vunpack.c.l.bf16 %v1164
        %v1229 = vunpack.c.l.bf16 %v1165
        %v1230 = vunpack.c.l.bf16 %v1166
        %v1231 = vunpack.c.l.bf16 %v1167
        %v1232 = vunpack.c.l.bf16 %v1168
        %v1233 = vunpack.c.l.bf16 %v1169
        %v1234 = vunpack.c.l.bf16 %v1170
        %v1235 = vunpack.c.l.bf16 %v1171
        %v1236 = vunpack.c.l.bf16 %v1172
        %v1237 = vunpack.c.l.bf16 %v1173
        %v1238 = vunpack.c.l.bf16 %v1174
        %v1239 = vunpack.c.l.bf16 %v1175
        %v1240 = vunpack.c.l.bf16 %v1176
        %v1241 = vunpack.c.l.bf16 %v1177
        %v1242 = vunpack.c.l.bf16 %v1178
        %v1243 = vunpack.c.l.bf16 %v1179
        %v1244 = vunpack.c.l.bf16 %v1180
        %v1245 = vunpack.c.l.bf16 %v1181
        %v1246 = vunpack.c.l.bf16 %v1182
        %v1247 = vunpack.c.l.bf16 %v1183
        %v1248 = vunpack.c.l.bf16 %v1184
        %v1249 = vunpack.c.l.bf16 %v1185
        %v1250 = vunpack.c.l.bf16 %v1186
        %v1251 = vunpack.c.l.bf16 %v1187
        %v1252 = vunpack.c.l.bf16 %v1188
        %v1253 = vunpack.c.l.bf16 %v1189
        %v1254 = vunpack.c.l.bf16 %v1190
        %v1255 = vunpack.c.l.bf16 %v1191
        %v1256 = vunpack.c.l.bf16 %v1192
        %v1257 = vunpack.c.l.bf16 %v1193
        %v1258 = vunpack.c.l.bf16 %v1194
        %v1259 = vunpack.c.l.bf16 %v1195
        %v1260 = vunpack.c.l.bf16 %v1196
        %v1261 = vunpack.c.l.bf16 %v1197
        %v1262 = vunpack.c.l.bf16 %v1198
        %v1263 = vunpack.c.l.bf16 %v1199
        %v1264 = vunpack.c.l.bf16 %v1200
        %v1265 = vunpack.c.l.bf16 %v1201
        %v1266 = vunpack.c.l.bf16 %v1202
        %v1267 = vunpack.c.l.bf16 %v1203
        %v1268 = vunpack.c.l.bf16 %v1204
        %v1269 = vunpack.c.l.bf16 %v1205
        %v1270 = vunpack.c.l.bf16 %v1206
        %v1271 = vunpack.c.l.bf16 %v1207
        %v1272 = vunpack.c.l.bf16 %v1208
        %v1273 = vunpack.c.l.bf16 %v1209
        %v1274 = vunpack.c.l.bf16 %v1210
        %v1275 = vunpack.c.l.bf16 %v1211
        %v1276 = vunpack.c.l.bf16 %v1212
        %v1277 = vunpack.c.l.bf16 %v1213
        %v1278 = vunpack.c.l.bf16 %v1214
        %v1279 = vunpack.c.l.bf16 %v1215
        %v1280 = vunpack.c.l.bf16 %v1216
        %v1281 = vunpack.c.l.bf16 %v1217
        %v1282 = vunpack.c.l.bf16 %v1218
        %v1283 = vunpack.c.l.bf16 %v1219
        %v1284 = vunpack.c.l.bf16 %v1220
        %v1285 = vunpack.c.l.bf16 %v1221
        %v1286 = vunpack.c.l.bf16 %v1222
        %v1287 = vunpack.c.l.bf16 %v1223
        %v1288 = vunpack.c.l.bf16 %v1224
        %v1290 = vperm.slane %v1157, 0
        %v1292 = vmul.f32 %v1225, %v1290
        %v1293 = vmul.f32 %v1226, %v1290
        %v1294 = vmul.f32 %v1227, %v1290
        %v1295 = vmul.f32 %v1228, %v1290
        %v1296 = vmul.f32 %v1229, %v1290
        %v1297 = vmul.f32 %v1230, %v1290
        %v1298 = vmul.f32 %v1231, %v1290
        %v1299 = vmul.f32 %v1232, %v1290
        %v1300 = vmul.f32 %v1233, %v1290
        %v1301 = vmul.f32 %v1234, %v1290
        %v1302 = vmul.f32 %v1235, %v1290
        %v1303 = vmul.f32 %v1236, %v1290
        %v1304 = vmul.f32 %v1237, %v1290
        %v1305 = vmul.f32 %v1238, %v1290
        %v1306 = vmul.f32 %v1239, %v1290
        %v1307 = vmul.f32 %v1240, %v1290
        %v1308 = vmul.f32 %v1241, %v1290
        %v1309 = vmul.f32 %v1242, %v1290
        %v1310 = vmul.f32 %v1243, %v1290
        %v1311 = vmul.f32 %v1244, %v1290
        %v1312 = vmul.f32 %v1245, %v1290
        %v1313 = vmul.f32 %v1246, %v1290
        %v1314 = vmul.f32 %v1247, %v1290
        %v1315 = vmul.f32 %v1248, %v1290
        %v1316 = vmul.f32 %v1249, %v1290
        %v1317 = vmul.f32 %v1250, %v1290
        %v1318 = vmul.f32 %v1251, %v1290
        %v1319 = vmul.f32 %v1252, %v1290
        %v1320 = vmul.f32 %v1253, %v1290
        %v1321 = vmul.f32 %v1254, %v1290
        %v1322 = vmul.f32 %v1255, %v1290
        %v1323 = vmul.f32 %v1256, %v1290
        %v1324 = vmul.f32 %v1257, %v1290
        %v1325 = vmul.f32 %v1258, %v1290
        %v1326 = vmul.f32 %v1259, %v1290
        %v1327 = vmul.f32 %v1260, %v1290
        %v1328 = vmul.f32 %v1261, %v1290
        %v1329 = vmul.f32 %v1262, %v1290
        %v1330 = vmul.f32 %v1263, %v1290
        %v1331 = vmul.f32 %v1264, %v1290
        %v1332 = vmul.f32 %v1265, %v1290
        %v1333 = vmul.f32 %v1266, %v1290
        %v1334 = vmul.f32 %v1267, %v1290
        %v1335 = vmul.f32 %v1268, %v1290
        %v1336 = vmul.f32 %v1269, %v1290
        %v1337 = vmul.f32 %v1270, %v1290
        %v1338 = vmul.f32 %v1271, %v1290
        %v1339 = vmul.f32 %v1272, %v1290
        %v1340 = vmul.f32 %v1273, %v1290
        %v1341 = vmul.f32 %v1274, %v1290
        %v1342 = vmul.f32 %v1275, %v1290
        %v1343 = vmul.f32 %v1276, %v1290
        %v1344 = vmul.f32 %v1277, %v1290
        %v1345 = vmul.f32 %v1278, %v1290
        %v1346 = vmul.f32 %v1279, %v1290
        %v1347 = vmul.f32 %v1280, %v1290
        %v1348 = vmul.f32 %v1281, %v1290
        %v1349 = vmul.f32 %v1282, %v1290
        %v1350 = vmul.f32 %v1283, %v1290
        %v1351 = vmul.f32 %v1284, %v1290
        %v1352 = vmul.f32 %v1285, %v1290
        %v1353 = vmul.f32 %v1286, %v1290
        %v1354 = vmul.f32 %v1287, %v1290
        %v1355 = vmul.f32 %v1288, %v1290
        %v1357 = vperm.slane %v1160, 0
        %v1359 = vadd.f32 %v1292, %v1357
        %v1360 = vadd.f32 %v1293, %v1357
        %v1361 = vadd.f32 %v1294, %v1357
        %v1362 = vadd.f32 %v1295, %v1357
        %v1363 = vadd.f32 %v1296, %v1357
        %v1364 = vadd.f32 %v1297, %v1357
        %v1365 = vadd.f32 %v1298, %v1357
        %v1366 = vadd.f32 %v1299, %v1357
        %v1367 = vadd.f32 %v1300, %v1357
        %v1368 = vadd.f32 %v1301, %v1357
        %v1369 = vadd.f32 %v1302, %v1357
        %v1370 = vadd.f32 %v1303, %v1357
        %v1371 = vadd.f32 %v1304, %v1357
        %v1372 = vadd.f32 %v1305, %v1357
        %v1373 = vadd.f32 %v1306, %v1357
        %v1374 = vadd.f32 %v1307, %v1357
        %v1375 = vadd.f32 %v1308, %v1357
        %v1376 = vadd.f32 %v1309, %v1357
        %v1377 = vadd.f32 %v1310, %v1357
        %v1378 = vadd.f32 %v1311, %v1357
        %v1379 = vadd.f32 %v1312, %v1357
        %v1380 = vadd.f32 %v1313, %v1357
        %v1381 = vadd.f32 %v1314, %v1357
        %v1382 = vadd.f32 %v1315, %v1357
        %v1383 = vadd.f32 %v1316, %v1357
        %v1384 = vadd.f32 %v1317, %v1357
        %v1385 = vadd.f32 %v1318, %v1357
        %v1386 = vadd.f32 %v1319, %v1357
        %v1387 = vadd.f32 %v1320, %v1357
        %v1388 = vadd.f32 %v1321, %v1357
        %v1389 = vadd.f32 %v1322, %v1357
        %v1390 = vadd.f32 %v1323, %v1357
        %v1391 = vadd.f32 %v1324, %v1357
        %v1392 = vadd.f32 %v1325, %v1357
        %v1393 = vadd.f32 %v1326, %v1357
        %v1394 = vadd.f32 %v1327, %v1357
        %v1395 = vadd.f32 %v1328, %v1357
        %v1396 = vadd.f32 %v1329, %v1357
        %v1397 = vadd.f32 %v1330, %v1357
        %v1398 = vadd.f32 %v1331, %v1357
        %v1399 = vadd.f32 %v1332, %v1357
        %v1400 = vadd.f32 %v1333, %v1357
        %v1401 = vadd.f32 %v1334, %v1357
        %v1402 = vadd.f32 %v1335, %v1357
        %v1403 = vadd.f32 %v1336, %v1357
        %v1404 = vadd.f32 %v1337, %v1357
        %v1405 = vadd.f32 %v1338, %v1357
        %v1406 = vadd.f32 %v1339, %v1357
        %v1407 = vadd.f32 %v1340, %v1357
        %v1408 = vadd.f32 %v1341, %v1357
        %v1409 = vadd.f32 %v1342, %v1357
        %v1410 = vadd.f32 %v1343, %v1357
        %v1411 = vadd.f32 %v1344, %v1357
        %v1412 = vadd.f32 %v1345, %v1357
        %v1413 = vadd.f32 %v1346, %v1357
        %v1414 = vadd.f32 %v1347, %v1357
        %v1415 = vadd.f32 %v1348, %v1357
        %v1416 = vadd.f32 %v1349, %v1357
        %v1417 = vadd.f32 %v1350, %v1357
        %v1418 = vadd.f32 %v1351, %v1357
        %v1419 = vadd.f32 %v1352, %v1357
        %v1420 = vadd.f32 %v1353, %v1357
        %v1421 = vadd.f32 %v1354, %v1357
        %v1422 = vadd.f32 %v1355, %v1357
        %v1423 = vmax.f32 %v1359, 0.0
        %v1424 = vmax.f32 %v1360, 0.0
        %v1425 = vmax.f32 %v1361, 0.0
        %v1426 = vmax.f32 %v1362, 0.0
        %v1427 = vmax.f32 %v1363, 0.0
        %v1428 = vmax.f32 %v1364, 0.0
        %v1429 = vmax.f32 %v1365, 0.0
        %v1430 = vmax.f32 %v1366, 0.0
        %v1431 = vmax.f32 %v1367, 0.0
        %v1432 = vmax.f32 %v1368, 0.0
        %v1433 = vmax.f32 %v1369, 0.0
        %v1434 = vmax.f32 %v1370, 0.0
        %v1435 = vmax.f32 %v1371, 0.0
        %v1436 = vmax.f32 %v1372, 0.0
        %v1437 = vmax.f32 %v1373, 0.0
        %v1438 = vmax.f32 %v1374, 0.0
        %v1439 = vmax.f32 %v1375, 0.0
        %v1440 = vmax.f32 %v1376, 0.0
        %v1441 = vmax.f32 %v1377, 0.0
        %v1442 = vmax.f32 %v1378, 0.0
        %v1443 = vmax.f32 %v1379, 0.0
        %v1444 = vmax.f32 %v1380, 0.0
        %v1445 = vmax.f32 %v1381, 0.0
        %v1446 = vmax.f32 %v1382, 0.0
        %v1447 = vmax.f32 %v1383, 0.0
        %v1448 = vmax.f32 %v1384, 0.0
        %v1449 = vmax.f32 %v1385, 0.0
        %v1450 = vmax.f32 %v1386, 0.0
        %v1451 = vmax.f32 %v1387, 0.0
        %v1452 = vmax.f32 %v1388, 0.0
        %v1453 = vmax.f32 %v1389, 0.0
        %v1454 = vmax.f32 %v1390, 0.0
        %v1455 = vmax.f32 %v1391, 0.0
        %v1456 = vmax.f32 %v1392, 0.0
        %v1457 = vmax.f32 %v1393, 0.0
        %v1458 = vmax.f32 %v1394, 0.0
        %v1459 = vmax.f32 %v1395, 0.0
        %v1460 = vmax.f32 %v1396, 0.0
        %v1461 = vmax.f32 %v1397, 0.0
        %v1462 = vmax.f32 %v1398, 0.0
        %v1463 = vmax.f32 %v1399, 0.0
        %v1464 = vmax.f32 %v1400, 0.0
        %v1465 = vmax.f32 %v1401, 0.0
        %v1466 = vmax.f32 %v1402, 0.0
        %v1467 = vmax.f32 %v1403, 0.0
        %v1468 = vmax.f32 %v1404, 0.0
        %v1469 = vmax.f32 %v1405, 0.0
        %v1470 = vmax.f32 %v1406, 0.0
        %v1471 = vmax.f32 %v1407, 0.0
        %v1472 = vmax.f32 %v1408, 0.0
        %v1473 = vmax.f32 %v1409, 0.0
        %v1474 = vmax.f32 %v1410, 0.0
        %v1475 = vmax.f32 %v1411, 0.0
        %v1476 = vmax.f32 %v1412, 0.0
        %v1477 = vmax.f32 %v1413, 0.0
        %v1478 = vmax.f32 %v1414, 0.0
        %v1479 = vmax.f32 %v1415, 0.0
        %v1480 = vmax.f32 %v1416, 0.0
        %v1481 = vmax.f32 %v1417, 0.0
        %v1482 = vmax.f32 %v1418, 0.0
        %v1483 = vmax.f32 %v1419, 0.0
        %v1484 = vmax.f32 %v1420, 0.0
        %v1485 = vmax.f32 %v1421, 0.0
        %v1486 = vmax.f32 %v1422, 0.0
        %v1487 = vpack.c.bf16 %v1423, %v1423
        %v1488 = vpack.c.bf16 %v1424, %v1424
        %v1489 = vpack.c.bf16 %v1425, %v1425
        %v1490 = vpack.c.bf16 %v1426, %v1426
        %v1491 = vpack.c.bf16 %v1427, %v1427
        %v1492 = vpack.c.bf16 %v1428, %v1428
        %v1493 = vpack.c.bf16 %v1429, %v1429
        %v1494 = vpack.c.bf16 %v1430, %v1430
        %v1495 = vpack.c.bf16 %v1431, %v1431
        %v1496 = vpack.c.bf16 %v1432, %v1432
        %v1497 = vpack.c.bf16 %v1433, %v1433
        %v1498 = vpack.c.bf16 %v1434, %v1434
        %v1499 = vpack.c.bf16 %v1435, %v1435
        %v1500 = vpack.c.bf16 %v1436, %v1436
        %v1501 = vpack.c.bf16 %v1437, %v1437
        %v1502 = vpack.c.bf16 %v1438, %v1438
        %v1503 = vpack.c.bf16 %v1439, %v1439
        %v1504 = vpack.c.bf16 %v1440, %v1440
        %v1505 = vpack.c.bf16 %v1441, %v1441
        %v1506 = vpack.c.bf16 %v1442, %v1442
        %v1507 = vpack.c.bf16 %v1443, %v1443
        %v1508 = vpack.c.bf16 %v1444, %v1444
        %v1509 = vpack.c.bf16 %v1445, %v1445
        %v1510 = vpack.c.bf16 %v1446, %v1446
        %v1511 = vpack.c.bf16 %v1447, %v1447
        %v1512 = vpack.c.bf16 %v1448, %v1448
        %v1513 = vpack.c.bf16 %v1449, %v1449
        %v1514 = vpack.c.bf16 %v1450, %v1450
        %v1515 = vpack.c.bf16 %v1451, %v1451
        %v1516 = vpack.c.bf16 %v1452, %v1452
        %v1517 = vpack.c.bf16 %v1453, %v1453
        %v1518 = vpack.c.bf16 %v1454, %v1454
        %v1519 = vpack.c.bf16 %v1455, %v1455
        %v1520 = vpack.c.bf16 %v1456, %v1456
        %v1521 = vpack.c.bf16 %v1457, %v1457
        %v1522 = vpack.c.bf16 %v1458, %v1458
        %v1523 = vpack.c.bf16 %v1459, %v1459
        %v1524 = vpack.c.bf16 %v1460, %v1460
        %v1525 = vpack.c.bf16 %v1461, %v1461
        %v1526 = vpack.c.bf16 %v1462, %v1462
        %v1527 = vpack.c.bf16 %v1463, %v1463
        %v1528 = vpack.c.bf16 %v1464, %v1464
        %v1529 = vpack.c.bf16 %v1465, %v1465
        %v1530 = vpack.c.bf16 %v1466, %v1466
        %v1531 = vpack.c.bf16 %v1467, %v1467
        %v1532 = vpack.c.bf16 %v1468, %v1468
        %v1533 = vpack.c.bf16 %v1469, %v1469
        %v1534 = vpack.c.bf16 %v1470, %v1470
        %v1535 = vpack.c.bf16 %v1471, %v1471
        %v1536 = vpack.c.bf16 %v1472, %v1472
        %v1537 = vpack.c.bf16 %v1473, %v1473
        %v1538 = vpack.c.bf16 %v1474, %v1474
        %v1539 = vpack.c.bf16 %v1475, %v1475
        %v1540 = vpack.c.bf16 %v1476, %v1476
        %v1541 = vpack.c.bf16 %v1477, %v1477
        %v1542 = vpack.c.bf16 %v1478, %v1478
        %v1543 = vpack.c.bf16 %v1479, %v1479
        %v1544 = vpack.c.bf16 %v1480, %v1480
        %v1545 = vpack.c.bf16 %v1481, %v1481
        %v1546 = vpack.c.bf16 %v1482, %v1482
        %v1547 = vpack.c.bf16 %v1483, %v1483
        %v1548 = vpack.c.bf16 %v1484, %v1484
        %v1549 = vpack.c.bf16 %v1485, %v1485
        %v1550 = vpack.c.bf16 %v1486, %v1486
        %1551 = vst [vmem:[%s4] sm:$0xf] %v1487
        %1552 = vst [vmem:[%s4 + $0x4] sm:$0xf] %v1488
        %1553 = vst [vmem:[%s4 + $0x8] sm:$0xf] %v1489
        %1554 = vst [vmem:[%s4 + $0xc] sm:$0xf] %v1490
        %1555 = vst [vmem:[%s4 + $0x10] sm:$0xf] %v1491
        %1556 = vst [vmem:[%s4 + $0x14] sm:$0xf] %v1492
        %1557 = vst [vmem:[%s4 + $0x18] sm:$0xf] %v1493
        %1558 = vst [vmem:[%s4 + $0x1c] sm:$0xf] %v1494
        %1559 = vst [vmem:[%s4 + $0x20] sm:$0xf] %v1495
        %1560 = vst [vmem:[%s4 + $0x24] sm:$0xf] %v1496
        %1561 = vst [vmem:[%s4 + $0x28] sm:$0xf] %v1497
        %1562 = vst [vmem:[%s4 + $0x2c] sm:$0xf] %v1498
        %1563 = vst [vmem:[%s4 + $0x30] sm:$0xf] %v1499
        %1564 = vst [vmem:[%s4 + $0x34] sm:$0xf] %v1500
        %1565 = vst [vmem:[%s4 + $0x38] sm:$0xf] %v1501
        %1566 = vst [vmem:[%s4 + $0x3c] sm:$0xf] %v1502
        %1567 = vst [vmem:[%s4 + $0x40] sm:$0xf] %v1503
        %1568 = vst [vmem:[%s4 + $0x44] sm:$0xf] %v1504
        %1569 = vst [vmem:[%s4 + $0x48] sm:$0xf] %v1505
        %1570 = vst [vmem:[%s4 + $0x4c] sm:$0xf] %v1506
        %1571 = vst [vmem:[%s4 + $0x50] sm:$0xf] %v1507
        %1572 = vst [vmem:[%s4 + $0x54] sm:$0xf] %v1508
        %1573 = vst [vmem:[%s4 + $0x58] sm:$0xf] %v1509
        %1574 = vst [vmem:[%s4 + $0x5c] sm:$0xf] %v1510
        %1575 = vst [vmem:[%s4 + $0x60] sm:$0xf] %v1511
        %1576 = vst [vmem:[%s4 + $0x64] sm:$0xf] %v1512
        %1577 = vst [vmem:[%s4 + $0x68] sm:$0xf] %v1513
        %1578 = vst [vmem:[%s4 + $0x6c] sm:$0xf] %v1514
        %1579 = vst [vmem:[%s4 + $0x70] sm:$0xf] %v1515
        %1580 = vst [vmem:[%s4 + $0x74] sm:$0xf] %v1516
        %1581 = vst [vmem:[%s4 + $0x78] sm:$0xf] %v1517
        %1582 = vst [vmem:[%s4 + $0x7c] sm:$0xf] %v1518
        %1583 = vst [vmem:[%s4 + $0x80] sm:$0xf] %v1519
        %1584 = vst [vmem:[%s4 + $0x84] sm:$0xf] %v1520
        %1585 = vst [vmem:[%s4 + $0x88] sm:$0xf] %v1521
        %1586 = vst [vmem:[%s4 + $0x8c] sm:$0xf] %v1522
        %1587 = vst [vmem:[%s4 + $0x90] sm:$0xf] %v1523
        %1588 = vst [vmem:[%s4 + $0x94] sm:$0xf] %v1524
        %1589 = vst [vmem:[%s4 + $0x98] sm:$0xf] %v1525
        %1590 = vst [vmem:[%s4 + $0x9c] sm:$0xf] %v1526
        %1591 = vst [vmem:[%s4 + $0xa0] sm:$0xf] %v1527
        %1592 = vst [vmem:[%s4 + $0xa4] sm:$0xf] %v1528
        %1593 = vst [vmem:[%s4 + $0xa8] sm:$0xf] %v1529
        %1594 = vst [vmem:[%s4 + $0xac] sm:$0xf] %v1530
        %1595 = vst [vmem:[%s4 + $0xb0] sm:$0xf] %v1531
        %1596 = vst [vmem:[%s4 + $0xb4] sm:$0xf] %v1532
        %1597 = vst [vmem:[%s4 + $0xb8] sm:$0xf] %v1533
        %1598 = vst [vmem:[%s4 + $0xbc] sm:$0xf] %v1534
        %1599 = vst [vmem:[%s4 + $0xc0] sm:$0xf] %v1535
        %1600 = vst [vmem:[%s4 + $0xc4] sm:$0xf] %v1536
        %1601 = vst [vmem:[%s4 + $0xc8] sm:$0xf] %v1537
        %1602 = vst [vmem:[%s4 + $0xcc] sm:$0xf] %v1538
        %1603 = vst [vmem:[%s4 + $0xd0] sm:$0xf] %v1539
        %1604 = vst [vmem:[%s4 + $0xd4] sm:$0xf] %v1540
        %1605 = vst [vmem:[%s4 + $0xd8] sm:$0xf] %v1541
        %1606 = vst [vmem:[%s4 + $0xdc] sm:$0xf] %v1542
        %1607 = vst [vmem:[%s4 + $0xe0] sm:$0xf] %v1543
        %1608 = vst [vmem:[%s4 + $0xe4] sm:$0xf] %v1544
        %1609 = vst [vmem:[%s4 + $0xe8] sm:$0xf] %v1545
        %1610 = vst [vmem:[%s4 + $0xec] sm:$0xf] %v1546
        %1611 = vst [vmem:[%s4 + $0xf0] sm:$0xf] %v1547
        %1612 = vst [vmem:[%s4 + $0xf4] sm:$0xf] %v1548
        %1613 = vst [vmem:[%s4 + $0xf8] sm:$0xf] %v1549
        %1614 = vst [vmem:[%s4 + $0xfc] sm:$0xf] %v1550
        %s1615 = scalar_lea.vmem %s4, 256
        %v1616 = vld [vmem:[%s1615] sm:$0xf]
        %v1617 = vld [vmem:[%s1615 + $0x4] sm:$0xf]
        %v1618 = vld [vmem:[%s1615 + $0x8] sm:$0xf]
        %v1619 = vld [vmem:[%s1615 + $0xc] sm:$0xf]
        %v1620 = vld [vmem:[%s1615 + $0x10] sm:$0xf]
        %v1621 = vld [vmem:[%s1615 + $0x14] sm:$0xf]
        %v1622 = vld [vmem:[%s1615 + $0x18] sm:$0xf]
        %v1623 = vld [vmem:[%s1615 + $0x1c] sm:$0xf]
        %v1624 = vld [vmem:[%s1615 + $0x20] sm:$0xf]
        %v1625 = vld [vmem:[%s1615 + $0x24] sm:$0xf]
        %v1626 = vld [vmem:[%s1615 + $0x28] sm:$0xf]
        %v1627 = vld [vmem:[%s1615 + $0x2c] sm:$0xf]
        %v1628 = vld [vmem:[%s1615 + $0x30] sm:$0xf]
        %v1629 = vld [vmem:[%s1615 + $0x34] sm:$0xf]
        %v1630 = vld [vmem:[%s1615 + $0x38] sm:$0xf]
        %v1631 = vld [vmem:[%s1615 + $0x3c] sm:$0xf]
        %v1632 = vld [vmem:[%s1615 + $0x40] sm:$0xf]
        %v1633 = vld [vmem:[%s1615 + $0x44] sm:$0xf]
        %v1634 = vld [vmem:[%s1615 + $0x48] sm:$0xf]
        %v1635 = vld [vmem:[%s1615 + $0x4c] sm:$0xf]
        %v1636 = vld [vmem:[%s1615 + $0x50] sm:$0xf]
        %v1637 = vld [vmem:[%s1615 + $0x54] sm:$0xf]
        %v1638 = vld [vmem:[%s1615 + $0x58] sm:$0xf]
        %v1639 = vld [vmem:[%s1615 + $0x5c] sm:$0xf]
        %v1640 = vld [vmem:[%s1615 + $0x60] sm:$0xf]
        %v1641 = vld [vmem:[%s1615 + $0x64] sm:$0xf]
        %v1642 = vld [vmem:[%s1615 + $0x68] sm:$0xf]
        %v1643 = vld [vmem:[%s1615 + $0x6c] sm:$0xf]
        %v1644 = vld [vmem:[%s1615 + $0x70] sm:$0xf]
        %v1645 = vld [vmem:[%s1615 + $0x74] sm:$0xf]
        %v1646 = vld [vmem:[%s1615 + $0x78] sm:$0xf]
        %v1647 = vld [vmem:[%s1615 + $0x7c] sm:$0xf]
        %v1648 = vld [vmem:[%s1615 + $0x80] sm:$0xf]
        %v1649 = vld [vmem:[%s1615 + $0x84] sm:$0xf]
        %v1650 = vld [vmem:[%s1615 + $0x88] sm:$0xf]
        %v1651 = vld [vmem:[%s1615 + $0x8c] sm:$0xf]
        %v1652 = vld [vmem:[%s1615 + $0x90] sm:$0xf]
        %v1653 = vld [vmem:[%s1615 + $0x94] sm:$0xf]
        %v1654 = vld [vmem:[%s1615 + $0x98] sm:$0xf]
        %v1655 = vld [vmem:[%s1615 + $0x9c] sm:$0xf]
        %v1656 = vld [vmem:[%s1615 + $0xa0] sm:$0xf]
        %v1657 = vld [vmem:[%s1615 + $0xa4] sm:$0xf]
        %v1658 = vld [vmem:[%s1615 + $0xa8] sm:$0xf]
        %v1659 = vld [vmem:[%s1615 + $0xac] sm:$0xf]
        %v1660 = vld [vmem:[%s1615 + $0xb0] sm:$0xf]
        %v1661 = vld [vmem:[%s1615 + $0xb4] sm:$0xf]
        %v1662 = vld [vmem:[%s1615 + $0xb8] sm:$0xf]
        %v1663 = vld [vmem:[%s1615 + $0xbc] sm:$0xf]
        %v1664 = vld [vmem:[%s1615 + $0xc0] sm:$0xf]
        %v1665 = vld [vmem:[%s1615 + $0xc4] sm:$0xf]
        %v1666 = vld [vmem:[%s1615 + $0xc8] sm:$0xf]
        %v1667 = vld [vmem:[%s1615 + $0xcc] sm:$0xf]
        %v1668 = vld [vmem:[%s1615 + $0xd0] sm:$0xf]
        %v1669 = vld [vmem:[%s1615 + $0xd4] sm:$0xf]
        %v1670 = vld [vmem:[%s1615 + $0xd8] sm:$0xf]
        %v1671 = vld [vmem:[%s1615 + $0xdc] sm:$0xf]
        %v1672 = vld [vmem:[%s1615 + $0xe0] sm:$0xf]
        %v1673 = vld [vmem:[%s1615 + $0xe4] sm:$0xf]
        %v1674 = vld [vmem:[%s1615 + $0xe8] sm:$0xf]
        %v1675 = vld [vmem:[%s1615 + $0xec] sm:$0xf]
        %v1676 = vld [vmem:[%s1615 + $0xf0] sm:$0xf]
        %v1677 = vld [vmem:[%s1615 + $0xf4] sm:$0xf]
        %v1678 = vld [vmem:[%s1615 + $0xf8] sm:$0xf]
        %v1679 = vld [vmem:[%s1615 + $0xfc] sm:$0xf]
        %v1680 = vunpack.c.l.bf16 %v1616
        %v1681 = vunpack.c.l.bf16 %v1617
        %v1682 = vunpack.c.l.bf16 %v1618
        %v1683 = vunpack.c.l.bf16 %v1619
        %v1684 = vunpack.c.l.bf16 %v1620
        %v1685 = vunpack.c.l.bf16 %v1621
        %v1686 = vunpack.c.l.bf16 %v1622
        %v1687 = vunpack.c.l.bf16 %v1623
        %v1688 = vunpack.c.l.bf16 %v1624
        %v1689 = vunpack.c.l.bf16 %v1625
        %v1690 = vunpack.c.l.bf16 %v1626
        %v1691 = vunpack.c.l.bf16 %v1627
        %v1692 = vunpack.c.l.bf16 %v1628
        %v1693 = vunpack.c.l.bf16 %v1629
        %v1694 = vunpack.c.l.bf16 %v1630
        %v1695 = vunpack.c.l.bf16 %v1631
        %v1696 = vunpack.c.l.bf16 %v1632
        %v1697 = vunpack.c.l.bf16 %v1633
        %v1698 = vunpack.c.l.bf16 %v1634
        %v1699 = vunpack.c.l.bf16 %v1635
        %v1700 = vunpack.c.l.bf16 %v1636
        %v1701 = vunpack.c.l.bf16 %v1637
        %v1702 = vunpack.c.l.bf16 %v1638
        %v1703 = vunpack.c.l.bf16 %v1639
        %v1704 = vunpack.c.l.bf16 %v1640
        %v1705 = vunpack.c.l.bf16 %v1641
        %v1706 = vunpack.c.l.bf16 %v1642
        %v1707 = vunpack.c.l.bf16 %v1643
        %v1708 = vunpack.c.l.bf16 %v1644
        %v1709 = vunpack.c.l.bf16 %v1645
        %v1710 = vunpack.c.l.bf16 %v1646
        %v1711 = vunpack.c.l.bf16 %v1647
        %v1712 = vunpack.c.l.bf16 %v1648
        %v1713 = vunpack.c.l.bf16 %v1649
        %v1714 = vunpack.c.l.bf16 %v1650
        %v1715 = vunpack.c.l.bf16 %v1651
        %v1716 = vunpack.c.l.bf16 %v1652
        %v1717 = vunpack.c.l.bf16 %v1653
        %v1718 = vunpack.c.l.bf16 %v1654
        %v1719 = vunpack.c.l.bf16 %v1655
        %v1720 = vunpack.c.l.bf16 %v1656
        %v1721 = vunpack.c.l.bf16 %v1657
        %v1722 = vunpack.c.l.bf16 %v1658
        %v1723 = vunpack.c.l.bf16 %v1659
        %v1724 = vunpack.c.l.bf16 %v1660
        %v1725 = vunpack.c.l.bf16 %v1661
        %v1726 = vunpack.c.l.bf16 %v1662
        %v1727 = vunpack.c.l.bf16 %v1663
        %v1728 = vunpack.c.l.bf16 %v1664
        %v1729 = vunpack.c.l.bf16 %v1665
        %v1730 = vunpack.c.l.bf16 %v1666
        %v1731 = vunpack.c.l.bf16 %v1667
        %v1732 = vunpack.c.l.bf16 %v1668
        %v1733 = vunpack.c.l.bf16 %v1669
        %v1734 = vunpack.c.l.bf16 %v1670
        %v1735 = vunpack.c.l.bf16 %v1671
        %v1736 = vunpack.c.l.bf16 %v1672
        %v1737 = vunpack.c.l.bf16 %v1673
        %v1738 = vunpack.c.l.bf16 %v1674
        %v1739 = vunpack.c.l.bf16 %v1675
        %v1740 = vunpack.c.l.bf16 %v1676
        %v1741 = vunpack.c.l.bf16 %v1677
        %v1742 = vunpack.c.l.bf16 %v1678
        %v1743 = vunpack.c.l.bf16 %v1679
        %v1744 = vmul.f32 %v1680, %v1290
        %v1745 = vmul.f32 %v1681, %v1290
        %v1746 = vmul.f32 %v1682, %v1290
        %v1747 = vmul.f32 %v1683, %v1290
        %v1748 = vmul.f32 %v1684, %v1290
        %v1749 = vmul.f32 %v1685, %v1290
        %v1750 = vmul.f32 %v1686, %v1290
        %v1751 = vmul.f32 %v1687, %v1290
        %v1752 = vmul.f32 %v1688, %v1290
        %v1753 = vmul.f32 %v1689, %v1290
        %v1754 = vmul.f32 %v1690, %v1290
        %v1755 = vmul.f32 %v1691, %v1290
        %v1756 = vmul.f32 %v1692, %v1290
        %v1757 = vmul.f32 %v1693, %v1290
        %v1758 = vmul.f32 %v1694, %v1290
        %v1759 = vmul.f32 %v1695, %v1290
        %v1760 = vmul.f32 %v1696, %v1290
        %v1761 = vmul.f32 %v1697, %v1290
        %v1762 = vmul.f32 %v1698, %v1290
        %v1763 = vmul.f32 %v1699, %v1290
        %v1764 = vmul.f32 %v1700, %v1290
        %v1765 = vmul.f32 %v1701, %v1290
        %v1766 = vmul.f32 %v1702, %v1290
        %v1767 = vmul.f32 %v1703, %v1290
        %v1768 = vmul.f32 %v1704, %v1290
        %v1769 = vmul.f32 %v1705, %v1290
        %v1770 = vmul.f32 %v1706, %v1290
        %v1771 = vmul.f32 %v1707, %v1290
        %v1772 = vmul.f32 %v1708, %v1290
        %v1773 = vmul.f32 %v1709, %v1290
        %v1774 = vmul.f32 %v1710, %v1290
        %v1775 = vmul.f32 %v1711, %v1290
        %v1776 = vmul.f32 %v1712, %v1290
        %v1777 = vmul.f32 %v1713, %v1290
        %v1778 = vmul.f32 %v1714, %v1290
        %v1779 = vmul.f32 %v1715, %v1290
        %v1780 = vmul.f32 %v1716, %v1290
        %v1781 = vmul.f32 %v1717, %v1290
        %v1782 = vmul.f32 %v1718, %v1290
        %v1783 = vmul.f32 %v1719, %v1290
        %v1784 = vmul.f32 %v1720, %v1290
        %v1785 = vmul.f32 %v1721, %v1290
        %v1786 = vmul.f32 %v1722, %v1290
        %v1787 = vmul.f32 %v1723, %v1290
        %v1788 = vmul.f32 %v1724, %v1290
        %v1789 = vmul.f32 %v1725, %v1290
        %v1790 = vmul.f32 %v1726, %v1290
        %v1791 = vmul.f32 %v1727, %v1290
        %v1792 = vmul.f32 %v1728, %v1290
        %v1793 = vmul.f32 %v1729, %v1290
        %v1794 = vmul.f32 %v1730, %v1290
        %v1795 = vmul.f32 %v1731, %v1290
        %v1796 = vmul.f32 %v1732, %v1290
        %v1797 = vmul.f32 %v1733, %v1290
        %v1798 = vmul.f32 %v1734, %v1290
        %v1799 = vmul.f32 %v1735, %v1290
        %v1800 = vmul.f32 %v1736, %v1290
        %v1801 = vmul.f32 %v1737, %v1290
        %v1802 = vmul.f32 %v1738, %v1290
        %v1803 = vmul.f32 %v1739, %v1290
        %v1804 = vmul.f32 %v1740, %v1290
        %v1805 = vmul.f32 %v1741, %v1290
        %v1806 = vmul.f32 %v1742, %v1290
        %v1807 = vmul.f32 %v1743, %v1290
        %v1808 = vadd.f32 %v1744, %v1357
        %v1809 = vadd.f32 %v1745, %v1357
        %v1810 = vadd.f32 %v1746, %v1357
        %v1811 = vadd.f32 %v1747, %v1357
        %v1812 = vadd.f32 %v1748, %v1357
        %v1813 = vadd.f32 %v1749, %v1357
        %v1814 = vadd.f32 %v1750, %v1357
        %v1815 = vadd.f32 %v1751, %v1357
        %v1816 = vadd.f32 %v1752, %v1357
        %v1817 = vadd.f32 %v1753, %v1357
        %v1818 = vadd.f32 %v1754, %v1357
        %v1819 = vadd.f32 %v1755, %v1357
        %v1820 = vadd.f32 %v1756, %v1357
        %v1821 = vadd.f32 %v1757, %v1357
        %v1822 = vadd.f32 %v1758, %v1357
        %v1823 = vadd.f32 %v1759, %v1357
        %v1824 = vadd.f32 %v1760, %v1357
        %v1825 = vadd.f32 %v1761, %v1357
        %v1826 = vadd.f32 %v1762, %v1357
        %v1827 = vadd.f32 %v1763, %v1357
        %v1828 = vadd.f32 %v1764, %v1357
        %v1829 = vadd.f32 %v1765, %v1357
        %v1830 = vadd.f32 %v1766, %v1357
        %v1831 = vadd.f32 %v1767, %v1357
        %v1832 = vadd.f32 %v1768, %v1357
        %v1833 = vadd.f32 %v1769, %v1357
        %v1834 = vadd.f32 %v1770, %v1357
        %v1835 = vadd.f32 %v1771, %v1357
        %v1836 = vadd.f32 %v1772, %v1357
        %v1837 = vadd.f32 %v1773, %v1357
        %v1838 = vadd.f32 %v1774, %v1357
        %v1839 = vadd.f32 %v1775, %v1357
        %v1840 = vadd.f32 %v1776, %v1357
        %v1841 = vadd.f32 %v1777, %v1357
        %v1842 = vadd.f32 %v1778, %v1357
        %v1843 = vadd.f32 %v1779, %v1357
        %v1844 = vadd.f32 %v1780, %v1357
        %v1845 = vadd.f32 %v1781, %v1357
        %v1846 = vadd.f32 %v1782, %v1357
        %v1847 = vadd.f32 %v1783, %v1357
        %v1848 = vadd.f32 %v1784, %v1357
        %v1849 = vadd.f32 %v1785, %v1357
        %v1850 = vadd.f32 %v1786, %v1357
        %v1851 = vadd.f32 %v1787, %v1357
        %v1852 = vadd.f32 %v1788, %v1357
        %v1853 = vadd.f32 %v1789, %v1357
        %v1854 = vadd.f32 %v1790, %v1357
        %v1855 = vadd.f32 %v1791, %v1357
        %v1856 = vadd.f32 %v1792, %v1357
        %v1857 = vadd.f32 %v1793, %v1357
        %v1858 = vadd.f32 %v1794, %v1357
        %v1859 = vadd.f32 %v1795, %v1357
        %v1860 = vadd.f32 %v1796, %v1357
        %v1861 = vadd.f32 %v1797, %v1357
        %v1862 = vadd.f32 %v1798, %v1357
        %v1863 = vadd.f32 %v1799, %v1357
        %v1864 = vadd.f32 %v1800, %v1357
        %v1865 = vadd.f32 %v1801, %v1357
        %v1866 = vadd.f32 %v1802, %v1357
        %v1867 = vadd.f32 %v1803, %v1357
        %v1868 = vadd.f32 %v1804, %v1357
        %v1869 = vadd.f32 %v1805, %v1357
        %v1870 = vadd.f32 %v1806, %v1357
        %v1871 = vadd.f32 %v1807, %v1357
        %v1872 = vmax.f32 %v1808, 0.0
        %v1873 = vmax.f32 %v1809, 0.0
        %v1874 = vmax.f32 %v1810, 0.0
        %v1875 = vmax.f32 %v1811, 0.0
        %v1876 = vmax.f32 %v1812, 0.0
        %v1877 = vmax.f32 %v1813, 0.0
        %v1878 = vmax.f32 %v1814, 0.0
        %v1879 = vmax.f32 %v1815, 0.0
        %v1880 = vmax.f32 %v1816, 0.0
        %v1881 = vmax.f32 %v1817, 0.0
        %v1882 = vmax.f32 %v1818, 0.0
        %v1883 = vmax.f32 %v1819, 0.0
        %v1884 = vmax.f32 %v1820, 0.0
        %v1885 = vmax.f32 %v1821, 0.0
        %v1886 = vmax.f32 %v1822, 0.0
        %v1887 = vmax.f32 %v1823, 0.0
        %v1888 = vmax.f32 %v1824, 0.0
        %v1889 = vmax.f32 %v1825, 0.0
        %v1890 = vmax.f32 %v1826, 0.0
        %v1891 = vmax.f32 %v1827, 0.0
        %v1892 = vmax.f32 %v1828, 0.0
        %v1893 = vmax.f32 %v1829, 0.0
        %v1894 = vmax.f32 %v1830, 0.0
        %v1895 = vmax.f32 %v1831, 0.0
        %v1896 = vmax.f32 %v1832, 0.0
        %v1897 = vmax.f32 %v1833, 0.0
        %v1898 = vmax.f32 %v1834, 0.0
        %v1899 = vmax.f32 %v1835, 0.0
        %v1900 = vmax.f32 %v1836, 0.0
        %v1901 = vmax.f32 %v1837, 0.0
        %v1902 = vmax.f32 %v1838, 0.0
        %v1903 = vmax.f32 %v1839, 0.0
        %v1904 = vmax.f32 %v1840, 0.0
        %v1905 = vmax.f32 %v1841, 0.0
        %v1906 = vmax.f32 %v1842, 0.0
        %v1907 = vmax.f32 %v1843, 0.0
        %v1908 = vmax.f32 %v1844, 0.0
        %v1909 = vmax.f32 %v1845, 0.0
        %v1910 = vmax.f32 %v1846, 0.0
        %v1911 = vmax.f32 %v1847, 0.0
        %v1912 = vmax.f32 %v1848, 0.0
        %v1913 = vmax.f32 %v1849, 0.0
        %v1914 = vmax.f32 %v1850, 0.0
        %v1915 = vmax.f32 %v1851, 0.0
        %v1916 = vmax.f32 %v1852, 0.0
        %v1917 = vmax.f32 %v1853, 0.0
        %v1918 = vmax.f32 %v1854, 0.0
        %v1919 = vmax.f32 %v1855, 0.0
        %v1920 = vmax.f32 %v1856, 0.0
        %v1921 = vmax.f32 %v1857, 0.0
        %v1922 = vmax.f32 %v1858, 0.0
        %v1923 = vmax.f32 %v1859, 0.0
        %v1924 = vmax.f32 %v1860, 0.0
        %v1925 = vmax.f32 %v1861, 0.0
        %v1926 = vmax.f32 %v1862, 0.0
        %v1927 = vmax.f32 %v1863, 0.0
        %v1928 = vmax.f32 %v1864, 0.0
        %v1929 = vmax.f32 %v1865, 0.0
        %v1930 = vmax.f32 %v1866, 0.0
        %v1931 = vmax.f32 %v1867, 0.0
        %v1932 = vmax.f32 %v1868, 0.0
        %v1933 = vmax.f32 %v1869, 0.0
        %v1934 = vmax.f32 %v1870, 0.0
        %v1935 = vmax.f32 %v1871, 0.0
        %v1936 = vpack.c.bf16 %v1872, %v1872
        %v1937 = vpack.c.bf16 %v1873, %v1873
        %v1938 = vpack.c.bf16 %v1874, %v1874
        %v1939 = vpack.c.bf16 %v1875, %v1875
        %v1940 = vpack.c.bf16 %v1876, %v1876
        %v1941 = vpack.c.bf16 %v1877, %v1877
        %v1942 = vpack.c.bf16 %v1878, %v1878
        %v1943 = vpack.c.bf16 %v1879, %v1879
        %v1944 = vpack.c.bf16 %v1880, %v1880
        %v1945 = vpack.c.bf16 %v1881, %v1881
        %v1946 = vpack.c.bf16 %v1882, %v1882
        %v1947 = vpack.c.bf16 %v1883, %v1883
        %v1948 = vpack.c.bf16 %v1884, %v1884
        %v1949 = vpack.c.bf16 %v1885, %v1885
        %v1950 = vpack.c.bf16 %v1886, %v1886
        %v1951 = vpack.c.bf16 %v1887, %v1887
        %v1952 = vpack.c.bf16 %v1888, %v1888
        %v1953 = vpack.c.bf16 %v1889, %v1889
        %v1954 = vpack.c.bf16 %v1890, %v1890
        %v1955 = vpack.c.bf16 %v1891, %v1891
        %v1956 = vpack.c.bf16 %v1892, %v1892
        %v1957 = vpack.c.bf16 %v1893, %v1893
        %v1958 = vpack.c.bf16 %v1894, %v1894
        %v1959 = vpack.c.bf16 %v1895, %v1895
        %v1960 = vpack.c.bf16 %v1896, %v1896
        %v1961 = vpack.c.bf16 %v1897, %v1897
        %v1962 = vpack.c.bf16 %v1898, %v1898
        %v1963 = vpack.c.bf16 %v1899, %v1899
        %v1964 = vpack.c.bf16 %v1900, %v1900
        %v1965 = vpack.c.bf16 %v1901, %v1901
        %v1966 = vpack.c.bf16 %v1902, %v1902
        %v1967 = vpack.c.bf16 %v1903, %v1903
        %v1968 = vpack.c.bf16 %v1904, %v1904
        %v1969 = vpack.c.bf16 %v1905, %v1905
        %v1970 = vpack.c.bf16 %v1906, %v1906
        %v1971 = vpack.c.bf16 %v1907, %v1907
        %v1972 = vpack.c.bf16 %v1908, %v1908
        %v1973 = vpack.c.bf16 %v1909, %v1909
        %v1974 = vpack.c.bf16 %v1910, %v1910
        %v1975 = vpack.c.bf16 %v1911, %v1911
        %v1976 = vpack.c.bf16 %v1912, %v1912
        %v1977 = vpack.c.bf16 %v1913, %v1913
        %v1978 = vpack.c.bf16 %v1914, %v1914
        %v1979 = vpack.c.bf16 %v1915, %v1915
        %v1980 = vpack.c.bf16 %v1916, %v1916
        %v1981 = vpack.c.bf16 %v1917, %v1917
        %v1982 = vpack.c.bf16 %v1918, %v1918
        %v1983 = vpack.c.bf16 %v1919, %v1919
        %v1984 = vpack.c.bf16 %v1920, %v1920
        %v1985 = vpack.c.bf16 %v1921, %v1921
        %v1986 = vpack.c.bf16 %v1922, %v1922
        %v1987 = vpack.c.bf16 %v1923, %v1923
        %v1988 = vpack.c.bf16 %v1924, %v1924
        %v1989 = vpack.c.bf16 %v1925, %v1925
        %v1990 = vpack.c.bf16 %v1926, %v1926
        %v1991 = vpack.c.bf16 %v1927, %v1927
        %v1992 = vpack.c.bf16 %v1928, %v1928
        %v1993 = vpack.c.bf16 %v1929, %v1929
        %v1994 = vpack.c.bf16 %v1930, %v1930
        %v1995 = vpack.c.bf16 %v1931, %v1931
        %v1996 = vpack.c.bf16 %v1932, %v1932
        %v1997 = vpack.c.bf16 %v1933, %v1933
        %v1998 = vpack.c.bf16 %v1934, %v1934
        %v1999 = vpack.c.bf16 %v1935, %v1935
        %2000 = vst [vmem:[%s1615] sm:$0xf] %v1936
        %2001 = vst [vmem:[%s1615 + $0x4] sm:$0xf] %v1937
        %2002 = vst [vmem:[%s1615 + $0x8] sm:$0xf] %v1938
        %2003 = vst [vmem:[%s1615 + $0xc] sm:$0xf] %v1939
        %2004 = vst [vmem:[%s1615 + $0x10] sm:$0xf] %v1940
        %2005 = vst [vmem:[%s1615 + $0x14] sm:$0xf] %v1941
        %2006 = vst [vmem:[%s1615 + $0x18] sm:$0xf] %v1942
        %2007 = vst [vmem:[%s1615 + $0x1c] sm:$0xf] %v1943
        %2008 = vst [vmem:[%s1615 + $0x20] sm:$0xf] %v1944
        %2009 = vst [vmem:[%s1615 + $0x24] sm:$0xf] %v1945
        %2010 = vst [vmem:[%s1615 + $0x28] sm:$0xf] %v1946
        %2011 = vst [vmem:[%s1615 + $0x2c] sm:$0xf] %v1947
        %2012 = vst [vmem:[%s1615 + $0x30] sm:$0xf] %v1948
        %2013 = vst [vmem:[%s1615 + $0x34] sm:$0xf] %v1949
        %2014 = vst [vmem:[%s1615 + $0x38] sm:$0xf] %v1950
        %2015 = vst [vmem:[%s1615 + $0x3c] sm:$0xf] %v1951
        %2016 = vst [vmem:[%s1615 + $0x40] sm:$0xf] %v1952
        %2017 = vst [vmem:[%s1615 + $0x44] sm:$0xf] %v1953
        %2018 = vst [vmem:[%s1615 + $0x48] sm:$0xf] %v1954
        %2019 = vst [vmem:[%s1615 + $0x4c] sm:$0xf] %v1955
        %2020 = vst [vmem:[%s1615 + $0x50] sm:$0xf] %v1956
        %2021 = vst [vmem:[%s1615 + $0x54] sm:$0xf] %v1957
        %2022 = vst [vmem:[%s1615 + $0x58] sm:$0xf] %v1958
        %2023 = vst [vmem:[%s1615 + $0x5c] sm:$0xf] %v1959
        %2024 = vst [vmem:[%s1615 + $0x60] sm:$0xf] %v1960
        %2025 = vst [vmem:[%s1615 + $0x64] sm:$0xf] %v1961
        %2026 = vst [vmem:[%s1615 + $0x68] sm:$0xf] %v1962
        %2027 = vst [vmem:[%s1615 + $0x6c] sm:$0xf] %v1963
        %2028 = vst [vmem:[%s1615 + $0x70] sm:$0xf] %v1964
        %2029 = vst [vmem:[%s1615 + $0x74] sm:$0xf] %v1965
        %2030 = vst [vmem:[%s1615 + $0x78] sm:$0xf] %v1966
        %2031 = vst [vmem:[%s1615 + $0x7c] sm:$0xf] %v1967
        %2032 = vst [vmem:[%s1615 + $0x80] sm:$0xf] %v1968
        %2033 = vst [vmem:[%s1615 + $0x84] sm:$0xf] %v1969
        %2034 = vst [vmem:[%s1615 + $0x88] sm:$0xf] %v1970
        %2035 = vst [vmem:[%s1615 + $0x8c] sm:$0xf] %v1971
        %2036 = vst [vmem:[%s1615 + $0x90] sm:$0xf] %v1972
        %2037 = vst [vmem:[%s1615 + $0x94] sm:$0xf] %v1973
        %2038 = vst [vmem:[%s1615 + $0x98] sm:$0xf] %v1974
        %2039 = vst [vmem:[%s1615 + $0x9c] sm:$0xf] %v1975
        %2040 = vst [vmem:[%s1615 + $0xa0] sm:$0xf] %v1976
        %2041 = vst [vmem:[%s1615 + $0xa4] sm:$0xf] %v1977
        %2042 = vst [vmem:[%s1615 + $0xa8] sm:$0xf] %v1978
        %2043 = vst [vmem:[%s1615 + $0xac] sm:$0xf] %v1979
        %2044 = vst [vmem:[%s1615 + $0xb0] sm:$0xf] %v1980
        %2045 = vst [vmem:[%s1615 + $0xb4] sm:$0xf] %v1981
        %2046 = vst [vmem:[%s1615 + $0xb8] sm:$0xf] %v1982
        %2047 = vst [vmem:[%s1615 + $0xbc] sm:$0xf] %v1983
        %2048 = vst [vmem:[%s1615 + $0xc0] sm:$0xf] %v1984
        %2049 = vst [vmem:[%s1615 + $0xc4] sm:$0xf] %v1985
        %2050 = vst [vmem:[%s1615 + $0xc8] sm:$0xf] %v1986
        %2051 = vst [vmem:[%s1615 + $0xcc] sm:$0xf] %v1987
        %2052 = vst [vmem:[%s1615 + $0xd0] sm:$0xf] %v1988
        %2053 = vst [vmem:[%s1615 + $0xd4] sm:$0xf] %v1989
        %2054 = vst [vmem:[%s1615 + $0xd8] sm:$0xf] %v1990
        %2055 = vst [vmem:[%s1615 + $0xdc] sm:$0xf] %v1991
        %2056 = vst [vmem:[%s1615 + $0xe0] sm:$0xf] %v1992
        %2057 = vst [vmem:[%s1615 + $0xe4] sm:$0xf] %v1993
        %2058 = vst [vmem:[%s1615 + $0xe8] sm:$0xf] %v1994
        %2059 = vst [vmem:[%s1615 + $0xec] sm:$0xf] %v1995
        %2060 = vst [vmem:[%s1615 + $0xf0] sm:$0xf] %v1996
        %2061 = vst [vmem:[%s1615 + $0xf4] sm:$0xf] %v1997
        %2062 = vst [vmem:[%s1615 + $0xf8] sm:$0xf] %v1998
        %2063 = vst [vmem:[%s1615 + $0xfc] sm:$0xf] %v1999
        %s2064 = scalar_lea.vmem %s4, 512
        %v2065 = vld [vmem:[%s2064] sm:$0xf]
        %v2066 = vld [vmem:[%s2064 + $0x4] sm:$0xf]
        %v2067 = vld [vmem:[%s2064 + $0x8] sm:$0xf]
        %v2068 = vld [vmem:[%s2064 + $0xc] sm:$0xf]
        %v2069 = vld [vmem:[%s2064 + $0x10] sm:$0xf]
        %v2070 = vld [vmem:[%s2064 + $0x14] sm:$0xf]
        %v2071 = vld [vmem:[%s2064 + $0x18] sm:$0xf]
        %v2072 = vld [vmem:[%s2064 + $0x1c] sm:$0xf]
        %v2073 = vld [vmem:[%s2064 + $0x20] sm:$0xf]
        %v2074 = vld [vmem:[%s2064 + $0x24] sm:$0xf]
        %v2075 = vld [vmem:[%s2064 + $0x28] sm:$0xf]
        %v2076 = vld [vmem:[%s2064 + $0x2c] sm:$0xf]
        %v2077 = vld [vmem:[%s2064 + $0x30] sm:$0xf]
        %v2078 = vld [vmem:[%s2064 + $0x34] sm:$0xf]
        %v2079 = vld [vmem:[%s2064 + $0x38] sm:$0xf]
        %v2080 = vld [vmem:[%s2064 + $0x3c] sm:$0xf]
        %v2081 = vld [vmem:[%s2064 + $0x40] sm:$0xf]
        %v2082 = vld [vmem:[%s2064 + $0x44] sm:$0xf]
        %v2083 = vld [vmem:[%s2064 + $0x48] sm:$0xf]
        %v2084 = vld [vmem:[%s2064 + $0x4c] sm:$0xf]
        %v2085 = vld [vmem:[%s2064 + $0x50] sm:$0xf]
        %v2086 = vld [vmem:[%s2064 + $0x54] sm:$0xf]
        %v2087 = vld [vmem:[%s2064 + $0x58] sm:$0xf]
        %v2088 = vld [vmem:[%s2064 + $0x5c] sm:$0xf]
        %v2089 = vld [vmem:[%s2064 + $0x60] sm:$0xf]
        %v2090 = vld [vmem:[%s2064 + $0x64] sm:$0xf]
        %v2091 = vld [vmem:[%s2064 + $0x68] sm:$0xf]
        %v2092 = vld [vmem:[%s2064 + $0x6c] sm:$0xf]
        %v2093 = vld [vmem:[%s2064 + $0x70] sm:$0xf]
        %v2094 = vld [vmem:[%s2064 + $0x74] sm:$0xf]
        %v2095 = vld [vmem:[%s2064 + $0x78] sm:$0xf]
        %v2096 = vld [vmem:[%s2064 + $0x7c] sm:$0xf]
        %v2097 = vld [vmem:[%s2064 + $0x80] sm:$0xf]
        %v2098 = vld [vmem:[%s2064 + $0x84] sm:$0xf]
        %v2099 = vld [vmem:[%s2064 + $0x88] sm:$0xf]
        %v2100 = vld [vmem:[%s2064 + $0x8c] sm:$0xf]
        %v2101 = vld [vmem:[%s2064 + $0x90] sm:$0xf]
        %v2102 = vld [vmem:[%s2064 + $0x94] sm:$0xf]
        %v2103 = vld [vmem:[%s2064 + $0x98] sm:$0xf]
        %v2104 = vld [vmem:[%s2064 + $0x9c] sm:$0xf]
        %v2105 = vld [vmem:[%s2064 + $0xa0] sm:$0xf]
        %v2106 = vld [vmem:[%s2064 + $0xa4] sm:$0xf]
        %v2107 = vld [vmem:[%s2064 + $0xa8] sm:$0xf]
        %v2108 = vld [vmem:[%s2064 + $0xac] sm:$0xf]
        %v2109 = vld [vmem:[%s2064 + $0xb0] sm:$0xf]
        %v2110 = vld [vmem:[%s2064 + $0xb4] sm:$0xf]
        %v2111 = vld [vmem:[%s2064 + $0xb8] sm:$0xf]
        %v2112 = vld [vmem:[%s2064 + $0xbc] sm:$0xf]
        %v2113 = vld [vmem:[%s2064 + $0xc0] sm:$0xf]
        %v2114 = vld [vmem:[%s2064 + $0xc4] sm:$0xf]
        %v2115 = vld [vmem:[%s2064 + $0xc8] sm:$0xf]
        %v2116 = vld [vmem:[%s2064 + $0xcc] sm:$0xf]
        %v2117 = vld [vmem:[%s2064 + $0xd0] sm:$0xf]
        %v2118 = vld [vmem:[%s2064 + $0xd4] sm:$0xf]
        %v2119 = vld [vmem:[%s2064 + $0xd8] sm:$0xf]
        %v2120 = vld [vmem:[%s2064 + $0xdc] sm:$0xf]
        %v2121 = vld [vmem:[%s2064 + $0xe0] sm:$0xf]
        %v2122 = vld [vmem:[%s2064 + $0xe4] sm:$0xf]
        %v2123 = vld [vmem:[%s2064 + $0xe8] sm:$0xf]
        %v2124 = vld [vmem:[%s2064 + $0xec] sm:$0xf]
        %v2125 = vld [vmem:[%s2064 + $0xf0] sm:$0xf]
        %v2126 = vld [vmem:[%s2064 + $0xf4] sm:$0xf]
        %v2127 = vld [vmem:[%s2064 + $0xf8] sm:$0xf]
        %v2128 = vld [vmem:[%s2064 + $0xfc] sm:$0xf]
        %v2129 = vunpack.c.l.bf16 %v2065
        %v2130 = vunpack.c.l.bf16 %v2066
        %v2131 = vunpack.c.l.bf16 %v2067
        %v2132 = vunpack.c.l.bf16 %v2068
        %v2133 = vunpack.c.l.bf16 %v2069
        %v2134 = vunpack.c.l.bf16 %v2070
        %v2135 = vunpack.c.l.bf16 %v2071
        %v2136 = vunpack.c.l.bf16 %v2072
        %v2137 = vunpack.c.l.bf16 %v2073
        %v2138 = vunpack.c.l.bf16 %v2074
        %v2139 = vunpack.c.l.bf16 %v2075
        %v2140 = vunpack.c.l.bf16 %v2076
        %v2141 = vunpack.c.l.bf16 %v2077
        %v2142 = vunpack.c.l.bf16 %v2078
        %v2143 = vunpack.c.l.bf16 %v2079
        %v2144 = vunpack.c.l.bf16 %v2080
        %v2145 = vunpack.c.l.bf16 %v2081
        %v2146 = vunpack.c.l.bf16 %v2082
        %v2147 = vunpack.c.l.bf16 %v2083
        %v2148 = vunpack.c.l.bf16 %v2084
        %v2149 = vunpack.c.l.bf16 %v2085
        %v2150 = vunpack.c.l.bf16 %v2086
        %v2151 = vunpack.c.l.bf16 %v2087
        %v2152 = vunpack.c.l.bf16 %v2088
        %v2153 = vunpack.c.l.bf16 %v2089
        %v2154 = vunpack.c.l.bf16 %v2090
        %v2155 = vunpack.c.l.bf16 %v2091
        %v2156 = vunpack.c.l.bf16 %v2092
        %v2157 = vunpack.c.l.bf16 %v2093
        %v2158 = vunpack.c.l.bf16 %v2094
        %v2159 = vunpack.c.l.bf16 %v2095
        %v2160 = vunpack.c.l.bf16 %v2096
        %v2161 = vunpack.c.l.bf16 %v2097
        %v2162 = vunpack.c.l.bf16 %v2098
        %v2163 = vunpack.c.l.bf16 %v2099
        %v2164 = vunpack.c.l.bf16 %v2100
        %v2165 = vunpack.c.l.bf16 %v2101
        %v2166 = vunpack.c.l.bf16 %v2102
        %v2167 = vunpack.c.l.bf16 %v2103
        %v2168 = vunpack.c.l.bf16 %v2104
        %v2169 = vunpack.c.l.bf16 %v2105
        %v2170 = vunpack.c.l.bf16 %v2106
        %v2171 = vunpack.c.l.bf16 %v2107
        %v2172 = vunpack.c.l.bf16 %v2108
        %v2173 = vunpack.c.l.bf16 %v2109
        %v2174 = vunpack.c.l.bf16 %v2110
        %v2175 = vunpack.c.l.bf16 %v2111
        %v2176 = vunpack.c.l.bf16 %v2112
        %v2177 = vunpack.c.l.bf16 %v2113
        %v2178 = vunpack.c.l.bf16 %v2114
        %v2179 = vunpack.c.l.bf16 %v2115
        %v2180 = vunpack.c.l.bf16 %v2116
        %v2181 = vunpack.c.l.bf16 %v2117
        %v2182 = vunpack.c.l.bf16 %v2118
        %v2183 = vunpack.c.l.bf16 %v2119
        %v2184 = vunpack.c.l.bf16 %v2120
        %v2185 = vunpack.c.l.bf16 %v2121
        %v2186 = vunpack.c.l.bf16 %v2122
        %v2187 = vunpack.c.l.bf16 %v2123
        %v2188 = vunpack.c.l.bf16 %v2124
        %v2189 = vunpack.c.l.bf16 %v2125
        %v2190 = vunpack.c.l.bf16 %v2126
        %v2191 = vunpack.c.l.bf16 %v2127
        %v2192 = vunpack.c.l.bf16 %v2128
        %v2193 = vmul.f32 %v2129, %v1290
        %v2194 = vmul.f32 %v2130, %v1290
        %v2195 = vmul.f32 %v2131, %v1290
        %v2196 = vmul.f32 %v2132, %v1290
        %v2197 = vmul.f32 %v2133, %v1290
        %v2198 = vmul.f32 %v2134, %v1290
        %v2199 = vmul.f32 %v2135, %v1290
        %v2200 = vmul.f32 %v2136, %v1290
        %v2201 = vmul.f32 %v2137, %v1290
        %v2202 = vmul.f32 %v2138, %v1290
        %v2203 = vmul.f32 %v2139, %v1290
        %v2204 = vmul.f32 %v2140, %v1290
        %v2205 = vmul.f32 %v2141, %v1290
        %v2206 = vmul.f32 %v2142, %v1290
        %v2207 = vmul.f32 %v2143, %v1290
        %v2208 = vmul.f32 %v2144, %v1290
        %v2209 = vmul.f32 %v2145, %v1290
        %v2210 = vmul.f32 %v2146, %v1290
        %v2211 = vmul.f32 %v2147, %v1290
        %v2212 = vmul.f32 %v2148, %v1290
        %v2213 = vmul.f32 %v2149, %v1290
        %v2214 = vmul.f32 %v2150, %v1290
        %v2215 = vmul.f32 %v2151, %v1290
        %v2216 = vmul.f32 %v2152, %v1290
        %v2217 = vmul.f32 %v2153, %v1290
        %v2218 = vmul.f32 %v2154, %v1290
        %v2219 = vmul.f32 %v2155, %v1290
        %v2220 = vmul.f32 %v2156, %v1290
        %v2221 = vmul.f32 %v2157, %v1290
        %v2222 = vmul.f32 %v2158, %v1290
        %v2223 = vmul.f32 %v2159, %v1290
        %v2224 = vmul.f32 %v2160, %v1290
        %v2225 = vmul.f32 %v2161, %v1290
        %v2226 = vmul.f32 %v2162, %v1290
        %v2227 = vmul.f32 %v2163, %v1290
        %v2228 = vmul.f32 %v2164, %v1290
        %v2229 = vmul.f32 %v2165, %v1290
        %v2230 = vmul.f32 %v2166, %v1290
        %v2231 = vmul.f32 %v2167, %v1290
        %v2232 = vmul.f32 %v2168, %v1290
        %v2233 = vmul.f32 %v2169, %v1290
        %v2234 = vmul.f32 %v2170, %v1290
        %v2235 = vmul.f32 %v2171, %v1290
        %v2236 = vmul.f32 %v2172, %v1290
        %v2237 = vmul.f32 %v2173, %v1290
        %v2238 = vmul.f32 %v2174, %v1290
        %v2239 = vmul.f32 %v2175, %v1290
        %v2240 = vmul.f32 %v2176, %v1290
        %v2241 = vmul.f32 %v2177, %v1290
        %v2242 = vmul.f32 %v2178, %v1290
        %v2243 = vmul.f32 %v2179, %v1290
        %v2244 = vmul.f32 %v2180, %v1290
        %v2245 = vmul.f32 %v2181, %v1290
        %v2246 = vmul.f32 %v2182, %v1290
        %v2247 = vmul.f32 %v2183, %v1290
        %v2248 = vmul.f32 %v2184, %v1290
        %v2249 = vmul.f32 %v2185, %v1290
        %v2250 = vmul.f32 %v2186, %v1290
        %v2251 = vmul.f32 %v2187, %v1290
        %v2252 = vmul.f32 %v2188, %v1290
        %v2253 = vmul.f32 %v2189, %v1290
        %v2254 = vmul.f32 %v2190, %v1290
        %v2255 = vmul.f32 %v2191, %v1290
        %v2256 = vmul.f32 %v2192, %v1290
        %v2257 = vadd.f32 %v2193, %v1357
        %v2258 = vadd.f32 %v2194, %v1357
        %v2259 = vadd.f32 %v2195, %v1357
        %v2260 = vadd.f32 %v2196, %v1357
        %v2261 = vadd.f32 %v2197, %v1357
        %v2262 = vadd.f32 %v2198, %v1357
        %v2263 = vadd.f32 %v2199, %v1357
        %v2264 = vadd.f32 %v2200, %v1357
        %v2265 = vadd.f32 %v2201, %v1357
        %v2266 = vadd.f32 %v2202, %v1357
        %v2267 = vadd.f32 %v2203, %v1357
        %v2268 = vadd.f32 %v2204, %v1357
        %v2269 = vadd.f32 %v2205, %v1357
        %v2270 = vadd.f32 %v2206, %v1357
        %v2271 = vadd.f32 %v2207, %v1357
        %v2272 = vadd.f32 %v2208, %v1357
        %v2273 = vadd.f32 %v2209, %v1357
        %v2274 = vadd.f32 %v2210, %v1357
        %v2275 = vadd.f32 %v2211, %v1357
        %v2276 = vadd.f32 %v2212, %v1357
        %v2277 = vadd.f32 %v2213, %v1357
        %v2278 = vadd.f32 %v2214, %v1357
        %v2279 = vadd.f32 %v2215, %v1357
        %v2280 = vadd.f32 %v2216, %v1357
        %v2281 = vadd.f32 %v2217, %v1357
        %v2282 = vadd.f32 %v2218, %v1357
        %v2283 = vadd.f32 %v2219, %v1357
        %v2284 = vadd.f32 %v2220, %v1357
        %v2285 = vadd.f32 %v2221, %v1357
        %v2286 = vadd.f32 %v2222, %v1357
        %v2287 = vadd.f32 %v2223, %v1357
        %v2288 = vadd.f32 %v2224, %v1357
        %v2289 = vadd.f32 %v2225, %v1357
        %v2290 = vadd.f32 %v2226, %v1357
        %v2291 = vadd.f32 %v2227, %v1357
        %v2292 = vadd.f32 %v2228, %v1357
        %v2293 = vadd.f32 %v2229, %v1357
        %v2294 = vadd.f32 %v2230, %v1357
        %v2295 = vadd.f32 %v2231, %v1357
        %v2296 = vadd.f32 %v2232, %v1357
        %v2297 = vadd.f32 %v2233, %v1357
        %v2298 = vadd.f32 %v2234, %v1357
        %v2299 = vadd.f32 %v2235, %v1357
        %v2300 = vadd.f32 %v2236, %v1357
        %v2301 = vadd.f32 %v2237, %v1357
        %v2302 = vadd.f32 %v2238, %v1357
        %v2303 = vadd.f32 %v2239, %v1357
        %v2304 = vadd.f32 %v2240, %v1357
        %v2305 = vadd.f32 %v2241, %v1357
        %v2306 = vadd.f32 %v2242, %v1357
        %v2307 = vadd.f32 %v2243, %v1357
        %v2308 = vadd.f32 %v2244, %v1357
        %v2309 = vadd.f32 %v2245, %v1357
        %v2310 = vadd.f32 %v2246, %v1357
        %v2311 = vadd.f32 %v2247, %v1357
        %v2312 = vadd.f32 %v2248, %v1357
        %v2313 = vadd.f32 %v2249, %v1357
        %v2314 = vadd.f32 %v2250, %v1357
        %v2315 = vadd.f32 %v2251, %v1357
        %v2316 = vadd.f32 %v2252, %v1357
        %v2317 = vadd.f32 %v2253, %v1357
        %v2318 = vadd.f32 %v2254, %v1357
        %v2319 = vadd.f32 %v2255, %v1357
        %v2320 = vadd.f32 %v2256, %v1357
        %v2321 = vmax.f32 %v2257, 0.0
        %v2322 = vmax.f32 %v2258, 0.0
        %v2323 = vmax.f32 %v2259, 0.0
        %v2324 = vmax.f32 %v2260, 0.0
        %v2325 = vmax.f32 %v2261, 0.0
        %v2326 = vmax.f32 %v2262, 0.0
        %v2327 = vmax.f32 %v2263, 0.0
        %v2328 = vmax.f32 %v2264, 0.0
        %v2329 = vmax.f32 %v2265, 0.0
        %v2330 = vmax.f32 %v2266, 0.0
        %v2331 = vmax.f32 %v2267, 0.0
        %v2332 = vmax.f32 %v2268, 0.0
        %v2333 = vmax.f32 %v2269, 0.0
        %v2334 = vmax.f32 %v2270, 0.0
        %v2335 = vmax.f32 %v2271, 0.0
        %v2336 = vmax.f32 %v2272, 0.0
        %v2337 = vmax.f32 %v2273, 0.0
        %v2338 = vmax.f32 %v2274, 0.0
        %v2339 = vmax.f32 %v2275, 0.0
        %v2340 = vmax.f32 %v2276, 0.0
        %v2341 = vmax.f32 %v2277, 0.0
        %v2342 = vmax.f32 %v2278, 0.0
        %v2343 = vmax.f32 %v2279, 0.0
        %v2344 = vmax.f32 %v2280, 0.0
        %v2345 = vmax.f32 %v2281, 0.0
        %v2346 = vmax.f32 %v2282, 0.0
        %v2347 = vmax.f32 %v2283, 0.0
        %v2348 = vmax.f32 %v2284, 0.0
        %v2349 = vmax.f32 %v2285, 0.0
        %v2350 = vmax.f32 %v2286, 0.0
        %v2351 = vmax.f32 %v2287, 0.0
        %v2352 = vmax.f32 %v2288, 0.0
        %v2353 = vmax.f32 %v2289, 0.0
        %v2354 = vmax.f32 %v2290, 0.0
        %v2355 = vmax.f32 %v2291, 0.0
        %v2356 = vmax.f32 %v2292, 0.0
        %v2357 = vmax.f32 %v2293, 0.0
        %v2358 = vmax.f32 %v2294, 0.0
        %v2359 = vmax.f32 %v2295, 0.0
        %v2360 = vmax.f32 %v2296, 0.0
        %v2361 = vmax.f32 %v2297, 0.0
        %v2362 = vmax.f32 %v2298, 0.0
        %v2363 = vmax.f32 %v2299, 0.0
        %v2364 = vmax.f32 %v2300, 0.0
        %v2365 = vmax.f32 %v2301, 0.0
        %v2366 = vmax.f32 %v2302, 0.0
        %v2367 = vmax.f32 %v2303, 0.0
        %v2368 = vmax.f32 %v2304, 0.0
        %v2369 = vmax.f32 %v2305, 0.0
        %v2370 = vmax.f32 %v2306, 0.0
        %v2371 = vmax.f32 %v2307, 0.0
        %v2372 = vmax.f32 %v2308, 0.0
        %v2373 = vmax.f32 %v2309, 0.0
        %v2374 = vmax.f32 %v2310, 0.0
        %v2375 = vmax.f32 %v2311, 0.0
        %v2376 = vmax.f32 %v2312, 0.0
        %v2377 = vmax.f32 %v2313, 0.0
        %v2378 = vmax.f32 %v2314, 0.0
        %v2379 = vmax.f32 %v2315, 0.0
        %v2380 = vmax.f32 %v2316, 0.0
        %v2381 = vmax.f32 %v2317, 0.0
        %v2382 = vmax.f32 %v2318, 0.0
        %v2383 = vmax.f32 %v2319, 0.0
        %v2384 = vmax.f32 %v2320, 0.0
        %v2385 = vpack.c.bf16 %v2321, %v2321
        %v2386 = vpack.c.bf16 %v2322, %v2322
        %v2387 = vpack.c.bf16 %v2323, %v2323
        %v2388 = vpack.c.bf16 %v2324, %v2324
        %v2389 = vpack.c.bf16 %v2325, %v2325
        %v2390 = vpack.c.bf16 %v2326, %v2326
        %v2391 = vpack.c.bf16 %v2327, %v2327
        %v2392 = vpack.c.bf16 %v2328, %v2328
        %v2393 = vpack.c.bf16 %v2329, %v2329
        %v2394 = vpack.c.bf16 %v2330, %v2330
        %v2395 = vpack.c.bf16 %v2331, %v2331
        %v2396 = vpack.c.bf16 %v2332, %v2332
        %v2397 = vpack.c.bf16 %v2333, %v2333
        %v2398 = vpack.c.bf16 %v2334, %v2334
        %v2399 = vpack.c.bf16 %v2335, %v2335
        %v2400 = vpack.c.bf16 %v2336, %v2336
        %v2401 = vpack.c.bf16 %v2337, %v2337
        %v2402 = vpack.c.bf16 %v2338, %v2338
        %v2403 = vpack.c.bf16 %v2339, %v2339
        %v2404 = vpack.c.bf16 %v2340, %v2340
        %v2405 = vpack.c.bf16 %v2341, %v2341
        %v2406 = vpack.c.bf16 %v2342, %v2342
        %v2407 = vpack.c.bf16 %v2343, %v2343
        %v2408 = vpack.c.bf16 %v2344, %v2344
        %v2409 = vpack.c.bf16 %v2345, %v2345
        %v2410 = vpack.c.bf16 %v2346, %v2346
        %v2411 = vpack.c.bf16 %v2347, %v2347
        %v2412 = vpack.c.bf16 %v2348, %v2348
        %v2413 = vpack.c.bf16 %v2349, %v2349
        %v2414 = vpack.c.bf16 %v2350, %v2350
        %v2415 = vpack.c.bf16 %v2351, %v2351
        %v2416 = vpack.c.bf16 %v2352, %v2352
        %v2417 = vpack.c.bf16 %v2353, %v2353
        %v2418 = vpack.c.bf16 %v2354, %v2354
        %v2419 = vpack.c.bf16 %v2355, %v2355
        %v2420 = vpack.c.bf16 %v2356, %v2356
        %v2421 = vpack.c.bf16 %v2357, %v2357
        %v2422 = vpack.c.bf16 %v2358, %v2358
        %v2423 = vpack.c.bf16 %v2359, %v2359
        %v2424 = vpack.c.bf16 %v2360, %v2360
        %v2425 = vpack.c.bf16 %v2361, %v2361
        %v2426 = vpack.c.bf16 %v2362, %v2362
        %v2427 = vpack.c.bf16 %v2363, %v2363
        %v2428 = vpack.c.bf16 %v2364, %v2364
        %v2429 = vpack.c.bf16 %v2365, %v2365
        %v2430 = vpack.c.bf16 %v2366, %v2366
        %v2431 = vpack.c.bf16 %v2367, %v2367
        %v2432 = vpack.c.bf16 %v2368, %v2368
        %v2433 = vpack.c.bf16 %v2369, %v2369
        %v2434 = vpack.c.bf16 %v2370, %v2370
        %v2435 = vpack.c.bf16 %v2371, %v2371
        %v2436 = vpack.c.bf16 %v2372, %v2372
        %v2437 = vpack.c.bf16 %v2373, %v2373
        %v2438 = vpack.c.bf16 %v2374, %v2374
        %v2439 = vpack.c.bf16 %v2375, %v2375
        %v2440 = vpack.c.bf16 %v2376, %v2376
        %v2441 = vpack.c.bf16 %v2377, %v2377
        %v2442 = vpack.c.bf16 %v2378, %v2378
        %v2443 = vpack.c.bf16 %v2379, %v2379
        %v2444 = vpack.c.bf16 %v2380, %v2380
        %v2445 = vpack.c.bf16 %v2381, %v2381
        %v2446 = vpack.c.bf16 %v2382, %v2382
        %v2447 = vpack.c.bf16 %v2383, %v2383
        %v2448 = vpack.c.bf16 %v2384, %v2384
        %2449 = vst [vmem:[%s2064] sm:$0xf] %v2385
        %2450 = vst [vmem:[%s2064 + $0x4] sm:$0xf] %v2386
        %2451 = vst [vmem:[%s2064 + $0x8] sm:$0xf] %v2387
        %2452 = vst [vmem:[%s2064 + $0xc] sm:$0xf] %v2388
        %2453 = vst [vmem:[%s2064 + $0x10] sm:$0xf] %v2389
        %2454 = vst [vmem:[%s2064 + $0x14] sm:$0xf] %v2390
        %2455 = vst [vmem:[%s2064 + $0x18] sm:$0xf] %v2391
        %2456 = vst [vmem:[%s2064 + $0x1c] sm:$0xf] %v2392
        %2457 = vst [vmem:[%s2064 + $0x20] sm:$0xf] %v2393
        %2458 = vst [vmem:[%s2064 + $0x24] sm:$0xf] %v2394
        %2459 = vst [vmem:[%s2064 + $0x28] sm:$0xf] %v2395
        %2460 = vst [vmem:[%s2064 + $0x2c] sm:$0xf] %v2396
        %2461 = vst [vmem:[%s2064 + $0x30] sm:$0xf] %v2397
        %2462 = vst [vmem:[%s2064 + $0x34] sm:$0xf] %v2398
        %2463 = vst [vmem:[%s2064 + $0x38] sm:$0xf] %v2399
        %2464 = vst [vmem:[%s2064 + $0x3c] sm:$0xf] %v2400
        %2465 = vst [vmem:[%s2064 + $0x40] sm:$0xf] %v2401
        %2466 = vst [vmem:[%s2064 + $0x44] sm:$0xf] %v2402
        %2467 = vst [vmem:[%s2064 + $0x48] sm:$0xf] %v2403
        %2468 = vst [vmem:[%s2064 + $0x4c] sm:$0xf] %v2404
        %2469 = vst [vmem:[%s2064 + $0x50] sm:$0xf] %v2405
        %2470 = vst [vmem:[%s2064 + $0x54] sm:$0xf] %v2406
        %2471 = vst [vmem:[%s2064 + $0x58] sm:$0xf] %v2407
        %2472 = vst [vmem:[%s2064 + $0x5c] sm:$0xf] %v2408
        %2473 = vst [vmem:[%s2064 + $0x60] sm:$0xf] %v2409
        %2474 = vst [vmem:[%s2064 + $0x64] sm:$0xf] %v2410
        %2475 = vst [vmem:[%s2064 + $0x68] sm:$0xf] %v2411
        %2476 = vst [vmem:[%s2064 + $0x6c] sm:$0xf] %v2412
        %2477 = vst [vmem:[%s2064 + $0x70] sm:$0xf] %v2413
        %2478 = vst [vmem:[%s2064 + $0x74] sm:$0xf] %v2414
        %2479 = vst [vmem:[%s2064 + $0x78] sm:$0xf] %v2415
        %2480 = vst [vmem:[%s2064 + $0x7c] sm:$0xf] %v2416
        %2481 = vst [vmem:[%s2064 + $0x80] sm:$0xf] %v2417
        %2482 = vst [vmem:[%s2064 + $0x84] sm:$0xf] %v2418
        %2483 = vst [vmem:[%s2064 + $0x88] sm:$0xf] %v2419
        %2484 = vst [vmem:[%s2064 + $0x8c] sm:$0xf] %v2420
        %2485 = vst [vmem:[%s2064 + $0x90] sm:$0xf] %v2421
        %2486 = vst [vmem:[%s2064 + $0x94] sm:$0xf] %v2422
        %2487 = vst [vmem:[%s2064 + $0x98] sm:$0xf] %v2423
        %2488 = vst [vmem:[%s2064 + $0x9c] sm:$0xf] %v2424
        %2489 = vst [vmem:[%s2064 + $0xa0] sm:$0xf] %v2425
        %2490 = vst [vmem:[%s2064 + $0xa4] sm:$0xf] %v2426
        %2491 = vst [vmem:[%s2064 + $0xa8] sm:$0xf] %v2427
        %2492 = vst [vmem:[%s2064 + $0xac] sm:$0xf] %v2428
        %2493 = vst [vmem:[%s2064 + $0xb0] sm:$0xf] %v2429
        %2494 = vst [vmem:[%s2064 + $0xb4] sm:$0xf] %v2430
        %2495 = vst [vmem:[%s2064 + $0xb8] sm:$0xf] %v2431
        %2496 = vst [vmem:[%s2064 + $0xbc] sm:$0xf] %v2432
        %2497 = vst [vmem:[%s2064 + $0xc0] sm:$0xf] %v2433
        %2498 = vst [vmem:[%s2064 + $0xc4] sm:$0xf] %v2434
        %2499 = vst [vmem:[%s2064 + $0xc8] sm:$0xf] %v2435
        %2500 = vst [vmem:[%s2064 + $0xcc] sm:$0xf] %v2436
        %2501 = vst [vmem:[%s2064 + $0xd0] sm:$0xf] %v2437
        %2502 = vst [vmem:[%s2064 + $0xd4] sm:$0xf] %v2438
        %2503 = vst [vmem:[%s2064 + $0xd8] sm:$0xf] %v2439
        %2504 = vst [vmem:[%s2064 + $0xdc] sm:$0xf] %v2440
        %2505 = vst [vmem:[%s2064 + $0xe0] sm:$0xf] %v2441
        %2506 = vst [vmem:[%s2064 + $0xe4] sm:$0xf] %v2442
        %2507 = vst [vmem:[%s2064 + $0xe8] sm:$0xf] %v2443
        %2508 = vst [vmem:[%s2064 + $0xec] sm:$0xf] %v2444
        %2509 = vst [vmem:[%s2064 + $0xf0] sm:$0xf] %v2445
        %2510 = vst [vmem:[%s2064 + $0xf4] sm:$0xf] %v2446
        %2511 = vst [vmem:[%s2064 + $0xf8] sm:$0xf] %v2447
        %2512 = vst [vmem:[%s2064 + $0xfc] sm:$0xf] %v2448
        %s2513 = scalar_lea.vmem %s4, 768
        %v2514 = vld [vmem:[%s2513] sm:$0xf]
        %v2515 = vld [vmem:[%s2513 + $0x4] sm:$0xf]
        %v2516 = vld [vmem:[%s2513 + $0x8] sm:$0xf]
        %v2517 = vld [vmem:[%s2513 + $0xc] sm:$0xf]
        %v2518 = vld [vmem:[%s2513 + $0x10] sm:$0xf]
        %v2519 = vld [vmem:[%s2513 + $0x14] sm:$0xf]
        %v2520 = vld [vmem:[%s2513 + $0x18] sm:$0xf]
        %v2521 = vld [vmem:[%s2513 + $0x1c] sm:$0xf]
        %v2522 = vld [vmem:[%s2513 + $0x20] sm:$0xf]
        %v2523 = vld [vmem:[%s2513 + $0x24] sm:$0xf]
        %v2524 = vld [vmem:[%s2513 + $0x28] sm:$0xf]
        %v2525 = vld [vmem:[%s2513 + $0x2c] sm:$0xf]
        %v2526 = vld [vmem:[%s2513 + $0x30] sm:$0xf]
        %v2527 = vld [vmem:[%s2513 + $0x34] sm:$0xf]
        %v2528 = vld [vmem:[%s2513 + $0x38] sm:$0xf]
        %v2529 = vld [vmem:[%s2513 + $0x3c] sm:$0xf]
        %v2530 = vld [vmem:[%s2513 + $0x40] sm:$0xf]
        %v2531 = vld [vmem:[%s2513 + $0x44] sm:$0xf]
        %v2532 = vld [vmem:[%s2513 + $0x48] sm:$0xf]
        %v2533 = vld [vmem:[%s2513 + $0x4c] sm:$0xf]
        %v2534 = vld [vmem:[%s2513 + $0x50] sm:$0xf]
        %v2535 = vld [vmem:[%s2513 + $0x54] sm:$0xf]
        %v2536 = vld [vmem:[%s2513 + $0x58] sm:$0xf]
        %v2537 = vld [vmem:[%s2513 + $0x5c] sm:$0xf]
        %v2538 = vld [vmem:[%s2513 + $0x60] sm:$0xf]
        %v2539 = vld [vmem:[%s2513 + $0x64] sm:$0xf]
        %v2540 = vld [vmem:[%s2513 + $0x68] sm:$0xf]
        %v2541 = vld [vmem:[%s2513 + $0x6c] sm:$0xf]
        %v2542 = vld [vmem:[%s2513 + $0x70] sm:$0xf]
        %v2543 = vld [vmem:[%s2513 + $0x74] sm:$0xf]
        %v2544 = vld [vmem:[%s2513 + $0x78] sm:$0xf]
        %v2545 = vld [vmem:[%s2513 + $0x7c] sm:$0xf]
        %v2546 = vld [vmem:[%s2513 + $0x80] sm:$0xf]
        %v2547 = vld [vmem:[%s2513 + $0x84] sm:$0xf]
        %v2548 = vld [vmem:[%s2513 + $0x88] sm:$0xf]
        %v2549 = vld [vmem:[%s2513 + $0x8c] sm:$0xf]
        %v2550 = vld [vmem:[%s2513 + $0x90] sm:$0xf]
        %v2551 = vld [vmem:[%s2513 + $0x94] sm:$0xf]
        %v2552 = vld [vmem:[%s2513 + $0x98] sm:$0xf]
        %v2553 = vld [vmem:[%s2513 + $0x9c] sm:$0xf]
        %v2554 = vld [vmem:[%s2513 + $0xa0] sm:$0xf]
        %v2555 = vld [vmem:[%s2513 + $0xa4] sm:$0xf]
        %v2556 = vld [vmem:[%s2513 + $0xa8] sm:$0xf]
        %v2557 = vld [vmem:[%s2513 + $0xac] sm:$0xf]
        %v2558 = vld [vmem:[%s2513 + $0xb0] sm:$0xf]
        %v2559 = vld [vmem:[%s2513 + $0xb4] sm:$0xf]
        %v2560 = vld [vmem:[%s2513 + $0xb8] sm:$0xf]
        %v2561 = vld [vmem:[%s2513 + $0xbc] sm:$0xf]
        %v2562 = vld [vmem:[%s2513 + $0xc0] sm:$0xf]
        %v2563 = vld [vmem:[%s2513 + $0xc4] sm:$0xf]
        %v2564 = vld [vmem:[%s2513 + $0xc8] sm:$0xf]
        %v2565 = vld [vmem:[%s2513 + $0xcc] sm:$0xf]
        %v2566 = vld [vmem:[%s2513 + $0xd0] sm:$0xf]
        %v2567 = vld [vmem:[%s2513 + $0xd4] sm:$0xf]
        %v2568 = vld [vmem:[%s2513 + $0xd8] sm:$0xf]
        %v2569 = vld [vmem:[%s2513 + $0xdc] sm:$0xf]
        %v2570 = vld [vmem:[%s2513 + $0xe0] sm:$0xf]
        %v2571 = vld [vmem:[%s2513 + $0xe4] sm:$0xf]
        %v2572 = vld [vmem:[%s2513 + $0xe8] sm:$0xf]
        %v2573 = vld [vmem:[%s2513 + $0xec] sm:$0xf]
        %v2574 = vld [vmem:[%s2513 + $0xf0] sm:$0xf]
        %v2575 = vld [vmem:[%s2513 + $0xf4] sm:$0xf]
        %v2576 = vld [vmem:[%s2513 + $0xf8] sm:$0xf]
        %v2577 = vld [vmem:[%s2513 + $0xfc] sm:$0xf]
        %v2578 = vunpack.c.l.bf16 %v2514
        %v2579 = vunpack.c.l.bf16 %v2515
        %v2580 = vunpack.c.l.bf16 %v2516
        %v2581 = vunpack.c.l.bf16 %v2517
        %v2582 = vunpack.c.l.bf16 %v2518
        %v2583 = vunpack.c.l.bf16 %v2519
        %v2584 = vunpack.c.l.bf16 %v2520
        %v2585 = vunpack.c.l.bf16 %v2521
        %v2586 = vunpack.c.l.bf16 %v2522
        %v2587 = vunpack.c.l.bf16 %v2523
        %v2588 = vunpack.c.l.bf16 %v2524
        %v2589 = vunpack.c.l.bf16 %v2525
        %v2590 = vunpack.c.l.bf16 %v2526
        %v2591 = vunpack.c.l.bf16 %v2527
        %v2592 = vunpack.c.l.bf16 %v2528
        %v2593 = vunpack.c.l.bf16 %v2529
        %v2594 = vunpack.c.l.bf16 %v2530
        %v2595 = vunpack.c.l.bf16 %v2531
        %v2596 = vunpack.c.l.bf16 %v2532
        %v2597 = vunpack.c.l.bf16 %v2533
        %v2598 = vunpack.c.l.bf16 %v2534
        %v2599 = vunpack.c.l.bf16 %v2535
        %v2600 = vunpack.c.l.bf16 %v2536
        %v2601 = vunpack.c.l.bf16 %v2537
        %v2602 = vunpack.c.l.bf16 %v2538
        %v2603 = vunpack.c.l.bf16 %v2539
        %v2604 = vunpack.c.l.bf16 %v2540
        %v2605 = vunpack.c.l.bf16 %v2541
        %v2606 = vunpack.c.l.bf16 %v2542
        %v2607 = vunpack.c.l.bf16 %v2543
        %v2608 = vunpack.c.l.bf16 %v2544
        %v2609 = vunpack.c.l.bf16 %v2545
        %v2610 = vunpack.c.l.bf16 %v2546
        %v2611 = vunpack.c.l.bf16 %v2547
        %v2612 = vunpack.c.l.bf16 %v2548
        %v2613 = vunpack.c.l.bf16 %v2549
        %v2614 = vunpack.c.l.bf16 %v2550
        %v2615 = vunpack.c.l.bf16 %v2551
        %v2616 = vunpack.c.l.bf16 %v2552
        %v2617 = vunpack.c.l.bf16 %v2553
        %v2618 = vunpack.c.l.bf16 %v2554
        %v2619 = vunpack.c.l.bf16 %v2555
        %v2620 = vunpack.c.l.bf16 %v2556
        %v2621 = vunpack.c.l.bf16 %v2557
        %v2622 = vunpack.c.l.bf16 %v2558
        %v2623 = vunpack.c.l.bf16 %v2559
        %v2624 = vunpack.c.l.bf16 %v2560
        %v2625 = vunpack.c.l.bf16 %v2561
        %v2626 = vunpack.c.l.bf16 %v2562
        %v2627 = vunpack.c.l.bf16 %v2563
        %v2628 = vunpack.c.l.bf16 %v2564
        %v2629 = vunpack.c.l.bf16 %v2565
        %v2630 = vunpack.c.l.bf16 %v2566
        %v2631 = vunpack.c.l.bf16 %v2567
        %v2632 = vunpack.c.l.bf16 %v2568
        %v2633 = vunpack.c.l.bf16 %v2569
        %v2634 = vunpack.c.l.bf16 %v2570
        %v2635 = vunpack.c.l.bf16 %v2571
        %v2636 = vunpack.c.l.bf16 %v2572
        %v2637 = vunpack.c.l.bf16 %v2573
        %v2638 = vunpack.c.l.bf16 %v2574
        %v2639 = vunpack.c.l.bf16 %v2575
        %v2640 = vunpack.c.l.bf16 %v2576
        %v2641 = vunpack.c.l.bf16 %v2577
        %v2642 = vmul.f32 %v2578, %v1290
        %v2643 = vmul.f32 %v2579, %v1290
        %v2644 = vmul.f32 %v2580, %v1290
        %v2645 = vmul.f32 %v2581, %v1290
        %v2646 = vmul.f32 %v2582, %v1290
        %v2647 = vmul.f32 %v2583, %v1290
        %v2648 = vmul.f32 %v2584, %v1290
        %v2649 = vmul.f32 %v2585, %v1290
        %v2650 = vmul.f32 %v2586, %v1290
        %v2651 = vmul.f32 %v2587, %v1290
        %v2652 = vmul.f32 %v2588, %v1290
        %v2653 = vmul.f32 %v2589, %v1290
        %v2654 = vmul.f32 %v2590, %v1290
        %v2655 = vmul.f32 %v2591, %v1290
        %v2656 = vmul.f32 %v2592, %v1290
        %v2657 = vmul.f32 %v2593, %v1290
        %v2658 = vmul.f32 %v2594, %v1290
        %v2659 = vmul.f32 %v2595, %v1290
        %v2660 = vmul.f32 %v2596, %v1290
        %v2661 = vmul.f32 %v2597, %v1290
        %v2662 = vmul.f32 %v2598, %v1290
        %v2663 = vmul.f32 %v2599, %v1290
        %v2664 = vmul.f32 %v2600, %v1290
        %v2665 = vmul.f32 %v2601, %v1290
        %v2666 = vmul.f32 %v2602, %v1290
        %v2667 = vmul.f32 %v2603, %v1290
        %v2668 = vmul.f32 %v2604, %v1290
        %v2669 = vmul.f32 %v2605, %v1290
        %v2670 = vmul.f32 %v2606, %v1290
        %v2671 = vmul.f32 %v2607, %v1290
        %v2672 = vmul.f32 %v2608, %v1290
        %v2673 = vmul.f32 %v2609, %v1290
        %v2674 = vmul.f32 %v2610, %v1290
        %v2675 = vmul.f32 %v2611, %v1290
        %v2676 = vmul.f32 %v2612, %v1290
        %v2677 = vmul.f32 %v2613, %v1290
        %v2678 = vmul.f32 %v2614, %v1290
        %v2679 = vmul.f32 %v2615, %v1290
        %v2680 = vmul.f32 %v2616, %v1290
        %v2681 = vmul.f32 %v2617, %v1290
        %v2682 = vmul.f32 %v2618, %v1290
        %v2683 = vmul.f32 %v2619, %v1290
        %v2684 = vmul.f32 %v2620, %v1290
        %v2685 = vmul.f32 %v2621, %v1290
        %v2686 = vmul.f32 %v2622, %v1290
        %v2687 = vmul.f32 %v2623, %v1290
        %v2688 = vmul.f32 %v2624, %v1290
        %v2689 = vmul.f32 %v2625, %v1290
        %v2690 = vmul.f32 %v2626, %v1290
        %v2691 = vmul.f32 %v2627, %v1290
        %v2692 = vmul.f32 %v2628, %v1290
        %v2693 = vmul.f32 %v2629, %v1290
        %v2694 = vmul.f32 %v2630, %v1290
        %v2695 = vmul.f32 %v2631, %v1290
        %v2696 = vmul.f32 %v2632, %v1290
        %v2697 = vmul.f32 %v2633, %v1290
        %v2698 = vmul.f32 %v2634, %v1290
        %v2699 = vmul.f32 %v2635, %v1290
        %v2700 = vmul.f32 %v2636, %v1290
        %v2701 = vmul.f32 %v2637, %v1290
        %v2702 = vmul.f32 %v2638, %v1290
        %v2703 = vmul.f32 %v2639, %v1290
        %v2704 = vmul.f32 %v2640, %v1290
        %v2705 = vmul.f32 %v2641, %v1290
        %v2706 = vadd.f32 %v2642, %v1357
        %v2707 = vadd.f32 %v2643, %v1357
        %v2708 = vadd.f32 %v2644, %v1357
        %v2709 = vadd.f32 %v2645, %v1357
        %v2710 = vadd.f32 %v2646, %v1357
        %v2711 = vadd.f32 %v2647, %v1357
        %v2712 = vadd.f32 %v2648, %v1357
        %v2713 = vadd.f32 %v2649, %v1357
        %v2714 = vadd.f32 %v2650, %v1357
        %v2715 = vadd.f32 %v2651, %v1357
        %v2716 = vadd.f32 %v2652, %v1357
        %v2717 = vadd.f32 %v2653, %v1357
        %v2718 = vadd.f32 %v2654, %v1357
        %v2719 = vadd.f32 %v2655, %v1357
        %v2720 = vadd.f32 %v2656, %v1357
        %v2721 = vadd.f32 %v2657, %v1357
        %v2722 = vadd.f32 %v2658, %v1357
        %v2723 = vadd.f32 %v2659, %v1357
        %v2724 = vadd.f32 %v2660, %v1357
        %v2725 = vadd.f32 %v2661, %v1357
        %v2726 = vadd.f32 %v2662, %v1357
        %v2727 = vadd.f32 %v2663, %v1357
        %v2728 = vadd.f32 %v2664, %v1357
        %v2729 = vadd.f32 %v2665, %v1357
        %v2730 = vadd.f32 %v2666, %v1357
        %v2731 = vadd.f32 %v2667, %v1357
        %v2732 = vadd.f32 %v2668, %v1357
        %v2733 = vadd.f32 %v2669, %v1357
        %v2734 = vadd.f32 %v2670, %v1357
        %v2735 = vadd.f32 %v2671, %v1357
        %v2736 = vadd.f32 %v2672, %v1357
        %v2737 = vadd.f32 %v2673, %v1357
        %v2738 = vadd.f32 %v2674, %v1357
        %v2739 = vadd.f32 %v2675, %v1357
        %v2740 = vadd.f32 %v2676, %v1357
        %v2741 = vadd.f32 %v2677, %v1357
        %v2742 = vadd.f32 %v2678, %v1357
        %v2743 = vadd.f32 %v2679, %v1357
        %v2744 = vadd.f32 %v2680, %v1357
        %v2745 = vadd.f32 %v2681, %v1357
        %v2746 = vadd.f32 %v2682, %v1357
        %v2747 = vadd.f32 %v2683, %v1357
        %v2748 = vadd.f32 %v2684, %v1357
        %v2749 = vadd.f32 %v2685, %v1357
        %v2750 = vadd.f32 %v2686, %v1357
        %v2751 = vadd.f32 %v2687, %v1357
        %v2752 = vadd.f32 %v2688, %v1357
        %v2753 = vadd.f32 %v2689, %v1357
        %v2754 = vadd.f32 %v2690, %v1357
        %v2755 = vadd.f32 %v2691, %v1357
        %v2756 = vadd.f32 %v2692, %v1357
        %v2757 = vadd.f32 %v2693, %v1357
        %v2758 = vadd.f32 %v2694, %v1357
        %v2759 = vadd.f32 %v2695, %v1357
        %v2760 = vadd.f32 %v2696, %v1357
        %v2761 = vadd.f32 %v2697, %v1357
        %v2762 = vadd.f32 %v2698, %v1357
        %v2763 = vadd.f32 %v2699, %v1357
        %v2764 = vadd.f32 %v2700, %v1357
        %v2765 = vadd.f32 %v2701, %v1357
        %v2766 = vadd.f32 %v2702, %v1357
        %v2767 = vadd.f32 %v2703, %v1357
        %v2768 = vadd.f32 %v2704, %v1357
        %v2769 = vadd.f32 %v2705, %v1357
        %v2770 = vmax.f32 %v2706, 0.0
        %v2771 = vmax.f32 %v2707, 0.0
        %v2772 = vmax.f32 %v2708, 0.0
        %v2773 = vmax.f32 %v2709, 0.0
        %v2774 = vmax.f32 %v2710, 0.0
        %v2775 = vmax.f32 %v2711, 0.0
        %v2776 = vmax.f32 %v2712, 0.0
        %v2777 = vmax.f32 %v2713, 0.0
        %v2778 = vmax.f32 %v2714, 0.0
        %v2779 = vmax.f32 %v2715, 0.0
        %v2780 = vmax.f32 %v2716, 0.0
        %v2781 = vmax.f32 %v2717, 0.0
        %v2782 = vmax.f32 %v2718, 0.0
        %v2783 = vmax.f32 %v2719, 0.0
        %v2784 = vmax.f32 %v2720, 0.0
        %v2785 = vmax.f32 %v2721, 0.0
        %v2786 = vmax.f32 %v2722, 0.0
        %v2787 = vmax.f32 %v2723, 0.0
        %v2788 = vmax.f32 %v2724, 0.0
        %v2789 = vmax.f32 %v2725, 0.0
        %v2790 = vmax.f32 %v2726, 0.0
        %v2791 = vmax.f32 %v2727, 0.0
        %v2792 = vmax.f32 %v2728, 0.0
        %v2793 = vmax.f32 %v2729, 0.0
        %v2794 = vmax.f32 %v2730, 0.0
        %v2795 = vmax.f32 %v2731, 0.0
        %v2796 = vmax.f32 %v2732, 0.0
        %v2797 = vmax.f32 %v2733, 0.0
        %v2798 = vmax.f32 %v2734, 0.0
        %v2799 = vmax.f32 %v2735, 0.0
        %v2800 = vmax.f32 %v2736, 0.0
        %v2801 = vmax.f32 %v2737, 0.0
        %v2802 = vmax.f32 %v2738, 0.0
        %v2803 = vmax.f32 %v2739, 0.0
        %v2804 = vmax.f32 %v2740, 0.0
        %v2805 = vmax.f32 %v2741, 0.0
        %v2806 = vmax.f32 %v2742, 0.0
        %v2807 = vmax.f32 %v2743, 0.0
        %v2808 = vmax.f32 %v2744, 0.0
        %v2809 = vmax.f32 %v2745, 0.0
        %v2810 = vmax.f32 %v2746, 0.0
        %v2811 = vmax.f32 %v2747, 0.0
        %v2812 = vmax.f32 %v2748, 0.0
        %v2813 = vmax.f32 %v2749, 0.0
        %v2814 = vmax.f32 %v2750, 0.0
        %v2815 = vmax.f32 %v2751, 0.0
        %v2816 = vmax.f32 %v2752, 0.0
        %v2817 = vmax.f32 %v2753, 0.0
        %v2818 = vmax.f32 %v2754, 0.0
        %v2819 = vmax.f32 %v2755, 0.0
        %v2820 = vmax.f32 %v2756, 0.0
        %v2821 = vmax.f32 %v2757, 0.0
        %v2822 = vmax.f32 %v2758, 0.0
        %v2823 = vmax.f32 %v2759, 0.0
        %v2824 = vmax.f32 %v2760, 0.0
        %v2825 = vmax.f32 %v2761, 0.0
        %v2826 = vmax.f32 %v2762, 0.0
        %v2827 = vmax.f32 %v2763, 0.0
        %v2828 = vmax.f32 %v2764, 0.0
        %v2829 = vmax.f32 %v2765, 0.0
        %v2830 = vmax.f32 %v2766, 0.0
        %v2831 = vmax.f32 %v2767, 0.0
        %v2832 = vmax.f32 %v2768, 0.0
        %v2833 = vmax.f32 %v2769, 0.0
        %v2834 = vpack.c.bf16 %v2770, %v2770
        %v2835 = vpack.c.bf16 %v2771, %v2771
        %v2836 = vpack.c.bf16 %v2772, %v2772
        %v2837 = vpack.c.bf16 %v2773, %v2773
        %v2838 = vpack.c.bf16 %v2774, %v2774
        %v2839 = vpack.c.bf16 %v2775, %v2775
        %v2840 = vpack.c.bf16 %v2776, %v2776
        %v2841 = vpack.c.bf16 %v2777, %v2777
        %v2842 = vpack.c.bf16 %v2778, %v2778
        %v2843 = vpack.c.bf16 %v2779, %v2779
        %v2844 = vpack.c.bf16 %v2780, %v2780
        %v2845 = vpack.c.bf16 %v2781, %v2781
        %v2846 = vpack.c.bf16 %v2782, %v2782
        %v2847 = vpack.c.bf16 %v2783, %v2783
        %v2848 = vpack.c.bf16 %v2784, %v2784
        %v2849 = vpack.c.bf16 %v2785, %v2785
        %v2850 = vpack.c.bf16 %v2786, %v2786
        %v2851 = vpack.c.bf16 %v2787, %v2787
        %v2852 = vpack.c.bf16 %v2788, %v2788
        %v2853 = vpack.c.bf16 %v2789, %v2789
        %v2854 = vpack.c.bf16 %v2790, %v2790
        %v2855 = vpack.c.bf16 %v2791, %v2791
        %v2856 = vpack.c.bf16 %v2792, %v2792
        %v2857 = vpack.c.bf16 %v2793, %v2793
        %v2858 = vpack.c.bf16 %v2794, %v2794
        %v2859 = vpack.c.bf16 %v2795, %v2795
        %v2860 = vpack.c.bf16 %v2796, %v2796
        %v2861 = vpack.c.bf16 %v2797, %v2797
        %v2862 = vpack.c.bf16 %v2798, %v2798
        %v2863 = vpack.c.bf16 %v2799, %v2799
        %v2864 = vpack.c.bf16 %v2800, %v2800
        %v2865 = vpack.c.bf16 %v2801, %v2801
        %v2866 = vpack.c.bf16 %v2802, %v2802
        %v2867 = vpack.c.bf16 %v2803, %v2803
        %v2868 = vpack.c.bf16 %v2804, %v2804
        %v2869 = vpack.c.bf16 %v2805, %v2805
        %v2870 = vpack.c.bf16 %v2806, %v2806
        %v2871 = vpack.c.bf16 %v2807, %v2807
        %v2872 = vpack.c.bf16 %v2808, %v2808
        %v2873 = vpack.c.bf16 %v2809, %v2809
        %v2874 = vpack.c.bf16 %v2810, %v2810
        %v2875 = vpack.c.bf16 %v2811, %v2811
        %v2876 = vpack.c.bf16 %v2812, %v2812
        %v2877 = vpack.c.bf16 %v2813, %v2813
        %v2878 = vpack.c.bf16 %v2814, %v2814
        %v2879 = vpack.c.bf16 %v2815, %v2815
        %v2880 = vpack.c.bf16 %v2816, %v2816
        %v2881 = vpack.c.bf16 %v2817, %v2817
        %v2882 = vpack.c.bf16 %v2818, %v2818
        %v2883 = vpack.c.bf16 %v2819, %v2819
        %v2884 = vpack.c.bf16 %v2820, %v2820
        %v2885 = vpack.c.bf16 %v2821, %v2821
        %v2886 = vpack.c.bf16 %v2822, %v2822
        %v2887 = vpack.c.bf16 %v2823, %v2823
        %v2888 = vpack.c.bf16 %v2824, %v2824
        %v2889 = vpack.c.bf16 %v2825, %v2825
        %v2890 = vpack.c.bf16 %v2826, %v2826
        %v2891 = vpack.c.bf16 %v2827, %v2827
        %v2892 = vpack.c.bf16 %v2828, %v2828
        %v2893 = vpack.c.bf16 %v2829, %v2829
        %v2894 = vpack.c.bf16 %v2830, %v2830
        %v2895 = vpack.c.bf16 %v2831, %v2831
        %v2896 = vpack.c.bf16 %v2832, %v2832
        %v2897 = vpack.c.bf16 %v2833, %v2833
        %2898 = vst [vmem:[%s2513] sm:$0xf] %v2834
        %2899 = vst [vmem:[%s2513 + $0x4] sm:$0xf] %v2835
        %2900 = vst [vmem:[%s2513 + $0x8] sm:$0xf] %v2836
        %2901 = vst [vmem:[%s2513 + $0xc] sm:$0xf] %v2837
        %2902 = vst [vmem:[%s2513 + $0x10] sm:$0xf] %v2838
        %2903 = vst [vmem:[%s2513 + $0x14] sm:$0xf] %v2839
        %2904 = vst [vmem:[%s2513 + $0x18] sm:$0xf] %v2840
        %2905 = vst [vmem:[%s2513 + $0x1c] sm:$0xf] %v2841
        %2906 = vst [vmem:[%s2513 + $0x20] sm:$0xf] %v2842
        %2907 = vst [vmem:[%s2513 + $0x24] sm:$0xf] %v2843
        %2908 = vst [vmem:[%s2513 + $0x28] sm:$0xf] %v2844
        %2909 = vst [vmem:[%s2513 + $0x2c] sm:$0xf] %v2845
        %2910 = vst [vmem:[%s2513 + $0x30] sm:$0xf] %v2846
        %2911 = vst [vmem:[%s2513 + $0x34] sm:$0xf] %v2847
        %2912 = vst [vmem:[%s2513 + $0x38] sm:$0xf] %v2848
        %2913 = vst [vmem:[%s2513 + $0x3c] sm:$0xf] %v2849
        %2914 = vst [vmem:[%s2513 + $0x40] sm:$0xf] %v2850
        %2915 = vst [vmem:[%s2513 + $0x44] sm:$0xf] %v2851
        %2916 = vst [vmem:[%s2513 + $0x48] sm:$0xf] %v2852
        %2917 = vst [vmem:[%s2513 + $0x4c] sm:$0xf] %v2853
        %2918 = vst [vmem:[%s2513 + $0x50] sm:$0xf] %v2854
        %2919 = vst [vmem:[%s2513 + $0x54] sm:$0xf] %v2855
        %2920 = vst [vmem:[%s2513 + $0x58] sm:$0xf] %v2856
        %2921 = vst [vmem:[%s2513 + $0x5c] sm:$0xf] %v2857
        %2922 = vst [vmem:[%s2513 + $0x60] sm:$0xf] %v2858
        %2923 = vst [vmem:[%s2513 + $0x64] sm:$0xf] %v2859
        %2924 = vst [vmem:[%s2513 + $0x68] sm:$0xf] %v2860
        %2925 = vst [vmem:[%s2513 + $0x6c] sm:$0xf] %v2861
        %2926 = vst [vmem:[%s2513 + $0x70] sm:$0xf] %v2862
        %2927 = vst [vmem:[%s2513 + $0x74] sm:$0xf] %v2863
        %2928 = vst [vmem:[%s2513 + $0x78] sm:$0xf] %v2864
        %2929 = vst [vmem:[%s2513 + $0x7c] sm:$0xf] %v2865
        %2930 = vst [vmem:[%s2513 + $0x80] sm:$0xf] %v2866
        %2931 = vst [vmem:[%s2513 + $0x84] sm:$0xf] %v2867
        %2932 = vst [vmem:[%s2513 + $0x88] sm:$0xf] %v2868
        %2933 = vst [vmem:[%s2513 + $0x8c] sm:$0xf] %v2869
        %2934 = vst [vmem:[%s2513 + $0x90] sm:$0xf] %v2870
        %2935 = vst [vmem:[%s2513 + $0x94] sm:$0xf] %v2871
        %2936 = vst [vmem:[%s2513 + $0x98] sm:$0xf] %v2872
        %2937 = vst [vmem:[%s2513 + $0x9c] sm:$0xf] %v2873
        %2938 = vst [vmem:[%s2513 + $0xa0] sm:$0xf] %v2874
        %2939 = vst [vmem:[%s2513 + $0xa4] sm:$0xf] %v2875
        %2940 = vst [vmem:[%s2513 + $0xa8] sm:$0xf] %v2876
        %2941 = vst [vmem:[%s2513 + $0xac] sm:$0xf] %v2877
        %2942 = vst [vmem:[%s2513 + $0xb0] sm:$0xf] %v2878
        %2943 = vst [vmem:[%s2513 + $0xb4] sm:$0xf] %v2879
        %2944 = vst [vmem:[%s2513 + $0xb8] sm:$0xf] %v2880
        %2945 = vst [vmem:[%s2513 + $0xbc] sm:$0xf] %v2881
        %2946 = vst [vmem:[%s2513 + $0xc0] sm:$0xf] %v2882
        %2947 = vst [vmem:[%s2513 + $0xc4] sm:$0xf] %v2883
        %2948 = vst [vmem:[%s2513 + $0xc8] sm:$0xf] %v2884
        %2949 = vst [vmem:[%s2513 + $0xcc] sm:$0xf] %v2885
        %2950 = vst [vmem:[%s2513 + $0xd0] sm:$0xf] %v2886
        %2951 = vst [vmem:[%s2513 + $0xd4] sm:$0xf] %v2887
        %2952 = vst [vmem:[%s2513 + $0xd8] sm:$0xf] %v2888
        %2953 = vst [vmem:[%s2513 + $0xdc] sm:$0xf] %v2889
        %2954 = vst [vmem:[%s2513 + $0xe0] sm:$0xf] %v2890
        %2955 = vst [vmem:[%s2513 + $0xe4] sm:$0xf] %v2891
        %2956 = vst [vmem:[%s2513 + $0xe8] sm:$0xf] %v2892
        %2957 = vst [vmem:[%s2513 + $0xec] sm:$0xf] %v2893
        %2958 = vst [vmem:[%s2513 + $0xf0] sm:$0xf] %v2894
        %2959 = vst [vmem:[%s2513 + $0xf4] sm:$0xf] %v2895
        %2960 = vst [vmem:[%s2513 + $0xf8] sm:$0xf] %v2896
        %2961 = vst [vmem:[%s2513 + $0xfc] sm:$0xf] %v2897
      $region44: #{generator_forward.8} parent=35 // pred_fallthru
        _
      // Predicated region
      $region45: #{generator_forward.8} parent=35 // pred_check
        %p2962 = pneg %p136
      $region46: #{generator_forward.8} parent=35 // pred_check_branch
        %2964 = sbr.rel (%p2962) target = $region48
      $region47: #{generator_forward.8} parent=35 // pred_region
        _
      $region48: #{generator_forward.8} parent=35 // pred_fallthru
        _
      // Predicated region
      $region49: #{generator_forward.8} parent=35 // pred_check
        %p2965 = pneg %p136
      $region50: #{generator_forward.8} parent=35 // pred_check_branch
        %2967 = sbr.rel (%p2965) target = $region52
      $region51: #{generator_forward.8} parent=35 // pred_region
        _
      $region52: #{generator_forward.8} parent=35 // pred_fallthru
        _
    $region36: #{generator_forward.8} parent=5 // pred_fallthru
      _
    %p2968 = scmp.le.s32.totalorder 2, %s10
    // Predicated region
    $region53: #{generator_forward.8} parent=5 // pred_check
      %p2969 = pneg %p2968
    $region54: #{generator_forward.8} parent=5 // pred_check_branch
      %2971 = sbr.rel (%p2969) target = $region56
    $region55: #{generator_forward.8} parent=5 // pred_region
      %s2972 = ssub.s32 %s10, 2
    $region56: #{generator_forward.8} parent=5 // pred_fallthru
      _
  $region6: #{generator_forward.8} parent=0 // loop_footer
    %s14 = sadd.s32 1, %s10
  $region7: #{generator_forward.8} parent=0 // loop_footer_branch
    %9 = sbr.rel target = $region3
  $region8: #{generator_forward.8} parent=0 // loop_exit
    _

// kernel: generator_forward.9
$region0: #{generator_forward.9}
  #allocation0 [shape = 'u32[]', space=smem, size = 0x4, offset = 0x4, fixed_abs, tag = 'smem constant byte address 0x4 - core index']
  #allocation1 [shape = 'u32[72,128]{1,0:T(1,128)}', space=vmem, size = 0x9000, scoped, tag = 'internal scratch']
  #allocation2 [shape = 'f32[1,1]{1,0:T(1,128)S(6)}', space=smem, size = 0x200, scoped, tag = 'scoped memory for generator_forward.9']
  %s0 = inlined_call_operand.vmem [shape: bf16[4,1,64], index: 0, kind: input, shape index: {}]
  %s1 = inlined_call_operand.<no memory space> [shape: f32[1,1], index: 1, kind: input, shape index: {}]
  %s2 = inlined_call_operand.vmem [shape: bf16[4,64,2048], index: 2, kind: input, shape index: {}]
  %s3 = inlined_call_operand.vmem [shape: bf16[4,2048], index: 3, kind: output, shape index: {}]
  %s4 = sld [smem:[#allocation0]]
  $region22: #{generator_forward.9} parent=0
    _
  %s6 = ssub.s32 1, %s4
  %s7 = scalar_select 0, %s6, %s4
  %8 = sst [smem:[#allocation2]] %s1
  // Predicated region
  $region2: #{generator_forward.9} parent=0 // pred_check
    _
  $region3: #{generator_forward.9} parent=0 // pred_check_branch
    %10 = sbr.rel (0) target = $region5
  $region4: #{generator_forward.9} parent=0 // pred_region
    _
  $region5: #{generator_forward.9} parent=0 // pred_fallthru
    _
  // Predicated region
  $region6: #{generator_forward.9} parent=0 // pred_check
    _
  $region7: #{generator_forward.9} parent=0 // pred_check_branch
    %12 = sbr.rel (0) target = $region9
  $region8: #{generator_forward.9} parent=0 // pred_region
    _
  $region9: #{generator_forward.9} parent=0 // pred_fallthru
    _
  // Predicated region
  $region10: #{generator_forward.9} parent=0 // pred_check
    _
  $region11: #{generator_forward.9} parent=0 // pred_check_branch
    %14 = sbr.rel (0) target = $region13
  $region12: #{generator_forward.9} parent=0 // pred_region
    _
  $region13: #{generator_forward.9} parent=0 // pred_fallthru
    _
  %s16 = sld [smem:[#allocation2]]
  %v17 = vld [vmem:[%s0] sm:$0x1]
  %v18 = vld [vmem:[%s2] sm:$0xff]
  %v19 = vld [vmem:[%s2 + $0x8] sm:$0xff]
  %v20 = vld [vmem:[%s2 + $0x10] sm:$0xff]
  %v21 = vld [vmem:[%s2 + $0x18] sm:$0xff]
  %v22 = vld [vmem:[%s2 + $0x20] sm:$0xff]
  %v23 = vld [vmem:[%s2 + $0x28] sm:$0xff]
  %v24 = vld [vmem:[%s2 + $0x30] sm:$0xff]
  %v25 = vld [vmem:[%s2 + $0x38] sm:$0xff]
  %v26 = vld [vmem:[%s2 + $0x40] sm:$0xff]
  %v27 = vld [vmem:[%s2 + $0x48] sm:$0xff]
  %v28 = vld [vmem:[%s2 + $0x50] sm:$0xff]
  %v29 = vld [vmem:[%s2 + $0x58] sm:$0xff]
  %v30 = vld [vmem:[%s2 + $0x60] sm:$0xff]
  %v31 = vld [vmem:[%s2 + $0x68] sm:$0xff]
  %v32 = vld [vmem:[%s2 + $0x70] sm:$0xff]
  %v33 = vld [vmem:[%s2 + $0x78] sm:$0xff]
  %v34 = vld [vmem:[%s2 + $0x80] sm:$0xff]
  %v35 = vld [vmem:[%s2 + $0x88] sm:$0xff]
  %v36 = vld [vmem:[%s2 + $0x90] sm:$0xff]
  %v37 = vld [vmem:[%s2 + $0x98] sm:$0xff]
  %v38 = vld [vmem:[%s2 + $0xa0] sm:$0xff]
  %v39 = vld [vmem:[%s2 + $0xa8] sm:$0xff]
  %v40 = vld [vmem:[%s2 + $0xb0] sm:$0xff]
  %v41 = vld [vmem:[%s2 + $0xb8] sm:$0xff]
  %v42 = vld [vmem:[%s2 + $0xc0] sm:$0xff]
  %v43 = vld [vmem:[%s2 + $0xc8] sm:$0xff]
  %v44 = vld [vmem:[%s2 + $0xd0] sm:$0xff]
  %v45 = vld [vmem:[%s2 + $0xd8] sm:$0xff]
  %v46 = vld [vmem:[%s2 + $0xe0] sm:$0xff]
  %v47 = vld [vmem:[%s2 + $0xe8] sm:$0xff]
  %v48 = vld [vmem:[%s2 + $0xf0] sm:$0xff]
  %v49 = vld [vmem:[%s2 + $0xf8] sm:$0xff]
  %v50 = vld [vmem:[%s2 + $0x100] sm:$0xff]
  %v51 = vld [vmem:[%s2 + $0x108] sm:$0xff]
  %v52 = vld [vmem:[%s2 + $0x110] sm:$0xff]
  %v53 = vld [vmem:[%s2 + $0x118] sm:$0xff]
  %v54 = vld [vmem:[%s2 + $0x120] sm:$0xff]
  %v55 = vld [vmem:[%s2 + $0x128] sm:$0xff]
  %v56 = vld [vmem:[%s2 + $0x130] sm:$0xff]
  %v57 = vld [vmem:[%s2 + $0x138] sm:$0xff]
  %v58 = vld [vmem:[%s2 + $0x140] sm:$0xff]
  %v59 = vld [vmem:[%s2 + $0x148] sm:$0xff]
  %v60 = vld [vmem:[%s2 + $0x150] sm:$0xff]
  %v61 = vld [vmem:[%s2 + $0x158] sm:$0xff]
  %v62 = vld [vmem:[%s2 + $0x160] sm:$0xff]
  %v63 = vld [vmem:[%s2 + $0x168] sm:$0xff]
  %v64 = vld [vmem:[%s2 + $0x170] sm:$0xff]
  %v65 = vld [vmem:[%s2 + $0x178] sm:$0xff]
  %v66 = vld [vmem:[%s2 + $0x180] sm:$0xff]
  %v67 = vld [vmem:[%s2 + $0x188] sm:$0xff]
  %v68 = vld [vmem:[%s2 + $0x190] sm:$0xff]
  %v69 = vld [vmem:[%s2 + $0x198] sm:$0xff]
  %v70 = vld [vmem:[%s2 + $0x1a0] sm:$0xff]
  %v71 = vld [vmem:[%s2 + $0x1a8] sm:$0xff]
  %v72 = vld [vmem:[%s2 + $0x1b0] sm:$0xff]
  %v73 = vld [vmem:[%s2 + $0x1b8] sm:$0xff]
  %v74 = vld [vmem:[%s2 + $0x1c0] sm:$0xff]
  %v75 = vld [vmem:[%s2 + $0x1c8] sm:$0xff]
  %v76 = vld [vmem:[%s2 + $0x1d0] sm:$0xff]
  %v77 = vld [vmem:[%s2 + $0x1d8] sm:$0xff]
  %v78 = vld [vmem:[%s2 + $0x1e0] sm:$0xff]
  %v79 = vld [vmem:[%s2 + $0x1e8] sm:$0xff]
  %v80 = vld [vmem:[%s2 + $0x1f0] sm:$0xff]
  %v81 = vld [vmem:[%s2 + $0x1f8] sm:$0xff]
  %v146 = vunpack.c.l.b16 %v18
  %v147 = vunpack.c.h.b16 %v18
  %v148 = vunpack.c.l.b16 %v19
  %v149 = vunpack.c.h.b16 %v19
  %v150 = vunpack.c.l.b16 %v20
  %v151 = vunpack.c.h.b16 %v20
  %v152 = vunpack.c.l.b16 %v21
  %v153 = vunpack.c.h.b16 %v21
  %v154 = vunpack.c.l.b16 %v22
  %v155 = vunpack.c.h.b16 %v22
  %v156 = vunpack.c.l.b16 %v23
  %v157 = vunpack.c.h.b16 %v23
  %v158 = vunpack.c.l.b16 %v24
  %v159 = vunpack.c.h.b16 %v24
  %v160 = vunpack.c.l.b16 %v25
  %v161 = vunpack.c.h.b16 %v25
  %v162 = vunpack.c.l.b16 %v26
  %v163 = vunpack.c.h.b16 %v26
  %v164 = vunpack.c.l.b16 %v27
  %v165 = vunpack.c.h.b16 %v27
  %v166 = vunpack.c.l.b16 %v28
  %v167 = vunpack.c.h.b16 %v28
  %v168 = vunpack.c.l.b16 %v29
  %v169 = vunpack.c.h.b16 %v29
  %v170 = vunpack.c.l.b16 %v30
  %v171 = vunpack.c.h.b16 %v30
  %v172 = vunpack.c.l.b16 %v31
  %v173 = vunpack.c.h.b16 %v31
  %v174 = vunpack.c.l.b16 %v32
  %v175 = vunpack.c.h.b16 %v32
  %v176 = vunpack.c.l.b16 %v33
  %v177 = vunpack.c.h.b16 %v33
  %v178 = vunpack.c.l.b16 %v34
  %v179 = vunpack.c.h.b16 %v34
  %v180 = vunpack.c.l.b16 %v35
  %v181 = vunpack.c.h.b16 %v35
  %v182 = vunpack.c.l.b16 %v36
  %v183 = vunpack.c.h.b16 %v36
  %v184 = vunpack.c.l.b16 %v37
  %v185 = vunpack.c.h.b16 %v37
  %v186 = vunpack.c.l.b16 %v38
  %v187 = vunpack.c.h.b16 %v38
  %v188 = vunpack.c.l.b16 %v39
  %v189 = vunpack.c.h.b16 %v39
  %v190 = vunpack.c.l.b16 %v40
  %v191 = vunpack.c.h.b16 %v40
  %v192 = vunpack.c.l.b16 %v41
  %v193 = vunpack.c.h.b16 %v41
  %v194 = vunpack.c.l.b16 %v42
  %v195 = vunpack.c.h.b16 %v42
  %v196 = vunpack.c.l.b16 %v43
  %v197 = vunpack.c.h.b16 %v43
  %v198 = vunpack.c.l.b16 %v44
  %v199 = vunpack.c.h.b16 %v44
  %v200 = vunpack.c.l.b16 %v45
  %v201 = vunpack.c.h.b16 %v45
  %v202 = vunpack.c.l.b16 %v46
  %v203 = vunpack.c.h.b16 %v46
  %v204 = vunpack.c.l.b16 %v47
  %v205 = vunpack.c.h.b16 %v47
  %v206 = vunpack.c.l.b16 %v48
  %v207 = vunpack.c.h.b16 %v48
  %v208 = vunpack.c.l.b16 %v49
  %v209 = vunpack.c.h.b16 %v49
  %v210 = vunpack.c.l.b16 %v50
  %v211 = vunpack.c.h.b16 %v50
  %v212 = vunpack.c.l.b16 %v51
  %v213 = vunpack.c.h.b16 %v51
  %v214 = vunpack.c.l.b16 %v52
  %v215 = vunpack.c.h.b16 %v52
  %v216 = vunpack.c.l.b16 %v53
  %v217 = vunpack.c.h.b16 %v53
  %v218 = vunpack.c.l.b16 %v54
  %v219 = vunpack.c.h.b16 %v54
  %v220 = vunpack.c.l.b16 %v55
  %v221 = vunpack.c.h.b16 %v55
  %v222 = vunpack.c.l.b16 %v56
  %v223 = vunpack.c.h.b16 %v56
  %v224 = vunpack.c.l.b16 %v57
  %v225 = vunpack.c.h.b16 %v57
  %v226 = vunpack.c.l.b16 %v58
  %v227 = vunpack.c.h.b16 %v58
  %v228 = vunpack.c.l.b16 %v59
  %v229 = vunpack.c.h.b16 %v59
  %v230 = vunpack.c.l.b16 %v60
  %v231 = vunpack.c.h.b16 %v60
  %v232 = vunpack.c.l.b16 %v61
  %v233 = vunpack.c.h.b16 %v61
  %v234 = vunpack.c.l.b16 %v62
  %v235 = vunpack.c.h.b16 %v62
  %v236 = vunpack.c.l.b16 %v63
  %v237 = vunpack.c.h.b16 %v63
  %v238 = vunpack.c.l.b16 %v64
  %v239 = vunpack.c.h.b16 %v64
  %v240 = vunpack.c.l.b16 %v65
  %v241 = vunpack.c.h.b16 %v65
  %v242 = vunpack.c.l.b16 %v66
  %v243 = vunpack.c.h.b16 %v66
  %v244 = vunpack.c.l.b16 %v67
  %v245 = vunpack.c.h.b16 %v67
  %v246 = vunpack.c.l.b16 %v68
  %v247 = vunpack.c.h.b16 %v68
  %v248 = vunpack.c.l.b16 %v69
  %v249 = vunpack.c.h.b16 %v69
  %v250 = vunpack.c.l.b16 %v70
  %v251 = vunpack.c.h.b16 %v70
  %v252 = vunpack.c.l.b16 %v71
  %v253 = vunpack.c.h.b16 %v71
  %v254 = vunpack.c.l.b16 %v72
  %v255 = vunpack.c.h.b16 %v72
  %v256 = vunpack.c.l.b16 %v73
  %v257 = vunpack.c.h.b16 %v73
  %v258 = vunpack.c.l.b16 %v74
  %v259 = vunpack.c.h.b16 %v74
  %v260 = vunpack.c.l.b16 %v75
  %v261 = vunpack.c.h.b16 %v75
  %v262 = vunpack.c.l.b16 %v76
  %v263 = vunpack.c.h.b16 %v76
  %v264 = vunpack.c.l.b16 %v77
  %v265 = vunpack.c.h.b16 %v77
  %v266 = vunpack.c.l.b16 %v78
  %v267 = vunpack.c.h.b16 %v78
  %v268 = vunpack.c.l.b16 %v79
  %v269 = vunpack.c.h.b16 %v79
  %v270 = vunpack.c.l.b16 %v80
  %v271 = vunpack.c.h.b16 %v80
  %v272 = vunpack.c.l.b16 %v81
  %v273 = vunpack.c.h.b16 %v81
  %v274 = vpack.c.b16 %v162, %v146
  %v275 = vpack.c.b16 %v163, %v147
  %v276 = vpack.c.b16 %v164, %v148
  %v277 = vpack.c.b16 %v165, %v149
  %v278 = vpack.c.b16 %v166, %v150
  %v279 = vpack.c.b16 %v167, %v151
  %v280 = vpack.c.b16 %v168, %v152
  %v281 = vpack.c.b16 %v169, %v153
  %v282 = vpack.c.b16 %v170, %v154
  %v283 = vpack.c.b16 %v171, %v155
  %v284 = vpack.c.b16 %v172, %v156
  %v285 = vpack.c.b16 %v173, %v157
  %v286 = vpack.c.b16 %v174, %v158
  %v287 = vpack.c.b16 %v175, %v159
  %v288 = vpack.c.b16 %v176, %v160
  %v289 = vpack.c.b16 %v177, %v161
  %v290 = vpack.c.b16 %v194, %v178
  %v291 = vpack.c.b16 %v195, %v179
  %v292 = vpack.c.b16 %v196, %v180
  %v293 = vpack.c.b16 %v197, %v181
  %v294 = vpack.c.b16 %v198, %v182
  %v295 = vpack.c.b16 %v199, %v183
  %v296 = vpack.c.b16 %v200, %v184
  %v297 = vpack.c.b16 %v201, %v185
  %v298 = vpack.c.b16 %v202, %v186
  %v299 = vpack.c.b16 %v203, %v187
  %v300 = vpack.c.b16 %v204, %v188
  %v301 = vpack.c.b16 %v205, %v189
  %v302 = vpack.c.b16 %v206, %v190
  %v303 = vpack.c.b16 %v207, %v191
  %v304 = vpack.c.b16 %v208, %v192
  %v305 = vpack.c.b16 %v209, %v193
  %v306 = vpack.c.b16 %v226, %v210
  %v307 = vpack.c.b16 %v227, %v211
  %v308 = vpack.c.b16 %v228, %v212
  %v309 = vpack.c.b16 %v229, %v213
  %v310 = vpack.c.b16 %v230, %v214
  %v311 = vpack.c.b16 %v231, %v215
  %v312 = vpack.c.b16 %v232, %v216
  %v313 = vpack.c.b16 %v233, %v217
  %v314 = vpack.c.b16 %v234, %v218
  %v315 = vpack.c.b16 %v235, %v219
  %v316 = vpack.c.b16 %v236, %v220
  %v317 = vpack.c.b16 %v237, %v221
  %v318 = vpack.c.b16 %v238, %v222
  %v319 = vpack.c.b16 %v239, %v223
  %v320 = vpack.c.b16 %v240, %v224
  %v321 = vpack.c.b16 %v241, %v225
  %v322 = vpack.c.b16 %v258, %v242
  %v323 = vpack.c.b16 %v259, %v243
  %v324 = vpack.c.b16 %v260, %v244
  %v325 = vpack.c.b16 %v261, %v245
  %v326 = vpack.c.b16 %v262, %v246
  %v327 = vpack.c.b16 %v263, %v247
  %v328 = vpack.c.b16 %v264, %v248
  %v329 = vpack.c.b16 %v265, %v249
  %v330 = vpack.c.b16 %v266, %v250
  %v331 = vpack.c.b16 %v267, %v251
  %v332 = vpack.c.b16 %v268, %v252
  %v333 = vpack.c.b16 %v269, %v253
  %v334 = vpack.c.b16 %v270, %v254
  %v335 = vpack.c.b16 %v271, %v255
  %v336 = vpack.c.b16 %v272, %v256
  %v337 = vpack.c.b16 %v273, %v257
  %vm402 = vcmask 523264
  %v404 = vsel %vm402, %v17, 0
  %406 = vmatpush.bf16.msra.mxu0 0
  %407 = vmatpush.bf16.msra.mxu0 0
  %408 = vmatpush.bf16.msra.mxu0 0
  %409 = vmatpush.bf16.msra.mxu0 0
  %410 = vmatpush.bf16.msra.mxu0 %v322
  %411 = vmatpush.bf16.msra.mxu0 %v306
  %412 = vmatpush.bf16.msra.mxu0 %v290
  %413 = vmatpush.bf16.msra.mxu0 %v274
  %414 = vmatmul.bf16.gmra.mxu0 %v404
  %v415 = vpop.f32.mrf.mxu0
  %v416 = vadd.f32 0.0, %v415
  %v417 = vpop.f32.mrf.mxu0
  %418 = vdwg.mxu0
  %419 = vmatpush.bf16.msra.mxu0 0
  %420 = vmatpush.bf16.msra.mxu0 0
  %421 = vmatpush.bf16.msra.mxu0 0
  %422 = vmatpush.bf16.msra.mxu0 0
  %423 = vmatpush.bf16.msra.mxu0 %v323
  %424 = vmatpush.bf16.msra.mxu0 %v307
  %425 = vmatpush.bf16.msra.mxu0 %v291
  %426 = vmatpush.bf16.msra.mxu0 %v275
  %427 = vmatmul.bf16.gmra.mxu0 %v404
  %v428 = vpop.f32.mrf.mxu0
  %v429 = vadd.f32 0.0, %v428
  %v430 = vpop.f32.mrf.mxu0
  %431 = vdwg.mxu0
  %432 = vmatpush.bf16.msra.mxu0 0
  %433 = vmatpush.bf16.msra.mxu0 0
  %434 = vmatpush.bf16.msra.mxu0 0
  %435 = vmatpush.bf16.msra.mxu0 0
  %436 = vmatpush.bf16.msra.mxu0 %v324
  %437 = vmatpush.bf16.msra.mxu0 %v308
  %438 = vmatpush.bf16.msra.mxu0 %v292
  %439 = vmatpush.bf16.msra.mxu0 %v276
  %440 = vmatmul.bf16.gmra.mxu0 %v404
  %v441 = vpop.f32.mrf.mxu0
  %v442 = vadd.f32 0.0, %v441
  %v443 = vpop.f32.mrf.mxu0
  %444 = vdwg.mxu0
  %445 = vmatpush.bf16.msra.mxu0 0
  %446 = vmatpush.bf16.msra.mxu0 0
  %447 = vmatpush.bf16.msra.mxu0 0
  %448 = vmatpush.bf16.msra.mxu0 0
  %449 = vmatpush.bf16.msra.mxu0 %v325
  %450 = vmatpush.bf16.msra.mxu0 %v309
  %451 = vmatpush.bf16.msra.mxu0 %v293
  %452 = vmatpush.bf16.msra.mxu0 %v277
  %453 = vmatmul.bf16.gmra.mxu0 %v404
  %v454 = vpop.f32.mrf.mxu0
  %v455 = vadd.f32 0.0, %v454
  %v456 = vpop.f32.mrf.mxu0
  %457 = vdwg.mxu0
  %458 = vmatpush.bf16.msra.mxu0 0
  %459 = vmatpush.bf16.msra.mxu0 0
  %460 = vmatpush.bf16.msra.mxu0 0
  %461 = vmatpush.bf16.msra.mxu0 0
  %462 = vmatpush.bf16.msra.mxu0 %v326
  %463 = vmatpush.bf16.msra.mxu0 %v310
  %464 = vmatpush.bf16.msra.mxu0 %v294
  %465 = vmatpush.bf16.msra.mxu0 %v278
  %466 = vmatmul.bf16.gmra.mxu0 %v404
  %v467 = vpop.f32.mrf.mxu0
  %v468 = vadd.f32 0.0, %v467
  %v469 = vpop.f32.mrf.mxu0
  %470 = vdwg.mxu0
  %471 = vmatpush.bf16.msra.mxu0 0
  %472 = vmatpush.bf16.msra.mxu0 0
  %473 = vmatpush.bf16.msra.mxu0 0
  %474 = vmatpush.bf16.msra.mxu0 0
  %475 = vmatpush.bf16.msra.mxu0 %v327
  %476 = vmatpush.bf16.msra.mxu0 %v311
  %477 = vmatpush.bf16.msra.mxu0 %v295
  %478 = vmatpush.bf16.msra.mxu0 %v279
  %479 = vmatmul.bf16.gmra.mxu0 %v404
  %v480 = vpop.f32.mrf.mxu0
  %v481 = vadd.f32 0.0, %v480
  %v482 = vpop.f32.mrf.mxu0
  %483 = vdwg.mxu0
  %484 = vmatpush.bf16.msra.mxu0 0
  %485 = vmatpush.bf16.msra.mxu0 0
  %486 = vmatpush.bf16.msra.mxu0 0
  %487 = vmatpush.bf16.msra.mxu0 0
  %488 = vmatpush.bf16.msra.mxu0 %v328
  %489 = vmatpush.bf16.msra.mxu0 %v312
  %490 = vmatpush.bf16.msra.mxu0 %v296
  %491 = vmatpush.bf16.msra.mxu0 %v280
  %492 = vmatmul.bf16.gmra.mxu0 %v404
  %v493 = vpop.f32.mrf.mxu0
  %v494 = vadd.f32 0.0, %v493
  %v495 = vpop.f32.mrf.mxu0
  %496 = vdwg.mxu0
  %497 = vmatpush.bf16.msra.mxu0 0
  %498 = vmatpush.bf16.msra.mxu0 0
  %499 = vmatpush.bf16.msra.mxu0 0
  %500 = vmatpush.bf16.msra.mxu0 0
  %501 = vmatpush.bf16.msra.mxu0 %v329
  %502 = vmatpush.bf16.msra.mxu0 %v313
  %503 = vmatpush.bf16.msra.mxu0 %v297
  %504 = vmatpush.bf16.msra.mxu0 %v281
  %505 = vmatmul.bf16.gmra.mxu0 %v404
  %v506 = vpop.f32.mrf.mxu0
  %v507 = vadd.f32 0.0, %v506
  %v508 = vpop.f32.mrf.mxu0
  %509 = vdwg.mxu0
  %510 = vmatpush.bf16.msra.mxu0 0
  %511 = vmatpush.bf16.msra.mxu0 0
  %512 = vmatpush.bf16.msra.mxu0 0
  %513 = vmatpush.bf16.msra.mxu0 0
  %514 = vmatpush.bf16.msra.mxu0 %v330
  %515 = vmatpush.bf16.msra.mxu0 %v314
  %516 = vmatpush.bf16.msra.mxu0 %v298
  %517 = vmatpush.bf16.msra.mxu0 %v282
  %518 = vmatmul.bf16.gmra.mxu0 %v404
  %v519 = vpop.f32.mrf.mxu0
  %v520 = vadd.f32 0.0, %v519
  %v521 = vpop.f32.mrf.mxu0
  %522 = vdwg.mxu0
  %523 = vmatpush.bf16.msra.mxu0 0
  %524 = vmatpush.bf16.msra.mxu0 0
  %525 = vmatpush.bf16.msra.mxu0 0
  %526 = vmatpush.bf16.msra.mxu0 0
  %527 = vmatpush.bf16.msra.mxu0 %v331
  %528 = vmatpush.bf16.msra.mxu0 %v315
  %529 = vmatpush.bf16.msra.mxu0 %v299
  %530 = vmatpush.bf16.msra.mxu0 %v283
  %531 = vmatmul.bf16.gmra.mxu0 %v404
  %v532 = vpop.f32.mrf.mxu0
  %v533 = vadd.f32 0.0, %v532
  %v534 = vpop.f32.mrf.mxu0
  %535 = vdwg.mxu0
  %536 = vmatpush.bf16.msra.mxu0 0
  %537 = vmatpush.bf16.msra.mxu0 0
  %538 = vmatpush.bf16.msra.mxu0 0
  %539 = vmatpush.bf16.msra.mxu0 0
  %540 = vmatpush.bf16.msra.mxu0 %v332
  %541 = vmatpush.bf16.msra.mxu0 %v316
  %542 = vmatpush.bf16.msra.mxu0 %v300
  %543 = vmatpush.bf16.msra.mxu0 %v284
  %544 = vmatmul.bf16.gmra.mxu0 %v404
  %v545 = vpop.f32.mrf.mxu0
  %v546 = vadd.f32 0.0, %v545
  %v547 = vpop.f32.mrf.mxu0
  %548 = vdwg.mxu0
  %549 = vmatpush.bf16.msra.mxu0 0
  %550 = vmatpush.bf16.msra.mxu0 0
  %551 = vmatpush.bf16.msra.mxu0 0
  %552 = vmatpush.bf16.msra.mxu0 0
  %553 = vmatpush.bf16.msra.mxu0 %v333
  %554 = vmatpush.bf16.msra.mxu0 %v317
  %555 = vmatpush.bf16.msra.mxu0 %v301
  %556 = vmatpush.bf16.msra.mxu0 %v285
  %557 = vmatmul.bf16.gmra.mxu0 %v404
  %v558 = vpop.f32.mrf.mxu0
  %v559 = vadd.f32 0.0, %v558
  %v560 = vpop.f32.mrf.mxu0
  %561 = vdwg.mxu0
  %562 = vmatpush.bf16.msra.mxu0 0
  %563 = vmatpush.bf16.msra.mxu0 0
  %564 = vmatpush.bf16.msra.mxu0 0
  %565 = vmatpush.bf16.msra.mxu0 0
  %566 = vmatpush.bf16.msra.mxu0 %v334
  %567 = vmatpush.bf16.msra.mxu0 %v318
  %568 = vmatpush.bf16.msra.mxu0 %v302
  %569 = vmatpush.bf16.msra.mxu0 %v286
  %570 = vmatmul.bf16.gmra.mxu0 %v404
  %v571 = vpop.f32.mrf.mxu0
  %v572 = vadd.f32 0.0, %v571
  %v573 = vpop.f32.mrf.mxu0
  %574 = vdwg.mxu0
  %575 = vmatpush.bf16.msra.mxu0 0
  %576 = vmatpush.bf16.msra.mxu0 0
  %577 = vmatpush.bf16.msra.mxu0 0
  %578 = vmatpush.bf16.msra.mxu0 0
  %579 = vmatpush.bf16.msra.mxu0 %v335
  %580 = vmatpush.bf16.msra.mxu0 %v319
  %581 = vmatpush.bf16.msra.mxu0 %v303
  %582 = vmatpush.bf16.msra.mxu0 %v287
  %583 = vmatmul.bf16.gmra.mxu0 %v404
  %v584 = vpop.f32.mrf.mxu0
  %v585 = vadd.f32 0.0, %v584
  %v586 = vpop.f32.mrf.mxu0
  %587 = vdwg.mxu0
  %588 = vmatpush.bf16.msra.mxu0 0
  %589 = vmatpush.bf16.msra.mxu0 0
  %590 = vmatpush.bf16.msra.mxu0 0
  %591 = vmatpush.bf16.msra.mxu0 0
  %592 = vmatpush.bf16.msra.mxu0 %v336
  %593 = vmatpush.bf16.msra.mxu0 %v320
  %594 = vmatpush.bf16.msra.mxu0 %v304
  %595 = vmatpush.bf16.msra.mxu0 %v288
  %596 = vmatmul.bf16.gmra.mxu0 %v404
  %v597 = vpop.f32.mrf.mxu0
  %v598 = vadd.f32 0.0, %v597
  %v599 = vpop.f32.mrf.mxu0
  %600 = vdwg.mxu0
  %601 = vmatpush.bf16.msra.mxu0 0
  %602 = vmatpush.bf16.msra.mxu0 0
  %603 = vmatpush.bf16.msra.mxu0 0
  %604 = vmatpush.bf16.msra.mxu0 0
  %605 = vmatpush.bf16.msra.mxu0 %v337
  %606 = vmatpush.bf16.msra.mxu0 %v321
  %607 = vmatpush.bf16.msra.mxu0 %v305
  %608 = vmatpush.bf16.msra.mxu0 %v289
  %609 = vmatmul.bf16.gmra.mxu0 %v404
  %v610 = vpop.f32.mrf.mxu0
  %v611 = vadd.f32 0.0, %v610
  %v612 = vpop.f32.mrf.mxu0
  %613 = vdwg.mxu0
  %s614 = scalar_lea.vmem %s0, 1
  %v615 = vld [vmem:[%s614] sm:$0x1]
  %s616 = scalar_lea.vmem %s2, 512
  %v617 = vld [vmem:[%s616] sm:$0xff]
  %v618 = vld [vmem:[%s616 + $0x8] sm:$0xff]
  %v619 = vld [vmem:[%s616 + $0x10] sm:$0xff]
  %v620 = vld [vmem:[%s616 + $0x18] sm:$0xff]
  %v621 = vld [vmem:[%s616 + $0x20] sm:$0xff]
  %v622 = vld [vmem:[%s616 + $0x28] sm:$0xff]
  %v623 = vld [vmem:[%s616 + $0x30] sm:$0xff]
  %v624 = vld [vmem:[%s616 + $0x38] sm:$0xff]
  %v625 = vld [vmem:[%s616 + $0x40] sm:$0xff]
  %v626 = vld [vmem:[%s616 + $0x48] sm:$0xff]
  %v627 = vld [vmem:[%s616 + $0x50] sm:$0xff]
  %v628 = vld [vmem:[%s616 + $0x58] sm:$0xff]
  %v629 = vld [vmem:[%s616 + $0x60] sm:$0xff]
  %v630 = vld [vmem:[%s616 + $0x68] sm:$0xff]
  %v631 = vld [vmem:[%s616 + $0x70] sm:$0xff]
  %v632 = vld [vmem:[%s616 + $0x78] sm:$0xff]
  %v633 = vld [vmem:[%s616 + $0x80] sm:$0xff]
  %v634 = vld [vmem:[%s616 + $0x88] sm:$0xff]
  %v635 = vld [vmem:[%s616 + $0x90] sm:$0xff]
  %v636 = vld [vmem:[%s616 + $0x98] sm:$0xff]
  %v637 = vld [vmem:[%s616 + $0xa0] sm:$0xff]
  %v638 = vld [vmem:[%s616 + $0xa8] sm:$0xff]
  %v639 = vld [vmem:[%s616 + $0xb0] sm:$0xff]
  %v640 = vld [vmem:[%s616 + $0xb8] sm:$0xff]
  %v641 = vld [vmem:[%s616 + $0xc0] sm:$0xff]
  %v642 = vld [vmem:[%s616 + $0xc8] sm:$0xff]
  %v643 = vld [vmem:[%s616 + $0xd0] sm:$0xff]
  %v644 = vld [vmem:[%s616 + $0xd8] sm:$0xff]
  %v645 = vld [vmem:[%s616 + $0xe0] sm:$0xff]
  %v646 = vld [vmem:[%s616 + $0xe8] sm:$0xff]
  %v647 = vld [vmem:[%s616 + $0xf0] sm:$0xff]
  %v648 = vld [vmem:[%s616 + $0xf8] sm:$0xff]
  %v649 = vld [vmem:[%s616 + $0x100] sm:$0xff]
  %v650 = vld [vmem:[%s616 + $0x108] sm:$0xff]
  %v651 = vld [vmem:[%s616 + $0x110] sm:$0xff]
  %v652 = vld [vmem:[%s616 + $0x118] sm:$0xff]
  %v653 = vld [vmem:[%s616 + $0x120] sm:$0xff]
  %v654 = vld [vmem:[%s616 + $0x128] sm:$0xff]
  %v655 = vld [vmem:[%s616 + $0x130] sm:$0xff]
  %v656 = vld [vmem:[%s616 + $0x138] sm:$0xff]
  %v657 = vld [vmem:[%s616 + $0x140] sm:$0xff]
  %v658 = vld [vmem:[%s616 + $0x148] sm:$0xff]
  %v659 = vld [vmem:[%s616 + $0x150] sm:$0xff]
  %v660 = vld [vmem:[%s616 + $0x158] sm:$0xff]
  %v661 = vld [vmem:[%s616 + $0x160] sm:$0xff]
  %v662 = vld [vmem:[%s616 + $0x168] sm:$0xff]
  %v663 = vld [vmem:[%s616 + $0x170] sm:$0xff]
  %v664 = vld [vmem:[%s616 + $0x178] sm:$0xff]
  %v665 = vld [vmem:[%s616 + $0x180] sm:$0xff]
  %v666 = vld [vmem:[%s616 + $0x188] sm:$0xff]
  %v667 = vld [vmem:[%s616 + $0x190] sm:$0xff]
  %v668 = vld [vmem:[%s616 + $0x198] sm:$0xff]
  %v669 = vld [vmem:[%s616 + $0x1a0] sm:$0xff]
  %v670 = vld [vmem:[%s616 + $0x1a8] sm:$0xff]
  %v671 = vld [vmem:[%s616 + $0x1b0] sm:$0xff]
  %v672 = vld [vmem:[%s616 + $0x1b8] sm:$0xff]
  %v673 = vld [vmem:[%s616 + $0x1c0] sm:$0xff]
  %v674 = vld [vmem:[%s616 + $0x1c8] sm:$0xff]
  %v675 = vld [vmem:[%s616 + $0x1d0] sm:$0xff]
  %v676 = vld [vmem:[%s616 + $0x1d8] sm:$0xff]
  %v677 = vld [vmem:[%s616 + $0x1e0] sm:$0xff]
  %v678 = vld [vmem:[%s616 + $0x1e8] sm:$0xff]
  %v679 = vld [vmem:[%s616 + $0x1f0] sm:$0xff]
  %v680 = vld [vmem:[%s616 + $0x1f8] sm:$0xff]
  %v745 = vunpack.c.l.b16 %v617
  %v746 = vunpack.c.h.b16 %v617
  %v747 = vunpack.c.l.b16 %v618
  %v748 = vunpack.c.h.b16 %v618
  %v749 = vunpack.c.l.b16 %v619
  %v750 = vunpack.c.h.b16 %v619
  %v751 = vunpack.c.l.b16 %v620
  %v752 = vunpack.c.h.b16 %v620
  %v753 = vunpack.c.l.b16 %v621
  %v754 = vunpack.c.h.b16 %v621
  %v755 = vunpack.c.l.b16 %v622
  %v756 = vunpack.c.h.b16 %v622
  %v757 = vunpack.c.l.b16 %v623
  %v758 = vunpack.c.h.b16 %v623
  %v759 = vunpack.c.l.b16 %v624
  %v760 = vunpack.c.h.b16 %v624
  %v761 = vunpack.c.l.b16 %v625
  %v762 = vunpack.c.h.b16 %v625
  %v763 = vunpack.c.l.b16 %v626
  %v764 = vunpack.c.h.b16 %v626
  %v765 = vunpack.c.l.b16 %v627
  %v766 = vunpack.c.h.b16 %v627
  %v767 = vunpack.c.l.b16 %v628
  %v768 = vunpack.c.h.b16 %v628
  %v769 = vunpack.c.l.b16 %v629
  %v770 = vunpack.c.h.b16 %v629
  %v771 = vunpack.c.l.b16 %v630
  %v772 = vunpack.c.h.b16 %v630
  %v773 = vunpack.c.l.b16 %v631
  %v774 = vunpack.c.h.b16 %v631
  %v775 = vunpack.c.l.b16 %v632
  %v776 = vunpack.c.h.b16 %v632
  %v777 = vunpack.c.l.b16 %v633
  %v778 = vunpack.c.h.b16 %v633
  %v779 = vunpack.c.l.b16 %v634
  %v780 = vunpack.c.h.b16 %v634
  %v781 = vunpack.c.l.b16 %v635
  %v782 = vunpack.c.h.b16 %v635
  %v783 = vunpack.c.l.b16 %v636
  %v784 = vunpack.c.h.b16 %v636
  %v785 = vunpack.c.l.b16 %v637
  %v786 = vunpack.c.h.b16 %v637
  %v787 = vunpack.c.l.b16 %v638
  %v788 = vunpack.c.h.b16 %v638
  %v789 = vunpack.c.l.b16 %v639
  %v790 = vunpack.c.h.b16 %v639
  %v791 = vunpack.c.l.b16 %v640
  %v792 = vunpack.c.h.b16 %v640
  %v793 = vunpack.c.l.b16 %v641
  %v794 = vunpack.c.h.b16 %v641
  %v795 = vunpack.c.l.b16 %v642
  %v796 = vunpack.c.h.b16 %v642
  %v797 = vunpack.c.l.b16 %v643
  %v798 = vunpack.c.h.b16 %v643
  %v799 = vunpack.c.l.b16 %v644
  %v800 = vunpack.c.h.b16 %v644
  %v801 = vunpack.c.l.b16 %v645
  %v802 = vunpack.c.h.b16 %v645
  %v803 = vunpack.c.l.b16 %v646
  %v804 = vunpack.c.h.b16 %v646
  %v805 = vunpack.c.l.b16 %v647
  %v806 = vunpack.c.h.b16 %v647
  %v807 = vunpack.c.l.b16 %v648
  %v808 = vunpack.c.h.b16 %v648
  %v809 = vunpack.c.l.b16 %v649
  %v810 = vunpack.c.h.b16 %v649
  %v811 = vunpack.c.l.b16 %v650
  %v812 = vunpack.c.h.b16 %v650
  %v813 = vunpack.c.l.b16 %v651
  %v814 = vunpack.c.h.b16 %v651
  %v815 = vunpack.c.l.b16 %v652
  %v816 = vunpack.c.h.b16 %v652
  %v817 = vunpack.c.l.b16 %v653
  %v818 = vunpack.c.h.b16 %v653
  %v819 = vunpack.c.l.b16 %v654
  %v820 = vunpack.c.h.b16 %v654
  %v821 = vunpack.c.l.b16 %v655
  %v822 = vunpack.c.h.b16 %v655
  %v823 = vunpack.c.l.b16 %v656
  %v824 = vunpack.c.h.b16 %v656
  %v825 = vunpack.c.l.b16 %v657
  %v826 = vunpack.c.h.b16 %v657
  %v827 = vunpack.c.l.b16 %v658
  %v828 = vunpack.c.h.b16 %v658
  %v829 = vunpack.c.l.b16 %v659
  %v830 = vunpack.c.h.b16 %v659
  %v831 = vunpack.c.l.b16 %v660
  %v832 = vunpack.c.h.b16 %v660
  %v833 = vunpack.c.l.b16 %v661
  %v834 = vunpack.c.h.b16 %v661
  %v835 = vunpack.c.l.b16 %v662
  %v836 = vunpack.c.h.b16 %v662
  %v837 = vunpack.c.l.b16 %v663
  %v838 = vunpack.c.h.b16 %v663
  %v839 = vunpack.c.l.b16 %v664
  %v840 = vunpack.c.h.b16 %v664
  %v841 = vunpack.c.l.b16 %v665
  %v842 = vunpack.c.h.b16 %v665
  %v843 = vunpack.c.l.b16 %v666
  %v844 = vunpack.c.h.b16 %v666
  %v845 = vunpack.c.l.b16 %v667
  %v846 = vunpack.c.h.b16 %v667
  %v847 = vunpack.c.l.b16 %v668
  %v848 = vunpack.c.h.b16 %v668
  %v849 = vunpack.c.l.b16 %v669
  %v850 = vunpack.c.h.b16 %v669
  %v851 = vunpack.c.l.b16 %v670
  %v852 = vunpack.c.h.b16 %v670
  %v853 = vunpack.c.l.b16 %v671
  %v854 = vunpack.c.h.b16 %v671
  %v855 = vunpack.c.l.b16 %v672
  %v856 = vunpack.c.h.b16 %v672
  %v857 = vunpack.c.l.b16 %v673
  %v858 = vunpack.c.h.b16 %v673
  %v859 = vunpack.c.l.b16 %v674
  %v860 = vunpack.c.h.b16 %v674
  %v861 = vunpack.c.l.b16 %v675
  %v862 = vunpack.c.h.b16 %v675
  %v863 = vunpack.c.l.b16 %v676
  %v864 = vunpack.c.h.b16 %v676
  %v865 = vunpack.c.l.b16 %v677
  %v866 = vunpack.c.h.b16 %v677
  %v867 = vunpack.c.l.b16 %v678
  %v868 = vunpack.c.h.b16 %v678
  %v869 = vunpack.c.l.b16 %v679
  %v870 = vunpack.c.h.b16 %v679
  %v871 = vunpack.c.l.b16 %v680
  %v872 = vunpack.c.h.b16 %v680
  %v873 = vpack.c.b16 %v761, %v745
  %v874 = vpack.c.b16 %v762, %v746
  %v875 = vpack.c.b16 %v763, %v747
  %v876 = vpack.c.b16 %v764, %v748
  %v877 = vpack.c.b16 %v765, %v749
  %v878 = vpack.c.b16 %v766, %v750
  %v879 = vpack.c.b16 %v767, %v751
  %v880 = vpack.c.b16 %v768, %v752
  %v881 = vpack.c.b16 %v769, %v753
  %v882 = vpack.c.b16 %v770, %v754
  %v883 = vpack.c.b16 %v771, %v755
  %v884 = vpack.c.b16 %v772, %v756
  %v885 = vpack.c.b16 %v773, %v757
  %v886 = vpack.c.b16 %v774, %v758
  %v887 = vpack.c.b16 %v775, %v759
  %v888 = vpack.c.b16 %v776, %v760
  %v889 = vpack.c.b16 %v793, %v777
  %v890 = vpack.c.b16 %v794, %v778
  %v891 = vpack.c.b16 %v795, %v779
  %v892 = vpack.c.b16 %v796, %v780
  %v893 = vpack.c.b16 %v797, %v781
  %v894 = vpack.c.b16 %v798, %v782
  %v895 = vpack.c.b16 %v799, %v783
  %v896 = vpack.c.b16 %v800, %v784
  %v897 = vpack.c.b16 %v801, %v785
  %v898 = vpack.c.b16 %v802, %v786
  %v899 = vpack.c.b16 %v803, %v787
  %v900 = vpack.c.b16 %v804, %v788
  %v901 = vpack.c.b16 %v805, %v789
  %v902 = vpack.c.b16 %v806, %v790
  %v903 = vpack.c.b16 %v807, %v791
  %v904 = vpack.c.b16 %v808, %v792
  %v905 = vpack.c.b16 %v825, %v809
  %v906 = vpack.c.b16 %v826, %v810
  %v907 = vpack.c.b16 %v827, %v811
  %v908 = vpack.c.b16 %v828, %v812
  %v909 = vpack.c.b16 %v829, %v813
  %v910 = vpack.c.b16 %v830, %v814
  %v911 = vpack.c.b16 %v831, %v815
  %v912 = vpack.c.b16 %v832, %v816
  %v913 = vpack.c.b16 %v833, %v817
  %v914 = vpack.c.b16 %v834, %v818
  %v915 = vpack.c.b16 %v835, %v819
  %v916 = vpack.c.b16 %v836, %v820
  %v917 = vpack.c.b16 %v837, %v821
  %v918 = vpack.c.b16 %v838, %v822
  %v919 = vpack.c.b16 %v839, %v823
  %v920 = vpack.c.b16 %v840, %v824
  %v921 = vpack.c.b16 %v857, %v841
  %v922 = vpack.c.b16 %v858, %v842
  %v923 = vpack.c.b16 %v859, %v843
  %v924 = vpack.c.b16 %v860, %v844
  %v925 = vpack.c.b16 %v861, %v845
  %v926 = vpack.c.b16 %v862, %v846
  %v927 = vpack.c.b16 %v863, %v847
  %v928 = vpack.c.b16 %v864, %v848
  %v929 = vpack.c.b16 %v865, %v849
  %v930 = vpack.c.b16 %v866, %v850
  %v931 = vpack.c.b16 %v867, %v851
  %v932 = vpack.c.b16 %v868, %v852
  %v933 = vpack.c.b16 %v869, %v853
  %v934 = vpack.c.b16 %v870, %v854
  %v935 = vpack.c.b16 %v871, %v855
  %v936 = vpack.c.b16 %v872, %v856
  %v1002 = vsel %vm402, %v615, 0
  %1004 = vmatpush.bf16.msra.mxu0 0
  %1005 = vmatpush.bf16.msra.mxu0 0
  %1006 = vmatpush.bf16.msra.mxu0 0
  %1007 = vmatpush.bf16.msra.mxu0 0
  %1008 = vmatpush.bf16.msra.mxu0 %v921
  %1009 = vmatpush.bf16.msra.mxu0 %v905
  %1010 = vmatpush.bf16.msra.mxu0 %v889
  %1011 = vmatpush.bf16.msra.mxu0 %v873
  %1012 = vmatmul.bf16.gmra.mxu0 %v1002
  %v1013 = vpop.f32.mrf.mxu0
  %v1014 = vadd.f32 0.0, %v1013
  %v1015 = vpop.f32.mrf.mxu0
  %1016 = vdwg.mxu0
  %1017 = vmatpush.bf16.msra.mxu0 0
  %1018 = vmatpush.bf16.msra.mxu0 0
  %1019 = vmatpush.bf16.msra.mxu0 0
  %1020 = vmatpush.bf16.msra.mxu0 0
  %1021 = vmatpush.bf16.msra.mxu0 %v922
  %1022 = vmatpush.bf16.msra.mxu0 %v906
  %1023 = vmatpush.bf16.msra.mxu0 %v890
  %1024 = vmatpush.bf16.msra.mxu0 %v874
  %1025 = vmatmul.bf16.gmra.mxu0 %v1002
  %v1026 = vpop.f32.mrf.mxu0
  %v1027 = vadd.f32 0.0, %v1026
  %v1028 = vpop.f32.mrf.mxu0
  %1029 = vdwg.mxu0
  %1030 = vmatpush.bf16.msra.mxu0 0
  %1031 = vmatpush.bf16.msra.mxu0 0
  %1032 = vmatpush.bf16.msra.mxu0 0
  %1033 = vmatpush.bf16.msra.mxu0 0
  %1034 = vmatpush.bf16.msra.mxu0 %v923
  %1035 = vmatpush.bf16.msra.mxu0 %v907
  %1036 = vmatpush.bf16.msra.mxu0 %v891
  %1037 = vmatpush.bf16.msra.mxu0 %v875
  %1038 = vmatmul.bf16.gmra.mxu0 %v1002
  %v1039 = vpop.f32.mrf.mxu0
  %v1040 = vadd.f32 0.0, %v1039
  %v1041 = vpop.f32.mrf.mxu0
  %1042 = vdwg.mxu0
  %1043 = vmatpush.bf16.msra.mxu0 0
  %1044 = vmatpush.bf16.msra.mxu0 0
  %1045 = vmatpush.bf16.msra.mxu0 0
  %1046 = vmatpush.bf16.msra.mxu0 0
  %1047 = vmatpush.bf16.msra.mxu0 %v924
  %1048 = vmatpush.bf16.msra.mxu0 %v908
  %1049 = vmatpush.bf16.msra.mxu0 %v892
  %1050 = vmatpush.bf16.msra.mxu0 %v876
  %1051 = vmatmul.bf16.gmra.mxu0 %v1002
  %v1052 = vpop.f32.mrf.mxu0
  %v1053 = vadd.f32 0.0, %v1052
  %v1054 = vpop.f32.mrf.mxu0
  %1055 = vdwg.mxu0
  %1056 = vmatpush.bf16.msra.mxu0 0
  %1057 = vmatpush.bf16.msra.mxu0 0
  %1058 = vmatpush.bf16.msra.mxu0 0
  %1059 = vmatpush.bf16.msra.mxu0 0
  %1060 = vmatpush.bf16.msra.mxu0 %v925
  %1061 = vmatpush.bf16.msra.mxu0 %v909
  %1062 = vmatpush.bf16.msra.mxu0 %v893
  %1063 = vmatpush.bf16.msra.mxu0 %v877
  %1064 = vmatmul.bf16.gmra.mxu0 %v1002
  %v1065 = vpop.f32.mrf.mxu0
  %v1066 = vadd.f32 0.0, %v1065
  %v1067 = vpop.f32.mrf.mxu0
  %1068 = vdwg.mxu0
  %1069 = vmatpush.bf16.msra.mxu0 0
  %1070 = vmatpush.bf16.msra.mxu0 0
  %1071 = vmatpush.bf16.msra.mxu0 0
  %1072 = vmatpush.bf16.msra.mxu0 0
  %1073 = vmatpush.bf16.msra.mxu0 %v926
  %1074 = vmatpush.bf16.msra.mxu0 %v910
  %1075 = vmatpush.bf16.msra.mxu0 %v894
  %1076 = vmatpush.bf16.msra.mxu0 %v878
  %1077 = vmatmul.bf16.gmra.mxu0 %v1002
  %v1078 = vpop.f32.mrf.mxu0
  %v1079 = vadd.f32 0.0, %v1078
  %v1080 = vpop.f32.mrf.mxu0
  %1081 = vdwg.mxu0
  %1082 = vmatpush.bf16.msra.mxu0 0
  %1083 = vmatpush.bf16.msra.mxu0 0
  %1084 = vmatpush.bf16.msra.mxu0 0
  %1085 = vmatpush.bf16.msra.mxu0 0
  %1086 = vmatpush.bf16.msra.mxu0 %v927
  %1087 = vmatpush.bf16.msra.mxu0 %v911
  %1088 = vmatpush.bf16.msra.mxu0 %v895
  %1089 = vmatpush.bf16.msra.mxu0 %v879
  %1090 = vmatmul.bf16.gmra.mxu0 %v1002
  %v1091 = vpop.f32.mrf.mxu0
  %v1092 = vadd.f32 0.0, %v1091
  %v1093 = vpop.f32.mrf.mxu0
  %1094 = vdwg.mxu0
  %1095 = vmatpush.bf16.msra.mxu0 0
  %1096 = vmatpush.bf16.msra.mxu0 0
  %1097 = vmatpush.bf16.msra.mxu0 0
  %1098 = vmatpush.bf16.msra.mxu0 0
  %1099 = vmatpush.bf16.msra.mxu0 %v928
  %1100 = vmatpush.bf16.msra.mxu0 %v912
  %1101 = vmatpush.bf16.msra.mxu0 %v896
  %1102 = vmatpush.bf16.msra.mxu0 %v880
  %1103 = vmatmul.bf16.gmra.mxu0 %v1002
  %v1104 = vpop.f32.mrf.mxu0
  %v1105 = vadd.f32 0.0, %v1104
  %v1106 = vpop.f32.mrf.mxu0
  %1107 = vdwg.mxu0
  %1108 = vmatpush.bf16.msra.mxu0 0
  %1109 = vmatpush.bf16.msra.mxu0 0
  %1110 = vmatpush.bf16.msra.mxu0 0
  %1111 = vmatpush.bf16.msra.mxu0 0
  %1112 = vmatpush.bf16.msra.mxu0 %v929
  %1113 = vmatpush.bf16.msra.mxu0 %v913
  %1114 = vmatpush.bf16.msra.mxu0 %v897
  %1115 = vmatpush.bf16.msra.mxu0 %v881
  %1116 = vmatmul.bf16.gmra.mxu0 %v1002
  %v1117 = vpop.f32.mrf.mxu0
  %v1118 = vadd.f32 0.0, %v1117
  %v1119 = vpop.f32.mrf.mxu0
  %1120 = vdwg.mxu0
  %1121 = vmatpush.bf16.msra.mxu0 0
  %1122 = vmatpush.bf16.msra.mxu0 0
  %1123 = vmatpush.bf16.msra.mxu0 0
  %1124 = vmatpush.bf16.msra.mxu0 0
  %1125 = vmatpush.bf16.msra.mxu0 %v930
  %1126 = vmatpush.bf16.msra.mxu0 %v914
  %1127 = vmatpush.bf16.msra.mxu0 %v898
  %1128 = vmatpush.bf16.msra.mxu0 %v882
  %1129 = vmatmul.bf16.gmra.mxu0 %v1002
  %v1130 = vpop.f32.mrf.mxu0
  %v1131 = vadd.f32 0.0, %v1130
  %v1132 = vpop.f32.mrf.mxu0
  %1133 = vdwg.mxu0
  %1134 = vmatpush.bf16.msra.mxu0 0
  %1135 = vmatpush.bf16.msra.mxu0 0
  %1136 = vmatpush.bf16.msra.mxu0 0
  %1137 = vmatpush.bf16.msra.mxu0 0
  %1138 = vmatpush.bf16.msra.mxu0 %v931
  %1139 = vmatpush.bf16.msra.mxu0 %v915
  %1140 = vmatpush.bf16.msra.mxu0 %v899
  %1141 = vmatpush.bf16.msra.mxu0 %v883
  %1142 = vmatmul.bf16.gmra.mxu0 %v1002
  %v1143 = vpop.f32.mrf.mxu0
  %v1144 = vadd.f32 0.0, %v1143
  %v1145 = vpop.f32.mrf.mxu0
  %1146 = vdwg.mxu0
  %1147 = vmatpush.bf16.msra.mxu0 0
  %1148 = vmatpush.bf16.msra.mxu0 0
  %1149 = vmatpush.bf16.msra.mxu0 0
  %1150 = vmatpush.bf16.msra.mxu0 0
  %1151 = vmatpush.bf16.msra.mxu0 %v932
  %1152 = vmatpush.bf16.msra.mxu0 %v916
  %1153 = vmatpush.bf16.msra.mxu0 %v900
  %1154 = vmatpush.bf16.msra.mxu0 %v884
  %1155 = vmatmul.bf16.gmra.mxu0 %v1002
  %v1156 = vpop.f32.mrf.mxu0
  %v1157 = vadd.f32 0.0, %v1156
  %v1158 = vpop.f32.mrf.mxu0
  %1159 = vdwg.mxu0
  %1160 = vmatpush.bf16.msra.mxu0 0
  %1161 = vmatpush.bf16.msra.mxu0 0
  %1162 = vmatpush.bf16.msra.mxu0 0
  %1163 = vmatpush.bf16.msra.mxu0 0
  %1164 = vmatpush.bf16.msra.mxu0 %v933
  %1165 = vmatpush.bf16.msra.mxu0 %v917
  %1166 = vmatpush.bf16.msra.mxu0 %v901
  %1167 = vmatpush.bf16.msra.mxu0 %v885
  %1168 = vmatmul.bf16.gmra.mxu0 %v1002
  %v1169 = vpop.f32.mrf.mxu0
  %v1170 = vadd.f32 0.0, %v1169
  %v1171 = vpop.f32.mrf.mxu0
  %1172 = vdwg.mxu0
  %1173 = vmatpush.bf16.msra.mxu0 0
  %1174 = vmatpush.bf16.msra.mxu0 0
  %1175 = vmatpush.bf16.msra.mxu0 0
  %1176 = vmatpush.bf16.msra.mxu0 0
  %1177 = vmatpush.bf16.msra.mxu0 %v934
  %1178 = vmatpush.bf16.msra.mxu0 %v918
  %1179 = vmatpush.bf16.msra.mxu0 %v902
  %1180 = vmatpush.bf16.msra.mxu0 %v886
  %1181 = vmatmul.bf16.gmra.mxu0 %v1002
  %v1182 = vpop.f32.mrf.mxu0
  %v1183 = vadd.f32 0.0, %v1182
  %v1184 = vpop.f32.mrf.mxu0
  %1185 = vdwg.mxu0
  %1186 = vmatpush.bf16.msra.mxu0 0
  %1187 = vmatpush.bf16.msra.mxu0 0
  %1188 = vmatpush.bf16.msra.mxu0 0
  %1189 = vmatpush.bf16.msra.mxu0 0
  %1190 = vmatpush.bf16.msra.mxu0 %v935
  %1191 = vmatpush.bf16.msra.mxu0 %v919
  %1192 = vmatpush.bf16.msra.mxu0 %v903
  %1193 = vmatpush.bf16.msra.mxu0 %v887
  %1194 = vmatmul.bf16.gmra.mxu0 %v1002
  %v1195 = vpop.f32.mrf.mxu0
  %v1196 = vadd.f32 0.0, %v1195
  %v1197 = vpop.f32.mrf.mxu0
  %1198 = vdwg.mxu0
  %1199 = vmatpush.bf16.msra.mxu0 0
  %1200 = vmatpush.bf16.msra.mxu0 0
  %1201 = vmatpush.bf16.msra.mxu0 0
  %1202 = vmatpush.bf16.msra.mxu0 0
  %1203 = vmatpush.bf16.msra.mxu0 %v936
  %1204 = vmatpush.bf16.msra.mxu0 %v920
  %1205 = vmatpush.bf16.msra.mxu0 %v904
  %1206 = vmatpush.bf16.msra.mxu0 %v888
  %1207 = vmatmul.bf16.gmra.mxu0 %v1002
  %v1208 = vpop.f32.mrf.mxu0
  %v1209 = vadd.f32 0.0, %v1208
  %v1210 = vpop.f32.mrf.mxu0
  %1211 = vdwg.mxu0
  %s1212 = scalar_lea.vmem %s0, 2
  %v1213 = vld [vmem:[%s1212] sm:$0x1]
  %s1214 = scalar_lea.vmem %s2, 1024
  %v1215 = vld [vmem:[%s1214] sm:$0xff]
  %v1216 = vld [vmem:[%s1214 + $0x8] sm:$0xff]
  %v1217 = vld [vmem:[%s1214 + $0x10] sm:$0xff]
  %v1218 = vld [vmem:[%s1214 + $0x18] sm:$0xff]
  %v1219 = vld [vmem:[%s1214 + $0x20] sm:$0xff]
  %v1220 = vld [vmem:[%s1214 + $0x28] sm:$0xff]
  %v1221 = vld [vmem:[%s1214 + $0x30] sm:$0xff]
  %v1222 = vld [vmem:[%s1214 + $0x38] sm:$0xff]
  %v1223 = vld [vmem:[%s1214 + $0x40] sm:$0xff]
  %v1224 = vld [vmem:[%s1214 + $0x48] sm:$0xff]
  %v1225 = vld [vmem:[%s1214 + $0x50] sm:$0xff]
  %v1226 = vld [vmem:[%s1214 + $0x58] sm:$0xff]
  %v1227 = vld [vmem:[%s1214 + $0x60] sm:$0xff]
  %v1228 = vld [vmem:[%s1214 + $0x68] sm:$0xff]
  %v1229 = vld [vmem:[%s1214 + $0x70] sm:$0xff]
  %v1230 = vld [vmem:[%s1214 + $0x78] sm:$0xff]
  %v1231 = vld [vmem:[%s1214 + $0x80] sm:$0xff]
  %v1232 = vld [vmem:[%s1214 + $0x88] sm:$0xff]
  %v1233 = vld [vmem:[%s1214 + $0x90] sm:$0xff]
  %v1234 = vld [vmem:[%s1214 + $0x98] sm:$0xff]
  %v1235 = vld [vmem:[%s1214 + $0xa0] sm:$0xff]
  %v1236 = vld [vmem:[%s1214 + $0xa8] sm:$0xff]
  %v1237 = vld [vmem:[%s1214 + $0xb0] sm:$0xff]
  %v1238 = vld [vmem:[%s1214 + $0xb8] sm:$0xff]
  %v1239 = vld [vmem:[%s1214 + $0xc0] sm:$0xff]
  %v1240 = vld [vmem:[%s1214 + $0xc8] sm:$0xff]
  %v1241 = vld [vmem:[%s1214 + $0xd0] sm:$0xff]
  %v1242 = vld [vmem:[%s1214 + $0xd8] sm:$0xff]
  %v1243 = vld [vmem:[%s1214 + $0xe0] sm:$0xff]
  %v1244 = vld [vmem:[%s1214 + $0xe8] sm:$0xff]
  %v1245 = vld [vmem:[%s1214 + $0xf0] sm:$0xff]
  %v1246 = vld [vmem:[%s1214 + $0xf8] sm:$0xff]
  %v1247 = vld [vmem:[%s1214 + $0x100] sm:$0xff]
  %v1248 = vld [vmem:[%s1214 + $0x108] sm:$0xff]
  %v1249 = vld [vmem:[%s1214 + $0x110] sm:$0xff]
  %v1250 = vld [vmem:[%s1214 + $0x118] sm:$0xff]
  %v1251 = vld [vmem:[%s1214 + $0x120] sm:$0xff]
  %v1252 = vld [vmem:[%s1214 + $0x128] sm:$0xff]
  %v1253 = vld [vmem:[%s1214 + $0x130] sm:$0xff]
  %v1254 = vld [vmem:[%s1214 + $0x138] sm:$0xff]
  %v1255 = vld [vmem:[%s1214 + $0x140] sm:$0xff]
  %v1256 = vld [vmem:[%s1214 + $0x148] sm:$0xff]
  %v1257 = vld [vmem:[%s1214 + $0x150] sm:$0xff]
  %v1258 = vld [vmem:[%s1214 + $0x158] sm:$0xff]
  %v1259 = vld [vmem:[%s1214 + $0x160] sm:$0xff]
  %v1260 = vld [vmem:[%s1214 + $0x168] sm:$0xff]
  %v1261 = vld [vmem:[%s1214 + $0x170] sm:$0xff]
  %v1262 = vld [vmem:[%s1214 + $0x178] sm:$0xff]
  %v1263 = vld [vmem:[%s1214 + $0x180] sm:$0xff]
  %v1264 = vld [vmem:[%s1214 + $0x188] sm:$0xff]
  %v1265 = vld [vmem:[%s1214 + $0x190] sm:$0xff]
  %v1266 = vld [vmem:[%s1214 + $0x198] sm:$0xff]
  %v1267 = vld [vmem:[%s1214 + $0x1a0] sm:$0xff]
  %v1268 = vld [vmem:[%s1214 + $0x1a8] sm:$0xff]
  %v1269 = vld [vmem:[%s1214 + $0x1b0] sm:$0xff]
  %v1270 = vld [vmem:[%s1214 + $0x1b8] sm:$0xff]
  %v1271 = vld [vmem:[%s1214 + $0x1c0] sm:$0xff]
  %v1272 = vld [vmem:[%s1214 + $0x1c8] sm:$0xff]
  %v1273 = vld [vmem:[%s1214 + $0x1d0] sm:$0xff]
  %v1274 = vld [vmem:[%s1214 + $0x1d8] sm:$0xff]
  %v1275 = vld [vmem:[%s1214 + $0x1e0] sm:$0xff]
  %v1276 = vld [vmem:[%s1214 + $0x1e8] sm:$0xff]
  %v1277 = vld [vmem:[%s1214 + $0x1f0] sm:$0xff]
  %v1278 = vld [vmem:[%s1214 + $0x1f8] sm:$0xff]
  %v1343 = vunpack.c.l.b16 %v1215
  %v1344 = vunpack.c.h.b16 %v1215
  %v1345 = vunpack.c.l.b16 %v1216
  %v1346 = vunpack.c.h.b16 %v1216
  %v1347 = vunpack.c.l.b16 %v1217
  %v1348 = vunpack.c.h.b16 %v1217
  %v1349 = vunpack.c.l.b16 %v1218
  %v1350 = vunpack.c.h.b16 %v1218
  %v1351 = vunpack.c.l.b16 %v1219
  %v1352 = vunpack.c.h.b16 %v1219
  %v1353 = vunpack.c.l.b16 %v1220
  %v1354 = vunpack.c.h.b16 %v1220
  %v1355 = vunpack.c.l.b16 %v1221
  %v1356 = vunpack.c.h.b16 %v1221
  %v1357 = vunpack.c.l.b16 %v1222
  %v1358 = vunpack.c.h.b16 %v1222
  %v1359 = vunpack.c.l.b16 %v1223
  %v1360 = vunpack.c.h.b16 %v1223
  %v1361 = vunpack.c.l.b16 %v1224
  %v1362 = vunpack.c.h.b16 %v1224
  %v1363 = vunpack.c.l.b16 %v1225
  %v1364 = vunpack.c.h.b16 %v1225
  %v1365 = vunpack.c.l.b16 %v1226
  %v1366 = vunpack.c.h.b16 %v1226
  %v1367 = vunpack.c.l.b16 %v1227
  %v1368 = vunpack.c.h.b16 %v1227
  %v1369 = vunpack.c.l.b16 %v1228
  %v1370 = vunpack.c.h.b16 %v1228
  %v1371 = vunpack.c.l.b16 %v1229
  %v1372 = vunpack.c.h.b16 %v1229
  %v1373 = vunpack.c.l.b16 %v1230
  %v1374 = vunpack.c.h.b16 %v1230
  %v1375 = vunpack.c.l.b16 %v1231
  %v1376 = vunpack.c.h.b16 %v1231
  %v1377 = vunpack.c.l.b16 %v1232
  %v1378 = vunpack.c.h.b16 %v1232
  %v1379 = vunpack.c.l.b16 %v1233
  %v1380 = vunpack.c.h.b16 %v1233
  %v1381 = vunpack.c.l.b16 %v1234
  %v1382 = vunpack.c.h.b16 %v1234
  %v1383 = vunpack.c.l.b16 %v1235
  %v1384 = vunpack.c.h.b16 %v1235
  %v1385 = vunpack.c.l.b16 %v1236
  %v1386 = vunpack.c.h.b16 %v1236
  %v1387 = vunpack.c.l.b16 %v1237
  %v1388 = vunpack.c.h.b16 %v1237
  %v1389 = vunpack.c.l.b16 %v1238
  %v1390 = vunpack.c.h.b16 %v1238
  %v1391 = vunpack.c.l.b16 %v1239
  %v1392 = vunpack.c.h.b16 %v1239
  %v1393 = vunpack.c.l.b16 %v1240
  %v1394 = vunpack.c.h.b16 %v1240
  %v1395 = vunpack.c.l.b16 %v1241
  %v1396 = vunpack.c.h.b16 %v1241
  %v1397 = vunpack.c.l.b16 %v1242
  %v1398 = vunpack.c.h.b16 %v1242
  %v1399 = vunpack.c.l.b16 %v1243
  %v1400 = vunpack.c.h.b16 %v1243
  %v1401 = vunpack.c.l.b16 %v1244
  %v1402 = vunpack.c.h.b16 %v1244
  %v1403 = vunpack.c.l.b16 %v1245
  %v1404 = vunpack.c.h.b16 %v1245
  %v1405 = vunpack.c.l.b16 %v1246
  %v1406 = vunpack.c.h.b16 %v1246
  %v1407 = vunpack.c.l.b16 %v1247
  %v1408 = vunpack.c.h.b16 %v1247
  %v1409 = vunpack.c.l.b16 %v1248
  %v1410 = vunpack.c.h.b16 %v1248
  %v1411 = vunpack.c.l.b16 %v1249
  %v1412 = vunpack.c.h.b16 %v1249
  %v1413 = vunpack.c.l.b16 %v1250
  %v1414 = vunpack.c.h.b16 %v1250
  %v1415 = vunpack.c.l.b16 %v1251
  %v1416 = vunpack.c.h.b16 %v1251
  %v1417 = vunpack.c.l.b16 %v1252
  %v1418 = vunpack.c.h.b16 %v1252
  %v1419 = vunpack.c.l.b16 %v1253
  %v1420 = vunpack.c.h.b16 %v1253
  %v1421 = vunpack.c.l.b16 %v1254
  %v1422 = vunpack.c.h.b16 %v1254
  %v1423 = vunpack.c.l.b16 %v1255
  %v1424 = vunpack.c.h.b16 %v1255
  %v1425 = vunpack.c.l.b16 %v1256
  %v1426 = vunpack.c.h.b16 %v1256
  %v1427 = vunpack.c.l.b16 %v1257
  %v1428 = vunpack.c.h.b16 %v1257
  %v1429 = vunpack.c.l.b16 %v1258
  %v1430 = vunpack.c.h.b16 %v1258
  %v1431 = vunpack.c.l.b16 %v1259
  %v1432 = vunpack.c.h.b16 %v1259
  %v1433 = vunpack.c.l.b16 %v1260
  %v1434 = vunpack.c.h.b16 %v1260
  %v1435 = vunpack.c.l.b16 %v1261
  %v1436 = vunpack.c.h.b16 %v1261
  %v1437 = vunpack.c.l.b16 %v1262
  %v1438 = vunpack.c.h.b16 %v1262
  %v1439 = vunpack.c.l.b16 %v1263
  %v1440 = vunpack.c.h.b16 %v1263
  %v1441 = vunpack.c.l.b16 %v1264
  %v1442 = vunpack.c.h.b16 %v1264
  %v1443 = vunpack.c.l.b16 %v1265
  %v1444 = vunpack.c.h.b16 %v1265
  %v1445 = vunpack.c.l.b16 %v1266
  %v1446 = vunpack.c.h.b16 %v1266
  %v1447 = vunpack.c.l.b16 %v1267
  %v1448 = vunpack.c.h.b16 %v1267
  %v1449 = vunpack.c.l.b16 %v1268
  %v1450 = vunpack.c.h.b16 %v1268
  %v1451 = vunpack.c.l.b16 %v1269
  %v1452 = vunpack.c.h.b16 %v1269
  %v1453 = vunpack.c.l.b16 %v1270
  %v1454 = vunpack.c.h.b16 %v1270
  %v1455 = vunpack.c.l.b16 %v1271
  %v1456 = vunpack.c.h.b16 %v1271
  %v1457 = vunpack.c.l.b16 %v1272
  %v1458 = vunpack.c.h.b16 %v1272
  %v1459 = vunpack.c.l.b16 %v1273
  %v1460 = vunpack.c.h.b16 %v1273
  %v1461 = vunpack.c.l.b16 %v1274
  %v1462 = vunpack.c.h.b16 %v1274
  %v1463 = vunpack.c.l.b16 %v1275
  %v1464 = vunpack.c.h.b16 %v1275
  %v1465 = vunpack.c.l.b16 %v1276
  %v1466 = vunpack.c.h.b16 %v1276
  %v1467 = vunpack.c.l.b16 %v1277
  %v1468 = vunpack.c.h.b16 %v1277
  %v1469 = vunpack.c.l.b16 %v1278
  %v1470 = vunpack.c.h.b16 %v1278
  %v1471 = vpack.c.b16 %v1359, %v1343
  %v1472 = vpack.c.b16 %v1360, %v1344
  %v1473 = vpack.c.b16 %v1361, %v1345
  %v1474 = vpack.c.b16 %v1362, %v1346
  %v1475 = vpack.c.b16 %v1363, %v1347
  %v1476 = vpack.c.b16 %v1364, %v1348
  %v1477 = vpack.c.b16 %v1365, %v1349
  %v1478 = vpack.c.b16 %v1366, %v1350
  %v1479 = vpack.c.b16 %v1367, %v1351
  %v1480 = vpack.c.b16 %v1368, %v1352
  %v1481 = vpack.c.b16 %v1369, %v1353
  %v1482 = vpack.c.b16 %v1370, %v1354
  %v1483 = vpack.c.b16 %v1371, %v1355
  %v1484 = vpack.c.b16 %v1372, %v1356
  %v1485 = vpack.c.b16 %v1373, %v1357
  %v1486 = vpack.c.b16 %v1374, %v1358
  %v1487 = vpack.c.b16 %v1391, %v1375
  %v1488 = vpack.c.b16 %v1392, %v1376
  %v1489 = vpack.c.b16 %v1393, %v1377
  %v1490 = vpack.c.b16 %v1394, %v1378
  %v1491 = vpack.c.b16 %v1395, %v1379
  %v1492 = vpack.c.b16 %v1396, %v1380
  %v1493 = vpack.c.b16 %v1397, %v1381
  %v1494 = vpack.c.b16 %v1398, %v1382
  %v1495 = vpack.c.b16 %v1399, %v1383
  %v1496 = vpack.c.b16 %v1400, %v1384
  %v1497 = vpack.c.b16 %v1401, %v1385
  %v1498 = vpack.c.b16 %v1402, %v1386
  %v1499 = vpack.c.b16 %v1403, %v1387
  %v1500 = vpack.c.b16 %v1404, %v1388
  %v1501 = vpack.c.b16 %v1405, %v1389
  %v1502 = vpack.c.b16 %v1406, %v1390
  %v1503 = vpack.c.b16 %v1423, %v1407
  %v1504 = vpack.c.b16 %v1424, %v1408
  %v1505 = vpack.c.b16 %v1425, %v1409
  %v1506 = vpack.c.b16 %v1426, %v1410
  %v1507 = vpack.c.b16 %v1427, %v1411
  %v1508 = vpack.c.b16 %v1428, %v1412
  %v1509 = vpack.c.b16 %v1429, %v1413
  %v1510 = vpack.c.b16 %v1430, %v1414
  %v1511 = vpack.c.b16 %v1431, %v1415
  %v1512 = vpack.c.b16 %v1432, %v1416
  %v1513 = vpack.c.b16 %v1433, %v1417
  %v1514 = vpack.c.b16 %v1434, %v1418
  %v1515 = vpack.c.b16 %v1435, %v1419
  %v1516 = vpack.c.b16 %v1436, %v1420
  %v1517 = vpack.c.b16 %v1437, %v1421
  %v1518 = vpack.c.b16 %v1438, %v1422
  %v1519 = vpack.c.b16 %v1455, %v1439
  %v1520 = vpack.c.b16 %v1456, %v1440
  %v1521 = vpack.c.b16 %v1457, %v1441
  %v1522 = vpack.c.b16 %v1458, %v1442
  %v1523 = vpack.c.b16 %v1459, %v1443
  %v1524 = vpack.c.b16 %v1460, %v1444
  %v1525 = vpack.c.b16 %v1461, %v1445
  %v1526 = vpack.c.b16 %v1462, %v1446
  %v1527 = vpack.c.b16 %v1463, %v1447
  %v1528 = vpack.c.b16 %v1464, %v1448
  %v1529 = vpack.c.b16 %v1465, %v1449
  %v1530 = vpack.c.b16 %v1466, %v1450
  %v1531 = vpack.c.b16 %v1467, %v1451
  %v1532 = vpack.c.b16 %v1468, %v1452
  %v1533 = vpack.c.b16 %v1469, %v1453
  %v1534 = vpack.c.b16 %v1470, %v1454
  %v1600 = vsel %vm402, %v1213, 0
  %1602 = vmatpush.bf16.msra.mxu0 0
  %1603 = vmatpush.bf16.msra.mxu0 0
  %1604 = vmatpush.bf16.msra.mxu0 0
  %1605 = vmatpush.bf16.msra.mxu0 0
  %1606 = vmatpush.bf16.msra.mxu0 %v1519
  %1607 = vmatpush.bf16.msra.mxu0 %v1503
  %1608 = vmatpush.bf16.msra.mxu0 %v1487
  %1609 = vmatpush.bf16.msra.mxu0 %v1471
  %1610 = vmatmul.bf16.gmra.mxu0 %v1600
  %v1611 = vpop.f32.mrf.mxu0
  %v1612 = vadd.f32 0.0, %v1611
  %v1613 = vpop.f32.mrf.mxu0
  %1614 = vdwg.mxu0
  %1615 = vmatpush.bf16.msra.mxu0 0
  %1616 = vmatpush.bf16.msra.mxu0 0
  %1617 = vmatpush.bf16.msra.mxu0 0
  %1618 = vmatpush.bf16.msra.mxu0 0
  %1619 = vmatpush.bf16.msra.mxu0 %v1520
  %1620 = vmatpush.bf16.msra.mxu0 %v1504
  %1621 = vmatpush.bf16.msra.mxu0 %v1488
  %1622 = vmatpush.bf16.msra.mxu0 %v1472
  %1623 = vmatmul.bf16.gmra.mxu0 %v1600
  %v1624 = vpop.f32.mrf.mxu0
  %v1625 = vadd.f32 0.0, %v1624
  %v1626 = vpop.f32.mrf.mxu0
  %1627 = vdwg.mxu0
  %1628 = vmatpush.bf16.msra.mxu0 0
  %1629 = vmatpush.bf16.msra.mxu0 0
  %1630 = vmatpush.bf16.msra.mxu0 0
  %1631 = vmatpush.bf16.msra.mxu0 0
  %1632 = vmatpush.bf16.msra.mxu0 %v1521
  %1633 = vmatpush.bf16.msra.mxu0 %v1505
  %1634 = vmatpush.bf16.msra.mxu0 %v1489
  %1635 = vmatpush.bf16.msra.mxu0 %v1473
  %1636 = vmatmul.bf16.gmra.mxu0 %v1600
  %v1637 = vpop.f32.mrf.mxu0
  %v1638 = vadd.f32 0.0, %v1637
  %v1639 = vpop.f32.mrf.mxu0
  %1640 = vdwg.mxu0
  %1641 = vmatpush.bf16.msra.mxu0 0
  %1642 = vmatpush.bf16.msra.mxu0 0
  %1643 = vmatpush.bf16.msra.mxu0 0
  %1644 = vmatpush.bf16.msra.mxu0 0
  %1645 = vmatpush.bf16.msra.mxu0 %v1522
  %1646 = vmatpush.bf16.msra.mxu0 %v1506
  %1647 = vmatpush.bf16.msra.mxu0 %v1490
  %1648 = vmatpush.bf16.msra.mxu0 %v1474
  %1649 = vmatmul.bf16.gmra.mxu0 %v1600
  %v1650 = vpop.f32.mrf.mxu0
  %v1651 = vadd.f32 0.0, %v1650
  %v1652 = vpop.f32.mrf.mxu0
  %1653 = vdwg.mxu0
  %1654 = vmatpush.bf16.msra.mxu0 0
  %1655 = vmatpush.bf16.msra.mxu0 0
  %1656 = vmatpush.bf16.msra.mxu0 0
  %1657 = vmatpush.bf16.msra.mxu0 0
  %1658 = vmatpush.bf16.msra.mxu0 %v1523
  %1659 = vmatpush.bf16.msra.mxu0 %v1507
  %1660 = vmatpush.bf16.msra.mxu0 %v1491
  %1661 = vmatpush.bf16.msra.mxu0 %v1475
  %1662 = vmatmul.bf16.gmra.mxu0 %v1600
  %v1663 = vpop.f32.mrf.mxu0
  %v1664 = vadd.f32 0.0, %v1663
  %v1665 = vpop.f32.mrf.mxu0
  %1666 = vdwg.mxu0
  %1667 = vmatpush.bf16.msra.mxu0 0
  %1668 = vmatpush.bf16.msra.mxu0 0
  %1669 = vmatpush.bf16.msra.mxu0 0
  %1670 = vmatpush.bf16.msra.mxu0 0
  %1671 = vmatpush.bf16.msra.mxu0 %v1524
  %1672 = vmatpush.bf16.msra.mxu0 %v1508
  %1673 = vmatpush.bf16.msra.mxu0 %v1492
  %1674 = vmatpush.bf16.msra.mxu0 %v1476
  %1675 = vmatmul.bf16.gmra.mxu0 %v1600
  %v1676 = vpop.f32.mrf.mxu0
  %v1677 = vadd.f32 0.0, %v1676
  %v1678 = vpop.f32.mrf.mxu0
  %1679 = vdwg.mxu0
  %1680 = vmatpush.bf16.msra.mxu0 0
  %1681 = vmatpush.bf16.msra.mxu0 0
  %1682 = vmatpush.bf16.msra.mxu0 0
  %1683 = vmatpush.bf16.msra.mxu0 0
  %1684 = vmatpush.bf16.msra.mxu0 %v1525
  %1685 = vmatpush.bf16.msra.mxu0 %v1509
  %1686 = vmatpush.bf16.msra.mxu0 %v1493
  %1687 = vmatpush.bf16.msra.mxu0 %v1477
  %1688 = vmatmul.bf16.gmra.mxu0 %v1600
  %v1689 = vpop.f32.mrf.mxu0
  %v1690 = vadd.f32 0.0, %v1689
  %v1691 = vpop.f32.mrf.mxu0
  %1692 = vdwg.mxu0
  %1693 = vmatpush.bf16.msra.mxu0 0
  %1694 = vmatpush.bf16.msra.mxu0 0
  %1695 = vmatpush.bf16.msra.mxu0 0
  %1696 = vmatpush.bf16.msra.mxu0 0
  %1697 = vmatpush.bf16.msra.mxu0 %v1526
  %1698 = vmatpush.bf16.msra.mxu0 %v1510
  %1699 = vmatpush.bf16.msra.mxu0 %v1494
  %1700 = vmatpush.bf16.msra.mxu0 %v1478
  %1701 = vmatmul.bf16.gmra.mxu0 %v1600
  %v1702 = vpop.f32.mrf.mxu0
  %v1703 = vadd.f32 0.0, %v1702
  %v1704 = vpop.f32.mrf.mxu0
  %1705 = vdwg.mxu0
  %1706 = vmatpush.bf16.msra.mxu0 0
  %1707 = vmatpush.bf16.msra.mxu0 0
  %1708 = vmatpush.bf16.msra.mxu0 0
  %1709 = vmatpush.bf16.msra.mxu0 0
  %1710 = vmatpush.bf16.msra.mxu0 %v1527
  %1711 = vmatpush.bf16.msra.mxu0 %v1511
  %1712 = vmatpush.bf16.msra.mxu0 %v1495
  %1713 = vmatpush.bf16.msra.mxu0 %v1479
  %1714 = vmatmul.bf16.gmra.mxu0 %v1600
  %v1715 = vpop.f32.mrf.mxu0
  %v1716 = vadd.f32 0.0, %v1715
  %v1717 = vpop.f32.mrf.mxu0
  %1718 = vdwg.mxu0
  %1719 = vmatpush.bf16.msra.mxu0 0
  %1720 = vmatpush.bf16.msra.mxu0 0
  %1721 = vmatpush.bf16.msra.mxu0 0
  %1722 = vmatpush.bf16.msra.mxu0 0
  %1723 = vmatpush.bf16.msra.mxu0 %v1528
  %1724 = vmatpush.bf16.msra.mxu0 %v1512
  %1725 = vmatpush.bf16.msra.mxu0 %v1496
  %1726 = vmatpush.bf16.msra.mxu0 %v1480
  %1727 = vmatmul.bf16.gmra.mxu0 %v1600
  %v1728 = vpop.f32.mrf.mxu0
  %v1729 = vadd.f32 0.0, %v1728
  %v1730 = vpop.f32.mrf.mxu0
  %1731 = vdwg.mxu0
  %1732 = vmatpush.bf16.msra.mxu0 0
  %1733 = vmatpush.bf16.msra.mxu0 0
  %1734 = vmatpush.bf16.msra.mxu0 0
  %1735 = vmatpush.bf16.msra.mxu0 0
  %1736 = vmatpush.bf16.msra.mxu0 %v1529
  %1737 = vmatpush.bf16.msra.mxu0 %v1513
  %1738 = vmatpush.bf16.msra.mxu0 %v1497
  %1739 = vmatpush.bf16.msra.mxu0 %v1481
  %1740 = vmatmul.bf16.gmra.mxu0 %v1600
  %v1741 = vpop.f32.mrf.mxu0
  %v1742 = vadd.f32 0.0, %v1741
  %v1743 = vpop.f32.mrf.mxu0
  %1744 = vdwg.mxu0
  %1745 = vmatpush.bf16.msra.mxu0 0
  %1746 = vmatpush.bf16.msra.mxu0 0
  %1747 = vmatpush.bf16.msra.mxu0 0
  %1748 = vmatpush.bf16.msra.mxu0 0
  %1749 = vmatpush.bf16.msra.mxu0 %v1530
  %1750 = vmatpush.bf16.msra.mxu0 %v1514
  %1751 = vmatpush.bf16.msra.mxu0 %v1498
  %1752 = vmatpush.bf16.msra.mxu0 %v1482
  %1753 = vmatmul.bf16.gmra.mxu0 %v1600
  %v1754 = vpop.f32.mrf.mxu0
  %v1755 = vadd.f32 0.0, %v1754
  %v1756 = vpop.f32.mrf.mxu0
  %1757 = vdwg.mxu0
  %1758 = vmatpush.bf16.msra.mxu0 0
  %1759 = vmatpush.bf16.msra.mxu0 0
  %1760 = vmatpush.bf16.msra.mxu0 0
  %1761 = vmatpush.bf16.msra.mxu0 0
  %1762 = vmatpush.bf16.msra.mxu0 %v1531
  %1763 = vmatpush.bf16.msra.mxu0 %v1515
  %1764 = vmatpush.bf16.msra.mxu0 %v1499
  %1765 = vmatpush.bf16.msra.mxu0 %v1483
  %1766 = vmatmul.bf16.gmra.mxu0 %v1600
  %v1767 = vpop.f32.mrf.mxu0
  %v1768 = vadd.f32 0.0, %v1767
  %v1769 = vpop.f32.mrf.mxu0
  %1770 = vdwg.mxu0
  %1771 = vmatpush.bf16.msra.mxu0 0
  %1772 = vmatpush.bf16.msra.mxu0 0
  %1773 = vmatpush.bf16.msra.mxu0 0
  %1774 = vmatpush.bf16.msra.mxu0 0
  %1775 = vmatpush.bf16.msra.mxu0 %v1532
  %1776 = vmatpush.bf16.msra.mxu0 %v1516
  %1777 = vmatpush.bf16.msra.mxu0 %v1500
  %1778 = vmatpush.bf16.msra.mxu0 %v1484
  %1779 = vmatmul.bf16.gmra.mxu0 %v1600
  %v1780 = vpop.f32.mrf.mxu0
  %v1781 = vadd.f32 0.0, %v1780
  %v1782 = vpop.f32.mrf.mxu0
  %1783 = vdwg.mxu0
  %1784 = vmatpush.bf16.msra.mxu0 0
  %1785 = vmatpush.bf16.msra.mxu0 0
  %1786 = vmatpush.bf16.msra.mxu0 0
  %1787 = vmatpush.bf16.msra.mxu0 0
  %1788 = vmatpush.bf16.msra.mxu0 %v1533
  %1789 = vmatpush.bf16.msra.mxu0 %v1517
  %1790 = vmatpush.bf16.msra.mxu0 %v1501
  %1791 = vmatpush.bf16.msra.mxu0 %v1485
  %1792 = vmatmul.bf16.gmra.mxu0 %v1600
  %v1793 = vpop.f32.mrf.mxu0
  %v1794 = vadd.f32 0.0, %v1793
  %v1795 = vpop.f32.mrf.mxu0
  %1796 = vdwg.mxu0
  %1797 = vmatpush.bf16.msra.mxu0 0
  %1798 = vmatpush.bf16.msra.mxu0 0
  %1799 = vmatpush.bf16.msra.mxu0 0
  %1800 = vmatpush.bf16.msra.mxu0 0
  %1801 = vmatpush.bf16.msra.mxu0 %v1534
  %1802 = vmatpush.bf16.msra.mxu0 %v1518
  %1803 = vmatpush.bf16.msra.mxu0 %v1502
  %1804 = vmatpush.bf16.msra.mxu0 %v1486
  %1805 = vmatmul.bf16.gmra.mxu0 %v1600
  %v1806 = vpop.f32.mrf.mxu0
  %v1807 = vadd.f32 0.0, %v1806
  %v1808 = vpop.f32.mrf.mxu0
  %1809 = vdwg.mxu0
  %s1810 = scalar_lea.vmem %s0, 3
  %v1811 = vld [vmem:[%s1810] sm:$0x1]
  %s1812 = scalar_lea.vmem %s2, 1536
  %v1813 = vld [vmem:[%s1812] sm:$0xff]
  %v1814 = vld [vmem:[%s1812 + $0x8] sm:$0xff]
  %v1815 = vld [vmem:[%s1812 + $0x10] sm:$0xff]
  %v1816 = vld [vmem:[%s1812 + $0x18] sm:$0xff]
  %v1817 = vld [vmem:[%s1812 + $0x20] sm:$0xff]
  %v1818 = vld [vmem:[%s1812 + $0x28] sm:$0xff]
  %v1819 = vld [vmem:[%s1812 + $0x30] sm:$0xff]
  %v1820 = vld [vmem:[%s1812 + $0x38] sm:$0xff]
  %v1821 = vld [vmem:[%s1812 + $0x40] sm:$0xff]
  %v1822 = vld [vmem:[%s1812 + $0x48] sm:$0xff]
  %v1823 = vld [vmem:[%s1812 + $0x50] sm:$0xff]
  %v1824 = vld [vmem:[%s1812 + $0x58] sm:$0xff]
  %v1825 = vld [vmem:[%s1812 + $0x60] sm:$0xff]
  %v1826 = vld [vmem:[%s1812 + $0x68] sm:$0xff]
  %v1827 = vld [vmem:[%s1812 + $0x70] sm:$0xff]
  %v1828 = vld [vmem:[%s1812 + $0x78] sm:$0xff]
  %v1829 = vld [vmem:[%s1812 + $0x80] sm:$0xff]
  %v1830 = vld [vmem:[%s1812 + $0x88] sm:$0xff]
  %v1831 = vld [vmem:[%s1812 + $0x90] sm:$0xff]
  %v1832 = vld [vmem:[%s1812 + $0x98] sm:$0xff]
  %v1833 = vld [vmem:[%s1812 + $0xa0] sm:$0xff]
  %v1834 = vld [vmem:[%s1812 + $0xa8] sm:$0xff]
  %v1835 = vld [vmem:[%s1812 + $0xb0] sm:$0xff]
  %v1836 = vld [vmem:[%s1812 + $0xb8] sm:$0xff]
  %v1837 = vld [vmem:[%s1812 + $0xc0] sm:$0xff]
  %v1838 = vld [vmem:[%s1812 + $0xc8] sm:$0xff]
  %v1839 = vld [vmem:[%s1812 + $0xd0] sm:$0xff]
  %v1840 = vld [vmem:[%s1812 + $0xd8] sm:$0xff]
  %v1841 = vld [vmem:[%s1812 + $0xe0] sm:$0xff]
  %v1842 = vld [vmem:[%s1812 + $0xe8] sm:$0xff]
  %v1843 = vld [vmem:[%s1812 + $0xf0] sm:$0xff]
  %v1844 = vld [vmem:[%s1812 + $0xf8] sm:$0xff]
  %v1845 = vld [vmem:[%s1812 + $0x100] sm:$0xff]
  %v1846 = vld [vmem:[%s1812 + $0x108] sm:$0xff]
  %v1847 = vld [vmem:[%s1812 + $0x110] sm:$0xff]
  %v1848 = vld [vmem:[%s1812 + $0x118] sm:$0xff]
  %v1849 = vld [vmem:[%s1812 + $0x120] sm:$0xff]
  %v1850 = vld [vmem:[%s1812 + $0x128] sm:$0xff]
  %v1851 = vld [vmem:[%s1812 + $0x130] sm:$0xff]
  %v1852 = vld [vmem:[%s1812 + $0x138] sm:$0xff]
  %v1853 = vld [vmem:[%s1812 + $0x140] sm:$0xff]
  %v1854 = vld [vmem:[%s1812 + $0x148] sm:$0xff]
  %v1855 = vld [vmem:[%s1812 + $0x150] sm:$0xff]
  %v1856 = vld [vmem:[%s1812 + $0x158] sm:$0xff]
  %v1857 = vld [vmem:[%s1812 + $0x160] sm:$0xff]
  %v1858 = vld [vmem:[%s1812 + $0x168] sm:$0xff]
  %v1859 = vld [vmem:[%s1812 + $0x170] sm:$0xff]
  %v1860 = vld [vmem:[%s1812 + $0x178] sm:$0xff]
  %v1861 = vld [vmem:[%s1812 + $0x180] sm:$0xff]
  %v1862 = vld [vmem:[%s1812 + $0x188] sm:$0xff]
  %v1863 = vld [vmem:[%s1812 + $0x190] sm:$0xff]
  %v1864 = vld [vmem:[%s1812 + $0x198] sm:$0xff]
  %v1865 = vld [vmem:[%s1812 + $0x1a0] sm:$0xff]
  %v1866 = vld [vmem:[%s1812 + $0x1a8] sm:$0xff]
  %v1867 = vld [vmem:[%s1812 + $0x1b0] sm:$0xff]
  %v1868 = vld [vmem:[%s1812 + $0x1b8] sm:$0xff]
  %v1869 = vld [vmem:[%s1812 + $0x1c0] sm:$0xff]
  %v1870 = vld [vmem:[%s1812 + $0x1c8] sm:$0xff]
  %v1871 = vld [vmem:[%s1812 + $0x1d0] sm:$0xff]
  %v1872 = vld [vmem:[%s1812 + $0x1d8] sm:$0xff]
  %v1873 = vld [vmem:[%s1812 + $0x1e0] sm:$0xff]
  %v1874 = vld [vmem:[%s1812 + $0x1e8] sm:$0xff]
  %v1875 = vld [vmem:[%s1812 + $0x1f0] sm:$0xff]
  %v1876 = vld [vmem:[%s1812 + $0x1f8] sm:$0xff]
  %v1941 = vunpack.c.l.b16 %v1813
  %v1942 = vunpack.c.h.b16 %v1813
  %v1943 = vunpack.c.l.b16 %v1814
  %v1944 = vunpack.c.h.b16 %v1814
  %v1945 = vunpack.c.l.b16 %v1815
  %v1946 = vunpack.c.h.b16 %v1815
  %v1947 = vunpack.c.l.b16 %v1816
  %v1948 = vunpack.c.h.b16 %v1816
  %v1949 = vunpack.c.l.b16 %v1817
  %v1950 = vunpack.c.h.b16 %v1817
  %v1951 = vunpack.c.l.b16 %v1818
  %v1952 = vunpack.c.h.b16 %v1818
  %v1953 = vunpack.c.l.b16 %v1819
  %v1954 = vunpack.c.h.b16 %v1819
  %v1955 = vunpack.c.l.b16 %v1820
  %v1956 = vunpack.c.h.b16 %v1820
  %v1957 = vunpack.c.l.b16 %v1821
  %v1958 = vunpack.c.h.b16 %v1821
  %v1959 = vunpack.c.l.b16 %v1822
  %v1960 = vunpack.c.h.b16 %v1822
  %v1961 = vunpack.c.l.b16 %v1823
  %v1962 = vunpack.c.h.b16 %v1823
  %v1963 = vunpack.c.l.b16 %v1824
  %v1964 = vunpack.c.h.b16 %v1824
  %v1965 = vunpack.c.l.b16 %v1825
  %v1966 = vunpack.c.h.b16 %v1825
  %v1967 = vunpack.c.l.b16 %v1826
  %v1968 = vunpack.c.h.b16 %v1826
  %v1969 = vunpack.c.l.b16 %v1827
  %v1970 = vunpack.c.h.b16 %v1827
  %v1971 = vunpack.c.l.b16 %v1828
  %v1972 = vunpack.c.h.b16 %v1828
  %v1973 = vunpack.c.l.b16 %v1829
  %v1974 = vunpack.c.h.b16 %v1829
  %v1975 = vunpack.c.l.b16 %v1830
  %v1976 = vunpack.c.h.b16 %v1830
  %v1977 = vunpack.c.l.b16 %v1831
  %v1978 = vunpack.c.h.b16 %v1831
  %v1979 = vunpack.c.l.b16 %v1832
  %v1980 = vunpack.c.h.b16 %v1832
  %v1981 = vunpack.c.l.b16 %v1833
  %v1982 = vunpack.c.h.b16 %v1833
  %v1983 = vunpack.c.l.b16 %v1834
  %v1984 = vunpack.c.h.b16 %v1834
  %v1985 = vunpack.c.l.b16 %v1835
  %v1986 = vunpack.c.h.b16 %v1835
  %v1987 = vunpack.c.l.b16 %v1836
  %v1988 = vunpack.c.h.b16 %v1836
  %v1989 = vunpack.c.l.b16 %v1837
  %v1990 = vunpack.c.h.b16 %v1837
  %v1991 = vunpack.c.l.b16 %v1838
  %v1992 = vunpack.c.h.b16 %v1838
  %v1993 = vunpack.c.l.b16 %v1839
  %v1994 = vunpack.c.h.b16 %v1839
  %v1995 = vunpack.c.l.b16 %v1840
  %v1996 = vunpack.c.h.b16 %v1840
  %v1997 = vunpack.c.l.b16 %v1841
  %v1998 = vunpack.c.h.b16 %v1841
  %v1999 = vunpack.c.l.b16 %v1842
  %v2000 = vunpack.c.h.b16 %v1842
  %v2001 = vunpack.c.l.b16 %v1843
  %v2002 = vunpack.c.h.b16 %v1843
  %v2003 = vunpack.c.l.b16 %v1844
  %v2004 = vunpack.c.h.b16 %v1844
  %v2005 = vunpack.c.l.b16 %v1845
  %v2006 = vunpack.c.h.b16 %v1845
  %v2007 = vunpack.c.l.b16 %v1846
  %v2008 = vunpack.c.h.b16 %v1846
  %v2009 = vunpack.c.l.b16 %v1847
  %v2010 = vunpack.c.h.b16 %v1847
  %v2011 = vunpack.c.l.b16 %v1848
  %v2012 = vunpack.c.h.b16 %v1848
  %v2013 = vunpack.c.l.b16 %v1849
  %v2014 = vunpack.c.h.b16 %v1849
  %v2015 = vunpack.c.l.b16 %v1850
  %v2016 = vunpack.c.h.b16 %v1850
  %v2017 = vunpack.c.l.b16 %v1851
  %v2018 = vunpack.c.h.b16 %v1851
  %v2019 = vunpack.c.l.b16 %v1852
  %v2020 = vunpack.c.h.b16 %v1852
  %v2021 = vunpack.c.l.b16 %v1853
  %v2022 = vunpack.c.h.b16 %v1853
  %v2023 = vunpack.c.l.b16 %v1854
  %v2024 = vunpack.c.h.b16 %v1854
  %v2025 = vunpack.c.l.b16 %v1855
  %v2026 = vunpack.c.h.b16 %v1855
  %v2027 = vunpack.c.l.b16 %v1856
  %v2028 = vunpack.c.h.b16 %v1856
  %v2029 = vunpack.c.l.b16 %v1857
  %v2030 = vunpack.c.h.b16 %v1857
  %v2031 = vunpack.c.l.b16 %v1858
  %v2032 = vunpack.c.h.b16 %v1858
  %v2033 = vunpack.c.l.b16 %v1859
  %v2034 = vunpack.c.h.b16 %v1859
  %v2035 = vunpack.c.l.b16 %v1860
  %v2036 = vunpack.c.h.b16 %v1860
  %v2037 = vunpack.c.l.b16 %v1861
  %v2038 = vunpack.c.h.b16 %v1861
  %v2039 = vunpack.c.l.b16 %v1862
  %v2040 = vunpack.c.h.b16 %v1862
  %v2041 = vunpack.c.l.b16 %v1863
  %v2042 = vunpack.c.h.b16 %v1863
  %v2043 = vunpack.c.l.b16 %v1864
  %v2044 = vunpack.c.h.b16 %v1864
  %v2045 = vunpack.c.l.b16 %v1865
  %v2046 = vunpack.c.h.b16 %v1865
  %v2047 = vunpack.c.l.b16 %v1866
  %v2048 = vunpack.c.h.b16 %v1866
  %v2049 = vunpack.c.l.b16 %v1867
  %v2050 = vunpack.c.h.b16 %v1867
  %v2051 = vunpack.c.l.b16 %v1868
  %v2052 = vunpack.c.h.b16 %v1868
  %v2053 = vunpack.c.l.b16 %v1869
  %v2054 = vunpack.c.h.b16 %v1869
  %v2055 = vunpack.c.l.b16 %v1870
  %v2056 = vunpack.c.h.b16 %v1870
  %v2057 = vunpack.c.l.b16 %v1871
  %v2058 = vunpack.c.h.b16 %v1871
  %v2059 = vunpack.c.l.b16 %v1872
  %v2060 = vunpack.c.h.b16 %v1872
  %v2061 = vunpack.c.l.b16 %v1873
  %v2062 = vunpack.c.h.b16 %v1873
  %v2063 = vunpack.c.l.b16 %v1874
  %v2064 = vunpack.c.h.b16 %v1874
  %v2065 = vunpack.c.l.b16 %v1875
  %v2066 = vunpack.c.h.b16 %v1875
  %v2067 = vunpack.c.l.b16 %v1876
  %v2068 = vunpack.c.h.b16 %v1876
  %v2069 = vpack.c.b16 %v1957, %v1941
  %v2070 = vpack.c.b16 %v1958, %v1942
  %v2071 = vpack.c.b16 %v1959, %v1943
  %v2072 = vpack.c.b16 %v1960, %v1944
  %v2073 = vpack.c.b16 %v1961, %v1945
  %v2074 = vpack.c.b16 %v1962, %v1946
  %v2075 = vpack.c.b16 %v1963, %v1947
  %v2076 = vpack.c.b16 %v1964, %v1948
  %v2077 = vpack.c.b16 %v1965, %v1949
  %v2078 = vpack.c.b16 %v1966, %v1950
  %v2079 = vpack.c.b16 %v1967, %v1951
  %v2080 = vpack.c.b16 %v1968, %v1952
  %v2081 = vpack.c.b16 %v1969, %v1953
  %v2082 = vpack.c.b16 %v1970, %v1954
  %v2083 = vpack.c.b16 %v1971, %v1955
  %v2084 = vpack.c.b16 %v1972, %v1956
  %v2085 = vpack.c.b16 %v1989, %v1973
  %v2086 = vpack.c.b16 %v1990, %v1974
  %v2087 = vpack.c.b16 %v1991, %v1975
  %v2088 = vpack.c.b16 %v1992, %v1976
  %v2089 = vpack.c.b16 %v1993, %v1977
  %v2090 = vpack.c.b16 %v1994, %v1978
  %v2091 = vpack.c.b16 %v1995, %v1979
  %v2092 = vpack.c.b16 %v1996, %v1980
  %v2093 = vpack.c.b16 %v1997, %v1981
  %v2094 = vpack.c.b16 %v1998, %v1982
  %v2095 = vpack.c.b16 %v1999, %v1983
  %v2096 = vpack.c.b16 %v2000, %v1984
  %v2097 = vpack.c.b16 %v2001, %v1985
  %v2098 = vpack.c.b16 %v2002, %v1986
  %v2099 = vpack.c.b16 %v2003, %v1987
  %v2100 = vpack.c.b16 %v2004, %v1988
  %v2101 = vpack.c.b16 %v2021, %v2005
  %v2102 = vpack.c.b16 %v2022, %v2006
  %v2103 = vpack.c.b16 %v2023, %v2007
  %v2104 = vpack.c.b16 %v2024, %v2008
  %v2105 = vpack.c.b16 %v2025, %v2009
  %v2106 = vpack.c.b16 %v2026, %v2010
  %v2107 = vpack.c.b16 %v2027, %v2011
  %v2108 = vpack.c.b16 %v2028, %v2012
  %v2109 = vpack.c.b16 %v2029, %v2013
  %v2110 = vpack.c.b16 %v2030, %v2014
  %v2111 = vpack.c.b16 %v2031, %v2015
  %v2112 = vpack.c.b16 %v2032, %v2016
  %v2113 = vpack.c.b16 %v2033, %v2017
  %v2114 = vpack.c.b16 %v2034, %v2018
  %v2115 = vpack.c.b16 %v2035, %v2019
  %v2116 = vpack.c.b16 %v2036, %v2020
  %v2117 = vpack.c.b16 %v2053, %v2037
  %v2118 = vpack.c.b16 %v2054, %v2038
  %v2119 = vpack.c.b16 %v2055, %v2039
  %v2120 = vpack.c.b16 %v2056, %v2040
  %v2121 = vpack.c.b16 %v2057, %v2041
  %v2122 = vpack.c.b16 %v2058, %v2042
  %v2123 = vpack.c.b16 %v2059, %v2043
  %v2124 = vpack.c.b16 %v2060, %v2044
  %v2125 = vpack.c.b16 %v2061, %v2045
  %v2126 = vpack.c.b16 %v2062, %v2046
  %v2127 = vpack.c.b16 %v2063, %v2047
  %v2128 = vpack.c.b16 %v2064, %v2048
  %v2129 = vpack.c.b16 %v2065, %v2049
  %v2130 = vpack.c.b16 %v2066, %v2050
  %v2131 = vpack.c.b16 %v2067, %v2051
  %v2132 = vpack.c.b16 %v2068, %v2052
  %v2198 = vsel %vm402, %v1811, 0
  %2200 = vmatpush.bf16.msra.mxu0 0
  %2201 = vmatpush.bf16.msra.mxu0 0
  %2202 = vmatpush.bf16.msra.mxu0 0
  %2203 = vmatpush.bf16.msra.mxu0 0
  %2204 = vmatpush.bf16.msra.mxu0 %v2117
  %2205 = vmatpush.bf16.msra.mxu0 %v2101
  %2206 = vmatpush.bf16.msra.mxu0 %v2085
  %2207 = vmatpush.bf16.msra.mxu0 %v2069
  %2208 = vmatmul.bf16.gmra.mxu0 %v2198
  %v2209 = vpop.f32.mrf.mxu0
  %v2210 = vadd.f32 0.0, %v2209
  %v2211 = vpop.f32.mrf.mxu0
  %2212 = vdwg.mxu0
  %2213 = vmatpush.bf16.msra.mxu0 0
  %2214 = vmatpush.bf16.msra.mxu0 0
  %2215 = vmatpush.bf16.msra.mxu0 0
  %2216 = vmatpush.bf16.msra.mxu0 0
  %2217 = vmatpush.bf16.msra.mxu0 %v2118
  %2218 = vmatpush.bf16.msra.mxu0 %v2102
  %2219 = vmatpush.bf16.msra.mxu0 %v2086
  %2220 = vmatpush.bf16.msra.mxu0 %v2070
  %2221 = vmatmul.bf16.gmra.mxu0 %v2198
  %v2222 = vpop.f32.mrf.mxu0
  %v2223 = vadd.f32 0.0, %v2222
  %v2224 = vpop.f32.mrf.mxu0
  %2225 = vdwg.mxu0
  %2226 = vmatpush.bf16.msra.mxu0 0
  %2227 = vmatpush.bf16.msra.mxu0 0
  %2228 = vmatpush.bf16.msra.mxu0 0
  %2229 = vmatpush.bf16.msra.mxu0 0
  %2230 = vmatpush.bf16.msra.mxu0 %v2119
  %2231 = vmatpush.bf16.msra.mxu0 %v2103
  %2232 = vmatpush.bf16.msra.mxu0 %v2087
  %2233 = vmatpush.bf16.msra.mxu0 %v2071
  %2234 = vmatmul.bf16.gmra.mxu0 %v2198
  %v2235 = vpop.f32.mrf.mxu0
  %v2236 = vadd.f32 0.0, %v2235
  %v2237 = vpop.f32.mrf.mxu0
  %2238 = vdwg.mxu0
  %2239 = vmatpush.bf16.msra.mxu0 0
  %2240 = vmatpush.bf16.msra.mxu0 0
  %2241 = vmatpush.bf16.msra.mxu0 0
  %2242 = vmatpush.bf16.msra.mxu0 0
  %2243 = vmatpush.bf16.msra.mxu0 %v2120
  %2244 = vmatpush.bf16.msra.mxu0 %v2104
  %2245 = vmatpush.bf16.msra.mxu0 %v2088
  %2246 = vmatpush.bf16.msra.mxu0 %v2072
  %2247 = vmatmul.bf16.gmra.mxu0 %v2198
  %v2248 = vpop.f32.mrf.mxu0
  %v2249 = vadd.f32 0.0, %v2248
  %v2250 = vpop.f32.mrf.mxu0
  %2251 = vdwg.mxu0
  %2252 = vmatpush.bf16.msra.mxu0 0
  %2253 = vmatpush.bf16.msra.mxu0 0
  %2254 = vmatpush.bf16.msra.mxu0 0
  %2255 = vmatpush.bf16.msra.mxu0 0
  %2256 = vmatpush.bf16.msra.mxu0 %v2121
  %2257 = vmatpush.bf16.msra.mxu0 %v2105
  %2258 = vmatpush.bf16.msra.mxu0 %v2089
  %2259 = vmatpush.bf16.msra.mxu0 %v2073
  %2260 = vmatmul.bf16.gmra.mxu0 %v2198
  %v2261 = vpop.f32.mrf.mxu0
  %v2262 = vadd.f32 0.0, %v2261
  %v2263 = vpop.f32.mrf.mxu0
  %2264 = vdwg.mxu0
  %2265 = vmatpush.bf16.msra.mxu0 0
  %2266 = vmatpush.bf16.msra.mxu0 0
  %2267 = vmatpush.bf16.msra.mxu0 0
  %2268 = vmatpush.bf16.msra.mxu0 0
  %2269 = vmatpush.bf16.msra.mxu0 %v2122
  %2270 = vmatpush.bf16.msra.mxu0 %v2106
  %2271 = vmatpush.bf16.msra.mxu0 %v2090
  %2272 = vmatpush.bf16.msra.mxu0 %v2074
  %2273 = vmatmul.bf16.gmra.mxu0 %v2198
  %v2274 = vpop.f32.mrf.mxu0
  %v2275 = vadd.f32 0.0, %v2274
  %v2276 = vpop.f32.mrf.mxu0
  %2277 = vdwg.mxu0
  %2278 = vmatpush.bf16.msra.mxu0 0
  %2279 = vmatpush.bf16.msra.mxu0 0
  %2280 = vmatpush.bf16.msra.mxu0 0
  %2281 = vmatpush.bf16.msra.mxu0 0
  %2282 = vmatpush.bf16.msra.mxu0 %v2123
  %2283 = vmatpush.bf16.msra.mxu0 %v2107
  %2284 = vmatpush.bf16.msra.mxu0 %v2091
  %2285 = vmatpush.bf16.msra.mxu0 %v2075
  %2286 = vmatmul.bf16.gmra.mxu0 %v2198
  %v2287 = vpop.f32.mrf.mxu0
  %v2288 = vadd.f32 0.0, %v2287
  %v2289 = vpop.f32.mrf.mxu0
  %2290 = vdwg.mxu0
  %2291 = vmatpush.bf16.msra.mxu0 0
  %2292 = vmatpush.bf16.msra.mxu0 0
  %2293 = vmatpush.bf16.msra.mxu0 0
  %2294 = vmatpush.bf16.msra.mxu0 0
  %2295 = vmatpush.bf16.msra.mxu0 %v2124
  %2296 = vmatpush.bf16.msra.mxu0 %v2108
  %2297 = vmatpush.bf16.msra.mxu0 %v2092
  %2298 = vmatpush.bf16.msra.mxu0 %v2076
  %2299 = vmatmul.bf16.gmra.mxu0 %v2198
  %v2300 = vpop.f32.mrf.mxu0
  %v2301 = vadd.f32 0.0, %v2300
  %v2302 = vpop.f32.mrf.mxu0
  %2303 = vdwg.mxu0
  %2304 = vmatpush.bf16.msra.mxu0 0
  %2305 = vmatpush.bf16.msra.mxu0 0
  %2306 = vmatpush.bf16.msra.mxu0 0
  %2307 = vmatpush.bf16.msra.mxu0 0
  %2308 = vmatpush.bf16.msra.mxu0 %v2125
  %2309 = vmatpush.bf16.msra.mxu0 %v2109
  %2310 = vmatpush.bf16.msra.mxu0 %v2093
  %2311 = vmatpush.bf16.msra.mxu0 %v2077
  %2312 = vmatmul.bf16.gmra.mxu0 %v2198
  %v2313 = vpop.f32.mrf.mxu0
  %v2314 = vadd.f32 0.0, %v2313
  %v2315 = vpop.f32.mrf.mxu0
  %2316 = vdwg.mxu0
  %2317 = vmatpush.bf16.msra.mxu0 0
  %2318 = vmatpush.bf16.msra.mxu0 0
  %2319 = vmatpush.bf16.msra.mxu0 0
  %2320 = vmatpush.bf16.msra.mxu0 0
  %2321 = vmatpush.bf16.msra.mxu0 %v2126
  %2322 = vmatpush.bf16.msra.mxu0 %v2110
  %2323 = vmatpush.bf16.msra.mxu0 %v2094
  %2324 = vmatpush.bf16.msra.mxu0 %v2078
  %2325 = vmatmul.bf16.gmra.mxu0 %v2198
  %v2326 = vpop.f32.mrf.mxu0
  %v2327 = vadd.f32 0.0, %v2326
  %v2328 = vpop.f32.mrf.mxu0
  %2329 = vdwg.mxu0
  %2330 = vmatpush.bf16.msra.mxu0 0
  %2331 = vmatpush.bf16.msra.mxu0 0
  %2332 = vmatpush.bf16.msra.mxu0 0
  %2333 = vmatpush.bf16.msra.mxu0 0
  %2334 = vmatpush.bf16.msra.mxu0 %v2127
  %2335 = vmatpush.bf16.msra.mxu0 %v2111
  %2336 = vmatpush.bf16.msra.mxu0 %v2095
  %2337 = vmatpush.bf16.msra.mxu0 %v2079
  %2338 = vmatmul.bf16.gmra.mxu0 %v2198
  %v2339 = vpop.f32.mrf.mxu0
  %v2340 = vadd.f32 0.0, %v2339
  %v2341 = vpop.f32.mrf.mxu0
  %2342 = vdwg.mxu0
  %2343 = vmatpush.bf16.msra.mxu0 0
  %2344 = vmatpush.bf16.msra.mxu0 0
  %2345 = vmatpush.bf16.msra.mxu0 0
  %2346 = vmatpush.bf16.msra.mxu0 0
  %2347 = vmatpush.bf16.msra.mxu0 %v2128
  %2348 = vmatpush.bf16.msra.mxu0 %v2112
  %2349 = vmatpush.bf16.msra.mxu0 %v2096
  %2350 = vmatpush.bf16.msra.mxu0 %v2080
  %2351 = vmatmul.bf16.gmra.mxu0 %v2198
  %v2352 = vpop.f32.mrf.mxu0
  %v2353 = vadd.f32 0.0, %v2352
  %v2354 = vpop.f32.mrf.mxu0
  %2355 = vdwg.mxu0
  %2356 = vmatpush.bf16.msra.mxu0 0
  %2357 = vmatpush.bf16.msra.mxu0 0
  %2358 = vmatpush.bf16.msra.mxu0 0
  %2359 = vmatpush.bf16.msra.mxu0 0
  %2360 = vmatpush.bf16.msra.mxu0 %v2129
  %2361 = vmatpush.bf16.msra.mxu0 %v2113
  %2362 = vmatpush.bf16.msra.mxu0 %v2097
  %2363 = vmatpush.bf16.msra.mxu0 %v2081
  %2364 = vmatmul.bf16.gmra.mxu0 %v2198
  %v2365 = vpop.f32.mrf.mxu0
  %v2366 = vadd.f32 0.0, %v2365
  %v2367 = vpop.f32.mrf.mxu0
  %2368 = vdwg.mxu0
  %2369 = vmatpush.bf16.msra.mxu0 0
  %2370 = vmatpush.bf16.msra.mxu0 0
  %2371 = vmatpush.bf16.msra.mxu0 0
  %2372 = vmatpush.bf16.msra.mxu0 0
  %2373 = vmatpush.bf16.msra.mxu0 %v2130
  %2374 = vmatpush.bf16.msra.mxu0 %v2114
  %2375 = vmatpush.bf16.msra.mxu0 %v2098
  %2376 = vmatpush.bf16.msra.mxu0 %v2082
  %2377 = vmatmul.bf16.gmra.mxu0 %v2198
  %v2378 = vpop.f32.mrf.mxu0
  %v2379 = vadd.f32 0.0, %v2378
  %v2380 = vpop.f32.mrf.mxu0
  %2381 = vdwg.mxu0
  %2382 = vmatpush.bf16.msra.mxu0 0
  %2383 = vmatpush.bf16.msra.mxu0 0
  %2384 = vmatpush.bf16.msra.mxu0 0
  %2385 = vmatpush.bf16.msra.mxu0 0
  %2386 = vmatpush.bf16.msra.mxu0 %v2131
  %2387 = vmatpush.bf16.msra.mxu0 %v2115
  %2388 = vmatpush.bf16.msra.mxu0 %v2099
  %2389 = vmatpush.bf16.msra.mxu0 %v2083
  %2390 = vmatmul.bf16.gmra.mxu0 %v2198
  %v2391 = vpop.f32.mrf.mxu0
  %v2392 = vadd.f32 0.0, %v2391
  %v2393 = vpop.f32.mrf.mxu0
  %2394 = vdwg.mxu0
  %2395 = vmatpush.bf16.msra.mxu0 0
  %2396 = vmatpush.bf16.msra.mxu0 0
  %2397 = vmatpush.bf16.msra.mxu0 0
  %2398 = vmatpush.bf16.msra.mxu0 0
  %2399 = vmatpush.bf16.msra.mxu0 %v2132
  %2400 = vmatpush.bf16.msra.mxu0 %v2116
  %2401 = vmatpush.bf16.msra.mxu0 %v2100
  %2402 = vmatpush.bf16.msra.mxu0 %v2084
  %2403 = vmatmul.bf16.gmra.mxu0 %v2198
  %v2404 = vpop.f32.mrf.mxu0
  %v2405 = vadd.f32 0.0, %v2404
  %v2406 = vpop.f32.mrf.mxu0
  %2407 = vdwg.mxu0
  %v2424 = vrot.slane %v1014, 7
  %v2425 = vrot.slane %v1027, 7
  %v2426 = vrot.slane %v1040, 7
  %v2427 = vrot.slane %v1053, 7
  %v2428 = vrot.slane %v1066, 7
  %v2429 = vrot.slane %v1079, 7
  %v2430 = vrot.slane %v1092, 7
  %v2431 = vrot.slane %v1105, 7
  %v2432 = vrot.slane %v1118, 7
  %v2433 = vrot.slane %v1131, 7
  %v2434 = vrot.slane %v1144, 7
  %v2435 = vrot.slane %v1157, 7
  %v2436 = vrot.slane %v1170, 7
  %v2437 = vrot.slane %v1183, 7
  %v2438 = vrot.slane %v1196, 7
  %v2439 = vrot.slane %v1209, 7
  %v2472 = vrot.slane %v1612, 6
  %v2473 = vrot.slane %v1625, 6
  %v2474 = vrot.slane %v1638, 6
  %v2475 = vrot.slane %v1651, 6
  %v2476 = vrot.slane %v1664, 6
  %v2477 = vrot.slane %v1677, 6
  %v2478 = vrot.slane %v1690, 6
  %v2479 = vrot.slane %v1703, 6
  %v2480 = vrot.slane %v1716, 6
  %v2481 = vrot.slane %v1729, 6
  %v2482 = vrot.slane %v1742, 6
  %v2483 = vrot.slane %v1755, 6
  %v2484 = vrot.slane %v1768, 6
  %v2485 = vrot.slane %v1781, 6
  %v2486 = vrot.slane %v1794, 6
  %v2487 = vrot.slane %v1807, 6
  %v2520 = vrot.slane %v2210, 5
  %v2521 = vrot.slane %v2223, 5
  %v2522 = vrot.slane %v2236, 5
  %v2523 = vrot.slane %v2249, 5
  %v2524 = vrot.slane %v2262, 5
  %v2525 = vrot.slane %v2275, 5
  %v2526 = vrot.slane %v2288, 5
  %v2527 = vrot.slane %v2301, 5
  %v2528 = vrot.slane %v2314, 5
  %v2529 = vrot.slane %v2327, 5
  %v2530 = vrot.slane %v2340, 5
  %v2531 = vrot.slane %v2353, 5
  %v2532 = vrot.slane %v2366, 5
  %v2533 = vrot.slane %v2379, 5
  %v2534 = vrot.slane %v2392, 5
  %v2535 = vrot.slane %v2405, 5
  %vm2552 = vcmask 1040384
  %v2553 = vsel %vm2552, %v416, %v2424
  %v2554 = vsel %vm2552, %v429, %v2425
  %v2555 = vsel %vm2552, %v442, %v2426
  %v2556 = vsel %vm2552, %v455, %v2427
  %v2557 = vsel %vm2552, %v468, %v2428
  %v2558 = vsel %vm2552, %v481, %v2429
  %v2559 = vsel %vm2552, %v494, %v2430
  %v2560 = vsel %vm2552, %v507, %v2431
  %v2561 = vsel %vm2552, %v520, %v2432
  %v2562 = vsel %vm2552, %v533, %v2433
  %v2563 = vsel %vm2552, %v546, %v2434
  %v2564 = vsel %vm2552, %v559, %v2435
  %v2565 = vsel %vm2552, %v572, %v2436
  %v2566 = vsel %vm2552, %v585, %v2437
  %v2567 = vsel %vm2552, %v598, %v2438
  %v2568 = vsel %vm2552, %v611, %v2439
  %vm2569 = vcmask 1041408
  %v2570 = vsel %vm2569, %v2553, %v2472
  %v2571 = vsel %vm2569, %v2554, %v2473
  %v2572 = vsel %vm2569, %v2555, %v2474
  %v2573 = vsel %vm2569, %v2556, %v2475
  %v2574 = vsel %vm2569, %v2557, %v2476
  %v2575 = vsel %vm2569, %v2558, %v2477
  %v2576 = vsel %vm2569, %v2559, %v2478
  %v2577 = vsel %vm2569, %v2560, %v2479
  %v2578 = vsel %vm2569, %v2561, %v2480
  %v2579 = vsel %vm2569, %v2562, %v2481
  %v2580 = vsel %vm2569, %v2563, %v2482
  %v2581 = vsel %vm2569, %v2564, %v2483
  %v2582 = vsel %vm2569, %v2565, %v2484
  %v2583 = vsel %vm2569, %v2566, %v2485
  %v2584 = vsel %vm2569, %v2567, %v2486
  %v2585 = vsel %vm2569, %v2568, %v2487
  %vm2586 = vcmask 1042432
  %v2587 = vsel %vm2586, %v2570, %v2520
  %v2588 = vsel %vm2586, %v2571, %v2521
  %v2589 = vsel %vm2586, %v2572, %v2522
  %v2590 = vsel %vm2586, %v2573, %v2523
  %v2591 = vsel %vm2586, %v2574, %v2524
  %v2592 = vsel %vm2586, %v2575, %v2525
  %v2593 = vsel %vm2586, %v2576, %v2526
  %v2594 = vsel %vm2586, %v2577, %v2527
  %v2595 = vsel %vm2586, %v2578, %v2528
  %v2596 = vsel %vm2586, %v2579, %v2529
  %v2597 = vsel %vm2586, %v2580, %v2530
  %v2598 = vsel %vm2586, %v2581, %v2531
  %v2599 = vsel %vm2586, %v2582, %v2532
  %v2600 = vsel %vm2586, %v2583, %v2533
  %v2601 = vsel %vm2586, %v2584, %v2534
  %v2602 = vsel %vm2586, %v2585, %v2535
  %v2603 = vstv %s16
  %v2604 = vadd.f32 %v2587, %v2603
  %v2605 = vadd.f32 %v2588, %v2603
  %v2606 = vadd.f32 %v2589, %v2603
  %v2607 = vadd.f32 %v2590, %v2603
  %v2608 = vadd.f32 %v2591, %v2603
  %v2609 = vadd.f32 %v2592, %v2603
  %v2610 = vadd.f32 %v2593, %v2603
  %v2611 = vadd.f32 %v2594, %v2603
  %v2612 = vadd.f32 %v2595, %v2603
  %v2613 = vadd.f32 %v2596, %v2603
  %v2614 = vadd.f32 %v2597, %v2603
  %v2615 = vadd.f32 %v2598, %v2603
  %v2616 = vadd.f32 %v2599, %v2603
  %v2617 = vadd.f32 %v2600, %v2603
  %v2618 = vadd.f32 %v2601, %v2603
  %v2619 = vadd.f32 %v2602, %v2603
  %v2620 = vtanh.pop %v2604
  %v2621 = vtanh.pop %v2605
  %v2622 = vtanh.pop %v2606
  %v2623 = vtanh.pop %v2607
  %v2624 = vtanh.pop %v2608
  %v2625 = vtanh.pop %v2609
  %v2626 = vtanh.pop %v2610
  %v2627 = vtanh.pop %v2611
  %v2628 = vtanh.pop %v2612
  %v2629 = vtanh.pop %v2613
  %v2630 = vtanh.pop %v2614
  %v2631 = vtanh.pop %v2615
  %v2632 = vtanh.pop %v2616
  %v2633 = vtanh.pop %v2617
  %v2634 = vtanh.pop %v2618
  %v2635 = vtanh.pop %v2619
  %v2636 = vpack.c.bf16 %v2621, %v2620
  %v2637 = vpack.c.bf16 %v2623, %v2622
  %v2638 = vpack.c.bf16 %v2625, %v2624
  %v2639 = vpack.c.bf16 %v2627, %v2626
  %v2640 = vpack.c.bf16 %v2629, %v2628
  %v2641 = vpack.c.bf16 %v2631, %v2630
  %v2642 = vpack.c.bf16 %v2633, %v2632
  %v2643 = vpack.c.bf16 %v2635, %v2634
  %v2652 = vrot.slane %v2636, 2
  %v2653 = vrot.slane %v2637, 4
  %v2654 = vrot.slane %v2637, 6
  %v2655 = vrot.slane %v2638, 2
  %v2656 = vrot.slane %v2639, 4
  %v2657 = vrot.slane %v2639, 6
  %v2658 = vrot.slane %v2640, 2
  %v2659 = vrot.slane %v2641, 4
  %v2660 = vrot.slane %v2641, 6
  %v2661 = vrot.slane %v2642, 2
  %v2662 = vrot.slane %v2643, 4
  %v2663 = vrot.slane %v2643, 6
  %v2666 = vsel %vm2569, %v2636, %v2652
  %vm2667 = vcmask 1045508
  %v2670 = vsel %vm2667, %v2653, %v2654
  %vm2671 = vcmask 1043456
  %v2672 = vsel %vm2671, %v2666, %v2670
  %v2675 = vsel %vm2569, %v2638, %v2655
  %v2678 = vsel %vm2667, %v2656, %v2657
  %v2679 = vsel %vm2671, %v2675, %v2678
  %v2682 = vsel %vm2569, %v2640, %v2658
  %v2685 = vsel %vm2667, %v2659, %v2660
  %v2686 = vsel %vm2671, %v2682, %v2685
  %v2689 = vsel %vm2569, %v2642, %v2661
  %v2692 = vsel %vm2667, %v2662, %v2663
  %v2693 = vsel %vm2671, %v2689, %v2692
  %2698 = vst [vmem:[%s3] sm:$0xff] %v2672
  %2699 = vst [vmem:[%s3 + $0x8] sm:$0xff] %v2679
  %2700 = vst [vmem:[%s3 + $0x10] sm:$0xff] %v2686
  %2701 = vst [vmem:[%s3 + $0x18] sm:$0xff] %v2693
  // Predicated region
  $region14: #{generator_forward.9} parent=0 // pred_check
    _
  $region15: #{generator_forward.9} parent=0 // pred_check_branch
    %2703 = sbr.rel (0) target = $region17
  $region16: #{generator_forward.9} parent=0 // pred_region
    _
  $region17: #{generator_forward.9} parent=0 // pred_fallthru
    _
  // Predicated region
  $region18: #{generator_forward.9} parent=0 // pred_check
    _
  $region19: #{generator_forward.9} parent=0 // pred_check_branch
    %2705 = sbr.rel (0) target = $region21
  $region20: #{generator_forward.9} parent=0 // pred_region
    _
  $region21: #{generator_forward.9} parent=0 // pred_fallthru
    _

</llo_original>
